<compile_context>
chip_gen: v5e
topology: v5e:2x2
jax: 0.10.0
libtpu: 0.0.40
codegen_flags: <defaults>
</compile_context>

<pallas_src>
import functools

import jax
import jax.numpy as jnp
from jax.experimental import pallas as pl
from jax.experimental.pallas import tpu as pltpu

LANE = 128              # lane width / channel padding multiple
EPS = 1e-5              # BatchNorm2d default eps
LRELU_SLOPE = 0.1
GEMM_A_TILE_BYTES = 4 * 1024 * 1024   # target bf16 A-tile footprint
EW_TILE_BYTES = 2 * 1024 * 1024       # target bf16 tile footprint for affine kernel
GEMM_VMEM_LIMIT = 48 * 1024 * 1024    # < v7x 64 MiB physical, > v5e 16 MiB default
EW_VMEM_LIMIT = 32 * 1024 * 1024


def _round_up(x, m):
    return ((x + m - 1) // m) * m


def _gemm_tile_m(M, K):
    """Row tile for the GEMM: ~GEMM_A_TILE_BYTES of bf16 A, clamp [256, 2048]."""
    tm = (GEMM_A_TILE_BYTES // (2 * K)) // 256 * 256
    tm = max(256, min(2048, tm))
    if M <= tm:
        return M          # single full-extent block (always a legal block shape)
    return tm


def _ew_tile_m(M, C):
    """Row tile for the memory-bound affine kernel: ~EW_TILE_BYTES of bf16."""
    tm = (EW_TILE_BYTES // (2 * C)) // 256 * 256
    tm = max(512, min(8192, tm))
    if M <= tm:
        return M
    return tm


# --------------------------------------------------------------------------
# Pallas kernels
# --------------------------------------------------------------------------
def _gemm_stats_kernel(a_ref, w_ref, y_ref, s_ref, q_ref, *, m_true, tile_m,
                       need_mask):
    """bf16 GEMM (f32 acc) with per-tile per-channel sum / sum-sq partials."""
    y = jnp.dot(a_ref[...], w_ref[...], preferred_element_type=jnp.float32)
    y_ref[...] = y.astype(y_ref.dtype)

    if need_mask:
        # Ragged last tile: rows >= m_true hold undefined data; exclude them
        # from the batch-norm statistics (their output rows are dropped anyway).
        row = jax.lax.broadcasted_iota(jnp.int32, y.shape, 0)
        valid = (row + pl.program_id(0) * tile_m) < m_true
        ym = jnp.where(valid, y, 0.0)
    else:
        ym = y

    C = y.shape[-1]
    cs = jnp.sum(ym, axis=0, keepdims=True)        # (1, C)
    cq = jnp.sum(ym * ym, axis=0, keepdims=True)   # (1, C)
    # Per-tile partials stored as (1, 8, C) blocks (sublane-dense); the 8 rows are
    # identical; the JAX glue reads row 0 and reduces over tiles.
    s_ref[...] = jnp.broadcast_to(cs, (8, C))[None, :, :]
    q_ref[...] = jnp.broadcast_to(cq, (8, C))[None, :, :]


def gemm_stats(a, w):
    """a: (M, K) bf16 patches, w: (K, C_pad) bf16 weight.

    Returns (y bf16 (M, C_pad), per-tile sums (T, 8, C_pad) f32,
             per-tile sum-of-squares (T, 8, C_pad) f32).
    """
    M, K = a.shape
    C = w.shape[1]
    tm = _gemm_tile_m(M, K)
    grid_m = (M + tm - 1) // tm
    need_mask = (M % tm) != 0

    cost = pl.CostEstimate(
        flops=2 * M * K * C,
        transcendentals=0,
        bytes_accessed=a.size * 2 + w.size * 2 + M * C * 2 + 2 * grid_m * 8 * C * 4,
    )
    kernel = functools.partial(_gemm_stats_kernel, m_true=M, tile_m=tm,
                               need_mask=need_mask)
    return pl.pallas_call(
        kernel,
        out_shape=(
            jax.ShapeDtypeStruct((M, C), jnp.bfloat16),
            jax.ShapeDtypeStruct((grid_m, 8, C), jnp.float32),
            jax.ShapeDtypeStruct((grid_m, 8, C), jnp.float32),
        ),
        grid_spec=pltpu.PrefetchScalarGridSpec(
            num_scalar_prefetch=0,
            grid=(grid_m,),
            in_specs=[
                pl.BlockSpec((tm, K), lambda i: (i, 0)),
                # Constant block index -> weight block stays VMEM-resident
                # across the whole M grid (no per-step re-DMA).
                pl.BlockSpec((K, C), lambda i: (0, 0)),
            ],
            out_specs=(
                pl.BlockSpec((tm, C), lambda i: (i, 0)),
                pl.BlockSpec((1, 8, C), lambda i: (i, 0, 0)),
                pl.BlockSpec((1, 8, C), lambda i: (i, 0, 0)),
            ),
        ),
        # Per-tile stat partials (no resident accumulator) -> M axis is parallel,
        # so both TensorCores are usable on v7x.
        compiler_params=pltpu.CompilerParams(
            dimension_semantics=("parallel",),
            vmem_limit_bytes=GEMM_VMEM_LIMIT,
        ),
        cost_estimate=cost,
    )(a, w)


def _affine_act_kernel(y_ref, s_ref, t_ref, o_ref, *, act):
    y = y_ref[...].astype(jnp.float32) * s_ref[...] + t_ref[...]
    if act == "lrelu":
        o = jnp.where(y >= 0, y, LRELU_SLOPE * y)
    elif act == "tanh":
        o = jnp.tanh(y)
    else:
        o = y
    o_ref[...] = o.astype(o_ref.dtype)


def affine_act(y, scale, shift, act):
    """y: (M, C) bf16; scale/shift: (1, C) f32. Returns (M, C) bf16."""
    M, C = y.shape
    tm = _ew_tile_m(M, C)
    grid_m = (M + tm - 1) // tm
    return pl.pallas_call(
        functools.partial(_affine_act_kernel, act=act),
        out_shape=jax.ShapeDtypeStruct((M, C), jnp.bfloat16),
        grid_spec=pltpu.PrefetchScalarGridSpec(
            num_scalar_prefetch=0,
            grid=(grid_m,),
            in_specs=[
                pl.BlockSpec((tm, C), lambda i: (i, 0)),
                pl.BlockSpec((1, C), lambda i: (0, 0)),
                pl.BlockSpec((1, C), lambda i: (0, 0)),
            ],
            out_specs=pl.BlockSpec((tm, C), lambda i: (i, 0)),
        ),
        compiler_params=pltpu.CompilerParams(
            dimension_semantics=("parallel",),
            vmem_limit_bytes=EW_VMEM_LIMIT,
        ),
    )(y, scale, shift)


# --------------------------------------------------------------------------
# JAX glue: im2col, weight reshaping, layer driver
# --------------------------------------------------------------------------
def extract_patches(x, k, stride, padding, dilation):
    """x: (N, H, W, C) NHWC bf16 -> ((N*Ho*Wo, k*k*C) patches, (N, Ho, Wo))."""
    N, H, W, C = x.shape
    xp = jnp.pad(x, ((0, 0), (padding, padding), (padding, padding), (0, 0)))
    Hp, Wp = H + 2 * padding, W + 2 * padding
    Ho = (Hp - dilation * (k - 1) - 1) // stride + 1
    Wo = (Wp - dilation * (k - 1) - 1) // stride + 1
    cols = []
    for ky in range(k):
        for kx in range(k):
            y0 = ky * dilation
            x0 = kx * dilation
            sl = xp[:, y0:y0 + (Ho - 1) * stride + 1:stride,
                       x0:x0 + (Wo - 1) * stride + 1:stride, :]
            cols.append(sl)
    patches = jnp.concatenate(cols, axis=-1)  # (N, Ho, Wo, k*k*C)
    # TODO(synk): the materialized im2col could be replaced by a k*k-tap grid axis
    # reading shifted NHWC windows directly inside the GEMM kernel (<=k^2 reads
    # with VMEM halo reuse instead of a k^2-blown-up HBM matrix).
    return patches.reshape(N * Ho * Wo, k * k * C), (N, Ho, Wo)


def conv_w_to_mat(w):
    """PyTorch Conv2d weight (Cout, Cin, k, k) -> (k*k*Cin, Cout) matching patch order."""
    cout, cin, k, _ = w.shape
    return jnp.transpose(w, (2, 3, 1, 0)).reshape(k * k * cin, cout)


def convT_w_to_mat(w):
    """PyTorch ConvTranspose2d weight (Cin, Cout, k, k) -> equivalent conv matrix."""
    wflip = w[:, :, ::-1, ::-1]
    wconv = jnp.transpose(wflip, (1, 0, 2, 3))  # (Cout, Cin, k, k)
    return conv_w_to_mat(wconv)


def conv_layer(x, p, *, k, cout, stride=1, padding=0, dilation=1, act="lrelu",
               norm=True, transpose=False):
    """One (Conv|ConvTranspose) + AdaptiveNorm2d + activation block. x is NHWC bf16."""
    if transpose:
        # ConvTranspose2d(k, stride=s, padding=pd) == Conv2d(stride=1, padding=k-1-pd)
        # on the zero-upsampled input with the spatially-flipped, channel-transposed
        # weight (weight conversion is done at init time).
        # TODO(synk): replace with the s^2 sub-pixel decomposition to avoid 4x
        # zero-FLOPs / zero-patch traffic on the upsampled input.
        N, H, W, C = x.shape
        s = stride
        up = jnp.zeros((N, (H - 1) * s + 1, (W - 1) * s + 1, C), x.dtype)
        up = up.at[:, ::s, ::s, :].set(x)
        x = up
        padding = k - 1 - padding
        stride = 1

    patches, (N, Ho, Wo) = extract_patches(x, k, stride, padding, dilation)
    M, K = patches.shape
    C_pad = p["w"].shape[1]

    # Bias is NOT added in the GEMM: BN(y + b) depends only on mean/var of y, so
    # the bias is folded into the affine shift below.  Ragged/out-of-bounds rows
    # are excluded from the statistics inside the kernel.
    y, s_part, q_part = gemm_stats(patches, p["w"])

    if norm:
        # BatchNorm2d training-mode batch statistics over the true M rows
        # (biased variance, eps=1e-5); per-tile partials reduced here.
        s_sum = jnp.sum(s_part[:, 0, :], axis=0)
        s_sq = jnp.sum(q_part[:, 0, :], axis=0)
        mean = s_sum / M
        var = jnp.maximum(s_sq / M - mean * mean, 0.0)  # guard f32 cancellation
        inv = jax.lax.rsqrt(var + EPS)
        # AdaptiveNorm2d: w0 * BN(y + b) + w1 * (y + b) == y * scale + shift
        scale = p["w0"] * p["gamma"] * inv + p["w1"]
        shift = p["w0"] * (p["beta"] - mean * p["gamma"] * inv) + p["w1"] * p["b"]
    else:
        scale = jnp.ones((C_pad,), jnp.float32)
        shift = p["b"]

    out = affine_act(y, scale.reshape(1, C_pad), shift.reshape(1, C_pad), act)
    return out[:, :cout].reshape(N, Ho, Wo, cout)


# --------------------------------------------------------------------------
# CompletionNet definition
# --------------------------------------------------------------------------
def make_cfgs(nf):
    return [
        dict(cin=3, cout=nf // 4, k=5, stride=1, padding=2),
        dict(cin=nf // 4, cout=nf, k=5, stride=2, padding=2),
        dict(cin=nf, cout=nf, k=3, stride=1, padding=2),
        dict(cin=nf, cout=nf * 4, k=5, stride=2, padding=1),
        dict(cin=nf * 4, cout=nf * 4, k=3, stride=1, padding=1),
        dict(cin=nf * 4, cout=nf * 4, k=3, stride=1, padding=1),
        dict(cin=nf * 4, cout=nf * 4, k=3, stride=1, padding=2, dilation=2),
        dict(cin=nf * 4, cout=nf * 4, k=3, stride=1, padding=4, dilation=4),
        dict(cin=nf * 4, cout=nf * 4, k=3, stride=1, padding=8, dilation=8),
        dict(cin=nf * 4, cout=nf * 4, k=3, stride=1, padding=16, dilation=16),
        dict(cin=nf * 4, cout=nf * 4, k=3, stride=1, padding=32, dilation=32),
        dict(cin=nf * 4, cout=nf * 4, k=3, stride=1, padding=1),
        dict(cin=nf * 4, cout=nf * 4, k=3, stride=1, padding=1),
        dict(cin=nf * 4, cout=nf, k=4, stride=2, padding=1, transpose=True),
        dict(cin=nf, cout=nf, k=3, stride=1, padding=1),
        dict(cin=nf, cout=nf // 4, k=4, stride=2, padding=1, transpose=True),
        dict(cin=nf // 4, cout=nf // 4, k=3, stride=1, padding=1),
        dict(cin=nf // 4, cout=3, k=3, stride=1, padding=1, norm=False, act="tanh"),
    ]


def init_params(key, cfgs):
    """Deterministic synthetic parameter init (shapes per the module __init__).

    Weights are pre-reshaped into (K, C_pad) bf16 GEMM matrices: Cout is padded
    to a multiple of 128 with zero columns (lane-dense MXU output / stores), K is
    kept exact (full-extent block dims are legal).  Bias / gamma / beta are f32,
    padded to C_pad.
    """
    params = []
    for cfg in cfgs:
        key, kw, kb, kbeta = jax.random.split(key, 4)
        cin, cout, k = cfg["cin"], cfg["cout"], cfg["k"]
        fan_in = cin * k * k
        if cfg.get("transpose", False):
            wt = jax.random.normal(kw, (cin, cout, k, k), jnp.float32) / jnp.sqrt(fan_in)
            wmat = convT_w_to_mat(wt)
        else:
            wt = jax.random.normal(kw, (cout, cin, k, k), jnp.float32) / jnp.sqrt(fan_in)
            wmat = conv_w_to_mat(wt)
        C_pad = _round_up(cout, LANE)
        wmat = jnp.pad(wmat, ((0, 0), (0, C_pad - cout))).astype(jnp.bfloat16)
        bias = jnp.pad(0.01 * jax.random.normal(kb, (cout,), jnp.float32),
                       (0, C_pad - cout))
        p = dict(w=wmat, b=bias)
        if cfg.get("norm", True):
            p["gamma"] = jnp.pad(jnp.ones((cout,), jnp.float32), (0, C_pad - cout))
            p["beta"] = jnp.pad(0.01 * jax.random.normal(kbeta, (cout,), jnp.float32),
                                (0, C_pad - cout))
            p["w0"] = jnp.float32(0.4)   # AdaptiveNorm2d w0
            p["w1"] = jnp.float32(0.8)   # AdaptiveNorm2d w1
        params.append(p)
    return params


def completion_net(x_nchw, cfgs, params):
    """Forward pass.  Input/output: NCHW float32, matching the PyTorch module."""
    # NCHW -> NHWC, bf16 activations end-to-end (kernels accumulate / normalize in f32).
    x = jnp.transpose(x_nchw, (0, 2, 3, 1)).astype(jnp.bfloat16)
    for cfg, p in zip(cfgs, params):
        x = conv_layer(
            x, p,
            k=cfg["k"],
            cout=cfg["cout"],
            stride=cfg.get("stride", 1),
            padding=cfg.get("padding", 0),
            dilation=cfg.get("dilation", 1),
            act=cfg.get("act", "lrelu"),
            norm=cfg.get("norm", True),
            transpose=cfg.get("transpose", False),
        )
    # Final torch.tanh is fused into the last layer's Pallas elementwise kernel.
    return jnp.transpose(x, (0, 3, 1, 2)).astype(jnp.float32)  # NHWC -> NCHW


# TODO(synk): BatchNorm running_mean/running_var updates (training-only side effect,
# momentum=0.05) are not modeled; they do not affect the forward output.

if __name__ == "__main__":
    nf = 16  # small nf for a quick run; architecture identical to default nf=64
    cfgs = make_cfgs(nf)
    params = init_params(jax.random.PRNGKey(0), cfgs)

    x = jax.random.normal(jax.random.PRNGKey(0), (2, 3, 16, 16), jnp.float32)

    fwd = jax.jit(lambda inp: completion_net(inp, cfgs, params))
    y = jax.block_until_ready(fwd(x))

    assert y.shape == (2, 3, 16, 16), y.shape
    assert bool(jnp.all(jnp.isfinite(y)))
    assert bool(jnp.all(jnp.abs(y) <= 1.0))  # tanh-bounded output
    print("KERNEL_OK")
</pallas_src>

<mosaic_0001>
module attributes {stable_mosaic.version = 11 : i64} {
  func.func @_gemm_stats_kernel(%arg0: i32, %arg1: memref<512x75xbf16, #tpu.memory_space<vmem>>, %arg2: memref<75x128xbf16, #tpu.memory_space<vmem>>, %arg3: memref<512x128xbf16, #tpu.memory_space<vmem>>, %arg4: memref<1x8x128xf32, #tpu.memory_space<vmem>>, %arg5: memref<1x8x128xf32, #tpu.memory_space<vmem>>) attributes {dimension_semantics = [#tpu.dimension_semantics<parallel>], iteration_bounds = array<i64: 1>, scalar_prefetch = 0 : i64, scratch_operands = 0 : i64, tpu.core_type = #tpu.core_type<tc>, window_params = [{transform_indices = @transform_0, window_bounds = array<i64: 512, 75>}, {pipeline_mode = #tpu.pipeline_mode<synchronous>, transform_indices = @transform_1, window_bounds = array<i64: 75, 128>}, {transform_indices = @transform_2, window_bounds = array<i64: 512, 128>}, {transform_indices = @transform_3, window_bounds = array<i64: 1, 8, 128>}, {transform_indices = @transform_4, window_bounds = array<i64: 1, 8, 128>}]} {
    %c0 = arith.constant 0 : index
    %c0_0 = arith.constant 0 : index
    %0 = vector.load %arg1[%c0, %c0_0] : memref<512x75xbf16, #tpu.memory_space<vmem>>, vector<512x75xbf16>
    %c0_1 = arith.constant 0 : index
    %c0_2 = arith.constant 0 : index
    %1 = vector.load %arg2[%c0_1, %c0_2] : memref<75x128xbf16, #tpu.memory_space<vmem>>, vector<75x128xbf16>
    %cst = arith.constant dense<0.000000e+00> : vector<512x128xf32>
    %2 = tpu.matmul %0, %1, %cst {dimension_numbers = #tpu.dot_dimension_numbers<[1], [0], [0], [1], [0, 0, 1, 1], [], []>} : vector<512x75xbf16>, vector<75x128xbf16>, vector<512x128xf32> -> vector<512x128xf32>
    %3 = arith.truncf %2 : vector<512x128xf32> to vector<512x128xbf16>
    %c0_3 = arith.constant 0 : index
    %c0_4 = arith.constant 0 : index
    %4 = vector.load %arg3[%c0_3, %c0_4] : memref<512x128xbf16, #tpu.memory_space<vmem>>, vector<512x128xbf16>
    tpu.vector_store %arg3[%c0_3, %c0_4], %3 {strides = array<i32>} : memref<512x128xbf16, #tpu.memory_space<vmem>>, vector<512x128xbf16>,
    %cst_5 = arith.constant dense<0.000000e+00> : vector<128xf32>
    %5 = vector.multi_reduction <add>, %2, %cst_5 [0] : vector<512x128xf32> to vector<128xf32>
    %6 = vector.shape_cast %5 : vector<128xf32> to vector<1x128xf32>
    %7 = arith.mulf %2, %2 : vector<512x128xf32>
    %cst_6 = arith.constant dense<0.000000e+00> : vector<128xf32>
    %8 = vector.multi_reduction <add>, %7, %cst_6 [0] : vector<512x128xf32> to vector<128xf32>
    %9 = vector.shape_cast %8 : vector<128xf32> to vector<1x128xf32>
    %10 = vector.shape_cast %6 : vector<1x128xf32> to vector<1x128xf32>
    %11 = vector.broadcast %10 : vector<1x128xf32> to vector<8x128xf32>
    %12 = vector.shape_cast %11 : vector<8x128xf32> to vector<1x8x128xf32>
    %c0_7 = arith.constant 0 : index
    %c0_8 = arith.constant 0 : index
    %c0_9 = arith.constant 0 : index
    %13 = vector.load %arg4[%c0_7, %c0_8, %c0_9] : memref<1x8x128xf32, #tpu.memory_space<vmem>>, vector<1x8x128xf32>
    tpu.vector_store %arg4[%c0_7, %c0_8, %c0_9], %12 {strides = array<i32>} : memref<1x8x128xf32, #tpu.memory_space<vmem>>, vector<1x8x128xf32>,
    %14 = vector.shape_cast %9 : vector<1x128xf32> to vector<1x128xf32>
    %15 = vector.broadcast %14 : vector<1x128xf32> to vector<8x128xf32>
    %16 = vector.shape_cast %15 : vector<8x128xf32> to vector<1x8x128xf32>
    %c0_10 = arith.constant 0 : index
    %c0_11 = arith.constant 0 : index
    %c0_12 = arith.constant 0 : index
    %17 = vector.load %arg5[%c0_10, %c0_11, %c0_12] : memref<1x8x128xf32, #tpu.memory_space<vmem>>, vector<1x8x128xf32>
    tpu.vector_store %arg5[%c0_10, %c0_11, %c0_12], %16 {strides = array<i32>} : memref<1x8x128xf32, #tpu.memory_space<vmem>>, vector<1x8x128xf32>,
    return
  }
  func.func @transform_0(%arg0: i32) -> (i32, i32) {
    %c0_i32 = arith.constant 0 : i32
    %c0_i32_0 = arith.constant 0 : i32
    return %arg0, %c0_i32 : i32, i32
  }
  func.func @transform_1(%arg0: i32) -> (i32, i32) {
    %c0_i32 = arith.constant 0 : i32
    %c0_i32_0 = arith.constant 0 : i32
    %c0_i32_1 = arith.constant 0 : i32
    return %c0_i32, %c0_i32_0 : i32, i32
  }
  func.func @transform_2(%arg0: i32) -> (i32, i32) {
    %c0_i32 = arith.constant 0 : i32
    %c0_i32_0 = arith.constant 0 : i32
    return %arg0, %c0_i32 : i32, i32
  }
  func.func @transform_3(%arg0: i32) -> (i32, i32, i32) {
    %c0_i32 = arith.constant 0 : i32
    %c0_i32_0 = arith.constant 0 : i32
    %c0_i32_1 = arith.constant 0 : i32
    return %arg0, %c0_i32, %c0_i32_0 : i32, i32, i32
  }
  func.func @transform_4(%arg0: i32) -> (i32, i32, i32) {
    %c0_i32 = arith.constant 0 : i32
    %c0_i32_0 = arith.constant 0 : i32
    %c0_i32_1 = arith.constant 0 : i32
    return %arg0, %c0_i32, %c0_i32_0 : i32, i32, i32
  }
}

module attributes {stable_mosaic.version = 11 : i64} {
  func.func @_affine_act_kernel(%arg0: i32, %arg1: memref<512x128xbf16, #tpu.memory_space<vmem>>, %arg2: memref<1x128xf32, #tpu.memory_space<vmem>>, %arg3: memref<1x128xf32, #tpu.memory_space<vmem>>, %arg4: memref<512x128xbf16, #tpu.memory_space<vmem>>) attributes {dimension_semantics = [#tpu.dimension_semantics<parallel>], iteration_bounds = array<i64: 1>, scalar_prefetch = 0 : i64, scratch_operands = 0 : i64, tpu.core_type = #tpu.core_type<tc>, window_params = [{transform_indices = @transform_0, window_bounds = array<i64: 512, 128>}, {pipeline_mode = #tpu.pipeline_mode<synchronous>, transform_indices = @transform_1, window_bounds = array<i64: 1, 128>}, {pipeline_mode = #tpu.pipeline_mode<synchronous>, transform_indices = @transform_2, window_bounds = array<i64: 1, 128>}, {transform_indices = @transform_3, window_bounds = array<i64: 512, 128>}]} {
    %c0 = arith.constant 0 : index
    %c0_0 = arith.constant 0 : index
    %0 = vector.load %arg1[%c0, %c0_0] : memref<512x128xbf16, #tpu.memory_space<vmem>>, vector<512x128xbf16>
    %1 = arith.extf %0 : vector<512x128xbf16> to vector<512x128xf32>
    %c0_1 = arith.constant 0 : index
    %c0_2 = arith.constant 0 : index
    %2 = vector.load %arg2[%c0_1, %c0_2] : memref<1x128xf32, #tpu.memory_space<vmem>>, vector<1x128xf32>
    %3 = vector.broadcast %2 : vector<1x128xf32> to vector<512x128xf32>
    %4 = arith.mulf %1, %3 : vector<512x128xf32>
    %c0_3 = arith.constant 0 : index
    %c0_4 = arith.constant 0 : index
    %5 = vector.load %arg3[%c0_3, %c0_4] : memref<1x128xf32, #tpu.memory_space<vmem>>, vector<1x128xf32>
    %6 = vector.broadcast %5 : vector<1x128xf32> to vector<512x128xf32>
    %7 = arith.addf %4, %6 : vector<512x128xf32>
    %cst = arith.constant 0.000000e+00 : f32
    %8 = vector.broadcast %cst : f32 to vector<512x128xf32>
    %9 = arith.cmpf oge, %7, %8 : vector<512x128xf32>
    %cst_5 = arith.constant 1.000000e-01 : f32
    %10 = vector.broadcast %cst_5 : f32 to vector<512x128xf32>
    %11 = arith.mulf %10, %7 : vector<512x128xf32>
    %12 = arith.select %9, %7, %11 : vector<512x128xi1>, vector<512x128xf32>
    %13 = arith.truncf %12 : vector<512x128xf32> to vector<512x128xbf16>
    %c0_6 = arith.constant 0 : index
    %c0_7 = arith.constant 0 : index
    %14 = vector.load %arg4[%c0_6, %c0_7] : memref<512x128xbf16, #tpu.memory_space<vmem>>, vector<512x128xbf16>
    tpu.vector_store %arg4[%c0_6, %c0_7], %13 {strides = array<i32>} : memref<512x128xbf16, #tpu.memory_space<vmem>>, vector<512x128xbf16>,
    return
  }
  func.func @transform_0(%arg0: i32) -> (i32, i32) {
    %c0_i32 = arith.constant 0 : i32
    %c0_i32_0 = arith.constant 0 : i32
    return %arg0, %c0_i32 : i32, i32
  }
  func.func @transform_1(%arg0: i32) -> (i32, i32) {
    %c0_i32 = arith.constant 0 : i32
    %c0_i32_0 = arith.constant 0 : i32
    %c0_i32_1 = arith.constant 0 : i32
    return %c0_i32, %c0_i32_0 : i32, i32
  }
  func.func @transform_2(%arg0: i32) -> (i32, i32) {
    %c0_i32 = arith.constant 0 : i32
    %c0_i32_0 = arith.constant 0 : i32
    %c0_i32_1 = arith.constant 0 : i32
    return %c0_i32, %c0_i32_0 : i32, i32
  }
  func.func @transform_3(%arg0: i32) -> (i32, i32) {
    %c0_i32 = arith.constant 0 : i32
    %c0_i32_0 = arith.constant 0 : i32
    return %arg0, %c0_i32 : i32, i32
  }
}

module attributes {stable_mosaic.version = 11 : i64} {
  func.func @_affine_act_kernel(%arg0: i32, %arg1: memref<128x128xbf16, #tpu.memory_space<vmem>>, %arg2: memref<1x128xf32, #tpu.memory_space<vmem>>, %arg3: memref<1x128xf32, #tpu.memory_space<vmem>>, %arg4: memref<128x128xbf16, #tpu.memory_space<vmem>>) attributes {dimension_semantics = [#tpu.dimension_semantics<parallel>], iteration_bounds = array<i64: 1>, scalar_prefetch = 0 : i64, scratch_operands = 0 : i64, tpu.core_type = #tpu.core_type<tc>, window_params = [{transform_indices = @transform_0, window_bounds = array<i64: 128, 128>}, {pipeline_mode = #tpu.pipeline_mode<synchronous>, transform_indices = @transform_1, window_bounds = array<i64: 1, 128>}, {pipeline_mode = #tpu.pipeline_mode<synchronous>, transform_indices = @transform_2, window_bounds = array<i64: 1, 128>}, {transform_indices = @transform_3, window_bounds = array<i64: 128, 128>}]} {
    %c0 = arith.constant 0 : index
    %c0_0 = arith.constant 0 : index
    %0 = vector.load %arg1[%c0, %c0_0] : memref<128x128xbf16, #tpu.memory_space<vmem>>, vector<128x128xbf16>
    %1 = arith.extf %0 : vector<128x128xbf16> to vector<128x128xf32>
    %c0_1 = arith.constant 0 : index
    %c0_2 = arith.constant 0 : index
    %2 = vector.load %arg2[%c0_1, %c0_2] : memref<1x128xf32, #tpu.memory_space<vmem>>, vector<1x128xf32>
    %3 = vector.broadcast %2 : vector<1x128xf32> to vector<128x128xf32>
    %4 = arith.mulf %1, %3 : vector<128x128xf32>
    %c0_3 = arith.constant 0 : index
    %c0_4 = arith.constant 0 : index
    %5 = vector.load %arg3[%c0_3, %c0_4] : memref<1x128xf32, #tpu.memory_space<vmem>>, vector<1x128xf32>
    %6 = vector.broadcast %5 : vector<1x128xf32> to vector<128x128xf32>
    %7 = arith.addf %4, %6 : vector<128x128xf32>
    %cst = arith.constant 0.000000e+00 : f32
    %8 = vector.broadcast %cst : f32 to vector<128x128xf32>
    %9 = arith.cmpf oge, %7, %8 : vector<128x128xf32>
    %cst_5 = arith.constant 1.000000e-01 : f32
    %10 = vector.broadcast %cst_5 : f32 to vector<128x128xf32>
    %11 = arith.mulf %10, %7 : vector<128x128xf32>
    %12 = arith.select %9, %7, %11 : vector<128x128xi1>, vector<128x128xf32>
    %13 = arith.truncf %12 : vector<128x128xf32> to vector<128x128xbf16>
    %c0_6 = arith.constant 0 : index
    %c0_7 = arith.constant 0 : index
    %14 = vector.load %arg4[%c0_6, %c0_7] : memref<128x128xbf16, #tpu.memory_space<vmem>>, vector<128x128xbf16>
    tpu.vector_store %arg4[%c0_6, %c0_7], %13 {strides = array<i32>} : memref<128x128xbf16, #tpu.memory_space<vmem>>, vector<128x128xbf16>,
    return
  }
  func.func @transform_0(%arg0: i32) -> (i32, i32) {
    %c0_i32 = arith.constant 0 : i32
    %c0_i32_0 = arith.constant 0 : i32
    return %arg0, %c0_i32 : i32, i32
  }
  func.func @transform_1(%arg0: i32) -> (i32, i32) {
    %c0_i32 = arith.constant 0 : i32
    %c0_i32_0 = arith.constant 0 : i32
    %c0_i32_1 = arith.constant 0 : i32
    return %c0_i32, %c0_i32_0 : i32, i32
  }
  func.func @transform_2(%arg0: i32) -> (i32, i32) {
    %c0_i32 = arith.constant 0 : i32
    %c0_i32_0 = arith.constant 0 : i32
    %c0_i32_1 = arith.constant 0 : i32
    return %c0_i32, %c0_i32_0 : i32, i32
  }
  func.func @transform_3(%arg0: i32) -> (i32, i32) {
    %c0_i32 = arith.constant 0 : i32
    %c0_i32_0 = arith.constant 0 : i32
    return %arg0, %c0_i32 : i32, i32
  }
}

module attributes {stable_mosaic.version = 11 : i64} {
  func.func @_gemm_stats_kernel(%arg0: i32, %arg1: memref<128x100xbf16, #tpu.memory_space<vmem>>, %arg2: memref<100x128xbf16, #tpu.memory_space<vmem>>, %arg3: memref<128x128xbf16, #tpu.memory_space<vmem>>, %arg4: memref<1x8x128xf32, #tpu.memory_space<vmem>>, %arg5: memref<1x8x128xf32, #tpu.memory_space<vmem>>) attributes {dimension_semantics = [#tpu.dimension_semantics<parallel>], iteration_bounds = array<i64: 1>, scalar_prefetch = 0 : i64, scratch_operands = 0 : i64, tpu.core_type = #tpu.core_type<tc>, window_params = [{transform_indices = @transform_0, window_bounds = array<i64: 128, 100>}, {pipeline_mode = #tpu.pipeline_mode<synchronous>, transform_indices = @transform_1, window_bounds = array<i64: 100, 128>}, {transform_indices = @transform_2, window_bounds = array<i64: 128, 128>}, {transform_indices = @transform_3, window_bounds = array<i64: 1, 8, 128>}, {transform_indices = @transform_4, window_bounds = array<i64: 1, 8, 128>}]} {
    %c0 = arith.constant 0 : index
    %c0_0 = arith.constant 0 : index
    %0 = vector.load %arg1[%c0, %c0_0] : memref<128x100xbf16, #tpu.memory_space<vmem>>, vector<128x100xbf16>
    %c0_1 = arith.constant 0 : index
    %c0_2 = arith.constant 0 : index
    %1 = vector.load %arg2[%c0_1, %c0_2] : memref<100x128xbf16, #tpu.memory_space<vmem>>, vector<100x128xbf16>
    %cst = arith.constant dense<0.000000e+00> : vector<128x128xf32>
    %2 = tpu.matmul %0, %1, %cst {dimension_numbers = #tpu.dot_dimension_numbers<[1], [0], [0], [1], [0, 0, 1, 1], [], []>} : vector<128x100xbf16>, vector<100x128xbf16>, vector<128x128xf32> -> vector<128x128xf32>
    %3 = arith.truncf %2 : vector<128x128xf32> to vector<128x128xbf16>
    %c0_3 = arith.constant 0 : index
    %c0_4 = arith.constant 0 : index
    %4 = vector.load %arg3[%c0_3, %c0_4] : memref<128x128xbf16, #tpu.memory_space<vmem>>, vector<128x128xbf16>
    tpu.vector_store %arg3[%c0_3, %c0_4], %3 {strides = array<i32>} : memref<128x128xbf16, #tpu.memory_space<vmem>>, vector<128x128xbf16>,
    %cst_5 = arith.constant dense<0.000000e+00> : vector<128xf32>
    %5 = vector.multi_reduction <add>, %2, %cst_5 [0] : vector<128x128xf32> to vector<128xf32>
    %6 = vector.shape_cast %5 : vector<128xf32> to vector<1x128xf32>
    %7 = arith.mulf %2, %2 : vector<128x128xf32>
    %cst_6 = arith.constant dense<0.000000e+00> : vector<128xf32>
    %8 = vector.multi_reduction <add>, %7, %cst_6 [0] : vector<128x128xf32> to vector<128xf32>
    %9 = vector.shape_cast %8 : vector<128xf32> to vector<1x128xf32>
    %10 = vector.shape_cast %6 : vector<1x128xf32> to vector<1x128xf32>
    %11 = vector.broadcast %10 : vector<1x128xf32> to vector<8x128xf32>
    %12 = vector.shape_cast %11 : vector<8x128xf32> to vector<1x8x128xf32>
    %c0_7 = arith.constant 0 : index
    %c0_8 = arith.constant 0 : index
    %c0_9 = arith.constant 0 : index
    %13 = vector.load %arg4[%c0_7, %c0_8, %c0_9] : memref<1x8x128xf32, #tpu.memory_space<vmem>>, vector<1x8x128xf32>
    tpu.vector_store %arg4[%c0_7, %c0_8, %c0_9], %12 {strides = array<i32>} : memref<1x8x128xf32, #tpu.memory_space<vmem>>, vector<1x8x128xf32>,
    %14 = vector.shape_cast %9 : vector<1x128xf32> to vector<1x128xf32>
    %15 = vector.broadcast %14 : vector<1x128xf32> to vector<8x128xf32>
    %16 = vector.shape_cast %15 : vector<8x128xf32> to vector<1x8x128xf32>
    %c0_10 = arith.constant 0 : index
    %c0_11 = arith.constant 0 : index
    %c0_12 = arith.constant 0 : index
    %17 = vector.load %arg5[%c0_10, %c0_11, %c0_12] : memref<1x8x128xf32, #tpu.memory_space<vmem>>, vector<1x8x128xf32>
    tpu.vector_store %arg5[%c0_10, %c0_11, %c0_12], %16 {strides = array<i32>} : memref<1x8x128xf32, #tpu.memory_space<vmem>>, vector<1x8x128xf32>,
    return
  }
  func.func @transform_0(%arg0: i32) -> (i32, i32) {
    %c0_i32 = arith.constant 0 : i32
    %c0_i32_0 = arith.constant 0 : i32
    return %arg0, %c0_i32 : i32, i32
  }
  func.func @transform_1(%arg0: i32) -> (i32, i32) {
    %c0_i32 = arith.constant 0 : i32
    %c0_i32_0 = arith.constant 0 : i32
    %c0_i32_1 = arith.constant 0 : i32
    return %c0_i32, %c0_i32_0 : i32, i32
  }
  func.func @transform_2(%arg0: i32) -> (i32, i32) {
    %c0_i32 = arith.constant 0 : i32
    %c0_i32_0 = arith.constant 0 : i32
    return %arg0, %c0_i32 : i32, i32
  }
  func.func @transform_3(%arg0: i32) -> (i32, i32, i32) {
    %c0_i32 = arith.constant 0 : i32
    %c0_i32_0 = arith.constant 0 : i32
    %c0_i32_1 = arith.constant 0 : i32
    return %arg0, %c0_i32, %c0_i32_0 : i32, i32, i32
  }
  func.func @transform_4(%arg0: i32) -> (i32, i32, i32) {
    %c0_i32 = arith.constant 0 : i32
    %c0_i32_0 = arith.constant 0 : i32
    %c0_i32_1 = arith.constant 0 : i32
    return %arg0, %c0_i32, %c0_i32_0 : i32, i32, i32
  }
}

module attributes {stable_mosaic.version = 11 : i64} {
  func.func @_gemm_stats_kernel(%arg0: i32, %arg1: memref<200x144xbf16, #tpu.memory_space<vmem>>, %arg2: memref<144x128xbf16, #tpu.memory_space<vmem>>, %arg3: memref<200x128xbf16, #tpu.memory_space<vmem>>, %arg4: memref<1x8x128xf32, #tpu.memory_space<vmem>>, %arg5: memref<1x8x128xf32, #tpu.memory_space<vmem>>) attributes {dimension_semantics = [#tpu.dimension_semantics<parallel>], iteration_bounds = array<i64: 1>, scalar_prefetch = 0 : i64, scratch_operands = 0 : i64, tpu.core_type = #tpu.core_type<tc>, window_params = [{transform_indices = @transform_0, window_bounds = array<i64: 200, 144>}, {pipeline_mode = #tpu.pipeline_mode<synchronous>, transform_indices = @transform_1, window_bounds = array<i64: 144, 128>}, {transform_indices = @transform_2, window_bounds = array<i64: 200, 128>}, {transform_indices = @transform_3, window_bounds = array<i64: 1, 8, 128>}, {transform_indices = @transform_4, window_bounds = array<i64: 1, 8, 128>}]} {
    %c0 = arith.constant 0 : index
    %c0_0 = arith.constant 0 : index
    %0 = vector.load %arg1[%c0, %c0_0] : memref<200x144xbf16, #tpu.memory_space<vmem>>, vector<200x144xbf16>
    %c0_1 = arith.constant 0 : index
    %c0_2 = arith.constant 0 : index
    %1 = vector.load %arg2[%c0_1, %c0_2] : memref<144x128xbf16, #tpu.memory_space<vmem>>, vector<144x128xbf16>
    %cst = arith.constant dense<0.000000e+00> : vector<200x128xf32>
    %2 = tpu.matmul %0, %1, %cst {dimension_numbers = #tpu.dot_dimension_numbers<[1], [0], [0], [1], [0, 0, 1, 1], [], []>} : vector<200x144xbf16>, vector<144x128xbf16>, vector<200x128xf32> -> vector<200x128xf32>
    %3 = arith.truncf %2 : vector<200x128xf32> to vector<200x128xbf16>
    %c0_3 = arith.constant 0 : index
    %c0_4 = arith.constant 0 : index
    %4 = vector.load %arg3[%c0_3, %c0_4] : memref<200x128xbf16, #tpu.memory_space<vmem>>, vector<200x128xbf16>
    tpu.vector_store %arg3[%c0_3, %c0_4], %3 {strides = array<i32>} : memref<200x128xbf16, #tpu.memory_space<vmem>>, vector<200x128xbf16>,
    %cst_5 = arith.constant dense<0.000000e+00> : vector<128xf32>
    %5 = vector.multi_reduction <add>, %2, %cst_5 [0] : vector<200x128xf32> to vector<128xf32>
    %6 = vector.shape_cast %5 : vector<128xf32> to vector<1x128xf32>
    %7 = arith.mulf %2, %2 : vector<200x128xf32>
    %cst_6 = arith.constant dense<0.000000e+00> : vector<128xf32>
    %8 = vector.multi_reduction <add>, %7, %cst_6 [0] : vector<200x128xf32> to vector<128xf32>
    %9 = vector.shape_cast %8 : vector<128xf32> to vector<1x128xf32>
    %10 = vector.shape_cast %6 : vector<1x128xf32> to vector<1x128xf32>
    %11 = vector.broadcast %10 : vector<1x128xf32> to vector<8x128xf32>
    %12 = vector.shape_cast %11 : vector<8x128xf32> to vector<1x8x128xf32>
    %c0_7 = arith.constant 0 : index
    %c0_8 = arith.constant 0 : index
    %c0_9 = arith.constant 0 : index
    %13 = vector.load %arg4[%c0_7, %c0_8, %c0_9] : memref<1x8x128xf32, #tpu.memory_space<vmem>>, vector<1x8x128xf32>
    tpu.vector_store %arg4[%c0_7, %c0_8, %c0_9], %12 {strides = array<i32>} : memref<1x8x128xf32, #tpu.memory_space<vmem>>, vector<1x8x128xf32>,
    %14 = vector.shape_cast %9 : vector<1x128xf32> to vector<1x128xf32>
    %15 = vector.broadcast %14 : vector<1x128xf32> to vector<8x128xf32>
    %16 = vector.shape_cast %15 : vector<8x128xf32> to vector<1x8x128xf32>
    %c0_10 = arith.constant 0 : index
    %c0_11 = arith.constant 0 : index
    %c0_12 = arith.constant 0 : index
    %17 = vector.load %arg5[%c0_10, %c0_11, %c0_12] : memref<1x8x128xf32, #tpu.memory_space<vmem>>, vector<1x8x128xf32>
    tpu.vector_store %arg5[%c0_10, %c0_11, %c0_12], %16 {strides = array<i32>} : memref<1x8x128xf32, #tpu.memory_space<vmem>>, vector<1x8x128xf32>,
    return
  }
  func.func @transform_0(%arg0: i32) -> (i32, i32) {
    %c0_i32 = arith.constant 0 : i32
    %c0_i32_0 = arith.constant 0 : i32
    return %arg0, %c0_i32 : i32, i32
  }
  func.func @transform_1(%arg0: i32) -> (i32, i32) {
    %c0_i32 = arith.constant 0 : i32
    %c0_i32_0 = arith.constant 0 : i32
    %c0_i32_1 = arith.constant 0 : i32
    return %c0_i32, %c0_i32_0 : i32, i32
  }
  func.func @transform_2(%arg0: i32) -> (i32, i32) {
    %c0_i32 = arith.constant 0 : i32
    %c0_i32_0 = arith.constant 0 : i32
    return %arg0, %c0_i32 : i32, i32
  }
  func.func @transform_3(%arg0: i32) -> (i32, i32, i32) {
    %c0_i32 = arith.constant 0 : i32
    %c0_i32_0 = arith.constant 0 : i32
    %c0_i32_1 = arith.constant 0 : i32
    return %arg0, %c0_i32, %c0_i32_0 : i32, i32, i32
  }
  func.func @transform_4(%arg0: i32) -> (i32, i32, i32) {
    %c0_i32 = arith.constant 0 : i32
    %c0_i32_0 = arith.constant 0 : i32
    %c0_i32_1 = arith.constant 0 : i32
    return %arg0, %c0_i32, %c0_i32_0 : i32, i32, i32
  }
}

module attributes {stable_mosaic.version = 11 : i64} {
  func.func @_affine_act_kernel(%arg0: i32, %arg1: memref<200x128xbf16, #tpu.memory_space<vmem>>, %arg2: memref<1x128xf32, #tpu.memory_space<vmem>>, %arg3: memref<1x128xf32, #tpu.memory_space<vmem>>, %arg4: memref<200x128xbf16, #tpu.memory_space<vmem>>) attributes {dimension_semantics = [#tpu.dimension_semantics<parallel>], iteration_bounds = array<i64: 1>, scalar_prefetch = 0 : i64, scratch_operands = 0 : i64, tpu.core_type = #tpu.core_type<tc>, window_params = [{transform_indices = @transform_0, window_bounds = array<i64: 200, 128>}, {pipeline_mode = #tpu.pipeline_mode<synchronous>, transform_indices = @transform_1, window_bounds = array<i64: 1, 128>}, {pipeline_mode = #tpu.pipeline_mode<synchronous>, transform_indices = @transform_2, window_bounds = array<i64: 1, 128>}, {transform_indices = @transform_3, window_bounds = array<i64: 200, 128>}]} {
    %c0 = arith.constant 0 : index
    %c0_0 = arith.constant 0 : index
    %0 = vector.load %arg1[%c0, %c0_0] : memref<200x128xbf16, #tpu.memory_space<vmem>>, vector<200x128xbf16>
    %1 = arith.extf %0 : vector<200x128xbf16> to vector<200x128xf32>
    %c0_1 = arith.constant 0 : index
    %c0_2 = arith.constant 0 : index
    %2 = vector.load %arg2[%c0_1, %c0_2] : memref<1x128xf32, #tpu.memory_space<vmem>>, vector<1x128xf32>
    %3 = vector.broadcast %2 : vector<1x128xf32> to vector<200x128xf32>
    %4 = arith.mulf %1, %3 : vector<200x128xf32>
    %c0_3 = arith.constant 0 : index
    %c0_4 = arith.constant 0 : index
    %5 = vector.load %arg3[%c0_3, %c0_4] : memref<1x128xf32, #tpu.memory_space<vmem>>, vector<1x128xf32>
    %6 = vector.broadcast %5 : vector<1x128xf32> to vector<200x128xf32>
    %7 = arith.addf %4, %6 : vector<200x128xf32>
    %cst = arith.constant 0.000000e+00 : f32
    %8 = vector.broadcast %cst : f32 to vector<200x128xf32>
    %9 = arith.cmpf oge, %7, %8 : vector<200x128xf32>
    %cst_5 = arith.constant 1.000000e-01 : f32
    %10 = vector.broadcast %cst_5 : f32 to vector<200x128xf32>
    %11 = arith.mulf %10, %7 : vector<200x128xf32>
    %12 = arith.select %9, %7, %11 : vector<200x128xi1>, vector<200x128xf32>
    %13 = arith.truncf %12 : vector<200x128xf32> to vector<200x128xbf16>
    %c0_6 = arith.constant 0 : index
    %c0_7 = arith.constant 0 : index
    %14 = vector.load %arg4[%c0_6, %c0_7] : memref<200x128xbf16, #tpu.memory_space<vmem>>, vector<200x128xbf16>
    tpu.vector_store %arg4[%c0_6, %c0_7], %13 {strides = array<i32>} : memref<200x128xbf16, #tpu.memory_space<vmem>>, vector<200x128xbf16>,
    return
  }
  func.func @transform_0(%arg0: i32) -> (i32, i32) {
    %c0_i32 = arith.constant 0 : i32
    %c0_i32_0 = arith.constant 0 : i32
    return %arg0, %c0_i32 : i32, i32
  }
  func.func @transform_1(%arg0: i32) -> (i32, i32) {
    %c0_i32 = arith.constant 0 : i32
    %c0_i32_0 = arith.constant 0 : i32
    %c0_i32_1 = arith.constant 0 : i32
    return %c0_i32, %c0_i32_0 : i32, i32
  }
  func.func @transform_2(%arg0: i32) -> (i32, i32) {
    %c0_i32 = arith.constant 0 : i32
    %c0_i32_0 = arith.constant 0 : i32
    %c0_i32_1 = arith.constant 0 : i32
    return %c0_i32, %c0_i32_0 : i32, i32
  }
  func.func @transform_3(%arg0: i32) -> (i32, i32) {
    %c0_i32 = arith.constant 0 : i32
    %c0_i32_0 = arith.constant 0 : i32
    return %arg0, %c0_i32 : i32, i32
  }
}

module attributes {stable_mosaic.version = 11 : i64} {
  func.func @_gemm_stats_kernel(%arg0: i32, %arg1: memref<32x400xbf16, #tpu.memory_space<vmem>>, %arg2: memref<400x128xbf16, #tpu.memory_space<vmem>>, %arg3: memref<32x128xbf16, #tpu.memory_space<vmem>>, %arg4: memref<1x8x128xf32, #tpu.memory_space<vmem>>, %arg5: memref<1x8x128xf32, #tpu.memory_space<vmem>>) attributes {dimension_semantics = [#tpu.dimension_semantics<parallel>], iteration_bounds = array<i64: 1>, scalar_prefetch = 0 : i64, scratch_operands = 0 : i64, tpu.core_type = #tpu.core_type<tc>, window_params = [{transform_indices = @transform_0, window_bounds = array<i64: 32, 400>}, {pipeline_mode = #tpu.pipeline_mode<synchronous>, transform_indices = @transform_1, window_bounds = array<i64: 400, 128>}, {transform_indices = @transform_2, window_bounds = array<i64: 32, 128>}, {transform_indices = @transform_3, window_bounds = array<i64: 1, 8, 128>}, {transform_indices = @transform_4, window_bounds = array<i64: 1, 8, 128>}]} {
    %c0 = arith.constant 0 : index
    %c0_0 = arith.constant 0 : index
    %0 = vector.load %arg1[%c0, %c0_0] : memref<32x400xbf16, #tpu.memory_space<vmem>>, vector<32x400xbf16>
    %c0_1 = arith.constant 0 : index
    %c0_2 = arith.constant 0 : index
    %1 = vector.load %arg2[%c0_1, %c0_2] : memref<400x128xbf16, #tpu.memory_space<vmem>>, vector<400x128xbf16>
    %cst = arith.constant dense<0.000000e+00> : vector<32x128xf32>
    %2 = tpu.matmul %0, %1, %cst {dimension_numbers = #tpu.dot_dimension_numbers<[1], [0], [0], [1], [0, 0, 1, 1], [], []>} : vector<32x400xbf16>, vector<400x128xbf16>, vector<32x128xf32> -> vector<32x128xf32>
    %3 = arith.truncf %2 : vector<32x128xf32> to vector<32x128xbf16>
    %c0_3 = arith.constant 0 : index
    %c0_4 = arith.constant 0 : index
    %4 = vector.load %arg3[%c0_3, %c0_4] : memref<32x128xbf16, #tpu.memory_space<vmem>>, vector<32x128xbf16>
    tpu.vector_store %arg3[%c0_3, %c0_4], %3 {strides = array<i32>} : memref<32x128xbf16, #tpu.memory_space<vmem>>, vector<32x128xbf16>,
    %cst_5 = arith.constant dense<0.000000e+00> : vector<128xf32>
    %5 = vector.multi_reduction <add>, %2, %cst_5 [0] : vector<32x128xf32> to vector<128xf32>
    %6 = vector.shape_cast %5 : vector<128xf32> to vector<1x128xf32>
    %7 = arith.mulf %2, %2 : vector<32x128xf32>
    %cst_6 = arith.constant dense<0.000000e+00> : vector<128xf32>
    %8 = vector.multi_reduction <add>, %7, %cst_6 [0] : vector<32x128xf32> to vector<128xf32>
    %9 = vector.shape_cast %8 : vector<128xf32> to vector<1x128xf32>
    %10 = vector.shape_cast %6 : vector<1x128xf32> to vector<1x128xf32>
    %11 = vector.broadcast %10 : vector<1x128xf32> to vector<8x128xf32>
    %12 = vector.shape_cast %11 : vector<8x128xf32> to vector<1x8x128xf32>
    %c0_7 = arith.constant 0 : index
    %c0_8 = arith.constant 0 : index
    %c0_9 = arith.constant 0 : index
    %13 = vector.load %arg4[%c0_7, %c0_8, %c0_9] : memref<1x8x128xf32, #tpu.memory_space<vmem>>, vector<1x8x128xf32>
    tpu.vector_store %arg4[%c0_7, %c0_8, %c0_9], %12 {strides = array<i32>} : memref<1x8x128xf32, #tpu.memory_space<vmem>>, vector<1x8x128xf32>,
    %14 = vector.shape_cast %9 : vector<1x128xf32> to vector<1x128xf32>
    %15 = vector.broadcast %14 : vector<1x128xf32> to vector<8x128xf32>
    %16 = vector.shape_cast %15 : vector<8x128xf32> to vector<1x8x128xf32>
    %c0_10 = arith.constant 0 : index
    %c0_11 = arith.constant 0 : index
    %c0_12 = arith.constant 0 : index
    %17 = vector.load %arg5[%c0_10, %c0_11, %c0_12] : memref<1x8x128xf32, #tpu.memory_space<vmem>>, vector<1x8x128xf32>
    tpu.vector_store %arg5[%c0_10, %c0_11, %c0_12], %16 {strides = array<i32>} : memref<1x8x128xf32, #tpu.memory_space<vmem>>, vector<1x8x128xf32>,
    return
  }
  func.func @transform_0(%arg0: i32) -> (i32, i32) {
    %c0_i32 = arith.constant 0 : i32
    %c0_i32_0 = arith.constant 0 : i32
    return %arg0, %c0_i32 : i32, i32
  }
  func.func @transform_1(%arg0: i32) -> (i32, i32) {
    %c0_i32 = arith.constant 0 : i32
    %c0_i32_0 = arith.constant 0 : i32
    %c0_i32_1 = arith.constant 0 : i32
    return %c0_i32, %c0_i32_0 : i32, i32
  }
  func.func @transform_2(%arg0: i32) -> (i32, i32) {
    %c0_i32 = arith.constant 0 : i32
    %c0_i32_0 = arith.constant 0 : i32
    return %arg0, %c0_i32 : i32, i32
  }
  func.func @transform_3(%arg0: i32) -> (i32, i32, i32) {
    %c0_i32 = arith.constant 0 : i32
    %c0_i32_0 = arith.constant 0 : i32
    %c0_i32_1 = arith.constant 0 : i32
    return %arg0, %c0_i32, %c0_i32_0 : i32, i32, i32
  }
  func.func @transform_4(%arg0: i32) -> (i32, i32, i32) {
    %c0_i32 = arith.constant 0 : i32
    %c0_i32_0 = arith.constant 0 : i32
    %c0_i32_1 = arith.constant 0 : i32
    return %arg0, %c0_i32, %c0_i32_0 : i32, i32, i32
  }
}

module attributes {stable_mosaic.version = 11 : i64} {
  func.func @_affine_act_kernel(%arg0: i32, %arg1: memref<32x128xbf16, #tpu.memory_space<vmem>>, %arg2: memref<1x128xf32, #tpu.memory_space<vmem>>, %arg3: memref<1x128xf32, #tpu.memory_space<vmem>>, %arg4: memref<32x128xbf16, #tpu.memory_space<vmem>>) attributes {dimension_semantics = [#tpu.dimension_semantics<parallel>], iteration_bounds = array<i64: 1>, scalar_prefetch = 0 : i64, scratch_operands = 0 : i64, tpu.core_type = #tpu.core_type<tc>, window_params = [{transform_indices = @transform_0, window_bounds = array<i64: 32, 128>}, {pipeline_mode = #tpu.pipeline_mode<synchronous>, transform_indices = @transform_1, window_bounds = array<i64: 1, 128>}, {pipeline_mode = #tpu.pipeline_mode<synchronous>, transform_indices = @transform_2, window_bounds = array<i64: 1, 128>}, {transform_indices = @transform_3, window_bounds = array<i64: 32, 128>}]} {
    %c0 = arith.constant 0 : index
    %c0_0 = arith.constant 0 : index
    %0 = vector.load %arg1[%c0, %c0_0] : memref<32x128xbf16, #tpu.memory_space<vmem>>, vector<32x128xbf16>
    %1 = arith.extf %0 : vector<32x128xbf16> to vector<32x128xf32>
    %c0_1 = arith.constant 0 : index
    %c0_2 = arith.constant 0 : index
    %2 = vector.load %arg2[%c0_1, %c0_2] : memref<1x128xf32, #tpu.memory_space<vmem>>, vector<1x128xf32>
    %3 = vector.broadcast %2 : vector<1x128xf32> to vector<32x128xf32>
    %4 = arith.mulf %1, %3 : vector<32x128xf32>
    %c0_3 = arith.constant 0 : index
    %c0_4 = arith.constant 0 : index
    %5 = vector.load %arg3[%c0_3, %c0_4] : memref<1x128xf32, #tpu.memory_space<vmem>>, vector<1x128xf32>
    %6 = vector.broadcast %5 : vector<1x128xf32> to vector<32x128xf32>
    %7 = arith.addf %4, %6 : vector<32x128xf32>
    %cst = arith.constant 0.000000e+00 : f32
    %8 = vector.broadcast %cst : f32 to vector<32x128xf32>
    %9 = arith.cmpf oge, %7, %8 : vector<32x128xf32>
    %cst_5 = arith.constant 1.000000e-01 : f32
    %10 = vector.broadcast %cst_5 : f32 to vector<32x128xf32>
    %11 = arith.mulf %10, %7 : vector<32x128xf32>
    %12 = arith.select %9, %7, %11 : vector<32x128xi1>, vector<32x128xf32>
    %13 = arith.truncf %12 : vector<32x128xf32> to vector<32x128xbf16>
    %c0_6 = arith.constant 0 : index
    %c0_7 = arith.constant 0 : index
    %14 = vector.load %arg4[%c0_6, %c0_7] : memref<32x128xbf16, #tpu.memory_space<vmem>>, vector<32x128xbf16>
    tpu.vector_store %arg4[%c0_6, %c0_7], %13 {strides = array<i32>} : memref<32x128xbf16, #tpu.memory_space<vmem>>, vector<32x128xbf16>,
    return
  }
  func.func @transform_0(%arg0: i32) -> (i32, i32) {
    %c0_i32 = arith.constant 0 : i32
    %c0_i32_0 = arith.constant 0 : i32
    return %arg0, %c0_i32 : i32, i32
  }
  func.func @transform_1(%arg0: i32) -> (i32, i32) {
    %c0_i32 = arith.constant 0 : i32
    %c0_i32_0 = arith.constant 0 : i32
    %c0_i32_1 = arith.constant 0 : i32
    return %c0_i32, %c0_i32_0 : i32, i32
  }
  func.func @transform_2(%arg0: i32) -> (i32, i32) {
    %c0_i32 = arith.constant 0 : i32
    %c0_i32_0 = arith.constant 0 : i32
    %c0_i32_1 = arith.constant 0 : i32
    return %c0_i32, %c0_i32_0 : i32, i32
  }
  func.func @transform_3(%arg0: i32) -> (i32, i32) {
    %c0_i32 = arith.constant 0 : i32
    %c0_i32_0 = arith.constant 0 : i32
    return %arg0, %c0_i32 : i32, i32
  }
}

module attributes {stable_mosaic.version = 11 : i64} {
  func.func @_gemm_stats_kernel(%arg0: i32, %arg1: memref<32x576xbf16, #tpu.memory_space<vmem>>, %arg2: memref<576x128xbf16, #tpu.memory_space<vmem>>, %arg3: memref<32x128xbf16, #tpu.memory_space<vmem>>, %arg4: memref<1x8x128xf32, #tpu.memory_space<vmem>>, %arg5: memref<1x8x128xf32, #tpu.memory_space<vmem>>) attributes {dimension_semantics = [#tpu.dimension_semantics<parallel>], iteration_bounds = array<i64: 1>, scalar_prefetch = 0 : i64, scratch_operands = 0 : i64, tpu.core_type = #tpu.core_type<tc>, window_params = [{transform_indices = @transform_0, window_bounds = array<i64: 32, 576>}, {pipeline_mode = #tpu.pipeline_mode<synchronous>, transform_indices = @transform_1, window_bounds = array<i64: 576, 128>}, {transform_indices = @transform_2, window_bounds = array<i64: 32, 128>}, {transform_indices = @transform_3, window_bounds = array<i64: 1, 8, 128>}, {transform_indices = @transform_4, window_bounds = array<i64: 1, 8, 128>}]} {
    %c0 = arith.constant 0 : index
    %c0_0 = arith.constant 0 : index
    %0 = vector.load %arg1[%c0, %c0_0] : memref<32x576xbf16, #tpu.memory_space<vmem>>, vector<32x576xbf16>
    %c0_1 = arith.constant 0 : index
    %c0_2 = arith.constant 0 : index
    %1 = vector.load %arg2[%c0_1, %c0_2] : memref<576x128xbf16, #tpu.memory_space<vmem>>, vector<576x128xbf16>
    %cst = arith.constant dense<0.000000e+00> : vector<32x128xf32>
    %2 = tpu.matmul %0, %1, %cst {dimension_numbers = #tpu.dot_dimension_numbers<[1], [0], [0], [1], [0, 0, 1, 1], [], []>} : vector<32x576xbf16>, vector<576x128xbf16>, vector<32x128xf32> -> vector<32x128xf32>
    %3 = arith.truncf %2 : vector<32x128xf32> to vector<32x128xbf16>
    %c0_3 = arith.constant 0 : index
    %c0_4 = arith.constant 0 : index
    %4 = vector.load %arg3[%c0_3, %c0_4] : memref<32x128xbf16, #tpu.memory_space<vmem>>, vector<32x128xbf16>
    tpu.vector_store %arg3[%c0_3, %c0_4], %3 {strides = array<i32>} : memref<32x128xbf16, #tpu.memory_space<vmem>>, vector<32x128xbf16>,
    %cst_5 = arith.constant dense<0.000000e+00> : vector<128xf32>
    %5 = vector.multi_reduction <add>, %2, %cst_5 [0] : vector<32x128xf32> to vector<128xf32>
    %6 = vector.shape_cast %5 : vector<128xf32> to vector<1x128xf32>
    %7 = arith.mulf %2, %2 : vector<32x128xf32>
    %cst_6 = arith.constant dense<0.000000e+00> : vector<128xf32>
    %8 = vector.multi_reduction <add>, %7, %cst_6 [0] : vector<32x128xf32> to vector<128xf32>
    %9 = vector.shape_cast %8 : vector<128xf32> to vector<1x128xf32>
    %10 = vector.shape_cast %6 : vector<1x128xf32> to vector<1x128xf32>
    %11 = vector.broadcast %10 : vector<1x128xf32> to vector<8x128xf32>
    %12 = vector.shape_cast %11 : vector<8x128xf32> to vector<1x8x128xf32>
    %c0_7 = arith.constant 0 : index
    %c0_8 = arith.constant 0 : index
    %c0_9 = arith.constant 0 : index
    %13 = vector.load %arg4[%c0_7, %c0_8, %c0_9] : memref<1x8x128xf32, #tpu.memory_space<vmem>>, vector<1x8x128xf32>
    tpu.vector_store %arg4[%c0_7, %c0_8, %c0_9], %12 {strides = array<i32>} : memref<1x8x128xf32, #tpu.memory_space<vmem>>, vector<1x8x128xf32>,
    %14 = vector.shape_cast %9 : vector<1x128xf32> to vector<1x128xf32>
    %15 = vector.broadcast %14 : vector<1x128xf32> to vector<8x128xf32>
    %16 = vector.shape_cast %15 : vector<8x128xf32> to vector<1x8x128xf32>
    %c0_10 = arith.constant 0 : index
    %c0_11 = arith.constant 0 : index
    %c0_12 = arith.constant 0 : index
    %17 = vector.load %arg5[%c0_10, %c0_11, %c0_12] : memref<1x8x128xf32, #tpu.memory_space<vmem>>, vector<1x8x128xf32>
    tpu.vector_store %arg5[%c0_10, %c0_11, %c0_12], %16 {strides = array<i32>} : memref<1x8x128xf32, #tpu.memory_space<vmem>>, vector<1x8x128xf32>,
    return
  }
  func.func @transform_0(%arg0: i32) -> (i32, i32) {
    %c0_i32 = arith.constant 0 : i32
    %c0_i32_0 = arith.constant 0 : i32
    return %arg0, %c0_i32 : i32, i32
  }
  func.func @transform_1(%arg0: i32) -> (i32, i32) {
    %c0_i32 = arith.constant 0 : i32
    %c0_i32_0 = arith.constant 0 : i32
    %c0_i32_1 = arith.constant 0 : i32
    return %c0_i32, %c0_i32_0 : i32, i32
  }
  func.func @transform_2(%arg0: i32) -> (i32, i32) {
    %c0_i32 = arith.constant 0 : i32
    %c0_i32_0 = arith.constant 0 : i32
    return %arg0, %c0_i32 : i32, i32
  }
  func.func @transform_3(%arg0: i32) -> (i32, i32, i32) {
    %c0_i32 = arith.constant 0 : i32
    %c0_i32_0 = arith.constant 0 : i32
    %c0_i32_1 = arith.constant 0 : i32
    return %arg0, %c0_i32, %c0_i32_0 : i32, i32, i32
  }
  func.func @transform_4(%arg0: i32) -> (i32, i32, i32) {
    %c0_i32 = arith.constant 0 : i32
    %c0_i32_0 = arith.constant 0 : i32
    %c0_i32_1 = arith.constant 0 : i32
    return %arg0, %c0_i32, %c0_i32_0 : i32, i32, i32
  }
}

module attributes {stable_mosaic.version = 11 : i64} {
  func.func @_gemm_stats_kernel(%arg0: i32, %arg1: memref<128x1024xbf16, #tpu.memory_space<vmem>>, %arg2: memref<1024x128xbf16, #tpu.memory_space<vmem>>, %arg3: memref<128x128xbf16, #tpu.memory_space<vmem>>, %arg4: memref<1x8x128xf32, #tpu.memory_space<vmem>>, %arg5: memref<1x8x128xf32, #tpu.memory_space<vmem>>) attributes {dimension_semantics = [#tpu.dimension_semantics<parallel>], iteration_bounds = array<i64: 1>, scalar_prefetch = 0 : i64, scratch_operands = 0 : i64, tpu.core_type = #tpu.core_type<tc>, window_params = [{transform_indices = @transform_0, window_bounds = array<i64: 128, 1024>}, {pipeline_mode = #tpu.pipeline_mode<synchronous>, transform_indices = @transform_1, window_bounds = array<i64: 1024, 128>}, {transform_indices = @transform_2, window_bounds = array<i64: 128, 128>}, {transform_indices = @transform_3, window_bounds = array<i64: 1, 8, 128>}, {transform_indices = @transform_4, window_bounds = array<i64: 1, 8, 128>}]} {
    %c0 = arith.constant 0 : index
    %c0_0 = arith.constant 0 : index
    %0 = vector.load %arg1[%c0, %c0_0] : memref<128x1024xbf16, #tpu.memory_space<vmem>>, vector<128x1024xbf16>
    %c0_1 = arith.constant 0 : index
    %c0_2 = arith.constant 0 : index
    %1 = vector.load %arg2[%c0_1, %c0_2] : memref<1024x128xbf16, #tpu.memory_space<vmem>>, vector<1024x128xbf16>
    %cst = arith.constant dense<0.000000e+00> : vector<128x128xf32>
    %2 = tpu.matmul %0, %1, %cst {dimension_numbers = #tpu.dot_dimension_numbers<[1], [0], [0], [1], [0, 0, 1, 1], [], []>} : vector<128x1024xbf16>, vector<1024x128xbf16>, vector<128x128xf32> -> vector<128x128xf32>
    %3 = arith.truncf %2 : vector<128x128xf32> to vector<128x128xbf16>
    %c0_3 = arith.constant 0 : index
    %c0_4 = arith.constant 0 : index
    %4 = vector.load %arg3[%c0_3, %c0_4] : memref<128x128xbf16, #tpu.memory_space<vmem>>, vector<128x128xbf16>
    tpu.vector_store %arg3[%c0_3, %c0_4], %3 {strides = array<i32>} : memref<128x128xbf16, #tpu.memory_space<vmem>>, vector<128x128xbf16>,
    %cst_5 = arith.constant dense<0.000000e+00> : vector<128xf32>
    %5 = vector.multi_reduction <add>, %2, %cst_5 [0] : vector<128x128xf32> to vector<128xf32>
    %6 = vector.shape_cast %5 : vector<128xf32> to vector<1x128xf32>
    %7 = arith.mulf %2, %2 : vector<128x128xf32>
    %cst_6 = arith.constant dense<0.000000e+00> : vector<128xf32>
    %8 = vector.multi_reduction <add>, %7, %cst_6 [0] : vector<128x128xf32> to vector<128xf32>
    %9 = vector.shape_cast %8 : vector<128xf32> to vector<1x128xf32>
    %10 = vector.shape_cast %6 : vector<1x128xf32> to vector<1x128xf32>
    %11 = vector.broadcast %10 : vector<1x128xf32> to vector<8x128xf32>
    %12 = vector.shape_cast %11 : vector<8x128xf32> to vector<1x8x128xf32>
    %c0_7 = arith.constant 0 : index
    %c0_8 = arith.constant 0 : index
    %c0_9 = arith.constant 0 : index
    %13 = vector.load %arg4[%c0_7, %c0_8, %c0_9] : memref<1x8x128xf32, #tpu.memory_space<vmem>>, vector<1x8x128xf32>
    tpu.vector_store %arg4[%c0_7, %c0_8, %c0_9], %12 {strides = array<i32>} : memref<1x8x128xf32, #tpu.memory_space<vmem>>, vector<1x8x128xf32>,
    %14 = vector.shape_cast %9 : vector<1x128xf32> to vector<1x128xf32>
    %15 = vector.broadcast %14 : vector<1x128xf32> to vector<8x128xf32>
    %16 = vector.shape_cast %15 : vector<8x128xf32> to vector<1x8x128xf32>
    %c0_10 = arith.constant 0 : index
    %c0_11 = arith.constant 0 : index
    %c0_12 = arith.constant 0 : index
    %17 = vector.load %arg5[%c0_10, %c0_11, %c0_12] : memref<1x8x128xf32, #tpu.memory_space<vmem>>, vector<1x8x128xf32>
    tpu.vector_store %arg5[%c0_10, %c0_11, %c0_12], %16 {strides = array<i32>} : memref<1x8x128xf32, #tpu.memory_space<vmem>>, vector<1x8x128xf32>,
    return
  }
  func.func @transform_0(%arg0: i32) -> (i32, i32) {
    %c0_i32 = arith.constant 0 : i32
    %c0_i32_0 = arith.constant 0 : i32
    return %arg0, %c0_i32 : i32, i32
  }
  func.func @transform_1(%arg0: i32) -> (i32, i32) {
    %c0_i32 = arith.constant 0 : i32
    %c0_i32_0 = arith.constant 0 : i32
    %c0_i32_1 = arith.constant 0 : i32
    return %c0_i32, %c0_i32_0 : i32, i32
  }
  func.func @transform_2(%arg0: i32) -> (i32, i32) {
    %c0_i32 = arith.constant 0 : i32
    %c0_i32_0 = arith.constant 0 : i32
    return %arg0, %c0_i32 : i32, i32
  }
  func.func @transform_3(%arg0: i32) -> (i32, i32, i32) {
    %c0_i32 = arith.constant 0 : i32
    %c0_i32_0 = arith.constant 0 : i32
    %c0_i32_1 = arith.constant 0 : i32
    return %arg0, %c0_i32, %c0_i32_0 : i32, i32, i32
  }
  func.func @transform_4(%arg0: i32) -> (i32, i32, i32) {
    %c0_i32 = arith.constant 0 : i32
    %c0_i32_0 = arith.constant 0 : i32
    %c0_i32_1 = arith.constant 0 : i32
    return %arg0, %c0_i32, %c0_i32_0 : i32, i32, i32
  }
}

module attributes {stable_mosaic.version = 11 : i64} {
  func.func @_gemm_stats_kernel(%arg0: i32, %arg1: memref<128x144xbf16, #tpu.memory_space<vmem>>, %arg2: memref<144x128xbf16, #tpu.memory_space<vmem>>, %arg3: memref<128x128xbf16, #tpu.memory_space<vmem>>, %arg4: memref<1x8x128xf32, #tpu.memory_space<vmem>>, %arg5: memref<1x8x128xf32, #tpu.memory_space<vmem>>) attributes {dimension_semantics = [#tpu.dimension_semantics<parallel>], iteration_bounds = array<i64: 1>, scalar_prefetch = 0 : i64, scratch_operands = 0 : i64, tpu.core_type = #tpu.core_type<tc>, window_params = [{transform_indices = @transform_0, window_bounds = array<i64: 128, 144>}, {pipeline_mode = #tpu.pipeline_mode<synchronous>, transform_indices = @transform_1, window_bounds = array<i64: 144, 128>}, {transform_indices = @transform_2, window_bounds = array<i64: 128, 128>}, {transform_indices = @transform_3, window_bounds = array<i64: 1, 8, 128>}, {transform_indices = @transform_4, window_bounds = array<i64: 1, 8, 128>}]} {
    %c0 = arith.constant 0 : index
    %c0_0 = arith.constant 0 : index
    %0 = vector.load %arg1[%c0, %c0_0] : memref<128x144xbf16, #tpu.memory_space<vmem>>, vector<128x144xbf16>
    %c0_1 = arith.constant 0 : index
    %c0_2 = arith.constant 0 : index
    %1 = vector.load %arg2[%c0_1, %c0_2] : memref<144x128xbf16, #tpu.memory_space<vmem>>, vector<144x128xbf16>
    %cst = arith.constant dense<0.000000e+00> : vector<128x128xf32>
    %2 = tpu.matmul %0, %1, %cst {dimension_numbers = #tpu.dot_dimension_numbers<[1], [0], [0], [1], [0, 0, 1, 1], [], []>} : vector<128x144xbf16>, vector<144x128xbf16>, vector<128x128xf32> -> vector<128x128xf32>
    %3 = arith.truncf %2 : vector<128x128xf32> to vector<128x128xbf16>
    %c0_3 = arith.constant 0 : index
    %c0_4 = arith.constant 0 : index
    %4 = vector.load %arg3[%c0_3, %c0_4] : memref<128x128xbf16, #tpu.memory_space<vmem>>, vector<128x128xbf16>
    tpu.vector_store %arg3[%c0_3, %c0_4], %3 {strides = array<i32>} : memref<128x128xbf16, #tpu.memory_space<vmem>>, vector<128x128xbf16>,
    %cst_5 = arith.constant dense<0.000000e+00> : vector<128xf32>
    %5 = vector.multi_reduction <add>, %2, %cst_5 [0] : vector<128x128xf32> to vector<128xf32>
    %6 = vector.shape_cast %5 : vector<128xf32> to vector<1x128xf32>
    %7 = arith.mulf %2, %2 : vector<128x128xf32>
    %cst_6 = arith.constant dense<0.000000e+00> : vector<128xf32>
    %8 = vector.multi_reduction <add>, %7, %cst_6 [0] : vector<128x128xf32> to vector<128xf32>
    %9 = vector.shape_cast %8 : vector<128xf32> to vector<1x128xf32>
    %10 = vector.shape_cast %6 : vector<1x128xf32> to vector<1x128xf32>
    %11 = vector.broadcast %10 : vector<1x128xf32> to vector<8x128xf32>
    %12 = vector.shape_cast %11 : vector<8x128xf32> to vector<1x8x128xf32>
    %c0_7 = arith.constant 0 : index
    %c0_8 = arith.constant 0 : index
    %c0_9 = arith.constant 0 : index
    %13 = vector.load %arg4[%c0_7, %c0_8, %c0_9] : memref<1x8x128xf32, #tpu.memory_space<vmem>>, vector<1x8x128xf32>
    tpu.vector_store %arg4[%c0_7, %c0_8, %c0_9], %12 {strides = array<i32>} : memref<1x8x128xf32, #tpu.memory_space<vmem>>, vector<1x8x128xf32>,
    %14 = vector.shape_cast %9 : vector<1x128xf32> to vector<1x128xf32>
    %15 = vector.broadcast %14 : vector<1x128xf32> to vector<8x128xf32>
    %16 = vector.shape_cast %15 : vector<8x128xf32> to vector<1x8x128xf32>
    %c0_10 = arith.constant 0 : index
    %c0_11 = arith.constant 0 : index
    %c0_12 = arith.constant 0 : index
    %17 = vector.load %arg5[%c0_10, %c0_11, %c0_12] : memref<1x8x128xf32, #tpu.memory_space<vmem>>, vector<1x8x128xf32>
    tpu.vector_store %arg5[%c0_10, %c0_11, %c0_12], %16 {strides = array<i32>} : memref<1x8x128xf32, #tpu.memory_space<vmem>>, vector<1x8x128xf32>,
    return
  }
  func.func @transform_0(%arg0: i32) -> (i32, i32) {
    %c0_i32 = arith.constant 0 : i32
    %c0_i32_0 = arith.constant 0 : i32
    return %arg0, %c0_i32 : i32, i32
  }
  func.func @transform_1(%arg0: i32) -> (i32, i32) {
    %c0_i32 = arith.constant 0 : i32
    %c0_i32_0 = arith.constant 0 : i32
    %c0_i32_1 = arith.constant 0 : i32
    return %c0_i32, %c0_i32_0 : i32, i32
  }
  func.func @transform_2(%arg0: i32) -> (i32, i32) {
    %c0_i32 = arith.constant 0 : i32
    %c0_i32_0 = arith.constant 0 : i32
    return %arg0, %c0_i32 : i32, i32
  }
  func.func @transform_3(%arg0: i32) -> (i32, i32, i32) {
    %c0_i32 = arith.constant 0 : i32
    %c0_i32_0 = arith.constant 0 : i32
    %c0_i32_1 = arith.constant 0 : i32
    return %arg0, %c0_i32, %c0_i32_0 : i32, i32, i32
  }
  func.func @transform_4(%arg0: i32) -> (i32, i32, i32) {
    %c0_i32 = arith.constant 0 : i32
    %c0_i32_0 = arith.constant 0 : i32
    %c0_i32_1 = arith.constant 0 : i32
    return %arg0, %c0_i32, %c0_i32_0 : i32, i32, i32
  }
}

module attributes {stable_mosaic.version = 11 : i64} {
  func.func @_gemm_stats_kernel(%arg0: i32, %arg1: memref<512x256xbf16, #tpu.memory_space<vmem>>, %arg2: memref<256x128xbf16, #tpu.memory_space<vmem>>, %arg3: memref<512x128xbf16, #tpu.memory_space<vmem>>, %arg4: memref<1x8x128xf32, #tpu.memory_space<vmem>>, %arg5: memref<1x8x128xf32, #tpu.memory_space<vmem>>) attributes {dimension_semantics = [#tpu.dimension_semantics<parallel>], iteration_bounds = array<i64: 1>, scalar_prefetch = 0 : i64, scratch_operands = 0 : i64, tpu.core_type = #tpu.core_type<tc>, window_params = [{transform_indices = @transform_0, window_bounds = array<i64: 512, 256>}, {pipeline_mode = #tpu.pipeline_mode<synchronous>, transform_indices = @transform_1, window_bounds = array<i64: 256, 128>}, {transform_indices = @transform_2, window_bounds = array<i64: 512, 128>}, {transform_indices = @transform_3, window_bounds = array<i64: 1, 8, 128>}, {transform_indices = @transform_4, window_bounds = array<i64: 1, 8, 128>}]} {
    %c0 = arith.constant 0 : index
    %c0_0 = arith.constant 0 : index
    %0 = vector.load %arg1[%c0, %c0_0] : memref<512x256xbf16, #tpu.memory_space<vmem>>, vector<512x256xbf16>
    %c0_1 = arith.constant 0 : index
    %c0_2 = arith.constant 0 : index
    %1 = vector.load %arg2[%c0_1, %c0_2] : memref<256x128xbf16, #tpu.memory_space<vmem>>, vector<256x128xbf16>
    %cst = arith.constant dense<0.000000e+00> : vector<512x128xf32>
    %2 = tpu.matmul %0, %1, %cst {dimension_numbers = #tpu.dot_dimension_numbers<[1], [0], [0], [1], [0, 0, 1, 1], [], []>} : vector<512x256xbf16>, vector<256x128xbf16>, vector<512x128xf32> -> vector<512x128xf32>
    %3 = arith.truncf %2 : vector<512x128xf32> to vector<512x128xbf16>
    %c0_3 = arith.constant 0 : index
    %c0_4 = arith.constant 0 : index
    %4 = vector.load %arg3[%c0_3, %c0_4] : memref<512x128xbf16, #tpu.memory_space<vmem>>, vector<512x128xbf16>
    tpu.vector_store %arg3[%c0_3, %c0_4], %3 {strides = array<i32>} : memref<512x128xbf16, #tpu.memory_space<vmem>>, vector<512x128xbf16>,
    %cst_5 = arith.constant dense<0.000000e+00> : vector<128xf32>
    %5 = vector.multi_reduction <add>, %2, %cst_5 [0] : vector<512x128xf32> to vector<128xf32>
    %6 = vector.shape_cast %5 : vector<128xf32> to vector<1x128xf32>
    %7 = arith.mulf %2, %2 : vector<512x128xf32>
    %cst_6 = arith.constant dense<0.000000e+00> : vector<128xf32>
    %8 = vector.multi_reduction <add>, %7, %cst_6 [0] : vector<512x128xf32> to vector<128xf32>
    %9 = vector.shape_cast %8 : vector<128xf32> to vector<1x128xf32>
    %10 = vector.shape_cast %6 : vector<1x128xf32> to vector<1x128xf32>
    %11 = vector.broadcast %10 : vector<1x128xf32> to vector<8x128xf32>
    %12 = vector.shape_cast %11 : vector<8x128xf32> to vector<1x8x128xf32>
    %c0_7 = arith.constant 0 : index
    %c0_8 = arith.constant 0 : index
    %c0_9 = arith.constant 0 : index
    %13 = vector.load %arg4[%c0_7, %c0_8, %c0_9] : memref<1x8x128xf32, #tpu.memory_space<vmem>>, vector<1x8x128xf32>
    tpu.vector_store %arg4[%c0_7, %c0_8, %c0_9], %12 {strides = array<i32>} : memref<1x8x128xf32, #tpu.memory_space<vmem>>, vector<1x8x128xf32>,
    %14 = vector.shape_cast %9 : vector<1x128xf32> to vector<1x128xf32>
    %15 = vector.broadcast %14 : vector<1x128xf32> to vector<8x128xf32>
    %16 = vector.shape_cast %15 : vector<8x128xf32> to vector<1x8x128xf32>
    %c0_10 = arith.constant 0 : index
    %c0_11 = arith.constant 0 : index
    %c0_12 = arith.constant 0 : index
    %17 = vector.load %arg5[%c0_10, %c0_11, %c0_12] : memref<1x8x128xf32, #tpu.memory_space<vmem>>, vector<1x8x128xf32>
    tpu.vector_store %arg5[%c0_10, %c0_11, %c0_12], %16 {strides = array<i32>} : memref<1x8x128xf32, #tpu.memory_space<vmem>>, vector<1x8x128xf32>,
    return
  }
  func.func @transform_0(%arg0: i32) -> (i32, i32) {
    %c0_i32 = arith.constant 0 : i32
    %c0_i32_0 = arith.constant 0 : i32
    return %arg0, %c0_i32 : i32, i32
  }
  func.func @transform_1(%arg0: i32) -> (i32, i32) {
    %c0_i32 = arith.constant 0 : i32
    %c0_i32_0 = arith.constant 0 : i32
    %c0_i32_1 = arith.constant 0 : i32
    return %c0_i32, %c0_i32_0 : i32, i32
  }
  func.func @transform_2(%arg0: i32) -> (i32, i32) {
    %c0_i32 = arith.constant 0 : i32
    %c0_i32_0 = arith.constant 0 : i32
    return %arg0, %c0_i32 : i32, i32
  }
  func.func @transform_3(%arg0: i32) -> (i32, i32, i32) {
    %c0_i32 = arith.constant 0 : i32
    %c0_i32_0 = arith.constant 0 : i32
    %c0_i32_1 = arith.constant 0 : i32
    return %arg0, %c0_i32, %c0_i32_0 : i32, i32, i32
  }
  func.func @transform_4(%arg0: i32) -> (i32, i32, i32) {
    %c0_i32 = arith.constant 0 : i32
    %c0_i32_0 = arith.constant 0 : i32
    %c0_i32_1 = arith.constant 0 : i32
    return %arg0, %c0_i32, %c0_i32_0 : i32, i32, i32
  }
}

module attributes {stable_mosaic.version = 11 : i64} {
  func.func @_gemm_stats_kernel(%arg0: i32, %arg1: memref<512x36xbf16, #tpu.memory_space<vmem>>, %arg2: memref<36x128xbf16, #tpu.memory_space<vmem>>, %arg3: memref<512x128xbf16, #tpu.memory_space<vmem>>, %arg4: memref<1x8x128xf32, #tpu.memory_space<vmem>>, %arg5: memref<1x8x128xf32, #tpu.memory_space<vmem>>) attributes {dimension_semantics = [#tpu.dimension_semantics<parallel>], iteration_bounds = array<i64: 1>, scalar_prefetch = 0 : i64, scratch_operands = 0 : i64, tpu.core_type = #tpu.core_type<tc>, window_params = [{transform_indices = @transform_0, window_bounds = array<i64: 512, 36>}, {pipeline_mode = #tpu.pipeline_mode<synchronous>, transform_indices = @transform_1, window_bounds = array<i64: 36, 128>}, {transform_indices = @transform_2, window_bounds = array<i64: 512, 128>}, {transform_indices = @transform_3, window_bounds = array<i64: 1, 8, 128>}, {transform_indices = @transform_4, window_bounds = array<i64: 1, 8, 128>}]} {
    %c0 = arith.constant 0 : index
    %c0_0 = arith.constant 0 : index
    %0 = vector.load %arg1[%c0, %c0_0] : memref<512x36xbf16, #tpu.memory_space<vmem>>, vector<512x36xbf16>
    %c0_1 = arith.constant 0 : index
    %c0_2 = arith.constant 0 : index
    %1 = vector.load %arg2[%c0_1, %c0_2] : memref<36x128xbf16, #tpu.memory_space<vmem>>, vector<36x128xbf16>
    %cst = arith.constant dense<0.000000e+00> : vector<512x128xf32>
    %2 = tpu.matmul %0, %1, %cst {dimension_numbers = #tpu.dot_dimension_numbers<[1], [0], [0], [1], [0, 0, 1, 1], [], []>} : vector<512x36xbf16>, vector<36x128xbf16>, vector<512x128xf32> -> vector<512x128xf32>
    %3 = arith.truncf %2 : vector<512x128xf32> to vector<512x128xbf16>
    %c0_3 = arith.constant 0 : index
    %c0_4 = arith.constant 0 : index
    %4 = vector.load %arg3[%c0_3, %c0_4] : memref<512x128xbf16, #tpu.memory_space<vmem>>, vector<512x128xbf16>
    tpu.vector_store %arg3[%c0_3, %c0_4], %3 {strides = array<i32>} : memref<512x128xbf16, #tpu.memory_space<vmem>>, vector<512x128xbf16>,
    %cst_5 = arith.constant dense<0.000000e+00> : vector<128xf32>
    %5 = vector.multi_reduction <add>, %2, %cst_5 [0] : vector<512x128xf32> to vector<128xf32>
    %6 = vector.shape_cast %5 : vector<128xf32> to vector<1x128xf32>
    %7 = arith.mulf %2, %2 : vector<512x128xf32>
    %cst_6 = arith.constant dense<0.000000e+00> : vector<128xf32>
    %8 = vector.multi_reduction <add>, %7, %cst_6 [0] : vector<512x128xf32> to vector<128xf32>
    %9 = vector.shape_cast %8 : vector<128xf32> to vector<1x128xf32>
    %10 = vector.shape_cast %6 : vector<1x128xf32> to vector<1x128xf32>
    %11 = vector.broadcast %10 : vector<1x128xf32> to vector<8x128xf32>
    %12 = vector.shape_cast %11 : vector<8x128xf32> to vector<1x8x128xf32>
    %c0_7 = arith.constant 0 : index
    %c0_8 = arith.constant 0 : index
    %c0_9 = arith.constant 0 : index
    %13 = vector.load %arg4[%c0_7, %c0_8, %c0_9] : memref<1x8x128xf32, #tpu.memory_space<vmem>>, vector<1x8x128xf32>
    tpu.vector_store %arg4[%c0_7, %c0_8, %c0_9], %12 {strides = array<i32>} : memref<1x8x128xf32, #tpu.memory_space<vmem>>, vector<1x8x128xf32>,
    %14 = vector.shape_cast %9 : vector<1x128xf32> to vector<1x128xf32>
    %15 = vector.broadcast %14 : vector<1x128xf32> to vector<8x128xf32>
    %16 = vector.shape_cast %15 : vector<8x128xf32> to vector<1x8x128xf32>
    %c0_10 = arith.constant 0 : index
    %c0_11 = arith.constant 0 : index
    %c0_12 = arith.constant 0 : index
    %17 = vector.load %arg5[%c0_10, %c0_11, %c0_12] : memref<1x8x128xf32, #tpu.memory_space<vmem>>, vector<1x8x128xf32>
    tpu.vector_store %arg5[%c0_10, %c0_11, %c0_12], %16 {strides = array<i32>} : memref<1x8x128xf32, #tpu.memory_space<vmem>>, vector<1x8x128xf32>,
    return
  }
  func.func @transform_0(%arg0: i32) -> (i32, i32) {
    %c0_i32 = arith.constant 0 : i32
    %c0_i32_0 = arith.constant 0 : i32
    return %arg0, %c0_i32 : i32, i32
  }
  func.func @transform_1(%arg0: i32) -> (i32, i32) {
    %c0_i32 = arith.constant 0 : i32
    %c0_i32_0 = arith.constant 0 : i32
    %c0_i32_1 = arith.constant 0 : i32
    return %c0_i32, %c0_i32_0 : i32, i32
  }
  func.func @transform_2(%arg0: i32) -> (i32, i32) {
    %c0_i32 = arith.constant 0 : i32
    %c0_i32_0 = arith.constant 0 : i32
    return %arg0, %c0_i32 : i32, i32
  }
  func.func @transform_3(%arg0: i32) -> (i32, i32, i32) {
    %c0_i32 = arith.constant 0 : i32
    %c0_i32_0 = arith.constant 0 : i32
    %c0_i32_1 = arith.constant 0 : i32
    return %arg0, %c0_i32, %c0_i32_0 : i32, i32, i32
  }
  func.func @transform_4(%arg0: i32) -> (i32, i32, i32) {
    %c0_i32 = arith.constant 0 : i32
    %c0_i32_0 = arith.constant 0 : i32
    %c0_i32_1 = arith.constant 0 : i32
    return %arg0, %c0_i32, %c0_i32_0 : i32, i32, i32
  }
}

module attributes {stable_mosaic.version = 11 : i64} {
  func.func @_gemm_stats_kernel(%arg0: i32, %arg1: memref<512x36xbf16, #tpu.memory_space<vmem>>, %arg2: memref<36x128xbf16, #tpu.memory_space<vmem>>, %arg3: memref<512x128xbf16, #tpu.memory_space<vmem>>, %arg4: memref<1x8x128xf32, #tpu.memory_space<vmem>>, %arg5: memref<1x8x128xf32, #tpu.memory_space<vmem>>) attributes {dimension_semantics = [#tpu.dimension_semantics<parallel>], iteration_bounds = array<i64: 1>, scalar_prefetch = 0 : i64, scratch_operands = 0 : i64, tpu.core_type = #tpu.core_type<tc>, window_params = [{transform_indices = @transform_0, window_bounds = array<i64: 512, 36>}, {pipeline_mode = #tpu.pipeline_mode<synchronous>, transform_indices = @transform_1, window_bounds = array<i64: 36, 128>}, {transform_indices = @transform_2, window_bounds = array<i64: 512, 128>}, {transform_indices = @transform_3, window_bounds = array<i64: 1, 8, 128>}, {transform_indices = @transform_4, window_bounds = array<i64: 1, 8, 128>}]} {
    %c0 = arith.constant 0 : index
    %c0_0 = arith.constant 0 : index
    %0 = vector.load %arg1[%c0, %c0_0] : memref<512x36xbf16, #tpu.memory_space<vmem>>, vector<512x36xbf16>
    %c0_1 = arith.constant 0 : index
    %c0_2 = arith.constant 0 : index
    %1 = vector.load %arg2[%c0_1, %c0_2] : memref<36x128xbf16, #tpu.memory_space<vmem>>, vector<36x128xbf16>
    %cst = arith.constant dense<0.000000e+00> : vector<512x128xf32>
    %2 = tpu.matmul %0, %1, %cst {dimension_numbers = #tpu.dot_dimension_numbers<[1], [0], [0], [1], [0, 0, 1, 1], [], []>} : vector<512x36xbf16>, vector<36x128xbf16>, vector<512x128xf32> -> vector<512x128xf32>
    %3 = arith.truncf %2 : vector<512x128xf32> to vector<512x128xbf16>
    %c0_3 = arith.constant 0 : index
    %c0_4 = arith.constant 0 : index
    %4 = vector.load %arg3[%c0_3, %c0_4] : memref<512x128xbf16, #tpu.memory_space<vmem>>, vector<512x128xbf16>
    tpu.vector_store %arg3[%c0_3, %c0_4], %3 {strides = array<i32>} : memref<512x128xbf16, #tpu.memory_space<vmem>>, vector<512x128xbf16>,
    %cst_5 = arith.constant dense<0.000000e+00> : vector<128xf32>
    %5 = vector.multi_reduction <add>, %2, %cst_5 [0] : vector<512x128xf32> to vector<128xf32>
    %6 = vector.shape_cast %5 : vector<128xf32> to vector<1x128xf32>
    %7 = arith.mulf %2, %2 : vector<512x128xf32>
    %cst_6 = arith.constant dense<0.000000e+00> : vector<128xf32>
    %8 = vector.multi_reduction <add>, %7, %cst_6 [0] : vector<512x128xf32> to vector<128xf32>
    %9 = vector.shape_cast %8 : vector<128xf32> to vector<1x128xf32>
    %10 = vector.shape_cast %6 : vector<1x128xf32> to vector<1x128xf32>
    %11 = vector.broadcast %10 : vector<1x128xf32> to vector<8x128xf32>
    %12 = vector.shape_cast %11 : vector<8x128xf32> to vector<1x8x128xf32>
    %c0_7 = arith.constant 0 : index
    %c0_8 = arith.constant 0 : index
    %c0_9 = arith.constant 0 : index
    %13 = vector.load %arg4[%c0_7, %c0_8, %c0_9] : memref<1x8x128xf32, #tpu.memory_space<vmem>>, vector<1x8x128xf32>
    tpu.vector_store %arg4[%c0_7, %c0_8, %c0_9], %12 {strides = array<i32>} : memref<1x8x128xf32, #tpu.memory_space<vmem>>, vector<1x8x128xf32>,
    %14 = vector.shape_cast %9 : vector<1x128xf32> to vector<1x128xf32>
    %15 = vector.broadcast %14 : vector<1x128xf32> to vector<8x128xf32>
    %16 = vector.shape_cast %15 : vector<8x128xf32> to vector<1x8x128xf32>
    %c0_10 = arith.constant 0 : index
    %c0_11 = arith.constant 0 : index
    %c0_12 = arith.constant 0 : index
    %17 = vector.load %arg5[%c0_10, %c0_11, %c0_12] : memref<1x8x128xf32, #tpu.memory_space<vmem>>, vector<1x8x128xf32>
    tpu.vector_store %arg5[%c0_10, %c0_11, %c0_12], %16 {strides = array<i32>} : memref<1x8x128xf32, #tpu.memory_space<vmem>>, vector<1x8x128xf32>,
    return
  }
  func.func @transform_0(%arg0: i32) -> (i32, i32) {
    %c0_i32 = arith.constant 0 : i32
    %c0_i32_0 = arith.constant 0 : i32
    return %arg0, %c0_i32 : i32, i32
  }
  func.func @transform_1(%arg0: i32) -> (i32, i32) {
    %c0_i32 = arith.constant 0 : i32
    %c0_i32_0 = arith.constant 0 : i32
    %c0_i32_1 = arith.constant 0 : i32
    return %c0_i32, %c0_i32_0 : i32, i32
  }
  func.func @transform_2(%arg0: i32) -> (i32, i32) {
    %c0_i32 = arith.constant 0 : i32
    %c0_i32_0 = arith.constant 0 : i32
    return %arg0, %c0_i32 : i32, i32
  }
  func.func @transform_3(%arg0: i32) -> (i32, i32, i32) {
    %c0_i32 = arith.constant 0 : i32
    %c0_i32_0 = arith.constant 0 : i32
    %c0_i32_1 = arith.constant 0 : i32
    return %arg0, %c0_i32, %c0_i32_0 : i32, i32, i32
  }
  func.func @transform_4(%arg0: i32) -> (i32, i32, i32) {
    %c0_i32 = arith.constant 0 : i32
    %c0_i32_0 = arith.constant 0 : i32
    %c0_i32_1 = arith.constant 0 : i32
    return %arg0, %c0_i32, %c0_i32_0 : i32, i32, i32
  }
}

module attributes {stable_mosaic.version = 11 : i64} {
  func.func @_affine_act_kernel(%arg0: i32, %arg1: memref<512x128xbf16, #tpu.memory_space<vmem>>, %arg2: memref<1x128xf32, #tpu.memory_space<vmem>>, %arg3: memref<1x128xf32, #tpu.memory_space<vmem>>, %arg4: memref<512x128xbf16, #tpu.memory_space<vmem>>) attributes {dimension_semantics = [#tpu.dimension_semantics<parallel>], iteration_bounds = array<i64: 1>, scalar_prefetch = 0 : i64, scratch_operands = 0 : i64, tpu.core_type = #tpu.core_type<tc>, window_params = [{transform_indices = @transform_0, window_bounds = array<i64: 512, 128>}, {pipeline_mode = #tpu.pipeline_mode<synchronous>, transform_indices = @transform_1, window_bounds = array<i64: 1, 128>}, {pipeline_mode = #tpu.pipeline_mode<synchronous>, transform_indices = @transform_2, window_bounds = array<i64: 1, 128>}, {transform_indices = @transform_3, window_bounds = array<i64: 512, 128>}]} {
    %c0 = arith.constant 0 : index
    %c0_0 = arith.constant 0 : index
    %0 = vector.load %arg1[%c0, %c0_0] : memref<512x128xbf16, #tpu.memory_space<vmem>>, vector<512x128xbf16>
    %1 = arith.extf %0 : vector<512x128xbf16> to vector<512x128xf32>
    %c0_1 = arith.constant 0 : index
    %c0_2 = arith.constant 0 : index
    %2 = vector.load %arg2[%c0_1, %c0_2] : memref<1x128xf32, #tpu.memory_space<vmem>>, vector<1x128xf32>
    %3 = vector.broadcast %2 : vector<1x128xf32> to vector<512x128xf32>
    %4 = arith.mulf %1, %3 : vector<512x128xf32>
    %c0_3 = arith.constant 0 : index
    %c0_4 = arith.constant 0 : index
    %5 = vector.load %arg3[%c0_3, %c0_4] : memref<1x128xf32, #tpu.memory_space<vmem>>, vector<1x128xf32>
    %6 = vector.broadcast %5 : vector<1x128xf32> to vector<512x128xf32>
    %7 = arith.addf %4, %6 : vector<512x128xf32>
    %8 = math.tanh %7 : vector<512x128xf32>
    %9 = arith.truncf %8 : vector<512x128xf32> to vector<512x128xbf16>
    %c0_5 = arith.constant 0 : index
    %c0_6 = arith.constant 0 : index
    %10 = vector.load %arg4[%c0_5, %c0_6] : memref<512x128xbf16, #tpu.memory_space<vmem>>, vector<512x128xbf16>
    tpu.vector_store %arg4[%c0_5, %c0_6], %9 {strides = array<i32>} : memref<512x128xbf16, #tpu.memory_space<vmem>>, vector<512x128xbf16>,
    return
  }
  func.func @transform_0(%arg0: i32) -> (i32, i32) {
    %c0_i32 = arith.constant 0 : i32
    %c0_i32_0 = arith.constant 0 : i32
    return %arg0, %c0_i32 : i32, i32
  }
  func.func @transform_1(%arg0: i32) -> (i32, i32) {
    %c0_i32 = arith.constant 0 : i32
    %c0_i32_0 = arith.constant 0 : i32
    %c0_i32_1 = arith.constant 0 : i32
    return %c0_i32, %c0_i32_0 : i32, i32
  }
  func.func @transform_2(%arg0: i32) -> (i32, i32) {
    %c0_i32 = arith.constant 0 : i32
    %c0_i32_0 = arith.constant 0 : i32
    %c0_i32_1 = arith.constant 0 : i32
    return %c0_i32, %c0_i32_0 : i32, i32
  }
  func.func @transform_3(%arg0: i32) -> (i32, i32) {
    %c0_i32 = arith.constant 0 : i32
    %c0_i32_0 = arith.constant 0 : i32
    return %arg0, %c0_i32 : i32, i32
  }
}

</mosaic_0001>

<llo_original>
// kernel: _lambda_.37
$region0: #{_lambda_.37}
  #allocation0 [shape = 'u32[]', space=smem, size = 0x4, offset = 0x4, fixed_abs, tag = 'smem constant byte address 0x4 - core index']
  #allocation1 [shape = 'u32[72,128]{1,0:T(1,128)}', space=vmem, size = 0x9000, scoped, tag = 'internal scratch']
  %s0 = inlined_call_operand.vmem [shape: bf16[512,128], index: 0, kind: input, shape index: {}]
  %s1 = inlined_call_operand.vmem [shape: f32[1,128], index: 1, kind: input, shape index: {}]
  %s2 = inlined_call_operand.vmem [shape: f32[1,128], index: 2, kind: input, shape index: {}]
  %s3 = inlined_call_operand.vmem [shape: bf16[512,128], index: 3, kind: output, shape index: {}]
  %s4 = sld [smem:[#allocation0]]
  $region22: #{_lambda_.37} parent=0
    _
  %s6 = ssub.s32 1, %s4
  %s7 = scalar_select 0, %s6, %s4
  // Predicated region
  $region2: #{_lambda_.37} parent=0 // pred_check
    _
  $region3: #{_lambda_.37} parent=0 // pred_check_branch
    %9 = sbr.rel (0) target = $region5
  $region4: #{_lambda_.37} parent=0 // pred_region
    _
  $region5: #{_lambda_.37} parent=0 // pred_fallthru
    _
  // Predicated region
  $region6: #{_lambda_.37} parent=0 // pred_check
    _
  $region7: #{_lambda_.37} parent=0 // pred_check_branch
    %11 = sbr.rel (0) target = $region9
  $region8: #{_lambda_.37} parent=0 // pred_region
    _
  $region9: #{_lambda_.37} parent=0 // pred_fallthru
    _
  // Predicated region
  $region10: #{_lambda_.37} parent=0 // pred_check
    _
  $region11: #{_lambda_.37} parent=0 // pred_check_branch
    %13 = sbr.rel (0) target = $region13
  $region12: #{_lambda_.37} parent=0 // pred_region
    _
  $region13: #{_lambda_.37} parent=0 // pred_fallthru
    _
  %v14 = vld [vmem:[%s0] sm:$0xf]
  %v15 = vld [vmem:[%s0 + $0x4] sm:$0xf]
  %v16 = vld [vmem:[%s0 + $0x8] sm:$0xf]
  %v17 = vld [vmem:[%s0 + $0xc] sm:$0xf]
  %v18 = vld [vmem:[%s0 + $0x10] sm:$0xf]
  %v19 = vld [vmem:[%s0 + $0x14] sm:$0xf]
  %v20 = vld [vmem:[%s0 + $0x18] sm:$0xf]
  %v21 = vld [vmem:[%s0 + $0x1c] sm:$0xf]
  %v22 = vld [vmem:[%s0 + $0x20] sm:$0xf]
  %v23 = vld [vmem:[%s0 + $0x24] sm:$0xf]
  %v24 = vld [vmem:[%s0 + $0x28] sm:$0xf]
  %v25 = vld [vmem:[%s0 + $0x2c] sm:$0xf]
  %v26 = vld [vmem:[%s0 + $0x30] sm:$0xf]
  %v27 = vld [vmem:[%s0 + $0x34] sm:$0xf]
  %v28 = vld [vmem:[%s0 + $0x38] sm:$0xf]
  %v29 = vld [vmem:[%s0 + $0x3c] sm:$0xf]
  %v30 = vld [vmem:[%s0 + $0x40] sm:$0xf]
  %v31 = vld [vmem:[%s0 + $0x44] sm:$0xf]
  %v32 = vld [vmem:[%s0 + $0x48] sm:$0xf]
  %v33 = vld [vmem:[%s0 + $0x4c] sm:$0xf]
  %v34 = vld [vmem:[%s0 + $0x50] sm:$0xf]
  %v35 = vld [vmem:[%s0 + $0x54] sm:$0xf]
  %v36 = vld [vmem:[%s0 + $0x58] sm:$0xf]
  %v37 = vld [vmem:[%s0 + $0x5c] sm:$0xf]
  %v38 = vld [vmem:[%s0 + $0x60] sm:$0xf]
  %v39 = vld [vmem:[%s0 + $0x64] sm:$0xf]
  %v40 = vld [vmem:[%s0 + $0x68] sm:$0xf]
  %v41 = vld [vmem:[%s0 + $0x6c] sm:$0xf]
  %v42 = vld [vmem:[%s0 + $0x70] sm:$0xf]
  %v43 = vld [vmem:[%s0 + $0x74] sm:$0xf]
  %v44 = vld [vmem:[%s0 + $0x78] sm:$0xf]
  %v45 = vld [vmem:[%s0 + $0x7c] sm:$0xf]
  %v46 = vld [vmem:[%s0 + $0x80] sm:$0xf]
  %v47 = vld [vmem:[%s0 + $0x84] sm:$0xf]
  %v48 = vld [vmem:[%s0 + $0x88] sm:$0xf]
  %v49 = vld [vmem:[%s0 + $0x8c] sm:$0xf]
  %v50 = vld [vmem:[%s0 + $0x90] sm:$0xf]
  %v51 = vld [vmem:[%s0 + $0x94] sm:$0xf]
  %v52 = vld [vmem:[%s0 + $0x98] sm:$0xf]
  %v53 = vld [vmem:[%s0 + $0x9c] sm:$0xf]
  %v54 = vld [vmem:[%s0 + $0xa0] sm:$0xf]
  %v55 = vld [vmem:[%s0 + $0xa4] sm:$0xf]
  %v56 = vld [vmem:[%s0 + $0xa8] sm:$0xf]
  %v57 = vld [vmem:[%s0 + $0xac] sm:$0xf]
  %v58 = vld [vmem:[%s0 + $0xb0] sm:$0xf]
  %v59 = vld [vmem:[%s0 + $0xb4] sm:$0xf]
  %v60 = vld [vmem:[%s0 + $0xb8] sm:$0xf]
  %v61 = vld [vmem:[%s0 + $0xbc] sm:$0xf]
  %v62 = vld [vmem:[%s0 + $0xc0] sm:$0xf]
  %v63 = vld [vmem:[%s0 + $0xc4] sm:$0xf]
  %v64 = vld [vmem:[%s0 + $0xc8] sm:$0xf]
  %v65 = vld [vmem:[%s0 + $0xcc] sm:$0xf]
  %v66 = vld [vmem:[%s0 + $0xd0] sm:$0xf]
  %v67 = vld [vmem:[%s0 + $0xd4] sm:$0xf]
  %v68 = vld [vmem:[%s0 + $0xd8] sm:$0xf]
  %v69 = vld [vmem:[%s0 + $0xdc] sm:$0xf]
  %v70 = vld [vmem:[%s0 + $0xe0] sm:$0xf]
  %v71 = vld [vmem:[%s0 + $0xe4] sm:$0xf]
  %v72 = vld [vmem:[%s0 + $0xe8] sm:$0xf]
  %v73 = vld [vmem:[%s0 + $0xec] sm:$0xf]
  %v74 = vld [vmem:[%s0 + $0xf0] sm:$0xf]
  %v75 = vld [vmem:[%s0 + $0xf4] sm:$0xf]
  %v76 = vld [vmem:[%s0 + $0xf8] sm:$0xf]
  %v77 = vld [vmem:[%s0 + $0xfc] sm:$0xf]
  %v78 = vunpack.c.l.bf16 %v14
  %v79 = vunpack.c.l.bf16 %v15
  %v80 = vunpack.c.l.bf16 %v16
  %v81 = vunpack.c.l.bf16 %v17
  %v82 = vunpack.c.l.bf16 %v18
  %v83 = vunpack.c.l.bf16 %v19
  %v84 = vunpack.c.l.bf16 %v20
  %v85 = vunpack.c.l.bf16 %v21
  %v86 = vunpack.c.l.bf16 %v22
  %v87 = vunpack.c.l.bf16 %v23
  %v88 = vunpack.c.l.bf16 %v24
  %v89 = vunpack.c.l.bf16 %v25
  %v90 = vunpack.c.l.bf16 %v26
  %v91 = vunpack.c.l.bf16 %v27
  %v92 = vunpack.c.l.bf16 %v28
  %v93 = vunpack.c.l.bf16 %v29
  %v94 = vunpack.c.l.bf16 %v30
  %v95 = vunpack.c.l.bf16 %v31
  %v96 = vunpack.c.l.bf16 %v32
  %v97 = vunpack.c.l.bf16 %v33
  %v98 = vunpack.c.l.bf16 %v34
  %v99 = vunpack.c.l.bf16 %v35
  %v100 = vunpack.c.l.bf16 %v36
  %v101 = vunpack.c.l.bf16 %v37
  %v102 = vunpack.c.l.bf16 %v38
  %v103 = vunpack.c.l.bf16 %v39
  %v104 = vunpack.c.l.bf16 %v40
  %v105 = vunpack.c.l.bf16 %v41
  %v106 = vunpack.c.l.bf16 %v42
  %v107 = vunpack.c.l.bf16 %v43
  %v108 = vunpack.c.l.bf16 %v44
  %v109 = vunpack.c.l.bf16 %v45
  %v110 = vunpack.c.l.bf16 %v46
  %v111 = vunpack.c.l.bf16 %v47
  %v112 = vunpack.c.l.bf16 %v48
  %v113 = vunpack.c.l.bf16 %v49
  %v114 = vunpack.c.l.bf16 %v50
  %v115 = vunpack.c.l.bf16 %v51
  %v116 = vunpack.c.l.bf16 %v52
  %v117 = vunpack.c.l.bf16 %v53
  %v118 = vunpack.c.l.bf16 %v54
  %v119 = vunpack.c.l.bf16 %v55
  %v120 = vunpack.c.l.bf16 %v56
  %v121 = vunpack.c.l.bf16 %v57
  %v122 = vunpack.c.l.bf16 %v58
  %v123 = vunpack.c.l.bf16 %v59
  %v124 = vunpack.c.l.bf16 %v60
  %v125 = vunpack.c.l.bf16 %v61
  %v126 = vunpack.c.l.bf16 %v62
  %v127 = vunpack.c.l.bf16 %v63
  %v128 = vunpack.c.l.bf16 %v64
  %v129 = vunpack.c.l.bf16 %v65
  %v130 = vunpack.c.l.bf16 %v66
  %v131 = vunpack.c.l.bf16 %v67
  %v132 = vunpack.c.l.bf16 %v68
  %v133 = vunpack.c.l.bf16 %v69
  %v134 = vunpack.c.l.bf16 %v70
  %v135 = vunpack.c.l.bf16 %v71
  %v136 = vunpack.c.l.bf16 %v72
  %v137 = vunpack.c.l.bf16 %v73
  %v138 = vunpack.c.l.bf16 %v74
  %v139 = vunpack.c.l.bf16 %v75
  %v140 = vunpack.c.l.bf16 %v76
  %v141 = vunpack.c.l.bf16 %v77
  %v142 = vld [vmem:[%s1] sm:$0x1]
  %v144 = vperm.slane %v142, 0
  %v146 = vmul.f32 %v78, %v144
  %v147 = vmul.f32 %v79, %v144
  %v148 = vmul.f32 %v80, %v144
  %v149 = vmul.f32 %v81, %v144
  %v150 = vmul.f32 %v82, %v144
  %v151 = vmul.f32 %v83, %v144
  %v152 = vmul.f32 %v84, %v144
  %v153 = vmul.f32 %v85, %v144
  %v154 = vmul.f32 %v86, %v144
  %v155 = vmul.f32 %v87, %v144
  %v156 = vmul.f32 %v88, %v144
  %v157 = vmul.f32 %v89, %v144
  %v158 = vmul.f32 %v90, %v144
  %v159 = vmul.f32 %v91, %v144
  %v160 = vmul.f32 %v92, %v144
  %v161 = vmul.f32 %v93, %v144
  %v162 = vmul.f32 %v94, %v144
  %v163 = vmul.f32 %v95, %v144
  %v164 = vmul.f32 %v96, %v144
  %v165 = vmul.f32 %v97, %v144
  %v166 = vmul.f32 %v98, %v144
  %v167 = vmul.f32 %v99, %v144
  %v168 = vmul.f32 %v100, %v144
  %v169 = vmul.f32 %v101, %v144
  %v170 = vmul.f32 %v102, %v144
  %v171 = vmul.f32 %v103, %v144
  %v172 = vmul.f32 %v104, %v144
  %v173 = vmul.f32 %v105, %v144
  %v174 = vmul.f32 %v106, %v144
  %v175 = vmul.f32 %v107, %v144
  %v176 = vmul.f32 %v108, %v144
  %v177 = vmul.f32 %v109, %v144
  %v178 = vmul.f32 %v110, %v144
  %v179 = vmul.f32 %v111, %v144
  %v180 = vmul.f32 %v112, %v144
  %v181 = vmul.f32 %v113, %v144
  %v182 = vmul.f32 %v114, %v144
  %v183 = vmul.f32 %v115, %v144
  %v184 = vmul.f32 %v116, %v144
  %v185 = vmul.f32 %v117, %v144
  %v186 = vmul.f32 %v118, %v144
  %v187 = vmul.f32 %v119, %v144
  %v188 = vmul.f32 %v120, %v144
  %v189 = vmul.f32 %v121, %v144
  %v190 = vmul.f32 %v122, %v144
  %v191 = vmul.f32 %v123, %v144
  %v192 = vmul.f32 %v124, %v144
  %v193 = vmul.f32 %v125, %v144
  %v194 = vmul.f32 %v126, %v144
  %v195 = vmul.f32 %v127, %v144
  %v196 = vmul.f32 %v128, %v144
  %v197 = vmul.f32 %v129, %v144
  %v198 = vmul.f32 %v130, %v144
  %v199 = vmul.f32 %v131, %v144
  %v200 = vmul.f32 %v132, %v144
  %v201 = vmul.f32 %v133, %v144
  %v202 = vmul.f32 %v134, %v144
  %v203 = vmul.f32 %v135, %v144
  %v204 = vmul.f32 %v136, %v144
  %v205 = vmul.f32 %v137, %v144
  %v206 = vmul.f32 %v138, %v144
  %v207 = vmul.f32 %v139, %v144
  %v208 = vmul.f32 %v140, %v144
  %v209 = vmul.f32 %v141, %v144
  %v210 = vld [vmem:[%s2] sm:$0x1]
  %v212 = vperm.slane %v210, 0
  %v214 = vadd.f32 %v146, %v212
  %v215 = vadd.f32 %v147, %v212
  %v216 = vadd.f32 %v148, %v212
  %v217 = vadd.f32 %v149, %v212
  %v218 = vadd.f32 %v150, %v212
  %v219 = vadd.f32 %v151, %v212
  %v220 = vadd.f32 %v152, %v212
  %v221 = vadd.f32 %v153, %v212
  %v222 = vadd.f32 %v154, %v212
  %v223 = vadd.f32 %v155, %v212
  %v224 = vadd.f32 %v156, %v212
  %v225 = vadd.f32 %v157, %v212
  %v226 = vadd.f32 %v158, %v212
  %v227 = vadd.f32 %v159, %v212
  %v228 = vadd.f32 %v160, %v212
  %v229 = vadd.f32 %v161, %v212
  %v230 = vadd.f32 %v162, %v212
  %v231 = vadd.f32 %v163, %v212
  %v232 = vadd.f32 %v164, %v212
  %v233 = vadd.f32 %v165, %v212
  %v234 = vadd.f32 %v166, %v212
  %v235 = vadd.f32 %v167, %v212
  %v236 = vadd.f32 %v168, %v212
  %v237 = vadd.f32 %v169, %v212
  %v238 = vadd.f32 %v170, %v212
  %v239 = vadd.f32 %v171, %v212
  %v240 = vadd.f32 %v172, %v212
  %v241 = vadd.f32 %v173, %v212
  %v242 = vadd.f32 %v174, %v212
  %v243 = vadd.f32 %v175, %v212
  %v244 = vadd.f32 %v176, %v212
  %v245 = vadd.f32 %v177, %v212
  %v246 = vadd.f32 %v178, %v212
  %v247 = vadd.f32 %v179, %v212
  %v248 = vadd.f32 %v180, %v212
  %v249 = vadd.f32 %v181, %v212
  %v250 = vadd.f32 %v182, %v212
  %v251 = vadd.f32 %v183, %v212
  %v252 = vadd.f32 %v184, %v212
  %v253 = vadd.f32 %v185, %v212
  %v254 = vadd.f32 %v186, %v212
  %v255 = vadd.f32 %v187, %v212
  %v256 = vadd.f32 %v188, %v212
  %v257 = vadd.f32 %v189, %v212
  %v258 = vadd.f32 %v190, %v212
  %v259 = vadd.f32 %v191, %v212
  %v260 = vadd.f32 %v192, %v212
  %v261 = vadd.f32 %v193, %v212
  %v262 = vadd.f32 %v194, %v212
  %v263 = vadd.f32 %v195, %v212
  %v264 = vadd.f32 %v196, %v212
  %v265 = vadd.f32 %v197, %v212
  %v266 = vadd.f32 %v198, %v212
  %v267 = vadd.f32 %v199, %v212
  %v268 = vadd.f32 %v200, %v212
  %v269 = vadd.f32 %v201, %v212
  %v270 = vadd.f32 %v202, %v212
  %v271 = vadd.f32 %v203, %v212
  %v272 = vadd.f32 %v204, %v212
  %v273 = vadd.f32 %v205, %v212
  %v274 = vadd.f32 %v206, %v212
  %v275 = vadd.f32 %v207, %v212
  %v276 = vadd.f32 %v208, %v212
  %v277 = vadd.f32 %v209, %v212
  %vm278 = vcmp.ge.f32.partialorder %v214, 0.0
  %vm279 = vcmp.ge.f32.partialorder %v215, 0.0
  %vm280 = vcmp.ge.f32.partialorder %v216, 0.0
  %vm281 = vcmp.ge.f32.partialorder %v217, 0.0
  %vm282 = vcmp.ge.f32.partialorder %v218, 0.0
  %vm283 = vcmp.ge.f32.partialorder %v219, 0.0
  %vm284 = vcmp.ge.f32.partialorder %v220, 0.0
  %vm285 = vcmp.ge.f32.partialorder %v221, 0.0
  %vm286 = vcmp.ge.f32.partialorder %v222, 0.0
  %vm287 = vcmp.ge.f32.partialorder %v223, 0.0
  %vm288 = vcmp.ge.f32.partialorder %v224, 0.0
  %vm289 = vcmp.ge.f32.partialorder %v225, 0.0
  %vm290 = vcmp.ge.f32.partialorder %v226, 0.0
  %vm291 = vcmp.ge.f32.partialorder %v227, 0.0
  %vm292 = vcmp.ge.f32.partialorder %v228, 0.0
  %vm293 = vcmp.ge.f32.partialorder %v229, 0.0
  %vm294 = vcmp.ge.f32.partialorder %v230, 0.0
  %vm295 = vcmp.ge.f32.partialorder %v231, 0.0
  %vm296 = vcmp.ge.f32.partialorder %v232, 0.0
  %vm297 = vcmp.ge.f32.partialorder %v233, 0.0
  %vm298 = vcmp.ge.f32.partialorder %v234, 0.0
  %vm299 = vcmp.ge.f32.partialorder %v235, 0.0
  %vm300 = vcmp.ge.f32.partialorder %v236, 0.0
  %vm301 = vcmp.ge.f32.partialorder %v237, 0.0
  %vm302 = vcmp.ge.f32.partialorder %v238, 0.0
  %vm303 = vcmp.ge.f32.partialorder %v239, 0.0
  %vm304 = vcmp.ge.f32.partialorder %v240, 0.0
  %vm305 = vcmp.ge.f32.partialorder %v241, 0.0
  %vm306 = vcmp.ge.f32.partialorder %v242, 0.0
  %vm307 = vcmp.ge.f32.partialorder %v243, 0.0
  %vm308 = vcmp.ge.f32.partialorder %v244, 0.0
  %vm309 = vcmp.ge.f32.partialorder %v245, 0.0
  %vm310 = vcmp.ge.f32.partialorder %v246, 0.0
  %vm311 = vcmp.ge.f32.partialorder %v247, 0.0
  %vm312 = vcmp.ge.f32.partialorder %v248, 0.0
  %vm313 = vcmp.ge.f32.partialorder %v249, 0.0
  %vm314 = vcmp.ge.f32.partialorder %v250, 0.0
  %vm315 = vcmp.ge.f32.partialorder %v251, 0.0
  %vm316 = vcmp.ge.f32.partialorder %v252, 0.0
  %vm317 = vcmp.ge.f32.partialorder %v253, 0.0
  %vm318 = vcmp.ge.f32.partialorder %v254, 0.0
  %vm319 = vcmp.ge.f32.partialorder %v255, 0.0
  %vm320 = vcmp.ge.f32.partialorder %v256, 0.0
  %vm321 = vcmp.ge.f32.partialorder %v257, 0.0
  %vm322 = vcmp.ge.f32.partialorder %v258, 0.0
  %vm323 = vcmp.ge.f32.partialorder %v259, 0.0
  %vm324 = vcmp.ge.f32.partialorder %v260, 0.0
  %vm325 = vcmp.ge.f32.partialorder %v261, 0.0
  %vm326 = vcmp.ge.f32.partialorder %v262, 0.0
  %vm327 = vcmp.ge.f32.partialorder %v263, 0.0
  %vm328 = vcmp.ge.f32.partialorder %v264, 0.0
  %vm329 = vcmp.ge.f32.partialorder %v265, 0.0
  %vm330 = vcmp.ge.f32.partialorder %v266, 0.0
  %vm331 = vcmp.ge.f32.partialorder %v267, 0.0
  %vm332 = vcmp.ge.f32.partialorder %v268, 0.0
  %vm333 = vcmp.ge.f32.partialorder %v269, 0.0
  %vm334 = vcmp.ge.f32.partialorder %v270, 0.0
  %vm335 = vcmp.ge.f32.partialorder %v271, 0.0
  %vm336 = vcmp.ge.f32.partialorder %v272, 0.0
  %vm337 = vcmp.ge.f32.partialorder %v273, 0.0
  %vm338 = vcmp.ge.f32.partialorder %v274, 0.0
  %vm339 = vcmp.ge.f32.partialorder %v275, 0.0
  %vm340 = vcmp.ge.f32.partialorder %v276, 0.0
  %vm341 = vcmp.ge.f32.partialorder %v277, 0.0
  %v342 = vmul.f32 %v214, 0.1
  %v343 = vmul.f32 %v215, 0.1
  %v344 = vmul.f32 %v216, 0.1
  %v345 = vmul.f32 %v217, 0.1
  %v346 = vmul.f32 %v218, 0.1
  %v347 = vmul.f32 %v219, 0.1
  %v348 = vmul.f32 %v220, 0.1
  %v349 = vmul.f32 %v221, 0.1
  %v350 = vmul.f32 %v222, 0.1
  %v351 = vmul.f32 %v223, 0.1
  %v352 = vmul.f32 %v224, 0.1
  %v353 = vmul.f32 %v225, 0.1
  %v354 = vmul.f32 %v226, 0.1
  %v355 = vmul.f32 %v227, 0.1
  %v356 = vmul.f32 %v228, 0.1
  %v357 = vmul.f32 %v229, 0.1
  %v358 = vmul.f32 %v230, 0.1
  %v359 = vmul.f32 %v231, 0.1
  %v360 = vmul.f32 %v232, 0.1
  %v361 = vmul.f32 %v233, 0.1
  %v362 = vmul.f32 %v234, 0.1
  %v363 = vmul.f32 %v235, 0.1
  %v364 = vmul.f32 %v236, 0.1
  %v365 = vmul.f32 %v237, 0.1
  %v366 = vmul.f32 %v238, 0.1
  %v367 = vmul.f32 %v239, 0.1
  %v368 = vmul.f32 %v240, 0.1
  %v369 = vmul.f32 %v241, 0.1
  %v370 = vmul.f32 %v242, 0.1
  %v371 = vmul.f32 %v243, 0.1
  %v372 = vmul.f32 %v244, 0.1
  %v373 = vmul.f32 %v245, 0.1
  %v374 = vmul.f32 %v246, 0.1
  %v375 = vmul.f32 %v247, 0.1
  %v376 = vmul.f32 %v248, 0.1
  %v377 = vmul.f32 %v249, 0.1
  %v378 = vmul.f32 %v250, 0.1
  %v379 = vmul.f32 %v251, 0.1
  %v380 = vmul.f32 %v252, 0.1
  %v381 = vmul.f32 %v253, 0.1
  %v382 = vmul.f32 %v254, 0.1
  %v383 = vmul.f32 %v255, 0.1
  %v384 = vmul.f32 %v256, 0.1
  %v385 = vmul.f32 %v257, 0.1
  %v386 = vmul.f32 %v258, 0.1
  %v387 = vmul.f32 %v259, 0.1
  %v388 = vmul.f32 %v260, 0.1
  %v389 = vmul.f32 %v261, 0.1
  %v390 = vmul.f32 %v262, 0.1
  %v391 = vmul.f32 %v263, 0.1
  %v392 = vmul.f32 %v264, 0.1
  %v393 = vmul.f32 %v265, 0.1
  %v394 = vmul.f32 %v266, 0.1
  %v395 = vmul.f32 %v267, 0.1
  %v396 = vmul.f32 %v268, 0.1
  %v397 = vmul.f32 %v269, 0.1
  %v398 = vmul.f32 %v270, 0.1
  %v399 = vmul.f32 %v271, 0.1
  %v400 = vmul.f32 %v272, 0.1
  %v401 = vmul.f32 %v273, 0.1
  %v402 = vmul.f32 %v274, 0.1
  %v403 = vmul.f32 %v275, 0.1
  %v404 = vmul.f32 %v276, 0.1
  %v405 = vmul.f32 %v277, 0.1
  %v406 = vsel %vm278, %v214, %v342
  %v407 = vsel %vm279, %v215, %v343
  %v408 = vsel %vm280, %v216, %v344
  %v409 = vsel %vm281, %v217, %v345
  %v410 = vsel %vm282, %v218, %v346
  %v411 = vsel %vm283, %v219, %v347
  %v412 = vsel %vm284, %v220, %v348
  %v413 = vsel %vm285, %v221, %v349
  %v414 = vsel %vm286, %v222, %v350
  %v415 = vsel %vm287, %v223, %v351
  %v416 = vsel %vm288, %v224, %v352
  %v417 = vsel %vm289, %v225, %v353
  %v418 = vsel %vm290, %v226, %v354
  %v419 = vsel %vm291, %v227, %v355
  %v420 = vsel %vm292, %v228, %v356
  %v421 = vsel %vm293, %v229, %v357
  %v422 = vsel %vm294, %v230, %v358
  %v423 = vsel %vm295, %v231, %v359
  %v424 = vsel %vm296, %v232, %v360
  %v425 = vsel %vm297, %v233, %v361
  %v426 = vsel %vm298, %v234, %v362
  %v427 = vsel %vm299, %v235, %v363
  %v428 = vsel %vm300, %v236, %v364
  %v429 = vsel %vm301, %v237, %v365
  %v430 = vsel %vm302, %v238, %v366
  %v431 = vsel %vm303, %v239, %v367
  %v432 = vsel %vm304, %v240, %v368
  %v433 = vsel %vm305, %v241, %v369
  %v434 = vsel %vm306, %v242, %v370
  %v435 = vsel %vm307, %v243, %v371
  %v436 = vsel %vm308, %v244, %v372
  %v437 = vsel %vm309, %v245, %v373
  %v438 = vsel %vm310, %v246, %v374
  %v439 = vsel %vm311, %v247, %v375
  %v440 = vsel %vm312, %v248, %v376
  %v441 = vsel %vm313, %v249, %v377
  %v442 = vsel %vm314, %v250, %v378
  %v443 = vsel %vm315, %v251, %v379
  %v444 = vsel %vm316, %v252, %v380
  %v445 = vsel %vm317, %v253, %v381
  %v446 = vsel %vm318, %v254, %v382
  %v447 = vsel %vm319, %v255, %v383
  %v448 = vsel %vm320, %v256, %v384
  %v449 = vsel %vm321, %v257, %v385
  %v450 = vsel %vm322, %v258, %v386
  %v451 = vsel %vm323, %v259, %v387
  %v452 = vsel %vm324, %v260, %v388
  %v453 = vsel %vm325, %v261, %v389
  %v454 = vsel %vm326, %v262, %v390
  %v455 = vsel %vm327, %v263, %v391
  %v456 = vsel %vm328, %v264, %v392
  %v457 = vsel %vm329, %v265, %v393
  %v458 = vsel %vm330, %v266, %v394
  %v459 = vsel %vm331, %v267, %v395
  %v460 = vsel %vm332, %v268, %v396
  %v461 = vsel %vm333, %v269, %v397
  %v462 = vsel %vm334, %v270, %v398
  %v463 = vsel %vm335, %v271, %v399
  %v464 = vsel %vm336, %v272, %v400
  %v465 = vsel %vm337, %v273, %v401
  %v466 = vsel %vm338, %v274, %v402
  %v467 = vsel %vm339, %v275, %v403
  %v468 = vsel %vm340, %v276, %v404
  %v469 = vsel %vm341, %v277, %v405
  %v470 = vpack.c.bf16 %v406, %v406
  %v471 = vpack.c.bf16 %v407, %v407
  %v472 = vpack.c.bf16 %v408, %v408
  %v473 = vpack.c.bf16 %v409, %v409
  %v474 = vpack.c.bf16 %v410, %v410
  %v475 = vpack.c.bf16 %v411, %v411
  %v476 = vpack.c.bf16 %v412, %v412
  %v477 = vpack.c.bf16 %v413, %v413
  %v478 = vpack.c.bf16 %v414, %v414
  %v479 = vpack.c.bf16 %v415, %v415
  %v480 = vpack.c.bf16 %v416, %v416
  %v481 = vpack.c.bf16 %v417, %v417
  %v482 = vpack.c.bf16 %v418, %v418
  %v483 = vpack.c.bf16 %v419, %v419
  %v484 = vpack.c.bf16 %v420, %v420
  %v485 = vpack.c.bf16 %v421, %v421
  %v486 = vpack.c.bf16 %v422, %v422
  %v487 = vpack.c.bf16 %v423, %v423
  %v488 = vpack.c.bf16 %v424, %v424
  %v489 = vpack.c.bf16 %v425, %v425
  %v490 = vpack.c.bf16 %v426, %v426
  %v491 = vpack.c.bf16 %v427, %v427
  %v492 = vpack.c.bf16 %v428, %v428
  %v493 = vpack.c.bf16 %v429, %v429
  %v494 = vpack.c.bf16 %v430, %v430
  %v495 = vpack.c.bf16 %v431, %v431
  %v496 = vpack.c.bf16 %v432, %v432
  %v497 = vpack.c.bf16 %v433, %v433
  %v498 = vpack.c.bf16 %v434, %v434
  %v499 = vpack.c.bf16 %v435, %v435
  %v500 = vpack.c.bf16 %v436, %v436
  %v501 = vpack.c.bf16 %v437, %v437
  %v502 = vpack.c.bf16 %v438, %v438
  %v503 = vpack.c.bf16 %v439, %v439
  %v504 = vpack.c.bf16 %v440, %v440
  %v505 = vpack.c.bf16 %v441, %v441
  %v506 = vpack.c.bf16 %v442, %v442
  %v507 = vpack.c.bf16 %v443, %v443
  %v508 = vpack.c.bf16 %v444, %v444
  %v509 = vpack.c.bf16 %v445, %v445
  %v510 = vpack.c.bf16 %v446, %v446
  %v511 = vpack.c.bf16 %v447, %v447
  %v512 = vpack.c.bf16 %v448, %v448
  %v513 = vpack.c.bf16 %v449, %v449
  %v514 = vpack.c.bf16 %v450, %v450
  %v515 = vpack.c.bf16 %v451, %v451
  %v516 = vpack.c.bf16 %v452, %v452
  %v517 = vpack.c.bf16 %v453, %v453
  %v518 = vpack.c.bf16 %v454, %v454
  %v519 = vpack.c.bf16 %v455, %v455
  %v520 = vpack.c.bf16 %v456, %v456
  %v521 = vpack.c.bf16 %v457, %v457
  %v522 = vpack.c.bf16 %v458, %v458
  %v523 = vpack.c.bf16 %v459, %v459
  %v524 = vpack.c.bf16 %v460, %v460
  %v525 = vpack.c.bf16 %v461, %v461
  %v526 = vpack.c.bf16 %v462, %v462
  %v527 = vpack.c.bf16 %v463, %v463
  %v528 = vpack.c.bf16 %v464, %v464
  %v529 = vpack.c.bf16 %v465, %v465
  %v530 = vpack.c.bf16 %v466, %v466
  %v531 = vpack.c.bf16 %v467, %v467
  %v532 = vpack.c.bf16 %v468, %v468
  %v533 = vpack.c.bf16 %v469, %v469
  %534 = vst [vmem:[%s3] sm:$0xf] %v470
  %535 = vst [vmem:[%s3 + $0x4] sm:$0xf] %v471
  %536 = vst [vmem:[%s3 + $0x8] sm:$0xf] %v472
  %537 = vst [vmem:[%s3 + $0xc] sm:$0xf] %v473
  %538 = vst [vmem:[%s3 + $0x10] sm:$0xf] %v474
  %539 = vst [vmem:[%s3 + $0x14] sm:$0xf] %v475
  %540 = vst [vmem:[%s3 + $0x18] sm:$0xf] %v476
  %541 = vst [vmem:[%s3 + $0x1c] sm:$0xf] %v477
  %542 = vst [vmem:[%s3 + $0x20] sm:$0xf] %v478
  %543 = vst [vmem:[%s3 + $0x24] sm:$0xf] %v479
  %544 = vst [vmem:[%s3 + $0x28] sm:$0xf] %v480
  %545 = vst [vmem:[%s3 + $0x2c] sm:$0xf] %v481
  %546 = vst [vmem:[%s3 + $0x30] sm:$0xf] %v482
  %547 = vst [vmem:[%s3 + $0x34] sm:$0xf] %v483
  %548 = vst [vmem:[%s3 + $0x38] sm:$0xf] %v484
  %549 = vst [vmem:[%s3 + $0x3c] sm:$0xf] %v485
  %550 = vst [vmem:[%s3 + $0x40] sm:$0xf] %v486
  %551 = vst [vmem:[%s3 + $0x44] sm:$0xf] %v487
  %552 = vst [vmem:[%s3 + $0x48] sm:$0xf] %v488
  %553 = vst [vmem:[%s3 + $0x4c] sm:$0xf] %v489
  %554 = vst [vmem:[%s3 + $0x50] sm:$0xf] %v490
  %555 = vst [vmem:[%s3 + $0x54] sm:$0xf] %v491
  %556 = vst [vmem:[%s3 + $0x58] sm:$0xf] %v492
  %557 = vst [vmem:[%s3 + $0x5c] sm:$0xf] %v493
  %558 = vst [vmem:[%s3 + $0x60] sm:$0xf] %v494
  %559 = vst [vmem:[%s3 + $0x64] sm:$0xf] %v495
  %560 = vst [vmem:[%s3 + $0x68] sm:$0xf] %v496
  %561 = vst [vmem:[%s3 + $0x6c] sm:$0xf] %v497
  %562 = vst [vmem:[%s3 + $0x70] sm:$0xf] %v498
  %563 = vst [vmem:[%s3 + $0x74] sm:$0xf] %v499
  %564 = vst [vmem:[%s3 + $0x78] sm:$0xf] %v500
  %565 = vst [vmem:[%s3 + $0x7c] sm:$0xf] %v501
  %566 = vst [vmem:[%s3 + $0x80] sm:$0xf] %v502
  %567 = vst [vmem:[%s3 + $0x84] sm:$0xf] %v503
  %568 = vst [vmem:[%s3 + $0x88] sm:$0xf] %v504
  %569 = vst [vmem:[%s3 + $0x8c] sm:$0xf] %v505
  %570 = vst [vmem:[%s3 + $0x90] sm:$0xf] %v506
  %571 = vst [vmem:[%s3 + $0x94] sm:$0xf] %v507
  %572 = vst [vmem:[%s3 + $0x98] sm:$0xf] %v508
  %573 = vst [vmem:[%s3 + $0x9c] sm:$0xf] %v509
  %574 = vst [vmem:[%s3 + $0xa0] sm:$0xf] %v510
  %575 = vst [vmem:[%s3 + $0xa4] sm:$0xf] %v511
  %576 = vst [vmem:[%s3 + $0xa8] sm:$0xf] %v512
  %577 = vst [vmem:[%s3 + $0xac] sm:$0xf] %v513
  %578 = vst [vmem:[%s3 + $0xb0] sm:$0xf] %v514
  %579 = vst [vmem:[%s3 + $0xb4] sm:$0xf] %v515
  %580 = vst [vmem:[%s3 + $0xb8] sm:$0xf] %v516
  %581 = vst [vmem:[%s3 + $0xbc] sm:$0xf] %v517
  %582 = vst [vmem:[%s3 + $0xc0] sm:$0xf] %v518
  %583 = vst [vmem:[%s3 + $0xc4] sm:$0xf] %v519
  %584 = vst [vmem:[%s3 + $0xc8] sm:$0xf] %v520
  %585 = vst [vmem:[%s3 + $0xcc] sm:$0xf] %v521
  %586 = vst [vmem:[%s3 + $0xd0] sm:$0xf] %v522
  %587 = vst [vmem:[%s3 + $0xd4] sm:$0xf] %v523
  %588 = vst [vmem:[%s3 + $0xd8] sm:$0xf] %v524
  %589 = vst [vmem:[%s3 + $0xdc] sm:$0xf] %v525
  %590 = vst [vmem:[%s3 + $0xe0] sm:$0xf] %v526
  %591 = vst [vmem:[%s3 + $0xe4] sm:$0xf] %v527
  %592 = vst [vmem:[%s3 + $0xe8] sm:$0xf] %v528
  %593 = vst [vmem:[%s3 + $0xec] sm:$0xf] %v529
  %594 = vst [vmem:[%s3 + $0xf0] sm:$0xf] %v530
  %595 = vst [vmem:[%s3 + $0xf4] sm:$0xf] %v531
  %596 = vst [vmem:[%s3 + $0xf8] sm:$0xf] %v532
  %597 = vst [vmem:[%s3 + $0xfc] sm:$0xf] %v533
  // Predicated region
  $region14: #{_lambda_.37} parent=0 // pred_check
    _
  $region15: #{_lambda_.37} parent=0 // pred_check_branch
    %599 = sbr.rel (0) target = $region17
  $region16: #{_lambda_.37} parent=0 // pred_region
    _
  $region17: #{_lambda_.37} parent=0 // pred_fallthru
    _
  // Predicated region
  $region18: #{_lambda_.37} parent=0 // pred_check
    _
  $region19: #{_lambda_.37} parent=0 // pred_check_branch
    %601 = sbr.rel (0) target = $region21
  $region20: #{_lambda_.37} parent=0 // pred_region
    _
  $region21: #{_lambda_.37} parent=0 // pred_fallthru
    _

// kernel: _lambda_.36
$region0: #{_lambda_.36}
  #allocation0 [shape = 'u32[]', space=smem, size = 0x4, offset = 0x4, fixed_abs, tag = 'smem constant byte address 0x4 - core index']
  #allocation1 [shape = 'u32[72,128]{1,0:T(1,128)}', space=vmem, size = 0x9000, scoped, tag = 'internal scratch']
  %s0 = inlined_call_operand.vmem [shape: bf16[512,75], index: 0, kind: input, shape index: {}]
  %s1 = inlined_call_operand.vmem [shape: bf16[75,128], index: 1, kind: input, shape index: {}]
  %s2 = inlined_call_operand.vmem [shape: bf16[512,128], index: 2, kind: output, shape index: {0}]
  %s3 = inlined_call_operand.vmem [shape: f32[1,8,128], index: 3, kind: output, shape index: {1}]
  %s4 = inlined_call_operand.vmem [shape: f32[1,8,128], index: 4, kind: output, shape index: {2}]
  %5 = xla_tuple %s2, %s3, %s4
  %s6 = sld [smem:[#allocation0]]
  $region34: #{_lambda_.36} parent=0
    _
  %s8 = ssub.s32 1, %s6
  %s9 = scalar_select 0, %s8, %s6
  // Predicated region
  $region2: #{_lambda_.36} parent=0 // pred_check
    _
  $region3: #{_lambda_.36} parent=0 // pred_check_branch
    %11 = sbr.rel (0) target = $region5
  $region4: #{_lambda_.36} parent=0 // pred_region
    _
  $region5: #{_lambda_.36} parent=0 // pred_fallthru
    _
  // Predicated region
  $region6: #{_lambda_.36} parent=0 // pred_check
    _
  $region7: #{_lambda_.36} parent=0 // pred_check_branch
    %13 = sbr.rel (0) target = $region9
  $region8: #{_lambda_.36} parent=0 // pred_region
    _
  $region9: #{_lambda_.36} parent=0 // pred_fallthru
    _
  %v15 = vld [vmem:[%s0] sm:$0xf]
  %v16 = vld [vmem:[%s0 + $0x4] sm:$0xf]
  %v17 = vld [vmem:[%s0 + $0x8] sm:$0xf]
  %v18 = vld [vmem:[%s0 + $0xc] sm:$0xf]
  %v19 = vld [vmem:[%s0 + $0x10] sm:$0xf]
  %v20 = vld [vmem:[%s0 + $0x14] sm:$0xf]
  %v21 = vld [vmem:[%s0 + $0x18] sm:$0xf]
  %v22 = vld [vmem:[%s0 + $0x1c] sm:$0xf]
  %v23 = vld [vmem:[%s0 + $0x20] sm:$0xf]
  %v24 = vld [vmem:[%s0 + $0x24] sm:$0xf]
  %v25 = vld [vmem:[%s0 + $0x28] sm:$0xf]
  %v26 = vld [vmem:[%s0 + $0x2c] sm:$0xf]
  %v27 = vld [vmem:[%s0 + $0x30] sm:$0xf]
  %v28 = vld [vmem:[%s0 + $0x34] sm:$0xf]
  %v29 = vld [vmem:[%s0 + $0x38] sm:$0xf]
  %v30 = vld [vmem:[%s0 + $0x3c] sm:$0xf]
  %v31 = vld [vmem:[%s0 + $0x40] sm:$0xf]
  %v32 = vld [vmem:[%s0 + $0x44] sm:$0xf]
  %v33 = vld [vmem:[%s0 + $0x48] sm:$0xf]
  %v34 = vld [vmem:[%s0 + $0x4c] sm:$0xf]
  %v35 = vld [vmem:[%s0 + $0x50] sm:$0xf]
  %v36 = vld [vmem:[%s0 + $0x54] sm:$0xf]
  %v37 = vld [vmem:[%s0 + $0x58] sm:$0xf]
  %v38 = vld [vmem:[%s0 + $0x5c] sm:$0xf]
  %v39 = vld [vmem:[%s0 + $0x60] sm:$0xf]
  %v40 = vld [vmem:[%s0 + $0x64] sm:$0xf]
  %v41 = vld [vmem:[%s0 + $0x68] sm:$0xf]
  %v42 = vld [vmem:[%s0 + $0x6c] sm:$0xf]
  %v43 = vld [vmem:[%s0 + $0x70] sm:$0xf]
  %v44 = vld [vmem:[%s0 + $0x74] sm:$0xf]
  %v45 = vld [vmem:[%s0 + $0x78] sm:$0xf]
  %v46 = vld [vmem:[%s0 + $0x7c] sm:$0xf]
  %v47 = vld [vmem:[%s0 + $0x80] sm:$0xf]
  %v48 = vld [vmem:[%s0 + $0x84] sm:$0xf]
  %v49 = vld [vmem:[%s0 + $0x88] sm:$0xf]
  %v50 = vld [vmem:[%s0 + $0x8c] sm:$0xf]
  %v51 = vld [vmem:[%s0 + $0x90] sm:$0xf]
  %v52 = vld [vmem:[%s0 + $0x94] sm:$0xf]
  %v53 = vld [vmem:[%s0 + $0x98] sm:$0xf]
  %v54 = vld [vmem:[%s0 + $0x9c] sm:$0xf]
  %v55 = vld [vmem:[%s0 + $0xa0] sm:$0xf]
  %v56 = vld [vmem:[%s0 + $0xa4] sm:$0xf]
  %v57 = vld [vmem:[%s0 + $0xa8] sm:$0xf]
  %v58 = vld [vmem:[%s0 + $0xac] sm:$0xf]
  %v59 = vld [vmem:[%s0 + $0xb0] sm:$0xf]
  %v60 = vld [vmem:[%s0 + $0xb4] sm:$0xf]
  %v61 = vld [vmem:[%s0 + $0xb8] sm:$0xf]
  %v62 = vld [vmem:[%s0 + $0xbc] sm:$0xf]
  %v63 = vld [vmem:[%s0 + $0xc0] sm:$0xf]
  %v64 = vld [vmem:[%s0 + $0xc4] sm:$0xf]
  %v65 = vld [vmem:[%s0 + $0xc8] sm:$0xf]
  %v66 = vld [vmem:[%s0 + $0xcc] sm:$0xf]
  %v67 = vld [vmem:[%s0 + $0xd0] sm:$0xf]
  %v68 = vld [vmem:[%s0 + $0xd4] sm:$0xf]
  %v69 = vld [vmem:[%s0 + $0xd8] sm:$0xf]
  %v70 = vld [vmem:[%s0 + $0xdc] sm:$0xf]
  %v71 = vld [vmem:[%s0 + $0xe0] sm:$0xf]
  %v72 = vld [vmem:[%s0 + $0xe4] sm:$0xf]
  %v73 = vld [vmem:[%s0 + $0xe8] sm:$0xf]
  %v74 = vld [vmem:[%s0 + $0xec] sm:$0xf]
  %v75 = vld [vmem:[%s0 + $0xf0] sm:$0xf]
  %v76 = vld [vmem:[%s0 + $0xf4] sm:$0xf]
  %v77 = vld [vmem:[%s0 + $0xf8] sm:$0xf]
  %v78 = vld [vmem:[%s0 + $0xfc] sm:$0xf]
  %v79 = vld [vmem:[%s1] sm:$0xf]
  %v80 = vld [vmem:[%s1 + $0x4] sm:$0xf]
  %v81 = vld [vmem:[%s1 + $0x8] sm:$0xf]
  %v82 = vld [vmem:[%s1 + $0xc] sm:$0xf]
  %v83 = vld [vmem:[%s1 + $0x10] sm:$0xf]
  %v84 = vld [vmem:[%s1 + $0x14] sm:$0xf]
  %v85 = vld [vmem:[%s1 + $0x18] sm:$0xf]
  %v86 = vld [vmem:[%s1 + $0x1c] sm:$0xf]
  %v87 = vld [vmem:[%s1 + $0x20] sm:$0xf]
  %v88 = vld [vmem:[%s1 + $0x24] sm:$0x3]
  %v153 = vunpack.c.l.b16 %v15
  %v154 = vunpack.c.l.b16 %v16
  %v155 = vunpack.c.l.b16 %v17
  %v156 = vunpack.c.l.b16 %v18
  %v157 = vunpack.c.l.b16 %v19
  %v158 = vunpack.c.l.b16 %v20
  %v159 = vunpack.c.l.b16 %v21
  %v160 = vunpack.c.l.b16 %v22
  %v161 = vunpack.c.l.b16 %v23
  %v162 = vunpack.c.l.b16 %v24
  %v163 = vunpack.c.l.b16 %v25
  %v164 = vunpack.c.l.b16 %v26
  %v165 = vunpack.c.l.b16 %v27
  %v166 = vunpack.c.l.b16 %v28
  %v167 = vunpack.c.l.b16 %v29
  %v168 = vunpack.c.l.b16 %v30
  %v169 = vunpack.c.l.b16 %v31
  %v170 = vunpack.c.l.b16 %v32
  %v171 = vunpack.c.l.b16 %v33
  %v172 = vunpack.c.l.b16 %v34
  %v173 = vunpack.c.l.b16 %v35
  %v174 = vunpack.c.l.b16 %v36
  %v175 = vunpack.c.l.b16 %v37
  %v176 = vunpack.c.l.b16 %v38
  %v177 = vunpack.c.l.b16 %v39
  %v178 = vunpack.c.l.b16 %v40
  %v179 = vunpack.c.l.b16 %v41
  %v180 = vunpack.c.l.b16 %v42
  %v181 = vunpack.c.l.b16 %v43
  %v182 = vunpack.c.l.b16 %v44
  %v183 = vunpack.c.l.b16 %v45
  %v184 = vunpack.c.l.b16 %v46
  %v185 = vunpack.c.l.b16 %v47
  %v186 = vunpack.c.l.b16 %v48
  %v187 = vunpack.c.l.b16 %v49
  %v188 = vunpack.c.l.b16 %v50
  %v189 = vunpack.c.l.b16 %v51
  %v190 = vunpack.c.l.b16 %v52
  %v191 = vunpack.c.l.b16 %v53
  %v192 = vunpack.c.l.b16 %v54
  %v193 = vunpack.c.l.b16 %v55
  %v194 = vunpack.c.l.b16 %v56
  %v195 = vunpack.c.l.b16 %v57
  %v196 = vunpack.c.l.b16 %v58
  %v197 = vunpack.c.l.b16 %v59
  %v198 = vunpack.c.l.b16 %v60
  %v199 = vunpack.c.l.b16 %v61
  %v200 = vunpack.c.l.b16 %v62
  %v201 = vunpack.c.l.b16 %v63
  %v202 = vunpack.c.l.b16 %v64
  %v203 = vunpack.c.l.b16 %v65
  %v204 = vunpack.c.l.b16 %v66
  %v205 = vunpack.c.l.b16 %v67
  %v206 = vunpack.c.l.b16 %v68
  %v207 = vunpack.c.l.b16 %v69
  %v208 = vunpack.c.l.b16 %v70
  %v209 = vunpack.c.l.b16 %v71
  %v210 = vunpack.c.l.b16 %v72
  %v211 = vunpack.c.l.b16 %v73
  %v212 = vunpack.c.l.b16 %v74
  %v213 = vunpack.c.l.b16 %v75
  %v214 = vunpack.c.l.b16 %v76
  %v215 = vunpack.c.l.b16 %v77
  %v216 = vunpack.c.l.b16 %v78
  %v217 = vpack.c.b16 %v154, %v153
  %v218 = vpack.c.b16 %v156, %v155
  %v219 = vpack.c.b16 %v158, %v157
  %v220 = vpack.c.b16 %v160, %v159
  %v221 = vpack.c.b16 %v162, %v161
  %v222 = vpack.c.b16 %v164, %v163
  %v223 = vpack.c.b16 %v166, %v165
  %v224 = vpack.c.b16 %v168, %v167
  %v225 = vpack.c.b16 %v170, %v169
  %v226 = vpack.c.b16 %v172, %v171
  %v227 = vpack.c.b16 %v174, %v173
  %v228 = vpack.c.b16 %v176, %v175
  %v229 = vpack.c.b16 %v178, %v177
  %v230 = vpack.c.b16 %v180, %v179
  %v231 = vpack.c.b16 %v182, %v181
  %v232 = vpack.c.b16 %v184, %v183
  %v233 = vpack.c.b16 %v186, %v185
  %v234 = vpack.c.b16 %v188, %v187
  %v235 = vpack.c.b16 %v190, %v189
  %v236 = vpack.c.b16 %v192, %v191
  %v237 = vpack.c.b16 %v194, %v193
  %v238 = vpack.c.b16 %v196, %v195
  %v239 = vpack.c.b16 %v198, %v197
  %v240 = vpack.c.b16 %v200, %v199
  %v241 = vpack.c.b16 %v202, %v201
  %v242 = vpack.c.b16 %v204, %v203
  %v243 = vpack.c.b16 %v206, %v205
  %v244 = vpack.c.b16 %v208, %v207
  %v245 = vpack.c.b16 %v210, %v209
  %v246 = vpack.c.b16 %v212, %v211
  %v247 = vpack.c.b16 %v214, %v213
  %v248 = vpack.c.b16 %v216, %v215
  %v259 = vunpack.c.l.b16 %v79
  %v260 = vunpack.c.l.b16 %v80
  %v261 = vunpack.c.l.b16 %v81
  %v262 = vunpack.c.l.b16 %v82
  %v263 = vunpack.c.l.b16 %v83
  %v264 = vunpack.c.l.b16 %v84
  %v265 = vunpack.c.l.b16 %v85
  %v266 = vunpack.c.l.b16 %v86
  %v267 = vunpack.c.l.b16 %v87
  %v268 = vunpack.c.l.b16 %v88
  %v269 = vpack.c.b16 %v260, %v259
  %v270 = vpack.c.b16 %v262, %v261
  %v271 = vpack.c.b16 %v264, %v263
  %v272 = vpack.c.b16 %v266, %v265
  %v273 = vpack.c.b16 %v268, %v267
  %vm278 = vcmask 613376
  %v280 = vsel %vm278, %v217, 0
  %v283 = vsel %vm278, %v218, 0
  %v286 = vsel %vm278, %v219, 0
  %v289 = vsel %vm278, %v220, 0
  %v292 = vsel %vm278, %v221, 0
  %v295 = vsel %vm278, %v222, 0
  %v298 = vsel %vm278, %v223, 0
  %v301 = vsel %vm278, %v224, 0
  %v304 = vsel %vm278, %v225, 0
  %v307 = vsel %vm278, %v226, 0
  %v310 = vsel %vm278, %v227, 0
  %v313 = vsel %vm278, %v228, 0
  %v316 = vsel %vm278, %v229, 0
  %v319 = vsel %vm278, %v230, 0
  %v322 = vsel %vm278, %v231, 0
  %v325 = vsel %vm278, %v232, 0
  %v328 = vsel %vm278, %v233, 0
  %v331 = vsel %vm278, %v234, 0
  %v334 = vsel %vm278, %v235, 0
  %v337 = vsel %vm278, %v236, 0
  %v340 = vsel %vm278, %v237, 0
  %v343 = vsel %vm278, %v238, 0
  %v346 = vsel %vm278, %v239, 0
  %v349 = vsel %vm278, %v240, 0
  %v352 = vsel %vm278, %v241, 0
  %v355 = vsel %vm278, %v242, 0
  %v358 = vsel %vm278, %v243, 0
  %v361 = vsel %vm278, %v244, 0
  %v364 = vsel %vm278, %v245, 0
  %v367 = vsel %vm278, %v246, 0
  %v370 = vsel %vm278, %v247, 0
  %v373 = vsel %vm278, %v248, 0
  %vm375 = vcmask 1044480
  %vm376 = vcmask 1045504
  %v377 = vsel %vm375, 4294967295, 65535
  %v378 = vsel %vm376, %v377, 0
  %v380 = vand.u32 %v273, %v378
  %382 = vmatpush.bf16.msra.mxu0 0
  %383 = vmatpush.bf16.msra.mxu0 0
  %384 = vmatpush.bf16.msra.mxu0 0
  %385 = vmatpush.bf16.msra.mxu0 %v380
  %386 = vmatpush.bf16.msra.mxu0 %v272
  %387 = vmatpush.bf16.msra.mxu0 %v271
  %388 = vmatpush.bf16.msra.mxu0 %v270
  %389 = vmatpush.bf16.msra.mxu0 %v269
  %390 = vmatmul.bf16.gmra.mxu0 %v280
  %v391 = vpop.f32.mrf.mxu0
  %v392 = vadd.f32 0.0, %v391
  %v393 = vpop.f32.mrf.mxu0
  %v394 = vadd.f32 0.0, %v393
  %395 = vmatmul.bf16.gmra.mxu0 %v283
  %v396 = vpop.f32.mrf.mxu0
  %v397 = vadd.f32 0.0, %v396
  %v398 = vpop.f32.mrf.mxu0
  %v399 = vadd.f32 0.0, %v398
  %400 = vmatmul.bf16.gmra.mxu0 %v286
  %v401 = vpop.f32.mrf.mxu0
  %v402 = vadd.f32 0.0, %v401
  %v403 = vpop.f32.mrf.mxu0
  %v404 = vadd.f32 0.0, %v403
  %405 = vmatmul.bf16.gmra.mxu0 %v289
  %v406 = vpop.f32.mrf.mxu0
  %v407 = vadd.f32 0.0, %v406
  %v408 = vpop.f32.mrf.mxu0
  %v409 = vadd.f32 0.0, %v408
  %410 = vmatmul.bf16.gmra.mxu0 %v292
  %v411 = vpop.f32.mrf.mxu0
  %v412 = vadd.f32 0.0, %v411
  %v413 = vpop.f32.mrf.mxu0
  %v414 = vadd.f32 0.0, %v413
  %415 = vmatmul.bf16.gmra.mxu0 %v295
  %v416 = vpop.f32.mrf.mxu0
  %v417 = vadd.f32 0.0, %v416
  %v418 = vpop.f32.mrf.mxu0
  %v419 = vadd.f32 0.0, %v418
  %420 = vmatmul.bf16.gmra.mxu0 %v298
  %v421 = vpop.f32.mrf.mxu0
  %v422 = vadd.f32 0.0, %v421
  %v423 = vpop.f32.mrf.mxu0
  %v424 = vadd.f32 0.0, %v423
  %425 = vmatmul.bf16.gmra.mxu0 %v301
  %v426 = vpop.f32.mrf.mxu0
  %v427 = vadd.f32 0.0, %v426
  %v428 = vpop.f32.mrf.mxu0
  %v429 = vadd.f32 0.0, %v428
  %430 = vmatmul.bf16.gmra.mxu0 %v304
  %v431 = vpop.f32.mrf.mxu0
  %v432 = vadd.f32 0.0, %v431
  %v433 = vpop.f32.mrf.mxu0
  %v434 = vadd.f32 0.0, %v433
  %435 = vmatmul.bf16.gmra.mxu0 %v307
  %v436 = vpop.f32.mrf.mxu0
  %v437 = vadd.f32 0.0, %v436
  %v438 = vpop.f32.mrf.mxu0
  %v439 = vadd.f32 0.0, %v438
  %440 = vmatmul.bf16.gmra.mxu0 %v310
  %v441 = vpop.f32.mrf.mxu0
  %v442 = vadd.f32 0.0, %v441
  %v443 = vpop.f32.mrf.mxu0
  %v444 = vadd.f32 0.0, %v443
  %445 = vmatmul.bf16.gmra.mxu0 %v313
  %v446 = vpop.f32.mrf.mxu0
  %v447 = vadd.f32 0.0, %v446
  %v448 = vpop.f32.mrf.mxu0
  %v449 = vadd.f32 0.0, %v448
  %450 = vmatmul.bf16.gmra.mxu0 %v316
  %v451 = vpop.f32.mrf.mxu0
  %v452 = vadd.f32 0.0, %v451
  %v453 = vpop.f32.mrf.mxu0
  %v454 = vadd.f32 0.0, %v453
  %455 = vmatmul.bf16.gmra.mxu0 %v319
  %v456 = vpop.f32.mrf.mxu0
  %v457 = vadd.f32 0.0, %v456
  %v458 = vpop.f32.mrf.mxu0
  %v459 = vadd.f32 0.0, %v458
  %460 = vmatmul.bf16.gmra.mxu0 %v322
  %v461 = vpop.f32.mrf.mxu0
  %v462 = vadd.f32 0.0, %v461
  %v463 = vpop.f32.mrf.mxu0
  %v464 = vadd.f32 0.0, %v463
  %465 = vmatmul.bf16.gmra.mxu0 %v325
  %v466 = vpop.f32.mrf.mxu0
  %v467 = vadd.f32 0.0, %v466
  %v468 = vpop.f32.mrf.mxu0
  %v469 = vadd.f32 0.0, %v468
  %470 = vmatmul.bf16.gmra.mxu0 %v328
  %v471 = vpop.f32.mrf.mxu0
  %v472 = vadd.f32 0.0, %v471
  %v473 = vpop.f32.mrf.mxu0
  %v474 = vadd.f32 0.0, %v473
  %475 = vmatmul.bf16.gmra.mxu0 %v331
  %v476 = vpop.f32.mrf.mxu0
  %v477 = vadd.f32 0.0, %v476
  %v478 = vpop.f32.mrf.mxu0
  %v479 = vadd.f32 0.0, %v478
  %480 = vmatmul.bf16.gmra.mxu0 %v334
  %v481 = vpop.f32.mrf.mxu0
  %v482 = vadd.f32 0.0, %v481
  %v483 = vpop.f32.mrf.mxu0
  %v484 = vadd.f32 0.0, %v483
  %485 = vmatmul.bf16.gmra.mxu0 %v337
  %v486 = vpop.f32.mrf.mxu0
  %v487 = vadd.f32 0.0, %v486
  %v488 = vpop.f32.mrf.mxu0
  %v489 = vadd.f32 0.0, %v488
  %490 = vmatmul.bf16.gmra.mxu0 %v340
  %v491 = vpop.f32.mrf.mxu0
  %v492 = vadd.f32 0.0, %v491
  %v493 = vpop.f32.mrf.mxu0
  %v494 = vadd.f32 0.0, %v493
  %495 = vmatmul.bf16.gmra.mxu0 %v343
  %v496 = vpop.f32.mrf.mxu0
  %v497 = vadd.f32 0.0, %v496
  %v498 = vpop.f32.mrf.mxu0
  %v499 = vadd.f32 0.0, %v498
  %500 = vmatmul.bf16.gmra.mxu0 %v346
  %v501 = vpop.f32.mrf.mxu0
  %v502 = vadd.f32 0.0, %v501
  %v503 = vpop.f32.mrf.mxu0
  %v504 = vadd.f32 0.0, %v503
  %505 = vmatmul.bf16.gmra.mxu0 %v349
  %v506 = vpop.f32.mrf.mxu0
  %v507 = vadd.f32 0.0, %v506
  %v508 = vpop.f32.mrf.mxu0
  %v509 = vadd.f32 0.0, %v508
  %510 = vmatmul.bf16.gmra.mxu0 %v352
  %v511 = vpop.f32.mrf.mxu0
  %v512 = vadd.f32 0.0, %v511
  %v513 = vpop.f32.mrf.mxu0
  %v514 = vadd.f32 0.0, %v513
  %515 = vmatmul.bf16.gmra.mxu0 %v355
  %v516 = vpop.f32.mrf.mxu0
  %v517 = vadd.f32 0.0, %v516
  %v518 = vpop.f32.mrf.mxu0
  %v519 = vadd.f32 0.0, %v518
  %520 = vmatmul.bf16.gmra.mxu0 %v358
  %v521 = vpop.f32.mrf.mxu0
  %v522 = vadd.f32 0.0, %v521
  %v523 = vpop.f32.mrf.mxu0
  %v524 = vadd.f32 0.0, %v523
  %525 = vmatmul.bf16.gmra.mxu0 %v361
  %v526 = vpop.f32.mrf.mxu0
  %v527 = vadd.f32 0.0, %v526
  %v528 = vpop.f32.mrf.mxu0
  %v529 = vadd.f32 0.0, %v528
  %530 = vmatmul.bf16.gmra.mxu0 %v364
  %v531 = vpop.f32.mrf.mxu0
  %v532 = vadd.f32 0.0, %v531
  %v533 = vpop.f32.mrf.mxu0
  %v534 = vadd.f32 0.0, %v533
  %535 = vmatmul.bf16.gmra.mxu0 %v367
  %v536 = vpop.f32.mrf.mxu0
  %v537 = vadd.f32 0.0, %v536
  %v538 = vpop.f32.mrf.mxu0
  %v539 = vadd.f32 0.0, %v538
  %540 = vmatmul.bf16.gmra.mxu0 %v370
  %v541 = vpop.f32.mrf.mxu0
  %v542 = vadd.f32 0.0, %v541
  %v543 = vpop.f32.mrf.mxu0
  %v544 = vadd.f32 0.0, %v543
  %545 = vmatmul.bf16.gmra.mxu0 %v373
  %v546 = vpop.f32.mrf.mxu0
  %v547 = vadd.f32 0.0, %v546
  %v548 = vpop.f32.mrf.mxu0
  %v549 = vadd.f32 0.0, %v548
  %550 = vdwg.mxu0
  %v551 = vpack.c.bf16 %v392, %v392
  %v552 = vpack.c.bf16 %v394, %v394
  %v553 = vpack.c.bf16 %v397, %v397
  %v554 = vpack.c.bf16 %v399, %v399
  %v555 = vpack.c.bf16 %v402, %v402
  %v556 = vpack.c.bf16 %v404, %v404
  %v557 = vpack.c.bf16 %v407, %v407
  %v558 = vpack.c.bf16 %v409, %v409
  %v559 = vpack.c.bf16 %v412, %v412
  %v560 = vpack.c.bf16 %v414, %v414
  %v561 = vpack.c.bf16 %v417, %v417
  %v562 = vpack.c.bf16 %v419, %v419
  %v563 = vpack.c.bf16 %v422, %v422
  %v564 = vpack.c.bf16 %v424, %v424
  %v565 = vpack.c.bf16 %v427, %v427
  %v566 = vpack.c.bf16 %v429, %v429
  %v567 = vpack.c.bf16 %v432, %v432
  %v568 = vpack.c.bf16 %v434, %v434
  %v569 = vpack.c.bf16 %v437, %v437
  %v570 = vpack.c.bf16 %v439, %v439
  %v571 = vpack.c.bf16 %v442, %v442
  %v572 = vpack.c.bf16 %v444, %v444
  %v573 = vpack.c.bf16 %v447, %v447
  %v574 = vpack.c.bf16 %v449, %v449
  %v575 = vpack.c.bf16 %v452, %v452
  %v576 = vpack.c.bf16 %v454, %v454
  %v577 = vpack.c.bf16 %v457, %v457
  %v578 = vpack.c.bf16 %v459, %v459
  %v579 = vpack.c.bf16 %v462, %v462
  %v580 = vpack.c.bf16 %v464, %v464
  %v581 = vpack.c.bf16 %v467, %v467
  %v582 = vpack.c.bf16 %v469, %v469
  %v583 = vpack.c.bf16 %v472, %v472
  %v584 = vpack.c.bf16 %v474, %v474
  %v585 = vpack.c.bf16 %v477, %v477
  %v586 = vpack.c.bf16 %v479, %v479
  %v587 = vpack.c.bf16 %v482, %v482
  %v588 = vpack.c.bf16 %v484, %v484
  %v589 = vpack.c.bf16 %v487, %v487
  %v590 = vpack.c.bf16 %v489, %v489
  %v591 = vpack.c.bf16 %v492, %v492
  %v592 = vpack.c.bf16 %v494, %v494
  %v593 = vpack.c.bf16 %v497, %v497
  %v594 = vpack.c.bf16 %v499, %v499
  %v595 = vpack.c.bf16 %v502, %v502
  %v596 = vpack.c.bf16 %v504, %v504
  %v597 = vpack.c.bf16 %v507, %v507
  %v598 = vpack.c.bf16 %v509, %v509
  %v599 = vpack.c.bf16 %v512, %v512
  %v600 = vpack.c.bf16 %v514, %v514
  %v601 = vpack.c.bf16 %v517, %v517
  %v602 = vpack.c.bf16 %v519, %v519
  %v603 = vpack.c.bf16 %v522, %v522
  %v604 = vpack.c.bf16 %v524, %v524
  %v605 = vpack.c.bf16 %v527, %v527
  %v606 = vpack.c.bf16 %v529, %v529
  %v607 = vpack.c.bf16 %v532, %v532
  %v608 = vpack.c.bf16 %v534, %v534
  %v609 = vpack.c.bf16 %v537, %v537
  %v610 = vpack.c.bf16 %v539, %v539
  %v611 = vpack.c.bf16 %v542, %v542
  %v612 = vpack.c.bf16 %v544, %v544
  %v613 = vpack.c.bf16 %v547, %v547
  %v614 = vpack.c.bf16 %v549, %v549
  %615 = vst [vmem:[%s2] sm:$0xf] %v551
  %616 = vst [vmem:[%s2 + $0x4] sm:$0xf] %v552
  %617 = vst [vmem:[%s2 + $0x8] sm:$0xf] %v553
  %618 = vst [vmem:[%s2 + $0xc] sm:$0xf] %v554
  %619 = vst [vmem:[%s2 + $0x10] sm:$0xf] %v555
  %620 = vst [vmem:[%s2 + $0x14] sm:$0xf] %v556
  %621 = vst [vmem:[%s2 + $0x18] sm:$0xf] %v557
  %622 = vst [vmem:[%s2 + $0x1c] sm:$0xf] %v558
  %623 = vst [vmem:[%s2 + $0x20] sm:$0xf] %v559
  %624 = vst [vmem:[%s2 + $0x24] sm:$0xf] %v560
  %625 = vst [vmem:[%s2 + $0x28] sm:$0xf] %v561
  %626 = vst [vmem:[%s2 + $0x2c] sm:$0xf] %v562
  %627 = vst [vmem:[%s2 + $0x30] sm:$0xf] %v563
  %628 = vst [vmem:[%s2 + $0x34] sm:$0xf] %v564
  %629 = vst [vmem:[%s2 + $0x38] sm:$0xf] %v565
  %630 = vst [vmem:[%s2 + $0x3c] sm:$0xf] %v566
  %631 = vst [vmem:[%s2 + $0x40] sm:$0xf] %v567
  %632 = vst [vmem:[%s2 + $0x44] sm:$0xf] %v568
  %633 = vst [vmem:[%s2 + $0x48] sm:$0xf] %v569
  %634 = vst [vmem:[%s2 + $0x4c] sm:$0xf] %v570
  %635 = vst [vmem:[%s2 + $0x50] sm:$0xf] %v571
  %636 = vst [vmem:[%s2 + $0x54] sm:$0xf] %v572
  %637 = vst [vmem:[%s2 + $0x58] sm:$0xf] %v573
  %638 = vst [vmem:[%s2 + $0x5c] sm:$0xf] %v574
  %639 = vst [vmem:[%s2 + $0x60] sm:$0xf] %v575
  %640 = vst [vmem:[%s2 + $0x64] sm:$0xf] %v576
  %641 = vst [vmem:[%s2 + $0x68] sm:$0xf] %v577
  %642 = vst [vmem:[%s2 + $0x6c] sm:$0xf] %v578
  %643 = vst [vmem:[%s2 + $0x70] sm:$0xf] %v579
  %644 = vst [vmem:[%s2 + $0x74] sm:$0xf] %v580
  %645 = vst [vmem:[%s2 + $0x78] sm:$0xf] %v581
  %646 = vst [vmem:[%s2 + $0x7c] sm:$0xf] %v582
  %647 = vst [vmem:[%s2 + $0x80] sm:$0xf] %v583
  %648 = vst [vmem:[%s2 + $0x84] sm:$0xf] %v584
  %649 = vst [vmem:[%s2 + $0x88] sm:$0xf] %v585
  %650 = vst [vmem:[%s2 + $0x8c] sm:$0xf] %v586
  %651 = vst [vmem:[%s2 + $0x90] sm:$0xf] %v587
  %652 = vst [vmem:[%s2 + $0x94] sm:$0xf] %v588
  %653 = vst [vmem:[%s2 + $0x98] sm:$0xf] %v589
  %654 = vst [vmem:[%s2 + $0x9c] sm:$0xf] %v590
  %655 = vst [vmem:[%s2 + $0xa0] sm:$0xf] %v591
  %656 = vst [vmem:[%s2 + $0xa4] sm:$0xf] %v592
  %657 = vst [vmem:[%s2 + $0xa8] sm:$0xf] %v593
  %658 = vst [vmem:[%s2 + $0xac] sm:$0xf] %v594
  %659 = vst [vmem:[%s2 + $0xb0] sm:$0xf] %v595
  %660 = vst [vmem:[%s2 + $0xb4] sm:$0xf] %v596
  %661 = vst [vmem:[%s2 + $0xb8] sm:$0xf] %v597
  %662 = vst [vmem:[%s2 + $0xbc] sm:$0xf] %v598
  %663 = vst [vmem:[%s2 + $0xc0] sm:$0xf] %v599
  %664 = vst [vmem:[%s2 + $0xc4] sm:$0xf] %v600
  %665 = vst [vmem:[%s2 + $0xc8] sm:$0xf] %v601
  %666 = vst [vmem:[%s2 + $0xcc] sm:$0xf] %v602
  %667 = vst [vmem:[%s2 + $0xd0] sm:$0xf] %v603
  %668 = vst [vmem:[%s2 + $0xd4] sm:$0xf] %v604
  %669 = vst [vmem:[%s2 + $0xd8] sm:$0xf] %v605
  %670 = vst [vmem:[%s2 + $0xdc] sm:$0xf] %v606
  %671 = vst [vmem:[%s2 + $0xe0] sm:$0xf] %v607
  %672 = vst [vmem:[%s2 + $0xe4] sm:$0xf] %v608
  %673 = vst [vmem:[%s2 + $0xe8] sm:$0xf] %v609
  %674 = vst [vmem:[%s2 + $0xec] sm:$0xf] %v610
  %675 = vst [vmem:[%s2 + $0xf0] sm:$0xf] %v611
  %676 = vst [vmem:[%s2 + $0xf4] sm:$0xf] %v612
  %677 = vst [vmem:[%s2 + $0xf8] sm:$0xf] %v613
  %678 = vst [vmem:[%s2 + $0xfc] sm:$0xf] %v614
  %v679 = vadd.f32 %v392, %v394
  %v680 = vadd.f32 %v679, %v397
  %v681 = vadd.f32 %v680, %v399
  %v682 = vadd.f32 %v681, %v402
  %v683 = vadd.f32 %v682, %v404
  %v684 = vadd.f32 %v683, %v407
  %v685 = vadd.f32 %v684, %v409
  %v686 = vadd.f32 %v685, %v412
  %v687 = vadd.f32 %v686, %v414
  %v688 = vadd.f32 %v687, %v417
  %v689 = vadd.f32 %v688, %v419
  %v690 = vadd.f32 %v689, %v422
  %v691 = vadd.f32 %v690, %v424
  %v692 = vadd.f32 %v691, %v427
  %v693 = vadd.f32 %v692, %v429
  %v694 = vadd.f32 %v693, %v432
  %v695 = vadd.f32 %v694, %v434
  %v696 = vadd.f32 %v695, %v437
  %v697 = vadd.f32 %v696, %v439
  %v698 = vadd.f32 %v697, %v442
  %v699 = vadd.f32 %v698, %v444
  %v700 = vadd.f32 %v699, %v447
  %v701 = vadd.f32 %v700, %v449
  %v702 = vadd.f32 %v701, %v452
  %v703 = vadd.f32 %v702, %v454
  %v704 = vadd.f32 %v703, %v457
  %v705 = vadd.f32 %v704, %v459
  %v706 = vadd.f32 %v705, %v462
  %v707 = vadd.f32 %v706, %v464
  %v708 = vadd.f32 %v707, %v467
  %v709 = vadd.f32 %v708, %v469
  %v710 = vadd.f32 %v709, %v472
  %v711 = vadd.f32 %v710, %v474
  %v712 = vadd.f32 %v711, %v477
  %v713 = vadd.f32 %v712, %v479
  %v714 = vadd.f32 %v713, %v482
  %v715 = vadd.f32 %v714, %v484
  %v716 = vadd.f32 %v715, %v487
  %v717 = vadd.f32 %v716, %v489
  %v718 = vadd.f32 %v717, %v492
  %v719 = vadd.f32 %v718, %v494
  %v720 = vadd.f32 %v719, %v497
  %v721 = vadd.f32 %v720, %v499
  %v722 = vadd.f32 %v721, %v502
  %v723 = vadd.f32 %v722, %v504
  %v724 = vadd.f32 %v723, %v507
  %v725 = vadd.f32 %v724, %v509
  %v726 = vadd.f32 %v725, %v512
  %v727 = vadd.f32 %v726, %v514
  %v728 = vadd.f32 %v727, %v517
  %v729 = vadd.f32 %v728, %v519
  %v730 = vadd.f32 %v729, %v522
  %v731 = vadd.f32 %v730, %v524
  %v732 = vadd.f32 %v731, %v527
  %v733 = vadd.f32 %v732, %v529
  %v734 = vadd.f32 %v733, %v532
  %v735 = vadd.f32 %v734, %v534
  %v736 = vadd.f32 %v735, %v537
  %v737 = vadd.f32 %v736, %v539
  %v738 = vadd.f32 %v737, %v542
  %v739 = vadd.f32 %v738, %v544
  %v740 = vadd.f32 %v739, %v547
  %v741 = vadd.f32 %v740, %v549
  %v742 = vrot.slane %v741, 4
  %v743 = vadd.f32 %v741, %v742
  %v744 = vrot.slane %v743, 2
  %v745 = vadd.f32 %v743, %v744
  %v746 = vrot.slane %v745, 1
  %v747 = vadd.f32 %v745, %v746
  %v748 = vmul.f32 %v392, %v392
  %v749 = vmul.f32 %v394, %v394
  %v750 = vmul.f32 %v397, %v397
  %v751 = vmul.f32 %v399, %v399
  %v752 = vmul.f32 %v402, %v402
  %v753 = vmul.f32 %v404, %v404
  %v754 = vmul.f32 %v407, %v407
  %v755 = vmul.f32 %v409, %v409
  %v756 = vmul.f32 %v412, %v412
  %v757 = vmul.f32 %v414, %v414
  %v758 = vmul.f32 %v417, %v417
  %v759 = vmul.f32 %v419, %v419
  %v760 = vmul.f32 %v422, %v422
  %v761 = vmul.f32 %v424, %v424
  %v762 = vmul.f32 %v427, %v427
  %v763 = vmul.f32 %v429, %v429
  %v764 = vmul.f32 %v432, %v432
  %v765 = vmul.f32 %v434, %v434
  %v766 = vmul.f32 %v437, %v437
  %v767 = vmul.f32 %v439, %v439
  %v768 = vmul.f32 %v442, %v442
  %v769 = vmul.f32 %v444, %v444
  %v770 = vmul.f32 %v447, %v447
  %v771 = vmul.f32 %v449, %v449
  %v772 = vmul.f32 %v452, %v452
  %v773 = vmul.f32 %v454, %v454
  %v774 = vmul.f32 %v457, %v457
  %v775 = vmul.f32 %v459, %v459
  %v776 = vmul.f32 %v462, %v462
  %v777 = vmul.f32 %v464, %v464
  %v778 = vmul.f32 %v467, %v467
  %v779 = vmul.f32 %v469, %v469
  %v780 = vmul.f32 %v472, %v472
  %v781 = vmul.f32 %v474, %v474
  %v782 = vmul.f32 %v477, %v477
  %v783 = vmul.f32 %v479, %v479
  %v784 = vmul.f32 %v482, %v482
  %v785 = vmul.f32 %v484, %v484
  %v786 = vmul.f32 %v487, %v487
  %v787 = vmul.f32 %v489, %v489
  %v788 = vmul.f32 %v492, %v492
  %v789 = vmul.f32 %v494, %v494
  %v790 = vmul.f32 %v497, %v497
  %v791 = vmul.f32 %v499, %v499
  %v792 = vmul.f32 %v502, %v502
  %v793 = vmul.f32 %v504, %v504
  %v794 = vmul.f32 %v507, %v507
  %v795 = vmul.f32 %v509, %v509
  %v796 = vmul.f32 %v512, %v512
  %v797 = vmul.f32 %v514, %v514
  %v798 = vmul.f32 %v517, %v517
  %v799 = vmul.f32 %v519, %v519
  %v800 = vmul.f32 %v522, %v522
  %v801 = vmul.f32 %v524, %v524
  %v802 = vmul.f32 %v527, %v527
  %v803 = vmul.f32 %v529, %v529
  %v804 = vmul.f32 %v532, %v532
  %v805 = vmul.f32 %v534, %v534
  %v806 = vmul.f32 %v537, %v537
  %v807 = vmul.f32 %v539, %v539
  %v808 = vmul.f32 %v542, %v542
  %v809 = vmul.f32 %v544, %v544
  %v810 = vmul.f32 %v547, %v547
  %v811 = vmul.f32 %v549, %v549
  %v812 = vadd.f32 %v748, %v749
  %v813 = vadd.f32 %v812, %v750
  %v814 = vadd.f32 %v813, %v751
  %v815 = vadd.f32 %v814, %v752
  %v816 = vadd.f32 %v815, %v753
  %v817 = vadd.f32 %v816, %v754
  %v818 = vadd.f32 %v817, %v755
  %v819 = vadd.f32 %v818, %v756
  %v820 = vadd.f32 %v819, %v757
  %v821 = vadd.f32 %v820, %v758
  %v822 = vadd.f32 %v821, %v759
  %v823 = vadd.f32 %v822, %v760
  %v824 = vadd.f32 %v823, %v761
  %v825 = vadd.f32 %v824, %v762
  %v826 = vadd.f32 %v825, %v763
  %v827 = vadd.f32 %v826, %v764
  %v828 = vadd.f32 %v827, %v765
  %v829 = vadd.f32 %v828, %v766
  %v830 = vadd.f32 %v829, %v767
  %v831 = vadd.f32 %v830, %v768
  %v832 = vadd.f32 %v831, %v769
  %v833 = vadd.f32 %v832, %v770
  %v834 = vadd.f32 %v833, %v771
  %v835 = vadd.f32 %v834, %v772
  %v836 = vadd.f32 %v835, %v773
  %v837 = vadd.f32 %v836, %v774
  %v838 = vadd.f32 %v837, %v775
  %v839 = vadd.f32 %v838, %v776
  %v840 = vadd.f32 %v839, %v777
  %v841 = vadd.f32 %v840, %v778
  %v842 = vadd.f32 %v841, %v779
  %v843 = vadd.f32 %v842, %v780
  %v844 = vadd.f32 %v843, %v781
  %v845 = vadd.f32 %v844, %v782
  %v846 = vadd.f32 %v845, %v783
  %v847 = vadd.f32 %v846, %v784
  %v848 = vadd.f32 %v847, %v785
  %v849 = vadd.f32 %v848, %v786
  %v850 = vadd.f32 %v849, %v787
  %v851 = vadd.f32 %v850, %v788
  %v852 = vadd.f32 %v851, %v789
  %v853 = vadd.f32 %v852, %v790
  %v854 = vadd.f32 %v853, %v791
  %v855 = vadd.f32 %v854, %v792
  %v856 = vadd.f32 %v855, %v793
  %v857 = vadd.f32 %v856, %v794
  %v858 = vadd.f32 %v857, %v795
  %v859 = vadd.f32 %v858, %v796
  %v860 = vadd.f32 %v859, %v797
  %v861 = vadd.f32 %v860, %v798
  %v862 = vadd.f32 %v861, %v799
  %v863 = vadd.f32 %v862, %v800
  %v864 = vadd.f32 %v863, %v801
  %v865 = vadd.f32 %v864, %v802
  %v866 = vadd.f32 %v865, %v803
  %v867 = vadd.f32 %v866, %v804
  %v868 = vadd.f32 %v867, %v805
  %v869 = vadd.f32 %v868, %v806
  %v870 = vadd.f32 %v869, %v807
  %v871 = vadd.f32 %v870, %v808
  %v872 = vadd.f32 %v871, %v809
  %v873 = vadd.f32 %v872, %v810
  %v874 = vadd.f32 %v873, %v811
  %v875 = vrot.slane %v874, 4
  %v876 = vadd.f32 %v874, %v875
  %v877 = vrot.slane %v876, 2
  %v878 = vadd.f32 %v876, %v877
  %v879 = vrot.slane %v878, 1
  %v880 = vadd.f32 %v878, %v879
  %881 = vst [vmem:[%s3] sm:$0xff] %v747
  %882 = vst [vmem:[%s4] sm:$0xff] %v880
  // Predicated region
  $region10: #{_lambda_.36} parent=0 // pred_check
    _
  $region11: #{_lambda_.36} parent=0 // pred_check_branch
    %884 = sbr.rel (0) target = $region13
  $region12: #{_lambda_.36} parent=0 // pred_region
    _
  $region13: #{_lambda_.36} parent=0 // pred_fallthru
    _
  // Predicated region
  $region14: #{_lambda_.36} parent=0 // pred_check
    _
  $region15: #{_lambda_.36} parent=0 // pred_check_branch
    %886 = sbr.rel (0) target = $region17
  $region16: #{_lambda_.36} parent=0 // pred_region
    _
  $region17: #{_lambda_.36} parent=0 // pred_fallthru
    _
  // Predicated region
  $region18: #{_lambda_.36} parent=0 // pred_check
    _
  $region19: #{_lambda_.36} parent=0 // pred_check_branch
    %888 = sbr.rel (0) target = $region21
  $region20: #{_lambda_.36} parent=0 // pred_region
    _
  $region21: #{_lambda_.36} parent=0 // pred_fallthru
    _
  // Predicated region
  $region22: #{_lambda_.36} parent=0 // pred_check
    _
  $region23: #{_lambda_.36} parent=0 // pred_check_branch
    %890 = sbr.rel (0) target = $region25
  $region24: #{_lambda_.36} parent=0 // pred_region
    _
  $region25: #{_lambda_.36} parent=0 // pred_fallthru
    _
  // Predicated region
  $region26: #{_lambda_.36} parent=0 // pred_check
    _
  $region27: #{_lambda_.36} parent=0 // pred_check_branch
    %892 = sbr.rel (0) target = $region29
  $region28: #{_lambda_.36} parent=0 // pred_region
    _
  $region29: #{_lambda_.36} parent=0 // pred_fallthru
    _
  // Predicated region
  $region30: #{_lambda_.36} parent=0 // pred_check
    _
  $region31: #{_lambda_.36} parent=0 // pred_check_branch
    %894 = sbr.rel (0) target = $region33
  $region32: #{_lambda_.36} parent=0 // pred_region
    _
  $region33: #{_lambda_.36} parent=0 // pred_fallthru
    _

// kernel: _lambda_.39
$region0: #{_lambda_.39}
  #allocation0 [shape = 'u32[]', space=smem, size = 0x4, offset = 0x4, fixed_abs, tag = 'smem constant byte address 0x4 - core index']
  #allocation1 [shape = 'u32[72,128]{1,0:T(1,128)}', space=vmem, size = 0x9000, scoped, tag = 'internal scratch']
  %s0 = inlined_call_operand.vmem [shape: bf16[128,128], index: 0, kind: input, shape index: {}]
  %s1 = inlined_call_operand.vmem [shape: f32[1,128], index: 1, kind: input, shape index: {}]
  %s2 = inlined_call_operand.vmem [shape: f32[1,128], index: 2, kind: input, shape index: {}]
  %s3 = inlined_call_operand.vmem [shape: bf16[128,128], index: 3, kind: output, shape index: {}]
  %s4 = sld [smem:[#allocation0]]
  $region22: #{_lambda_.39} parent=0
    _
  %s6 = ssub.s32 1, %s4
  %s7 = scalar_select 0, %s6, %s4
  // Predicated region
  $region2: #{_lambda_.39} parent=0 // pred_check
    _
  $region3: #{_lambda_.39} parent=0 // pred_check_branch
    %9 = sbr.rel (0) target = $region5
  $region4: #{_lambda_.39} parent=0 // pred_region
    _
  $region5: #{_lambda_.39} parent=0 // pred_fallthru
    _
  // Predicated region
  $region6: #{_lambda_.39} parent=0 // pred_check
    _
  $region7: #{_lambda_.39} parent=0 // pred_check_branch
    %11 = sbr.rel (0) target = $region9
  $region8: #{_lambda_.39} parent=0 // pred_region
    _
  $region9: #{_lambda_.39} parent=0 // pred_fallthru
    _
  // Predicated region
  $region10: #{_lambda_.39} parent=0 // pred_check
    _
  $region11: #{_lambda_.39} parent=0 // pred_check_branch
    %13 = sbr.rel (0) target = $region13
  $region12: #{_lambda_.39} parent=0 // pred_region
    _
  $region13: #{_lambda_.39} parent=0 // pred_fallthru
    _
  %v14 = vld [vmem:[%s0] sm:$0xf]
  %v15 = vld [vmem:[%s0 + $0x4] sm:$0xf]
  %v16 = vld [vmem:[%s0 + $0x8] sm:$0xf]
  %v17 = vld [vmem:[%s0 + $0xc] sm:$0xf]
  %v18 = vld [vmem:[%s0 + $0x10] sm:$0xf]
  %v19 = vld [vmem:[%s0 + $0x14] sm:$0xf]
  %v20 = vld [vmem:[%s0 + $0x18] sm:$0xf]
  %v21 = vld [vmem:[%s0 + $0x1c] sm:$0xf]
  %v22 = vld [vmem:[%s0 + $0x20] sm:$0xf]
  %v23 = vld [vmem:[%s0 + $0x24] sm:$0xf]
  %v24 = vld [vmem:[%s0 + $0x28] sm:$0xf]
  %v25 = vld [vmem:[%s0 + $0x2c] sm:$0xf]
  %v26 = vld [vmem:[%s0 + $0x30] sm:$0xf]
  %v27 = vld [vmem:[%s0 + $0x34] sm:$0xf]
  %v28 = vld [vmem:[%s0 + $0x38] sm:$0xf]
  %v29 = vld [vmem:[%s0 + $0x3c] sm:$0xf]
  %v30 = vunpack.c.l.bf16 %v14
  %v31 = vunpack.c.l.bf16 %v15
  %v32 = vunpack.c.l.bf16 %v16
  %v33 = vunpack.c.l.bf16 %v17
  %v34 = vunpack.c.l.bf16 %v18
  %v35 = vunpack.c.l.bf16 %v19
  %v36 = vunpack.c.l.bf16 %v20
  %v37 = vunpack.c.l.bf16 %v21
  %v38 = vunpack.c.l.bf16 %v22
  %v39 = vunpack.c.l.bf16 %v23
  %v40 = vunpack.c.l.bf16 %v24
  %v41 = vunpack.c.l.bf16 %v25
  %v42 = vunpack.c.l.bf16 %v26
  %v43 = vunpack.c.l.bf16 %v27
  %v44 = vunpack.c.l.bf16 %v28
  %v45 = vunpack.c.l.bf16 %v29
  %v46 = vld [vmem:[%s1] sm:$0x1]
  %v48 = vperm.slane %v46, 0
  %v50 = vmul.f32 %v30, %v48
  %v51 = vmul.f32 %v31, %v48
  %v52 = vmul.f32 %v32, %v48
  %v53 = vmul.f32 %v33, %v48
  %v54 = vmul.f32 %v34, %v48
  %v55 = vmul.f32 %v35, %v48
  %v56 = vmul.f32 %v36, %v48
  %v57 = vmul.f32 %v37, %v48
  %v58 = vmul.f32 %v38, %v48
  %v59 = vmul.f32 %v39, %v48
  %v60 = vmul.f32 %v40, %v48
  %v61 = vmul.f32 %v41, %v48
  %v62 = vmul.f32 %v42, %v48
  %v63 = vmul.f32 %v43, %v48
  %v64 = vmul.f32 %v44, %v48
  %v65 = vmul.f32 %v45, %v48
  %v66 = vld [vmem:[%s2] sm:$0x1]
  %v68 = vperm.slane %v66, 0
  %v70 = vadd.f32 %v50, %v68
  %v71 = vadd.f32 %v51, %v68
  %v72 = vadd.f32 %v52, %v68
  %v73 = vadd.f32 %v53, %v68
  %v74 = vadd.f32 %v54, %v68
  %v75 = vadd.f32 %v55, %v68
  %v76 = vadd.f32 %v56, %v68
  %v77 = vadd.f32 %v57, %v68
  %v78 = vadd.f32 %v58, %v68
  %v79 = vadd.f32 %v59, %v68
  %v80 = vadd.f32 %v60, %v68
  %v81 = vadd.f32 %v61, %v68
  %v82 = vadd.f32 %v62, %v68
  %v83 = vadd.f32 %v63, %v68
  %v84 = vadd.f32 %v64, %v68
  %v85 = vadd.f32 %v65, %v68
  %vm86 = vcmp.ge.f32.partialorder %v70, 0.0
  %vm87 = vcmp.ge.f32.partialorder %v71, 0.0
  %vm88 = vcmp.ge.f32.partialorder %v72, 0.0
  %vm89 = vcmp.ge.f32.partialorder %v73, 0.0
  %vm90 = vcmp.ge.f32.partialorder %v74, 0.0
  %vm91 = vcmp.ge.f32.partialorder %v75, 0.0
  %vm92 = vcmp.ge.f32.partialorder %v76, 0.0
  %vm93 = vcmp.ge.f32.partialorder %v77, 0.0
  %vm94 = vcmp.ge.f32.partialorder %v78, 0.0
  %vm95 = vcmp.ge.f32.partialorder %v79, 0.0
  %vm96 = vcmp.ge.f32.partialorder %v80, 0.0
  %vm97 = vcmp.ge.f32.partialorder %v81, 0.0
  %vm98 = vcmp.ge.f32.partialorder %v82, 0.0
  %vm99 = vcmp.ge.f32.partialorder %v83, 0.0
  %vm100 = vcmp.ge.f32.partialorder %v84, 0.0
  %vm101 = vcmp.ge.f32.partialorder %v85, 0.0
  %v102 = vmul.f32 %v70, 0.1
  %v103 = vmul.f32 %v71, 0.1
  %v104 = vmul.f32 %v72, 0.1
  %v105 = vmul.f32 %v73, 0.1
  %v106 = vmul.f32 %v74, 0.1
  %v107 = vmul.f32 %v75, 0.1
  %v108 = vmul.f32 %v76, 0.1
  %v109 = vmul.f32 %v77, 0.1
  %v110 = vmul.f32 %v78, 0.1
  %v111 = vmul.f32 %v79, 0.1
  %v112 = vmul.f32 %v80, 0.1
  %v113 = vmul.f32 %v81, 0.1
  %v114 = vmul.f32 %v82, 0.1
  %v115 = vmul.f32 %v83, 0.1
  %v116 = vmul.f32 %v84, 0.1
  %v117 = vmul.f32 %v85, 0.1
  %v118 = vsel %vm86, %v70, %v102
  %v119 = vsel %vm87, %v71, %v103
  %v120 = vsel %vm88, %v72, %v104
  %v121 = vsel %vm89, %v73, %v105
  %v122 = vsel %vm90, %v74, %v106
  %v123 = vsel %vm91, %v75, %v107
  %v124 = vsel %vm92, %v76, %v108
  %v125 = vsel %vm93, %v77, %v109
  %v126 = vsel %vm94, %v78, %v110
  %v127 = vsel %vm95, %v79, %v111
  %v128 = vsel %vm96, %v80, %v112
  %v129 = vsel %vm97, %v81, %v113
  %v130 = vsel %vm98, %v82, %v114
  %v131 = vsel %vm99, %v83, %v115
  %v132 = vsel %vm100, %v84, %v116
  %v133 = vsel %vm101, %v85, %v117
  %v134 = vpack.c.bf16 %v118, %v118
  %v135 = vpack.c.bf16 %v119, %v119
  %v136 = vpack.c.bf16 %v120, %v120
  %v137 = vpack.c.bf16 %v121, %v121
  %v138 = vpack.c.bf16 %v122, %v122
  %v139 = vpack.c.bf16 %v123, %v123
  %v140 = vpack.c.bf16 %v124, %v124
  %v141 = vpack.c.bf16 %v125, %v125
  %v142 = vpack.c.bf16 %v126, %v126
  %v143 = vpack.c.bf16 %v127, %v127
  %v144 = vpack.c.bf16 %v128, %v128
  %v145 = vpack.c.bf16 %v129, %v129
  %v146 = vpack.c.bf16 %v130, %v130
  %v147 = vpack.c.bf16 %v131, %v131
  %v148 = vpack.c.bf16 %v132, %v132
  %v149 = vpack.c.bf16 %v133, %v133
  %150 = vst [vmem:[%s3] sm:$0xf] %v134
  %151 = vst [vmem:[%s3 + $0x4] sm:$0xf] %v135
  %152 = vst [vmem:[%s3 + $0x8] sm:$0xf] %v136
  %153 = vst [vmem:[%s3 + $0xc] sm:$0xf] %v137
  %154 = vst [vmem:[%s3 + $0x10] sm:$0xf] %v138
  %155 = vst [vmem:[%s3 + $0x14] sm:$0xf] %v139
  %156 = vst [vmem:[%s3 + $0x18] sm:$0xf] %v140
  %157 = vst [vmem:[%s3 + $0x1c] sm:$0xf] %v141
  %158 = vst [vmem:[%s3 + $0x20] sm:$0xf] %v142
  %159 = vst [vmem:[%s3 + $0x24] sm:$0xf] %v143
  %160 = vst [vmem:[%s3 + $0x28] sm:$0xf] %v144
  %161 = vst [vmem:[%s3 + $0x2c] sm:$0xf] %v145
  %162 = vst [vmem:[%s3 + $0x30] sm:$0xf] %v146
  %163 = vst [vmem:[%s3 + $0x34] sm:$0xf] %v147
  %164 = vst [vmem:[%s3 + $0x38] sm:$0xf] %v148
  %165 = vst [vmem:[%s3 + $0x3c] sm:$0xf] %v149
  // Predicated region
  $region14: #{_lambda_.39} parent=0 // pred_check
    _
  $region15: #{_lambda_.39} parent=0 // pred_check_branch
    %167 = sbr.rel (0) target = $region17
  $region16: #{_lambda_.39} parent=0 // pred_region
    _
  $region17: #{_lambda_.39} parent=0 // pred_fallthru
    _
  // Predicated region
  $region18: #{_lambda_.39} parent=0 // pred_check
    _
  $region19: #{_lambda_.39} parent=0 // pred_check_branch
    %169 = sbr.rel (0) target = $region21
  $region20: #{_lambda_.39} parent=0 // pred_region
    _
  $region21: #{_lambda_.39} parent=0 // pred_fallthru
    _

// kernel: _lambda_.38
$region0: #{_lambda_.38}
  #allocation0 [shape = 'u32[]', space=smem, size = 0x4, offset = 0x4, fixed_abs, tag = 'smem constant byte address 0x4 - core index']
  #allocation1 [shape = 'u32[72,128]{1,0:T(1,128)}', space=vmem, size = 0x9000, scoped, tag = 'internal scratch']
  %s0 = inlined_call_operand.vmem [shape: bf16[128,100], index: 0, kind: input, shape index: {}]
  %s1 = inlined_call_operand.vmem [shape: bf16[100,128], index: 1, kind: input, shape index: {}]
  %s2 = inlined_call_operand.vmem [shape: bf16[128,128], index: 2, kind: output, shape index: {0}]
  %s3 = inlined_call_operand.vmem [shape: f32[1,8,128], index: 3, kind: output, shape index: {1}]
  %s4 = inlined_call_operand.vmem [shape: f32[1,8,128], index: 4, kind: output, shape index: {2}]
  %5 = xla_tuple %s2, %s3, %s4
  %s6 = sld [smem:[#allocation0]]
  $region34: #{_lambda_.38} parent=0
    _
  %s8 = ssub.s32 1, %s6
  %s9 = scalar_select 0, %s8, %s6
  // Predicated region
  $region2: #{_lambda_.38} parent=0 // pred_check
    _
  $region3: #{_lambda_.38} parent=0 // pred_check_branch
    %11 = sbr.rel (0) target = $region5
  $region4: #{_lambda_.38} parent=0 // pred_region
    _
  $region5: #{_lambda_.38} parent=0 // pred_fallthru
    _
  // Predicated region
  $region6: #{_lambda_.38} parent=0 // pred_check
    _
  $region7: #{_lambda_.38} parent=0 // pred_check_branch
    %13 = sbr.rel (0) target = $region9
  $region8: #{_lambda_.38} parent=0 // pred_region
    _
  $region9: #{_lambda_.38} parent=0 // pred_fallthru
    _
  %v15 = vld [vmem:[%s0] sm:$0xf]
  %v16 = vld [vmem:[%s0 + $0x4] sm:$0xf]
  %v17 = vld [vmem:[%s0 + $0x8] sm:$0xf]
  %v18 = vld [vmem:[%s0 + $0xc] sm:$0xf]
  %v19 = vld [vmem:[%s0 + $0x10] sm:$0xf]
  %v20 = vld [vmem:[%s0 + $0x14] sm:$0xf]
  %v21 = vld [vmem:[%s0 + $0x18] sm:$0xf]
  %v22 = vld [vmem:[%s0 + $0x1c] sm:$0xf]
  %v23 = vld [vmem:[%s0 + $0x20] sm:$0xf]
  %v24 = vld [vmem:[%s0 + $0x24] sm:$0xf]
  %v25 = vld [vmem:[%s0 + $0x28] sm:$0xf]
  %v26 = vld [vmem:[%s0 + $0x2c] sm:$0xf]
  %v27 = vld [vmem:[%s0 + $0x30] sm:$0xf]
  %v28 = vld [vmem:[%s0 + $0x34] sm:$0xf]
  %v29 = vld [vmem:[%s0 + $0x38] sm:$0xf]
  %v30 = vld [vmem:[%s0 + $0x3c] sm:$0xf]
  %v31 = vld [vmem:[%s1] sm:$0xf]
  %v32 = vld [vmem:[%s1 + $0x4] sm:$0xf]
  %v33 = vld [vmem:[%s1 + $0x8] sm:$0xf]
  %v34 = vld [vmem:[%s1 + $0xc] sm:$0xf]
  %v35 = vld [vmem:[%s1 + $0x10] sm:$0xf]
  %v36 = vld [vmem:[%s1 + $0x14] sm:$0xf]
  %v37 = vld [vmem:[%s1 + $0x18] sm:$0xf]
  %v38 = vld [vmem:[%s1 + $0x1c] sm:$0xf]
  %v39 = vld [vmem:[%s1 + $0x20] sm:$0xf]
  %v40 = vld [vmem:[%s1 + $0x24] sm:$0xf]
  %v41 = vld [vmem:[%s1 + $0x28] sm:$0xf]
  %v42 = vld [vmem:[%s1 + $0x2c] sm:$0xf]
  %v43 = vld [vmem:[%s1 + $0x30] sm:$0x3]
  %v60 = vunpack.c.l.b16 %v15
  %v61 = vunpack.c.l.b16 %v16
  %v62 = vunpack.c.l.b16 %v17
  %v63 = vunpack.c.l.b16 %v18
  %v64 = vunpack.c.l.b16 %v19
  %v65 = vunpack.c.l.b16 %v20
  %v66 = vunpack.c.l.b16 %v21
  %v67 = vunpack.c.l.b16 %v22
  %v68 = vunpack.c.l.b16 %v23
  %v69 = vunpack.c.l.b16 %v24
  %v70 = vunpack.c.l.b16 %v25
  %v71 = vunpack.c.l.b16 %v26
  %v72 = vunpack.c.l.b16 %v27
  %v73 = vunpack.c.l.b16 %v28
  %v74 = vunpack.c.l.b16 %v29
  %v75 = vunpack.c.l.b16 %v30
  %v76 = vpack.c.b16 %v61, %v60
  %v77 = vpack.c.b16 %v63, %v62
  %v78 = vpack.c.b16 %v65, %v64
  %v79 = vpack.c.b16 %v67, %v66
  %v80 = vpack.c.b16 %v69, %v68
  %v81 = vpack.c.b16 %v71, %v70
  %v82 = vpack.c.b16 %v73, %v72
  %v83 = vpack.c.b16 %v75, %v74
  %v97 = vunpack.c.l.b16 %v31
  %v98 = vunpack.c.l.b16 %v32
  %v99 = vunpack.c.l.b16 %v33
  %v100 = vunpack.c.l.b16 %v34
  %v101 = vunpack.c.l.b16 %v35
  %v102 = vunpack.c.l.b16 %v36
  %v103 = vunpack.c.l.b16 %v37
  %v104 = vunpack.c.l.b16 %v38
  %v105 = vunpack.c.l.b16 %v39
  %v106 = vunpack.c.l.b16 %v40
  %v107 = vunpack.c.l.b16 %v41
  %v108 = vunpack.c.l.b16 %v42
  %v109 = vunpack.c.l.b16 %v43
  %v110 = vpack.c.b16 %v98, %v97
  %v111 = vpack.c.b16 %v100, %v99
  %v112 = vpack.c.b16 %v102, %v101
  %v113 = vpack.c.b16 %v104, %v103
  %v114 = vpack.c.b16 %v106, %v105
  %v115 = vpack.c.b16 %v108, %v107
  %v116 = vpack.c.b16 %v109, %v109
  %vm123 = vcmask 818176
  %v125 = vsel %vm123, %v76, 0
  %v128 = vsel %vm123, %v77, 0
  %v131 = vsel %vm123, %v78, 0
  %v134 = vsel %vm123, %v79, 0
  %v137 = vsel %vm123, %v80, 0
  %v140 = vsel %vm123, %v81, 0
  %v143 = vsel %vm123, %v82, 0
  %v146 = vsel %vm123, %v83, 0
  %vm148 = vcmask 1041408
  %v150 = vsel %vm148, %v116, 0
  %152 = vmatpush.bf16.msra.mxu0 0
  %153 = vmatpush.bf16.msra.mxu0 %v150
  %154 = vmatpush.bf16.msra.mxu0 %v115
  %155 = vmatpush.bf16.msra.mxu0 %v114
  %156 = vmatpush.bf16.msra.mxu0 %v113
  %157 = vmatpush.bf16.msra.mxu0 %v112
  %158 = vmatpush.bf16.msra.mxu0 %v111
  %159 = vmatpush.bf16.msra.mxu0 %v110
  %160 = vmatmul.bf16.gmra.mxu0 %v125
  %v161 = vpop.f32.mrf.mxu0
  %v162 = vadd.f32 0.0, %v161
  %v163 = vpop.f32.mrf.mxu0
  %v164 = vadd.f32 0.0, %v163
  %165 = vmatmul.bf16.gmra.mxu0 %v128
  %v166 = vpop.f32.mrf.mxu0
  %v167 = vadd.f32 0.0, %v166
  %v168 = vpop.f32.mrf.mxu0
  %v169 = vadd.f32 0.0, %v168
  %170 = vmatmul.bf16.gmra.mxu0 %v131
  %v171 = vpop.f32.mrf.mxu0
  %v172 = vadd.f32 0.0, %v171
  %v173 = vpop.f32.mrf.mxu0
  %v174 = vadd.f32 0.0, %v173
  %175 = vmatmul.bf16.gmra.mxu0 %v134
  %v176 = vpop.f32.mrf.mxu0
  %v177 = vadd.f32 0.0, %v176
  %v178 = vpop.f32.mrf.mxu0
  %v179 = vadd.f32 0.0, %v178
  %180 = vmatmul.bf16.gmra.mxu0 %v137
  %v181 = vpop.f32.mrf.mxu0
  %v182 = vadd.f32 0.0, %v181
  %v183 = vpop.f32.mrf.mxu0
  %v184 = vadd.f32 0.0, %v183
  %185 = vmatmul.bf16.gmra.mxu0 %v140
  %v186 = vpop.f32.mrf.mxu0
  %v187 = vadd.f32 0.0, %v186
  %v188 = vpop.f32.mrf.mxu0
  %v189 = vadd.f32 0.0, %v188
  %190 = vmatmul.bf16.gmra.mxu0 %v143
  %v191 = vpop.f32.mrf.mxu0
  %v192 = vadd.f32 0.0, %v191
  %v193 = vpop.f32.mrf.mxu0
  %v194 = vadd.f32 0.0, %v193
  %195 = vmatmul.bf16.gmra.mxu0 %v146
  %v196 = vpop.f32.mrf.mxu0
  %v197 = vadd.f32 0.0, %v196
  %v198 = vpop.f32.mrf.mxu0
  %v199 = vadd.f32 0.0, %v198
  %200 = vdwg.mxu0
  %v201 = vpack.c.bf16 %v162, %v162
  %v202 = vpack.c.bf16 %v164, %v164
  %v203 = vpack.c.bf16 %v167, %v167
  %v204 = vpack.c.bf16 %v169, %v169
  %v205 = vpack.c.bf16 %v172, %v172
  %v206 = vpack.c.bf16 %v174, %v174
  %v207 = vpack.c.bf16 %v177, %v177
  %v208 = vpack.c.bf16 %v179, %v179
  %v209 = vpack.c.bf16 %v182, %v182
  %v210 = vpack.c.bf16 %v184, %v184
  %v211 = vpack.c.bf16 %v187, %v187
  %v212 = vpack.c.bf16 %v189, %v189
  %v213 = vpack.c.bf16 %v192, %v192
  %v214 = vpack.c.bf16 %v194, %v194
  %v215 = vpack.c.bf16 %v197, %v197
  %v216 = vpack.c.bf16 %v199, %v199
  %217 = vst [vmem:[%s2] sm:$0xf] %v201
  %218 = vst [vmem:[%s2 + $0x4] sm:$0xf] %v202
  %219 = vst [vmem:[%s2 + $0x8] sm:$0xf] %v203
  %220 = vst [vmem:[%s2 + $0xc] sm:$0xf] %v204
  %221 = vst [vmem:[%s2 + $0x10] sm:$0xf] %v205
  %222 = vst [vmem:[%s2 + $0x14] sm:$0xf] %v206
  %223 = vst [vmem:[%s2 + $0x18] sm:$0xf] %v207
  %224 = vst [vmem:[%s2 + $0x1c] sm:$0xf] %v208
  %225 = vst [vmem:[%s2 + $0x20] sm:$0xf] %v209
  %226 = vst [vmem:[%s2 + $0x24] sm:$0xf] %v210
  %227 = vst [vmem:[%s2 + $0x28] sm:$0xf] %v211
  %228 = vst [vmem:[%s2 + $0x2c] sm:$0xf] %v212
  %229 = vst [vmem:[%s2 + $0x30] sm:$0xf] %v213
  %230 = vst [vmem:[%s2 + $0x34] sm:$0xf] %v214
  %231 = vst [vmem:[%s2 + $0x38] sm:$0xf] %v215
  %232 = vst [vmem:[%s2 + $0x3c] sm:$0xf] %v216
  %v233 = vadd.f32 %v162, %v164
  %v234 = vadd.f32 %v233, %v167
  %v235 = vadd.f32 %v234, %v169
  %v236 = vadd.f32 %v235, %v172
  %v237 = vadd.f32 %v236, %v174
  %v238 = vadd.f32 %v237, %v177
  %v239 = vadd.f32 %v238, %v179
  %v240 = vadd.f32 %v239, %v182
  %v241 = vadd.f32 %v240, %v184
  %v242 = vadd.f32 %v241, %v187
  %v243 = vadd.f32 %v242, %v189
  %v244 = vadd.f32 %v243, %v192
  %v245 = vadd.f32 %v244, %v194
  %v246 = vadd.f32 %v245, %v197
  %v247 = vadd.f32 %v246, %v199
  %v248 = vrot.slane %v247, 4
  %v249 = vadd.f32 %v247, %v248
  %v250 = vrot.slane %v249, 2
  %v251 = vadd.f32 %v249, %v250
  %v252 = vrot.slane %v251, 1
  %v253 = vadd.f32 %v251, %v252
  %v254 = vmul.f32 %v162, %v162
  %v255 = vmul.f32 %v164, %v164
  %v256 = vmul.f32 %v167, %v167
  %v257 = vmul.f32 %v169, %v169
  %v258 = vmul.f32 %v172, %v172
  %v259 = vmul.f32 %v174, %v174
  %v260 = vmul.f32 %v177, %v177
  %v261 = vmul.f32 %v179, %v179
  %v262 = vmul.f32 %v182, %v182
  %v263 = vmul.f32 %v184, %v184
  %v264 = vmul.f32 %v187, %v187
  %v265 = vmul.f32 %v189, %v189
  %v266 = vmul.f32 %v192, %v192
  %v267 = vmul.f32 %v194, %v194
  %v268 = vmul.f32 %v197, %v197
  %v269 = vmul.f32 %v199, %v199
  %v270 = vadd.f32 %v254, %v255
  %v271 = vadd.f32 %v270, %v256
  %v272 = vadd.f32 %v271, %v257
  %v273 = vadd.f32 %v272, %v258
  %v274 = vadd.f32 %v273, %v259
  %v275 = vadd.f32 %v274, %v260
  %v276 = vadd.f32 %v275, %v261
  %v277 = vadd.f32 %v276, %v262
  %v278 = vadd.f32 %v277, %v263
  %v279 = vadd.f32 %v278, %v264
  %v280 = vadd.f32 %v279, %v265
  %v281 = vadd.f32 %v280, %v266
  %v282 = vadd.f32 %v281, %v267
  %v283 = vadd.f32 %v282, %v268
  %v284 = vadd.f32 %v283, %v269
  %v285 = vrot.slane %v284, 4
  %v286 = vadd.f32 %v284, %v285
  %v287 = vrot.slane %v286, 2
  %v288 = vadd.f32 %v286, %v287
  %v289 = vrot.slane %v288, 1
  %v290 = vadd.f32 %v288, %v289
  %291 = vst [vmem:[%s3] sm:$0xff] %v253
  %292 = vst [vmem:[%s4] sm:$0xff] %v290
  // Predicated region
  $region10: #{_lambda_.38} parent=0 // pred_check
    _
  $region11: #{_lambda_.38} parent=0 // pred_check_branch
    %294 = sbr.rel (0) target = $region13
  $region12: #{_lambda_.38} parent=0 // pred_region
    _
  $region13: #{_lambda_.38} parent=0 // pred_fallthru
    _
  // Predicated region
  $region14: #{_lambda_.38} parent=0 // pred_check
    _
  $region15: #{_lambda_.38} parent=0 // pred_check_branch
    %296 = sbr.rel (0) target = $region17
  $region16: #{_lambda_.38} parent=0 // pred_region
    _
  $region17: #{_lambda_.38} parent=0 // pred_fallthru
    _
  // Predicated region
  $region18: #{_lambda_.38} parent=0 // pred_check
    _
  $region19: #{_lambda_.38} parent=0 // pred_check_branch
    %298 = sbr.rel (0) target = $region21
  $region20: #{_lambda_.38} parent=0 // pred_region
    _
  $region21: #{_lambda_.38} parent=0 // pred_fallthru
    _
  // Predicated region
  $region22: #{_lambda_.38} parent=0 // pred_check
    _
  $region23: #{_lambda_.38} parent=0 // pred_check_branch
    %300 = sbr.rel (0) target = $region25
  $region24: #{_lambda_.38} parent=0 // pred_region
    _
  $region25: #{_lambda_.38} parent=0 // pred_fallthru
    _
  // Predicated region
  $region26: #{_lambda_.38} parent=0 // pred_check
    _
  $region27: #{_lambda_.38} parent=0 // pred_check_branch
    %302 = sbr.rel (0) target = $region29
  $region28: #{_lambda_.38} parent=0 // pred_region
    _
  $region29: #{_lambda_.38} parent=0 // pred_fallthru
    _
  // Predicated region
  $region30: #{_lambda_.38} parent=0 // pred_check
    _
  $region31: #{_lambda_.38} parent=0 // pred_check_branch
    %304 = sbr.rel (0) target = $region33
  $region32: #{_lambda_.38} parent=0 // pred_region
    _
  $region33: #{_lambda_.38} parent=0 // pred_fallthru
    _

// kernel: _lambda_.40
$region0: #{_lambda_.40}
  #allocation0 [shape = 'u32[]', space=smem, size = 0x4, offset = 0x4, fixed_abs, tag = 'smem constant byte address 0x4 - core index']
  #allocation1 [shape = 'u32[72,128]{1,0:T(1,128)}', space=vmem, size = 0x9000, scoped, tag = 'internal scratch']
  %s0 = inlined_call_operand.vmem [shape: bf16[200,144], index: 0, kind: input, shape index: {}]
  %s1 = inlined_call_operand.vmem [shape: bf16[144,128], index: 1, kind: input, shape index: {}]
  %s2 = inlined_call_operand.vmem [shape: bf16[200,128], index: 2, kind: output, shape index: {0}]
  %s3 = inlined_call_operand.vmem [shape: f32[1,8,128], index: 3, kind: output, shape index: {1}]
  %s4 = inlined_call_operand.vmem [shape: f32[1,8,128], index: 4, kind: output, shape index: {2}]
  %5 = xla_tuple %s2, %s3, %s4
  %s6 = sld [smem:[#allocation0]]
  $region34: #{_lambda_.40} parent=0
    _
  %s8 = ssub.s32 1, %s6
  %s9 = scalar_select 0, %s8, %s6
  // Predicated region
  $region2: #{_lambda_.40} parent=0 // pred_check
    _
  $region3: #{_lambda_.40} parent=0 // pred_check_branch
    %11 = sbr.rel (0) target = $region5
  $region4: #{_lambda_.40} parent=0 // pred_region
    _
  $region5: #{_lambda_.40} parent=0 // pred_fallthru
    _
  // Predicated region
  $region6: #{_lambda_.40} parent=0 // pred_check
    _
  $region7: #{_lambda_.40} parent=0 // pred_check_branch
    %13 = sbr.rel (0) target = $region9
  $region8: #{_lambda_.40} parent=0 // pred_region
    _
  $region9: #{_lambda_.40} parent=0 // pred_fallthru
    _
  %v15 = vld [vmem:[%s0] sm:$0xff]
  %v16 = vld [vmem:[%s0 + $0x8] sm:$0xff]
  %v17 = vld [vmem:[%s0 + $0x10] sm:$0xff]
  %v18 = vld [vmem:[%s0 + $0x18] sm:$0xff]
  %v19 = vld [vmem:[%s0 + $0x20] sm:$0xff]
  %v20 = vld [vmem:[%s0 + $0x28] sm:$0xff]
  %v21 = vld [vmem:[%s0 + $0x30] sm:$0xff]
  %v22 = vld [vmem:[%s0 + $0x38] sm:$0xff]
  %v23 = vld [vmem:[%s0 + $0x40] sm:$0xff]
  %v24 = vld [vmem:[%s0 + $0x48] sm:$0xff]
  %v25 = vld [vmem:[%s0 + $0x50] sm:$0xff]
  %v26 = vld [vmem:[%s0 + $0x58] sm:$0xff]
  %v27 = vld [vmem:[%s0 + $0x60] sm:$0xff]
  %v28 = vld [vmem:[%s0 + $0x68] sm:$0xff]
  %v29 = vld [vmem:[%s0 + $0x70] sm:$0xff]
  %v30 = vld [vmem:[%s0 + $0x78] sm:$0xff]
  %v31 = vld [vmem:[%s0 + $0x80] sm:$0xff]
  %v32 = vld [vmem:[%s0 + $0x88] sm:$0xff]
  %v33 = vld [vmem:[%s0 + $0x90] sm:$0xff]
  %v34 = vld [vmem:[%s0 + $0x98] sm:$0xff]
  %v35 = vld [vmem:[%s0 + $0xa0] sm:$0xff]
  %v36 = vld [vmem:[%s0 + $0xa8] sm:$0xff]
  %v37 = vld [vmem:[%s0 + $0xb0] sm:$0xff]
  %v38 = vld [vmem:[%s0 + $0xb8] sm:$0xff]
  %v39 = vld [vmem:[%s0 + $0xc0] sm:$0xff]
  %v40 = vld [vmem:[%s1] sm:$0xf]
  %v41 = vld [vmem:[%s1 + $0x4] sm:$0xf]
  %v42 = vld [vmem:[%s1 + $0x8] sm:$0xf]
  %v43 = vld [vmem:[%s1 + $0xc] sm:$0xf]
  %v44 = vld [vmem:[%s1 + $0x10] sm:$0xf]
  %v45 = vld [vmem:[%s1 + $0x14] sm:$0xf]
  %v46 = vld [vmem:[%s1 + $0x18] sm:$0xf]
  %v47 = vld [vmem:[%s1 + $0x1c] sm:$0xf]
  %v48 = vld [vmem:[%s1 + $0x20] sm:$0xf]
  %v49 = vld [vmem:[%s1 + $0x24] sm:$0xf]
  %v50 = vld [vmem:[%s1 + $0x28] sm:$0xf]
  %v51 = vld [vmem:[%s1 + $0x2c] sm:$0xf]
  %v52 = vld [vmem:[%s1 + $0x30] sm:$0xf]
  %v53 = vld [vmem:[%s1 + $0x34] sm:$0xf]
  %v54 = vld [vmem:[%s1 + $0x38] sm:$0xf]
  %v55 = vld [vmem:[%s1 + $0x3c] sm:$0xf]
  %v56 = vld [vmem:[%s1 + $0x40] sm:$0xf]
  %v57 = vld [vmem:[%s1 + $0x44] sm:$0xf]
  %v83 = vunpack.c.l.b16 %v15
  %v84 = vunpack.c.h.b16 %v15
  %v85 = vunpack.c.l.b16 %v16
  %v86 = vunpack.c.h.b16 %v16
  %v87 = vunpack.c.l.b16 %v17
  %v88 = vunpack.c.h.b16 %v17
  %v89 = vunpack.c.l.b16 %v18
  %v90 = vunpack.c.h.b16 %v18
  %v91 = vunpack.c.l.b16 %v19
  %v92 = vunpack.c.h.b16 %v19
  %v93 = vunpack.c.l.b16 %v20
  %v94 = vunpack.c.h.b16 %v20
  %v95 = vunpack.c.l.b16 %v21
  %v96 = vunpack.c.h.b16 %v21
  %v97 = vunpack.c.l.b16 %v22
  %v98 = vunpack.c.h.b16 %v22
  %v99 = vunpack.c.l.b16 %v23
  %v100 = vunpack.c.h.b16 %v23
  %v101 = vunpack.c.l.b16 %v24
  %v102 = vunpack.c.h.b16 %v24
  %v103 = vunpack.c.l.b16 %v25
  %v104 = vunpack.c.h.b16 %v25
  %v105 = vunpack.c.l.b16 %v26
  %v106 = vunpack.c.h.b16 %v26
  %v107 = vunpack.c.l.b16 %v27
  %v108 = vunpack.c.h.b16 %v27
  %v109 = vunpack.c.l.b16 %v28
  %v110 = vunpack.c.h.b16 %v28
  %v111 = vunpack.c.l.b16 %v29
  %v112 = vunpack.c.h.b16 %v29
  %v113 = vunpack.c.l.b16 %v30
  %v114 = vunpack.c.h.b16 %v30
  %v115 = vunpack.c.l.b16 %v31
  %v116 = vunpack.c.h.b16 %v31
  %v117 = vunpack.c.l.b16 %v32
  %v118 = vunpack.c.h.b16 %v32
  %v119 = vunpack.c.l.b16 %v33
  %v120 = vunpack.c.h.b16 %v33
  %v121 = vunpack.c.l.b16 %v34
  %v122 = vunpack.c.h.b16 %v34
  %v123 = vunpack.c.l.b16 %v35
  %v124 = vunpack.c.h.b16 %v35
  %v125 = vunpack.c.l.b16 %v36
  %v126 = vunpack.c.h.b16 %v36
  %v127 = vunpack.c.l.b16 %v37
  %v128 = vunpack.c.h.b16 %v37
  %v129 = vunpack.c.l.b16 %v38
  %v130 = vunpack.c.h.b16 %v38
  %v131 = vunpack.c.l.b16 %v39
  %v132 = vunpack.c.h.b16 %v39
  %v133 = vpack.c.b16 %v85, %v83
  %v134 = vpack.c.b16 %v86, %v84
  %v135 = vpack.c.b16 %v89, %v87
  %v136 = vpack.c.b16 %v90, %v88
  %v137 = vpack.c.b16 %v93, %v91
  %v138 = vpack.c.b16 %v94, %v92
  %v139 = vpack.c.b16 %v97, %v95
  %v140 = vpack.c.b16 %v98, %v96
  %v141 = vpack.c.b16 %v101, %v99
  %v142 = vpack.c.b16 %v102, %v100
  %v143 = vpack.c.b16 %v105, %v103
  %v144 = vpack.c.b16 %v106, %v104
  %v145 = vpack.c.b16 %v109, %v107
  %v146 = vpack.c.b16 %v110, %v108
  %v147 = vpack.c.b16 %v113, %v111
  %v148 = vpack.c.b16 %v114, %v112
  %v149 = vpack.c.b16 %v117, %v115
  %v150 = vpack.c.b16 %v118, %v116
  %v151 = vpack.c.b16 %v121, %v119
  %v152 = vpack.c.b16 %v122, %v120
  %v153 = vpack.c.b16 %v125, %v123
  %v154 = vpack.c.b16 %v126, %v124
  %v155 = vpack.c.b16 %v129, %v127
  %v156 = vpack.c.b16 %v130, %v128
  %v157 = vpack.c.b16 %v131, %v131
  %v158 = vpack.c.b16 %v132, %v132
  %v190 = vunpack.c.l.b16 %v40
  %v191 = vunpack.c.l.b16 %v41
  %v192 = vunpack.c.l.b16 %v42
  %v193 = vunpack.c.l.b16 %v43
  %v194 = vunpack.c.l.b16 %v44
  %v195 = vunpack.c.l.b16 %v45
  %v196 = vunpack.c.l.b16 %v46
  %v197 = vunpack.c.l.b16 %v47
  %v198 = vunpack.c.l.b16 %v48
  %v199 = vunpack.c.l.b16 %v49
  %v200 = vunpack.c.l.b16 %v50
  %v201 = vunpack.c.l.b16 %v51
  %v202 = vunpack.c.l.b16 %v52
  %v203 = vunpack.c.l.b16 %v53
  %v204 = vunpack.c.l.b16 %v54
  %v205 = vunpack.c.l.b16 %v55
  %v206 = vunpack.c.l.b16 %v56
  %v207 = vunpack.c.l.b16 %v57
  %v208 = vpack.c.b16 %v191, %v190
  %v209 = vpack.c.b16 %v193, %v192
  %v210 = vpack.c.b16 %v195, %v194
  %v211 = vpack.c.b16 %v197, %v196
  %v212 = vpack.c.b16 %v199, %v198
  %v213 = vpack.c.b16 %v201, %v200
  %v214 = vpack.c.b16 %v203, %v202
  %v215 = vpack.c.b16 %v205, %v204
  %v216 = vpack.c.b16 %v207, %v206
  %vm226 = vcmask 130048
  %v228 = vsel %vm226, %v134, 0
  %v231 = vsel %vm226, %v136, 0
  %v234 = vsel %vm226, %v138, 0
  %v237 = vsel %vm226, %v140, 0
  %v240 = vsel %vm226, %v142, 0
  %v243 = vsel %vm226, %v144, 0
  %v246 = vsel %vm226, %v146, 0
  %v249 = vsel %vm226, %v148, 0
  %v252 = vsel %vm226, %v150, 0
  %v255 = vsel %vm226, %v152, 0
  %v258 = vsel %vm226, %v154, 0
  %v261 = vsel %vm226, %v156, 0
  %v264 = vsel %vm226, %v158, 0
  %266 = vmatpush.bf16.msra.mxu0 %v215
  %267 = vmatpush.bf16.msra.mxu0 %v214
  %268 = vmatpush.bf16.msra.mxu0 %v213
  %269 = vmatpush.bf16.msra.mxu0 %v212
  %270 = vmatpush.bf16.msra.mxu0 %v211
  %271 = vmatpush.bf16.msra.mxu0 %v210
  %272 = vmatpush.bf16.msra.mxu0 %v209
  %273 = vmatpush.bf16.msra.mxu0 %v208
  %274 = vmatmul.bf16.gmra.mxu0 %v133
  %v275 = vpop.f32.mrf.mxu0
  %v276 = vadd.f32 0.0, %v275
  %v277 = vpop.f32.mrf.mxu0
  %v278 = vadd.f32 0.0, %v277
  %279 = vmatmul.bf16.gmra.mxu0 %v135
  %v280 = vpop.f32.mrf.mxu0
  %v281 = vadd.f32 0.0, %v280
  %v282 = vpop.f32.mrf.mxu0
  %v283 = vadd.f32 0.0, %v282
  %284 = vmatmul.bf16.gmra.mxu0 %v137
  %v285 = vpop.f32.mrf.mxu0
  %v286 = vadd.f32 0.0, %v285
  %v287 = vpop.f32.mrf.mxu0
  %v288 = vadd.f32 0.0, %v287
  %289 = vmatmul.bf16.gmra.mxu0 %v139
  %v290 = vpop.f32.mrf.mxu0
  %v291 = vadd.f32 0.0, %v290
  %v292 = vpop.f32.mrf.mxu0
  %v293 = vadd.f32 0.0, %v292
  %294 = vmatmul.bf16.gmra.mxu0 %v141
  %v295 = vpop.f32.mrf.mxu0
  %v296 = vadd.f32 0.0, %v295
  %v297 = vpop.f32.mrf.mxu0
  %v298 = vadd.f32 0.0, %v297
  %299 = vmatmul.bf16.gmra.mxu0 %v143
  %v300 = vpop.f32.mrf.mxu0
  %v301 = vadd.f32 0.0, %v300
  %v302 = vpop.f32.mrf.mxu0
  %v303 = vadd.f32 0.0, %v302
  %304 = vmatmul.bf16.gmra.mxu0 %v145
  %v305 = vpop.f32.mrf.mxu0
  %v306 = vadd.f32 0.0, %v305
  %v307 = vpop.f32.mrf.mxu0
  %v308 = vadd.f32 0.0, %v307
  %309 = vmatmul.bf16.gmra.mxu0 %v147
  %v310 = vpop.f32.mrf.mxu0
  %v311 = vadd.f32 0.0, %v310
  %v312 = vpop.f32.mrf.mxu0
  %v313 = vadd.f32 0.0, %v312
  %314 = vmatmul.bf16.gmra.mxu0 %v149
  %v315 = vpop.f32.mrf.mxu0
  %v316 = vadd.f32 0.0, %v315
  %v317 = vpop.f32.mrf.mxu0
  %v318 = vadd.f32 0.0, %v317
  %319 = vmatmul.bf16.gmra.mxu0 %v151
  %v320 = vpop.f32.mrf.mxu0
  %v321 = vadd.f32 0.0, %v320
  %v322 = vpop.f32.mrf.mxu0
  %v323 = vadd.f32 0.0, %v322
  %324 = vmatmul.bf16.gmra.mxu0 %v153
  %v325 = vpop.f32.mrf.mxu0
  %v326 = vadd.f32 0.0, %v325
  %v327 = vpop.f32.mrf.mxu0
  %v328 = vadd.f32 0.0, %v327
  %329 = vmatmul.bf16.gmra.mxu0 %v155
  %v330 = vpop.f32.mrf.mxu0
  %v331 = vadd.f32 0.0, %v330
  %v332 = vpop.f32.mrf.mxu0
  %v333 = vadd.f32 0.0, %v332
  %334 = vmatmul.bf16.gmra.mxu0 %v157
  %v335 = vpop.f32.mrf.mxu0
  %v336 = vadd.f32 0.0, %v335
  %v337 = vpop.f32.mrf.mxu0
  %338 = vdwg.mxu0
  %339 = vmatpush.bf16.msra.mxu0 0
  %340 = vmatpush.bf16.msra.mxu0 0
  %341 = vmatpush.bf16.msra.mxu0 0
  %342 = vmatpush.bf16.msra.mxu0 0
  %343 = vmatpush.bf16.msra.mxu0 0
  %344 = vmatpush.bf16.msra.mxu0 0
  %345 = vmatpush.bf16.msra.mxu0 0
  %346 = vmatpush.bf16.msra.mxu0 %v216
  %347 = vmatmul.bf16.gmra.mxu0 %v228
  %v348 = vpop.f32.mrf.mxu0
  %v349 = vadd.f32 %v276, %v348
  %v350 = vpop.f32.mrf.mxu0
  %v351 = vadd.f32 %v278, %v350
  %352 = vmatmul.bf16.gmra.mxu0 %v231
  %v353 = vpop.f32.mrf.mxu0
  %v354 = vadd.f32 %v281, %v353
  %v355 = vpop.f32.mrf.mxu0
  %v356 = vadd.f32 %v283, %v355
  %357 = vmatmul.bf16.gmra.mxu0 %v234
  %v358 = vpop.f32.mrf.mxu0
  %v359 = vadd.f32 %v286, %v358
  %v360 = vpop.f32.mrf.mxu0
  %v361 = vadd.f32 %v288, %v360
  %362 = vmatmul.bf16.gmra.mxu0 %v237
  %v363 = vpop.f32.mrf.mxu0
  %v364 = vadd.f32 %v291, %v363
  %v365 = vpop.f32.mrf.mxu0
  %v366 = vadd.f32 %v293, %v365
  %367 = vmatmul.bf16.gmra.mxu0 %v240
  %v368 = vpop.f32.mrf.mxu0
  %v369 = vadd.f32 %v296, %v368
  %v370 = vpop.f32.mrf.mxu0
  %v371 = vadd.f32 %v298, %v370
  %372 = vmatmul.bf16.gmra.mxu0 %v243
  %v373 = vpop.f32.mrf.mxu0
  %v374 = vadd.f32 %v301, %v373
  %v375 = vpop.f32.mrf.mxu0
  %v376 = vadd.f32 %v303, %v375
  %377 = vmatmul.bf16.gmra.mxu0 %v246
  %v378 = vpop.f32.mrf.mxu0
  %v379 = vadd.f32 %v306, %v378
  %v380 = vpop.f32.mrf.mxu0
  %v381 = vadd.f32 %v308, %v380
  %382 = vmatmul.bf16.gmra.mxu0 %v249
  %v383 = vpop.f32.mrf.mxu0
  %v384 = vadd.f32 %v311, %v383
  %v385 = vpop.f32.mrf.mxu0
  %v386 = vadd.f32 %v313, %v385
  %387 = vmatmul.bf16.gmra.mxu0 %v252
  %v388 = vpop.f32.mrf.mxu0
  %v389 = vadd.f32 %v316, %v388
  %v390 = vpop.f32.mrf.mxu0
  %v391 = vadd.f32 %v318, %v390
  %392 = vmatmul.bf16.gmra.mxu0 %v255
  %v393 = vpop.f32.mrf.mxu0
  %v394 = vadd.f32 %v321, %v393
  %v395 = vpop.f32.mrf.mxu0
  %v396 = vadd.f32 %v323, %v395
  %397 = vmatmul.bf16.gmra.mxu0 %v258
  %v398 = vpop.f32.mrf.mxu0
  %v399 = vadd.f32 %v326, %v398
  %v400 = vpop.f32.mrf.mxu0
  %v401 = vadd.f32 %v328, %v400
  %402 = vmatmul.bf16.gmra.mxu0 %v261
  %v403 = vpop.f32.mrf.mxu0
  %v404 = vadd.f32 %v331, %v403
  %v405 = vpop.f32.mrf.mxu0
  %v406 = vadd.f32 %v333, %v405
  %407 = vmatmul.bf16.gmra.mxu0 %v264
  %v408 = vpop.f32.mrf.mxu0
  %v409 = vadd.f32 %v336, %v408
  %v410 = vpop.f32.mrf.mxu0
  %411 = vdwg.mxu0
  %v412 = vpack.c.bf16 %v349, %v349
  %v413 = vpack.c.bf16 %v351, %v351
  %v414 = vpack.c.bf16 %v354, %v354
  %v415 = vpack.c.bf16 %v356, %v356
  %v416 = vpack.c.bf16 %v359, %v359
  %v417 = vpack.c.bf16 %v361, %v361
  %v418 = vpack.c.bf16 %v364, %v364
  %v419 = vpack.c.bf16 %v366, %v366
  %v420 = vpack.c.bf16 %v369, %v369
  %v421 = vpack.c.bf16 %v371, %v371
  %v422 = vpack.c.bf16 %v374, %v374
  %v423 = vpack.c.bf16 %v376, %v376
  %v424 = vpack.c.bf16 %v379, %v379
  %v425 = vpack.c.bf16 %v381, %v381
  %v426 = vpack.c.bf16 %v384, %v384
  %v427 = vpack.c.bf16 %v386, %v386
  %v428 = vpack.c.bf16 %v389, %v389
  %v429 = vpack.c.bf16 %v391, %v391
  %v430 = vpack.c.bf16 %v394, %v394
  %v431 = vpack.c.bf16 %v396, %v396
  %v432 = vpack.c.bf16 %v399, %v399
  %v433 = vpack.c.bf16 %v401, %v401
  %v434 = vpack.c.bf16 %v404, %v404
  %v435 = vpack.c.bf16 %v406, %v406
  %v436 = vpack.c.bf16 %v409, %v409
  %437 = vst [vmem:[%s2] sm:$0xf] %v412
  %438 = vst [vmem:[%s2 + $0x4] sm:$0xf] %v413
  %439 = vst [vmem:[%s2 + $0x8] sm:$0xf] %v414
  %440 = vst [vmem:[%s2 + $0xc] sm:$0xf] %v415
  %441 = vst [vmem:[%s2 + $0x10] sm:$0xf] %v416
  %442 = vst [vmem:[%s2 + $0x14] sm:$0xf] %v417
  %443 = vst [vmem:[%s2 + $0x18] sm:$0xf] %v418
  %444 = vst [vmem:[%s2 + $0x1c] sm:$0xf] %v419
  %445 = vst [vmem:[%s2 + $0x20] sm:$0xf] %v420
  %446 = vst [vmem:[%s2 + $0x24] sm:$0xf] %v421
  %447 = vst [vmem:[%s2 + $0x28] sm:$0xf] %v422
  %448 = vst [vmem:[%s2 + $0x2c] sm:$0xf] %v423
  %449 = vst [vmem:[%s2 + $0x30] sm:$0xf] %v424
  %450 = vst [vmem:[%s2 + $0x34] sm:$0xf] %v425
  %451 = vst [vmem:[%s2 + $0x38] sm:$0xf] %v426
  %452 = vst [vmem:[%s2 + $0x3c] sm:$0xf] %v427
  %453 = vst [vmem:[%s2 + $0x40] sm:$0xf] %v428
  %454 = vst [vmem:[%s2 + $0x44] sm:$0xf] %v429
  %455 = vst [vmem:[%s2 + $0x48] sm:$0xf] %v430
  %456 = vst [vmem:[%s2 + $0x4c] sm:$0xf] %v431
  %457 = vst [vmem:[%s2 + $0x50] sm:$0xf] %v432
  %458 = vst [vmem:[%s2 + $0x54] sm:$0xf] %v433
  %459 = vst [vmem:[%s2 + $0x58] sm:$0xf] %v434
  %460 = vst [vmem:[%s2 + $0x5c] sm:$0xf] %v435
  %461 = vst [vmem:[%s2 + $0x60] sm:$0xf] %v436
  %v462 = vadd.f32 %v349, %v351
  %v463 = vadd.f32 %v462, %v354
  %v464 = vadd.f32 %v463, %v356
  %v465 = vadd.f32 %v464, %v359
  %v466 = vadd.f32 %v465, %v361
  %v467 = vadd.f32 %v466, %v364
  %v468 = vadd.f32 %v467, %v366
  %v469 = vadd.f32 %v468, %v369
  %v470 = vadd.f32 %v469, %v371
  %v471 = vadd.f32 %v470, %v374
  %v472 = vadd.f32 %v471, %v376
  %v473 = vadd.f32 %v472, %v379
  %v474 = vadd.f32 %v473, %v381
  %v475 = vadd.f32 %v474, %v384
  %v476 = vadd.f32 %v475, %v386
  %v477 = vadd.f32 %v476, %v389
  %v478 = vadd.f32 %v477, %v391
  %v479 = vadd.f32 %v478, %v394
  %v480 = vadd.f32 %v479, %v396
  %v481 = vadd.f32 %v480, %v399
  %v482 = vadd.f32 %v481, %v401
  %v483 = vadd.f32 %v482, %v404
  %v484 = vadd.f32 %v483, %v406
  %v485 = vadd.f32 %v484, %v409
  %v486 = vrot.slane %v485, 4
  %v487 = vadd.f32 %v485, %v486
  %v488 = vrot.slane %v487, 2
  %v489 = vadd.f32 %v487, %v488
  %v490 = vrot.slane %v489, 1
  %v491 = vadd.f32 %v489, %v490
  %v492 = vmul.f32 %v349, %v349
  %v493 = vmul.f32 %v351, %v351
  %v494 = vmul.f32 %v354, %v354
  %v495 = vmul.f32 %v356, %v356
  %v496 = vmul.f32 %v359, %v359
  %v497 = vmul.f32 %v361, %v361
  %v498 = vmul.f32 %v364, %v364
  %v499 = vmul.f32 %v366, %v366
  %v500 = vmul.f32 %v369, %v369
  %v501 = vmul.f32 %v371, %v371
  %v502 = vmul.f32 %v374, %v374
  %v503 = vmul.f32 %v376, %v376
  %v504 = vmul.f32 %v379, %v379
  %v505 = vmul.f32 %v381, %v381
  %v506 = vmul.f32 %v384, %v384
  %v507 = vmul.f32 %v386, %v386
  %v508 = vmul.f32 %v389, %v389
  %v509 = vmul.f32 %v391, %v391
  %v510 = vmul.f32 %v394, %v394
  %v511 = vmul.f32 %v396, %v396
  %v512 = vmul.f32 %v399, %v399
  %v513 = vmul.f32 %v401, %v401
  %v514 = vmul.f32 %v404, %v404
  %v515 = vmul.f32 %v406, %v406
  %v516 = vmul.f32 %v409, %v409
  %v517 = vadd.f32 %v492, %v493
  %v518 = vadd.f32 %v517, %v494
  %v519 = vadd.f32 %v518, %v495
  %v520 = vadd.f32 %v519, %v496
  %v521 = vadd.f32 %v520, %v497
  %v522 = vadd.f32 %v521, %v498
  %v523 = vadd.f32 %v522, %v499
  %v524 = vadd.f32 %v523, %v500
  %v525 = vadd.f32 %v524, %v501
  %v526 = vadd.f32 %v525, %v502
  %v527 = vadd.f32 %v526, %v503
  %v528 = vadd.f32 %v527, %v504
  %v529 = vadd.f32 %v528, %v505
  %v530 = vadd.f32 %v529, %v506
  %v531 = vadd.f32 %v530, %v507
  %v532 = vadd.f32 %v531, %v508
  %v533 = vadd.f32 %v532, %v509
  %v534 = vadd.f32 %v533, %v510
  %v535 = vadd.f32 %v534, %v511
  %v536 = vadd.f32 %v535, %v512
  %v537 = vadd.f32 %v536, %v513
  %v538 = vadd.f32 %v537, %v514
  %v539 = vadd.f32 %v538, %v515
  %v540 = vadd.f32 %v539, %v516
  %v541 = vrot.slane %v540, 4
  %v542 = vadd.f32 %v540, %v541
  %v543 = vrot.slane %v542, 2
  %v544 = vadd.f32 %v542, %v543
  %v545 = vrot.slane %v544, 1
  %v546 = vadd.f32 %v544, %v545
  %547 = vst [vmem:[%s3] sm:$0xff] %v491
  %548 = vst [vmem:[%s4] sm:$0xff] %v546
  // Predicated region
  $region10: #{_lambda_.40} parent=0 // pred_check
    _
  $region11: #{_lambda_.40} parent=0 // pred_check_branch
    %550 = sbr.rel (0) target = $region13
  $region12: #{_lambda_.40} parent=0 // pred_region
    _
  $region13: #{_lambda_.40} parent=0 // pred_fallthru
    _
  // Predicated region
  $region14: #{_lambda_.40} parent=0 // pred_check
    _
  $region15: #{_lambda_.40} parent=0 // pred_check_branch
    %552 = sbr.rel (0) target = $region17
  $region16: #{_lambda_.40} parent=0 // pred_region
    _
  $region17: #{_lambda_.40} parent=0 // pred_fallthru
    _
  // Predicated region
  $region18: #{_lambda_.40} parent=0 // pred_check
    _
  $region19: #{_lambda_.40} parent=0 // pred_check_branch
    %554 = sbr.rel (0) target = $region21
  $region20: #{_lambda_.40} parent=0 // pred_region
    _
  $region21: #{_lambda_.40} parent=0 // pred_fallthru
    _
  // Predicated region
  $region22: #{_lambda_.40} parent=0 // pred_check
    _
  $region23: #{_lambda_.40} parent=0 // pred_check_branch
    %556 = sbr.rel (0) target = $region25
  $region24: #{_lambda_.40} parent=0 // pred_region
    _
  $region25: #{_lambda_.40} parent=0 // pred_fallthru
    _
  // Predicated region
  $region26: #{_lambda_.40} parent=0 // pred_check
    _
  $region27: #{_lambda_.40} parent=0 // pred_check_branch
    %558 = sbr.rel (0) target = $region29
  $region28: #{_lambda_.40} parent=0 // pred_region
    _
  $region29: #{_lambda_.40} parent=0 // pred_fallthru
    _
  // Predicated region
  $region30: #{_lambda_.40} parent=0 // pred_check
    _
  $region31: #{_lambda_.40} parent=0 // pred_check_branch
    %560 = sbr.rel (0) target = $region33
  $region32: #{_lambda_.40} parent=0 // pred_region
    _
  $region33: #{_lambda_.40} parent=0 // pred_fallthru
    _

// kernel: _lambda_.41
$region0: #{_lambda_.41}
  #allocation0 [shape = 'u32[]', space=smem, size = 0x4, offset = 0x4, fixed_abs, tag = 'smem constant byte address 0x4 - core index']
  #allocation1 [shape = 'u32[72,128]{1,0:T(1,128)}', space=vmem, size = 0x9000, scoped, tag = 'internal scratch']
  %s0 = inlined_call_operand.vmem [shape: bf16[200,128], index: 0, kind: input, shape index: {}]
  %s1 = inlined_call_operand.vmem [shape: f32[1,128], index: 1, kind: input, shape index: {}]
  %s2 = inlined_call_operand.vmem [shape: f32[1,128], index: 2, kind: input, shape index: {}]
  %s3 = inlined_call_operand.vmem [shape: bf16[200,128], index: 3, kind: output, shape index: {}]
  %s4 = sld [smem:[#allocation0]]
  $region22: #{_lambda_.41} parent=0
    _
  %s6 = ssub.s32 1, %s4
  %s7 = scalar_select 0, %s6, %s4
  // Predicated region
  $region2: #{_lambda_.41} parent=0 // pred_check
    _
  $region3: #{_lambda_.41} parent=0 // pred_check_branch
    %9 = sbr.rel (0) target = $region5
  $region4: #{_lambda_.41} parent=0 // pred_region
    _
  $region5: #{_lambda_.41} parent=0 // pred_fallthru
    _
  // Predicated region
  $region6: #{_lambda_.41} parent=0 // pred_check
    _
  $region7: #{_lambda_.41} parent=0 // pred_check_branch
    %11 = sbr.rel (0) target = $region9
  $region8: #{_lambda_.41} parent=0 // pred_region
    _
  $region9: #{_lambda_.41} parent=0 // pred_fallthru
    _
  // Predicated region
  $region10: #{_lambda_.41} parent=0 // pred_check
    _
  $region11: #{_lambda_.41} parent=0 // pred_check_branch
    %13 = sbr.rel (0) target = $region13
  $region12: #{_lambda_.41} parent=0 // pred_region
    _
  $region13: #{_lambda_.41} parent=0 // pred_fallthru
    _
  %v14 = vld [vmem:[%s0] sm:$0xf]
  %v15 = vld [vmem:[%s0 + $0x4] sm:$0xf]
  %v16 = vld [vmem:[%s0 + $0x8] sm:$0xf]
  %v17 = vld [vmem:[%s0 + $0xc] sm:$0xf]
  %v18 = vld [vmem:[%s0 + $0x10] sm:$0xf]
  %v19 = vld [vmem:[%s0 + $0x14] sm:$0xf]
  %v20 = vld [vmem:[%s0 + $0x18] sm:$0xf]
  %v21 = vld [vmem:[%s0 + $0x1c] sm:$0xf]
  %v22 = vld [vmem:[%s0 + $0x20] sm:$0xf]
  %v23 = vld [vmem:[%s0 + $0x24] sm:$0xf]
  %v24 = vld [vmem:[%s0 + $0x28] sm:$0xf]
  %v25 = vld [vmem:[%s0 + $0x2c] sm:$0xf]
  %v26 = vld [vmem:[%s0 + $0x30] sm:$0xf]
  %v27 = vld [vmem:[%s0 + $0x34] sm:$0xf]
  %v28 = vld [vmem:[%s0 + $0x38] sm:$0xf]
  %v29 = vld [vmem:[%s0 + $0x3c] sm:$0xf]
  %v30 = vld [vmem:[%s0 + $0x40] sm:$0xf]
  %v31 = vld [vmem:[%s0 + $0x44] sm:$0xf]
  %v32 = vld [vmem:[%s0 + $0x48] sm:$0xf]
  %v33 = vld [vmem:[%s0 + $0x4c] sm:$0xf]
  %v34 = vld [vmem:[%s0 + $0x50] sm:$0xf]
  %v35 = vld [vmem:[%s0 + $0x54] sm:$0xf]
  %v36 = vld [vmem:[%s0 + $0x58] sm:$0xf]
  %v37 = vld [vmem:[%s0 + $0x5c] sm:$0xf]
  %v38 = vld [vmem:[%s0 + $0x60] sm:$0xf]
  %v39 = vunpack.c.l.bf16 %v14
  %v40 = vunpack.c.l.bf16 %v15
  %v41 = vunpack.c.l.bf16 %v16
  %v42 = vunpack.c.l.bf16 %v17
  %v43 = vunpack.c.l.bf16 %v18
  %v44 = vunpack.c.l.bf16 %v19
  %v45 = vunpack.c.l.bf16 %v20
  %v46 = vunpack.c.l.bf16 %v21
  %v47 = vunpack.c.l.bf16 %v22
  %v48 = vunpack.c.l.bf16 %v23
  %v49 = vunpack.c.l.bf16 %v24
  %v50 = vunpack.c.l.bf16 %v25
  %v51 = vunpack.c.l.bf16 %v26
  %v52 = vunpack.c.l.bf16 %v27
  %v53 = vunpack.c.l.bf16 %v28
  %v54 = vunpack.c.l.bf16 %v29
  %v55 = vunpack.c.l.bf16 %v30
  %v56 = vunpack.c.l.bf16 %v31
  %v57 = vunpack.c.l.bf16 %v32
  %v58 = vunpack.c.l.bf16 %v33
  %v59 = vunpack.c.l.bf16 %v34
  %v60 = vunpack.c.l.bf16 %v35
  %v61 = vunpack.c.l.bf16 %v36
  %v62 = vunpack.c.l.bf16 %v37
  %v63 = vunpack.c.l.bf16 %v38
  %v64 = vld [vmem:[%s1] sm:$0x1]
  %v66 = vperm.slane %v64, 0
  %v68 = vmul.f32 %v39, %v66
  %v69 = vmul.f32 %v40, %v66
  %v70 = vmul.f32 %v41, %v66
  %v71 = vmul.f32 %v42, %v66
  %v72 = vmul.f32 %v43, %v66
  %v73 = vmul.f32 %v44, %v66
  %v74 = vmul.f32 %v45, %v66
  %v75 = vmul.f32 %v46, %v66
  %v76 = vmul.f32 %v47, %v66
  %v77 = vmul.f32 %v48, %v66
  %v78 = vmul.f32 %v49, %v66
  %v79 = vmul.f32 %v50, %v66
  %v80 = vmul.f32 %v51, %v66
  %v81 = vmul.f32 %v52, %v66
  %v82 = vmul.f32 %v53, %v66
  %v83 = vmul.f32 %v54, %v66
  %v84 = vmul.f32 %v55, %v66
  %v85 = vmul.f32 %v56, %v66
  %v86 = vmul.f32 %v57, %v66
  %v87 = vmul.f32 %v58, %v66
  %v88 = vmul.f32 %v59, %v66
  %v89 = vmul.f32 %v60, %v66
  %v90 = vmul.f32 %v61, %v66
  %v91 = vmul.f32 %v62, %v66
  %v92 = vmul.f32 %v63, %v66
  %v93 = vld [vmem:[%s2] sm:$0x1]
  %v95 = vperm.slane %v93, 0
  %v97 = vadd.f32 %v68, %v95
  %v98 = vadd.f32 %v69, %v95
  %v99 = vadd.f32 %v70, %v95
  %v100 = vadd.f32 %v71, %v95
  %v101 = vadd.f32 %v72, %v95
  %v102 = vadd.f32 %v73, %v95
  %v103 = vadd.f32 %v74, %v95
  %v104 = vadd.f32 %v75, %v95
  %v105 = vadd.f32 %v76, %v95
  %v106 = vadd.f32 %v77, %v95
  %v107 = vadd.f32 %v78, %v95
  %v108 = vadd.f32 %v79, %v95
  %v109 = vadd.f32 %v80, %v95
  %v110 = vadd.f32 %v81, %v95
  %v111 = vadd.f32 %v82, %v95
  %v112 = vadd.f32 %v83, %v95
  %v113 = vadd.f32 %v84, %v95
  %v114 = vadd.f32 %v85, %v95
  %v115 = vadd.f32 %v86, %v95
  %v116 = vadd.f32 %v87, %v95
  %v117 = vadd.f32 %v88, %v95
  %v118 = vadd.f32 %v89, %v95
  %v119 = vadd.f32 %v90, %v95
  %v120 = vadd.f32 %v91, %v95
  %v121 = vadd.f32 %v92, %v95
  %vm122 = vcmp.ge.f32.partialorder %v97, 0.0
  %vm123 = vcmp.ge.f32.partialorder %v98, 0.0
  %vm124 = vcmp.ge.f32.partialorder %v99, 0.0
  %vm125 = vcmp.ge.f32.partialorder %v100, 0.0
  %vm126 = vcmp.ge.f32.partialorder %v101, 0.0
  %vm127 = vcmp.ge.f32.partialorder %v102, 0.0
  %vm128 = vcmp.ge.f32.partialorder %v103, 0.0
  %vm129 = vcmp.ge.f32.partialorder %v104, 0.0
  %vm130 = vcmp.ge.f32.partialorder %v105, 0.0
  %vm131 = vcmp.ge.f32.partialorder %v106, 0.0
  %vm132 = vcmp.ge.f32.partialorder %v107, 0.0
  %vm133 = vcmp.ge.f32.partialorder %v108, 0.0
  %vm134 = vcmp.ge.f32.partialorder %v109, 0.0
  %vm135 = vcmp.ge.f32.partialorder %v110, 0.0
  %vm136 = vcmp.ge.f32.partialorder %v111, 0.0
  %vm137 = vcmp.ge.f32.partialorder %v112, 0.0
  %vm138 = vcmp.ge.f32.partialorder %v113, 0.0
  %vm139 = vcmp.ge.f32.partialorder %v114, 0.0
  %vm140 = vcmp.ge.f32.partialorder %v115, 0.0
  %vm141 = vcmp.ge.f32.partialorder %v116, 0.0
  %vm142 = vcmp.ge.f32.partialorder %v117, 0.0
  %vm143 = vcmp.ge.f32.partialorder %v118, 0.0
  %vm144 = vcmp.ge.f32.partialorder %v119, 0.0
  %vm145 = vcmp.ge.f32.partialorder %v120, 0.0
  %vm146 = vcmp.ge.f32.partialorder %v121, 0.0
  %v147 = vmul.f32 %v97, 0.1
  %v148 = vmul.f32 %v98, 0.1
  %v149 = vmul.f32 %v99, 0.1
  %v150 = vmul.f32 %v100, 0.1
  %v151 = vmul.f32 %v101, 0.1
  %v152 = vmul.f32 %v102, 0.1
  %v153 = vmul.f32 %v103, 0.1
  %v154 = vmul.f32 %v104, 0.1
  %v155 = vmul.f32 %v105, 0.1
  %v156 = vmul.f32 %v106, 0.1
  %v157 = vmul.f32 %v107, 0.1
  %v158 = vmul.f32 %v108, 0.1
  %v159 = vmul.f32 %v109, 0.1
  %v160 = vmul.f32 %v110, 0.1
  %v161 = vmul.f32 %v111, 0.1
  %v162 = vmul.f32 %v112, 0.1
  %v163 = vmul.f32 %v113, 0.1
  %v164 = vmul.f32 %v114, 0.1
  %v165 = vmul.f32 %v115, 0.1
  %v166 = vmul.f32 %v116, 0.1
  %v167 = vmul.f32 %v117, 0.1
  %v168 = vmul.f32 %v118, 0.1
  %v169 = vmul.f32 %v119, 0.1
  %v170 = vmul.f32 %v120, 0.1
  %v171 = vmul.f32 %v121, 0.1
  %v172 = vsel %vm122, %v97, %v147
  %v173 = vsel %vm123, %v98, %v148
  %v174 = vsel %vm124, %v99, %v149
  %v175 = vsel %vm125, %v100, %v150
  %v176 = vsel %vm126, %v101, %v151
  %v177 = vsel %vm127, %v102, %v152
  %v178 = vsel %vm128, %v103, %v153
  %v179 = vsel %vm129, %v104, %v154
  %v180 = vsel %vm130, %v105, %v155
  %v181 = vsel %vm131, %v106, %v156
  %v182 = vsel %vm132, %v107, %v157
  %v183 = vsel %vm133, %v108, %v158
  %v184 = vsel %vm134, %v109, %v159
  %v185 = vsel %vm135, %v110, %v160
  %v186 = vsel %vm136, %v111, %v161
  %v187 = vsel %vm137, %v112, %v162
  %v188 = vsel %vm138, %v113, %v163
  %v189 = vsel %vm139, %v114, %v164
  %v190 = vsel %vm140, %v115, %v165
  %v191 = vsel %vm141, %v116, %v166
  %v192 = vsel %vm142, %v117, %v167
  %v193 = vsel %vm143, %v118, %v168
  %v194 = vsel %vm144, %v119, %v169
  %v195 = vsel %vm145, %v120, %v170
  %v196 = vsel %vm146, %v121, %v171
  %v197 = vpack.c.bf16 %v172, %v172
  %v198 = vpack.c.bf16 %v173, %v173
  %v199 = vpack.c.bf16 %v174, %v174
  %v200 = vpack.c.bf16 %v175, %v175
  %v201 = vpack.c.bf16 %v176, %v176
  %v202 = vpack.c.bf16 %v177, %v177
  %v203 = vpack.c.bf16 %v178, %v178
  %v204 = vpack.c.bf16 %v179, %v179
  %v205 = vpack.c.bf16 %v180, %v180
  %v206 = vpack.c.bf16 %v181, %v181
  %v207 = vpack.c.bf16 %v182, %v182
  %v208 = vpack.c.bf16 %v183, %v183
  %v209 = vpack.c.bf16 %v184, %v184
  %v210 = vpack.c.bf16 %v185, %v185
  %v211 = vpack.c.bf16 %v186, %v186
  %v212 = vpack.c.bf16 %v187, %v187
  %v213 = vpack.c.bf16 %v188, %v188
  %v214 = vpack.c.bf16 %v189, %v189
  %v215 = vpack.c.bf16 %v190, %v190
  %v216 = vpack.c.bf16 %v191, %v191
  %v217 = vpack.c.bf16 %v192, %v192
  %v218 = vpack.c.bf16 %v193, %v193
  %v219 = vpack.c.bf16 %v194, %v194
  %v220 = vpack.c.bf16 %v195, %v195
  %v221 = vpack.c.bf16 %v196, %v196
  %222 = vst [vmem:[%s3] sm:$0xf] %v197
  %223 = vst [vmem:[%s3 + $0x4] sm:$0xf] %v198
  %224 = vst [vmem:[%s3 + $0x8] sm:$0xf] %v199
  %225 = vst [vmem:[%s3 + $0xc] sm:$0xf] %v200
  %226 = vst [vmem:[%s3 + $0x10] sm:$0xf] %v201
  %227 = vst [vmem:[%s3 + $0x14] sm:$0xf] %v202
  %228 = vst [vmem:[%s3 + $0x18] sm:$0xf] %v203
  %229 = vst [vmem:[%s3 + $0x1c] sm:$0xf] %v204
  %230 = vst [vmem:[%s3 + $0x20] sm:$0xf] %v205
  %231 = vst [vmem:[%s3 + $0x24] sm:$0xf] %v206
  %232 = vst [vmem:[%s3 + $0x28] sm:$0xf] %v207
  %233 = vst [vmem:[%s3 + $0x2c] sm:$0xf] %v208
  %234 = vst [vmem:[%s3 + $0x30] sm:$0xf] %v209
  %235 = vst [vmem:[%s3 + $0x34] sm:$0xf] %v210
  %236 = vst [vmem:[%s3 + $0x38] sm:$0xf] %v211
  %237 = vst [vmem:[%s3 + $0x3c] sm:$0xf] %v212
  %238 = vst [vmem:[%s3 + $0x40] sm:$0xf] %v213
  %239 = vst [vmem:[%s3 + $0x44] sm:$0xf] %v214
  %240 = vst [vmem:[%s3 + $0x48] sm:$0xf] %v215
  %241 = vst [vmem:[%s3 + $0x4c] sm:$0xf] %v216
  %242 = vst [vmem:[%s3 + $0x50] sm:$0xf] %v217
  %243 = vst [vmem:[%s3 + $0x54] sm:$0xf] %v218
  %244 = vst [vmem:[%s3 + $0x58] sm:$0xf] %v219
  %245 = vst [vmem:[%s3 + $0x5c] sm:$0xf] %v220
  %246 = vst [vmem:[%s3 + $0x60] sm:$0xf] %v221
  // Predicated region
  $region14: #{_lambda_.41} parent=0 // pred_check
    _
  $region15: #{_lambda_.41} parent=0 // pred_check_branch
    %248 = sbr.rel (0) target = $region17
  $region16: #{_lambda_.41} parent=0 // pred_region
    _
  $region17: #{_lambda_.41} parent=0 // pred_fallthru
    _
  // Predicated region
  $region18: #{_lambda_.41} parent=0 // pred_check
    _
  $region19: #{_lambda_.41} parent=0 // pred_check_branch
    %250 = sbr.rel (0) target = $region21
  $region20: #{_lambda_.41} parent=0 // pred_region
    _
  $region21: #{_lambda_.41} parent=0 // pred_fallthru
    _

// kernel: _lambda_.43
$region0: #{_lambda_.43}
  #allocation0 [shape = 'u32[]', space=smem, size = 0x4, offset = 0x4, fixed_abs, tag = 'smem constant byte address 0x4 - core index']
  #allocation1 [shape = 'u32[72,128]{1,0:T(1,128)}', space=vmem, size = 0x9000, scoped, tag = 'internal scratch']
  %s0 = inlined_call_operand.vmem [shape: bf16[32,128], index: 0, kind: input, shape index: {}]
  %s1 = inlined_call_operand.vmem [shape: f32[1,128], index: 1, kind: input, shape index: {}]
  %s2 = inlined_call_operand.vmem [shape: f32[1,128], index: 2, kind: input, shape index: {}]
  %s3 = inlined_call_operand.vmem [shape: bf16[32,128], index: 3, kind: output, shape index: {}]
  %s4 = sld [smem:[#allocation0]]
  $region22: #{_lambda_.43} parent=0
    _
  %s6 = ssub.s32 1, %s4
  %s7 = scalar_select 0, %s6, %s4
  // Predicated region
  $region2: #{_lambda_.43} parent=0 // pred_check
    _
  $region3: #{_lambda_.43} parent=0 // pred_check_branch
    %9 = sbr.rel (0) target = $region5
  $region4: #{_lambda_.43} parent=0 // pred_region
    _
  $region5: #{_lambda_.43} parent=0 // pred_fallthru
    _
  // Predicated region
  $region6: #{_lambda_.43} parent=0 // pred_check
    _
  $region7: #{_lambda_.43} parent=0 // pred_check_branch
    %11 = sbr.rel (0) target = $region9
  $region8: #{_lambda_.43} parent=0 // pred_region
    _
  $region9: #{_lambda_.43} parent=0 // pred_fallthru
    _
  // Predicated region
  $region10: #{_lambda_.43} parent=0 // pred_check
    _
  $region11: #{_lambda_.43} parent=0 // pred_check_branch
    %13 = sbr.rel (0) target = $region13
  $region12: #{_lambda_.43} parent=0 // pred_region
    _
  $region13: #{_lambda_.43} parent=0 // pred_fallthru
    _
  %v14 = vld [vmem:[%s0] sm:$0xf]
  %v15 = vld [vmem:[%s0 + $0x4] sm:$0xf]
  %v16 = vld [vmem:[%s0 + $0x8] sm:$0xf]
  %v17 = vld [vmem:[%s0 + $0xc] sm:$0xf]
  %v18 = vunpack.c.l.bf16 %v14
  %v19 = vunpack.c.l.bf16 %v15
  %v20 = vunpack.c.l.bf16 %v16
  %v21 = vunpack.c.l.bf16 %v17
  %v22 = vld [vmem:[%s1] sm:$0x1]
  %v24 = vperm.slane %v22, 0
  %v26 = vmul.f32 %v18, %v24
  %v27 = vmul.f32 %v19, %v24
  %v28 = vmul.f32 %v20, %v24
  %v29 = vmul.f32 %v21, %v24
  %v30 = vld [vmem:[%s2] sm:$0x1]
  %v32 = vperm.slane %v30, 0
  %v34 = vadd.f32 %v26, %v32
  %v35 = vadd.f32 %v27, %v32
  %v36 = vadd.f32 %v28, %v32
  %v37 = vadd.f32 %v29, %v32
  %vm38 = vcmp.ge.f32.partialorder %v34, 0.0
  %vm39 = vcmp.ge.f32.partialorder %v35, 0.0
  %vm40 = vcmp.ge.f32.partialorder %v36, 0.0
  %vm41 = vcmp.ge.f32.partialorder %v37, 0.0
  %v42 = vmul.f32 %v34, 0.1
  %v43 = vmul.f32 %v35, 0.1
  %v44 = vmul.f32 %v36, 0.1
  %v45 = vmul.f32 %v37, 0.1
  %v46 = vsel %vm38, %v34, %v42
  %v47 = vsel %vm39, %v35, %v43
  %v48 = vsel %vm40, %v36, %v44
  %v49 = vsel %vm41, %v37, %v45
  %v50 = vpack.c.bf16 %v46, %v46
  %v51 = vpack.c.bf16 %v47, %v47
  %v52 = vpack.c.bf16 %v48, %v48
  %v53 = vpack.c.bf16 %v49, %v49
  %54 = vst [vmem:[%s3] sm:$0xf] %v50
  %55 = vst [vmem:[%s3 + $0x4] sm:$0xf] %v51
  %56 = vst [vmem:[%s3 + $0x8] sm:$0xf] %v52
  %57 = vst [vmem:[%s3 + $0xc] sm:$0xf] %v53
  // Predicated region
  $region14: #{_lambda_.43} parent=0 // pred_check
    _
  $region15: #{_lambda_.43} parent=0 // pred_check_branch
    %59 = sbr.rel (0) target = $region17
  $region16: #{_lambda_.43} parent=0 // pred_region
    _
  $region17: #{_lambda_.43} parent=0 // pred_fallthru
    _
  // Predicated region
  $region18: #{_lambda_.43} parent=0 // pred_check
    _
  $region19: #{_lambda_.43} parent=0 // pred_check_branch
    %61 = sbr.rel (0) target = $region21
  $region20: #{_lambda_.43} parent=0 // pred_region
    _
  $region21: #{_lambda_.43} parent=0 // pred_fallthru
    _

// kernel: _lambda_.42
$region0: #{_lambda_.42}
  #allocation0 [shape = 'u32[]', space=smem, size = 0x4, offset = 0x4, fixed_abs, tag = 'smem constant byte address 0x4 - core index']
  #allocation1 [shape = 'u32[72,128]{1,0:T(1,128)}', space=vmem, size = 0x9000, scoped, tag = 'internal scratch']
  %s0 = inlined_call_operand.vmem [shape: bf16[32,400], index: 0, kind: input, shape index: {}]
  %s1 = inlined_call_operand.vmem [shape: bf16[400,128], index: 1, kind: input, shape index: {}]
  %s2 = inlined_call_operand.vmem [shape: bf16[32,128], index: 2, kind: output, shape index: {0}]
  %s3 = inlined_call_operand.vmem [shape: f32[1,8,128], index: 3, kind: output, shape index: {1}]
  %s4 = inlined_call_operand.vmem [shape: f32[1,8,128], index: 4, kind: output, shape index: {2}]
  %5 = xla_tuple %s2, %s3, %s4
  %s6 = sld [smem:[#allocation0]]
  $region34: #{_lambda_.42} parent=0
    _
  %s8 = ssub.s32 1, %s6
  %s9 = scalar_select 0, %s8, %s6
  // Predicated region
  $region2: #{_lambda_.42} parent=0 // pred_check
    _
  $region3: #{_lambda_.42} parent=0 // pred_check_branch
    %11 = sbr.rel (0) target = $region5
  $region4: #{_lambda_.42} parent=0 // pred_region
    _
  $region5: #{_lambda_.42} parent=0 // pred_fallthru
    _
  // Predicated region
  $region6: #{_lambda_.42} parent=0 // pred_check
    _
  $region7: #{_lambda_.42} parent=0 // pred_check_branch
    %13 = sbr.rel (0) target = $region9
  $region8: #{_lambda_.42} parent=0 // pred_region
    _
  $region9: #{_lambda_.42} parent=0 // pred_fallthru
    _
  %v15 = vld [vmem:[%s0] sm:$0xff]
  %v16 = vld [vmem:[%s0 + $0x8] sm:$0xff]
  %v17 = vld [vmem:[%s0 + $0x10] sm:$0xff]
  %v18 = vld [vmem:[%s0 + $0x18] sm:$0xff]
  %v19 = vld [vmem:[%s0 + $0x20] sm:$0xff]
  %v20 = vld [vmem:[%s0 + $0x28] sm:$0xff]
  %v21 = vld [vmem:[%s0 + $0x30] sm:$0xff]
  %v22 = vld [vmem:[%s0 + $0x38] sm:$0xff]
  %v23 = vld [vmem:[%s1] sm:$0xf]
  %v24 = vld [vmem:[%s1 + $0x4] sm:$0xf]
  %v25 = vld [vmem:[%s1 + $0x8] sm:$0xf]
  %v26 = vld [vmem:[%s1 + $0xc] sm:$0xf]
  %v27 = vld [vmem:[%s1 + $0x10] sm:$0xf]
  %v28 = vld [vmem:[%s1 + $0x14] sm:$0xf]
  %v29 = vld [vmem:[%s1 + $0x18] sm:$0xf]
  %v30 = vld [vmem:[%s1 + $0x1c] sm:$0xf]
  %v31 = vld [vmem:[%s1 + $0x20] sm:$0xf]
  %v32 = vld [vmem:[%s1 + $0x24] sm:$0xf]
  %v33 = vld [vmem:[%s1 + $0x28] sm:$0xf]
  %v34 = vld [vmem:[%s1 + $0x2c] sm:$0xf]
  %v35 = vld [vmem:[%s1 + $0x30] sm:$0xf]
  %v36 = vld [vmem:[%s1 + $0x34] sm:$0xf]
  %v37 = vld [vmem:[%s1 + $0x38] sm:$0xf]
  %v38 = vld [vmem:[%s1 + $0x3c] sm:$0xf]
  %v39 = vld [vmem:[%s1 + $0x40] sm:$0xf]
  %v40 = vld [vmem:[%s1 + $0x44] sm:$0xf]
  %v41 = vld [vmem:[%s1 + $0x48] sm:$0xf]
  %v42 = vld [vmem:[%s1 + $0x4c] sm:$0xf]
  %v43 = vld [vmem:[%s1 + $0x50] sm:$0xf]
  %v44 = vld [vmem:[%s1 + $0x54] sm:$0xf]
  %v45 = vld [vmem:[%s1 + $0x58] sm:$0xf]
  %v46 = vld [vmem:[%s1 + $0x5c] sm:$0xf]
  %v47 = vld [vmem:[%s1 + $0x60] sm:$0xf]
  %v48 = vld [vmem:[%s1 + $0x64] sm:$0xf]
  %v49 = vld [vmem:[%s1 + $0x68] sm:$0xf]
  %v50 = vld [vmem:[%s1 + $0x6c] sm:$0xf]
  %v51 = vld [vmem:[%s1 + $0x70] sm:$0xf]
  %v52 = vld [vmem:[%s1 + $0x74] sm:$0xf]
  %v53 = vld [vmem:[%s1 + $0x78] sm:$0xf]
  %v54 = vld [vmem:[%s1 + $0x7c] sm:$0xf]
  %v55 = vld [vmem:[%s1 + $0x80] sm:$0xf]
  %v56 = vld [vmem:[%s1 + $0x84] sm:$0xf]
  %v57 = vld [vmem:[%s1 + $0x88] sm:$0xf]
  %v58 = vld [vmem:[%s1 + $0x8c] sm:$0xf]
  %v59 = vld [vmem:[%s1 + $0x90] sm:$0xf]
  %v60 = vld [vmem:[%s1 + $0x94] sm:$0xf]
  %v61 = vld [vmem:[%s1 + $0x98] sm:$0xf]
  %v62 = vld [vmem:[%s1 + $0x9c] sm:$0xf]
  %v63 = vld [vmem:[%s1 + $0xa0] sm:$0xf]
  %v64 = vld [vmem:[%s1 + $0xa4] sm:$0xf]
  %v65 = vld [vmem:[%s1 + $0xa8] sm:$0xf]
  %v66 = vld [vmem:[%s1 + $0xac] sm:$0xf]
  %v67 = vld [vmem:[%s1 + $0xb0] sm:$0xf]
  %v68 = vld [vmem:[%s1 + $0xb4] sm:$0xf]
  %v69 = vld [vmem:[%s1 + $0xb8] sm:$0xf]
  %v70 = vld [vmem:[%s1 + $0xbc] sm:$0xf]
  %v71 = vld [vmem:[%s1 + $0xc0] sm:$0xf]
  %v72 = vld [vmem:[%s1 + $0xc4] sm:$0xf]
  %v81 = vunpack.c.l.b16 %v15
  %v82 = vunpack.c.h.b16 %v15
  %v83 = vunpack.c.l.b16 %v16
  %v84 = vunpack.c.h.b16 %v16
  %v85 = vunpack.c.l.b16 %v17
  %v86 = vunpack.c.h.b16 %v17
  %v87 = vunpack.c.l.b16 %v18
  %v88 = vunpack.c.h.b16 %v18
  %v89 = vunpack.c.l.b16 %v19
  %v90 = vunpack.c.h.b16 %v19
  %v91 = vunpack.c.l.b16 %v20
  %v92 = vunpack.c.h.b16 %v20
  %v93 = vunpack.c.l.b16 %v21
  %v94 = vunpack.c.h.b16 %v21
  %v95 = vunpack.c.l.b16 %v22
  %v96 = vunpack.c.h.b16 %v22
  %v97 = vpack.c.b16 %v85, %v81
  %v98 = vpack.c.b16 %v86, %v82
  %v99 = vpack.c.b16 %v87, %v83
  %v100 = vpack.c.b16 %v88, %v84
  %v101 = vpack.c.b16 %v93, %v89
  %v102 = vpack.c.b16 %v94, %v90
  %v103 = vpack.c.b16 %v95, %v91
  %v104 = vpack.c.b16 %v96, %v92
  %v161 = vunpack.c.l.b16 %v23
  %v162 = vunpack.c.l.b16 %v24
  %v163 = vunpack.c.l.b16 %v25
  %v164 = vunpack.c.l.b16 %v26
  %v165 = vunpack.c.l.b16 %v27
  %v166 = vunpack.c.l.b16 %v28
  %v167 = vunpack.c.l.b16 %v29
  %v168 = vunpack.c.l.b16 %v30
  %v169 = vunpack.c.l.b16 %v31
  %v170 = vunpack.c.l.b16 %v32
  %v171 = vunpack.c.l.b16 %v33
  %v172 = vunpack.c.l.b16 %v34
  %v173 = vunpack.c.l.b16 %v35
  %v174 = vunpack.c.l.b16 %v36
  %v175 = vunpack.c.l.b16 %v37
  %v176 = vunpack.c.l.b16 %v38
  %v177 = vunpack.c.l.b16 %v39
  %v178 = vunpack.c.l.b16 %v40
  %v179 = vunpack.c.l.b16 %v41
  %v180 = vunpack.c.l.b16 %v42
  %v181 = vunpack.c.l.b16 %v43
  %v182 = vunpack.c.l.b16 %v44
  %v183 = vunpack.c.l.b16 %v45
  %v184 = vunpack.c.l.b16 %v46
  %v185 = vunpack.c.l.b16 %v47
  %v186 = vunpack.c.l.b16 %v48
  %v187 = vunpack.c.l.b16 %v49
  %v188 = vunpack.c.l.b16 %v50
  %v189 = vunpack.c.l.b16 %v51
  %v190 = vunpack.c.l.b16 %v52
  %v191 = vunpack.c.l.b16 %v53
  %v192 = vunpack.c.l.b16 %v54
  %v193 = vunpack.c.l.b16 %v55
  %v194 = vunpack.c.l.b16 %v56
  %v195 = vunpack.c.l.b16 %v57
  %v196 = vunpack.c.l.b16 %v58
  %v197 = vunpack.c.l.b16 %v59
  %v198 = vunpack.c.l.b16 %v60
  %v199 = vunpack.c.l.b16 %v61
  %v200 = vunpack.c.l.b16 %v62
  %v201 = vunpack.c.l.b16 %v63
  %v202 = vunpack.c.l.b16 %v64
  %v203 = vunpack.c.l.b16 %v65
  %v204 = vunpack.c.l.b16 %v66
  %v205 = vunpack.c.l.b16 %v67
  %v206 = vunpack.c.l.b16 %v68
  %v207 = vunpack.c.l.b16 %v69
  %v208 = vunpack.c.l.b16 %v70
  %v209 = vunpack.c.l.b16 %v71
  %v210 = vunpack.c.l.b16 %v72
  %v211 = vpack.c.b16 %v162, %v161
  %v212 = vpack.c.b16 %v164, %v163
  %v213 = vpack.c.b16 %v166, %v165
  %v214 = vpack.c.b16 %v168, %v167
  %v215 = vpack.c.b16 %v170, %v169
  %v216 = vpack.c.b16 %v172, %v171
  %v217 = vpack.c.b16 %v174, %v173
  %v218 = vpack.c.b16 %v176, %v175
  %v219 = vpack.c.b16 %v178, %v177
  %v220 = vpack.c.b16 %v180, %v179
  %v221 = vpack.c.b16 %v182, %v181
  %v222 = vpack.c.b16 %v184, %v183
  %v223 = vpack.c.b16 %v186, %v185
  %v224 = vpack.c.b16 %v188, %v187
  %v225 = vpack.c.b16 %v190, %v189
  %v226 = vpack.c.b16 %v192, %v191
  %v227 = vpack.c.b16 %v194, %v193
  %v228 = vpack.c.b16 %v196, %v195
  %v229 = vpack.c.b16 %v198, %v197
  %v230 = vpack.c.b16 %v200, %v199
  %v231 = vpack.c.b16 %v202, %v201
  %v232 = vpack.c.b16 %v204, %v203
  %v233 = vpack.c.b16 %v206, %v205
  %v234 = vpack.c.b16 %v208, %v207
  %v235 = vpack.c.b16 %v210, %v209
  %vm261 = vcmask 130048
  %v263 = vsel %vm261, %v100, 0
  %v266 = vsel %vm261, %v104, 0
  %268 = vmatpush.bf16.msra.mxu0 %v218
  %269 = vmatpush.bf16.msra.mxu0 %v217
  %270 = vmatpush.bf16.msra.mxu0 %v216
  %271 = vmatpush.bf16.msra.mxu0 %v215
  %272 = vmatpush.bf16.msra.mxu0 %v214
  %273 = vmatpush.bf16.msra.mxu0 %v213
  %274 = vmatpush.bf16.msra.mxu0 %v212
  %275 = vmatpush.bf16.msra.mxu0 %v211
  %276 = vmatmul.bf16.gmra.mxu0 %v97
  %v277 = vpop.f32.mrf.mxu0
  %v278 = vadd.f32 0.0, %v277
  %v279 = vpop.f32.mrf.mxu0
  %v280 = vadd.f32 0.0, %v279
  %281 = vmatmul.bf16.gmra.mxu0 %v101
  %v282 = vpop.f32.mrf.mxu0
  %v283 = vadd.f32 0.0, %v282
  %v284 = vpop.f32.mrf.mxu0
  %v285 = vadd.f32 0.0, %v284
  %286 = vdwg.mxu0
  %287 = vmatpush.bf16.msra.mxu0 %v226
  %288 = vmatpush.bf16.msra.mxu0 %v225
  %289 = vmatpush.bf16.msra.mxu0 %v224
  %290 = vmatpush.bf16.msra.mxu0 %v223
  %291 = vmatpush.bf16.msra.mxu0 %v222
  %292 = vmatpush.bf16.msra.mxu0 %v221
  %293 = vmatpush.bf16.msra.mxu0 %v220
  %294 = vmatpush.bf16.msra.mxu0 %v219
  %295 = vmatmul.bf16.gmra.mxu0 %v98
  %v296 = vpop.f32.mrf.mxu0
  %v297 = vadd.f32 %v278, %v296
  %v298 = vpop.f32.mrf.mxu0
  %v299 = vadd.f32 %v280, %v298
  %300 = vmatmul.bf16.gmra.mxu0 %v102
  %v301 = vpop.f32.mrf.mxu0
  %v302 = vadd.f32 %v283, %v301
  %v303 = vpop.f32.mrf.mxu0
  %v304 = vadd.f32 %v285, %v303
  %305 = vdwg.mxu0
  %306 = vmatpush.bf16.msra.mxu0 %v234
  %307 = vmatpush.bf16.msra.mxu0 %v233
  %308 = vmatpush.bf16.msra.mxu0 %v232
  %309 = vmatpush.bf16.msra.mxu0 %v231
  %310 = vmatpush.bf16.msra.mxu0 %v230
  %311 = vmatpush.bf16.msra.mxu0 %v229
  %312 = vmatpush.bf16.msra.mxu0 %v228
  %313 = vmatpush.bf16.msra.mxu0 %v227
  %314 = vmatmul.bf16.gmra.mxu0 %v99
  %v315 = vpop.f32.mrf.mxu0
  %v316 = vadd.f32 %v297, %v315
  %v317 = vpop.f32.mrf.mxu0
  %v318 = vadd.f32 %v299, %v317
  %319 = vmatmul.bf16.gmra.mxu0 %v103
  %v320 = vpop.f32.mrf.mxu0
  %v321 = vadd.f32 %v302, %v320
  %v322 = vpop.f32.mrf.mxu0
  %v323 = vadd.f32 %v304, %v322
  %324 = vdwg.mxu0
  %325 = vmatpush.bf16.msra.mxu0 0
  %326 = vmatpush.bf16.msra.mxu0 0
  %327 = vmatpush.bf16.msra.mxu0 0
  %328 = vmatpush.bf16.msra.mxu0 0
  %329 = vmatpush.bf16.msra.mxu0 0
  %330 = vmatpush.bf16.msra.mxu0 0
  %331 = vmatpush.bf16.msra.mxu0 0
  %332 = vmatpush.bf16.msra.mxu0 %v235
  %333 = vmatmul.bf16.gmra.mxu0 %v263
  %v334 = vpop.f32.mrf.mxu0
  %v335 = vadd.f32 %v316, %v334
  %v336 = vpop.f32.mrf.mxu0
  %v337 = vadd.f32 %v318, %v336
  %338 = vmatmul.bf16.gmra.mxu0 %v266
  %v339 = vpop.f32.mrf.mxu0
  %v340 = vadd.f32 %v321, %v339
  %v341 = vpop.f32.mrf.mxu0
  %v342 = vadd.f32 %v323, %v341
  %343 = vdwg.mxu0
  %v344 = vpack.c.bf16 %v335, %v335
  %v345 = vpack.c.bf16 %v337, %v337
  %v346 = vpack.c.bf16 %v340, %v340
  %v347 = vpack.c.bf16 %v342, %v342
  %348 = vst [vmem:[%s2] sm:$0xf] %v344
  %349 = vst [vmem:[%s2 + $0x4] sm:$0xf] %v345
  %350 = vst [vmem:[%s2 + $0x8] sm:$0xf] %v346
  %351 = vst [vmem:[%s2 + $0xc] sm:$0xf] %v347
  %v352 = vadd.f32 %v335, %v337
  %v353 = vadd.f32 %v352, %v340
  %v354 = vadd.f32 %v353, %v342
  %v355 = vrot.slane %v354, 4
  %v356 = vadd.f32 %v354, %v355
  %v357 = vrot.slane %v356, 2
  %v358 = vadd.f32 %v356, %v357
  %v359 = vrot.slane %v358, 1
  %v360 = vadd.f32 %v358, %v359
  %v361 = vmul.f32 %v335, %v335
  %v362 = vmul.f32 %v337, %v337
  %v363 = vmul.f32 %v340, %v340
  %v364 = vmul.f32 %v342, %v342
  %v365 = vadd.f32 %v361, %v362
  %v366 = vadd.f32 %v365, %v363
  %v367 = vadd.f32 %v366, %v364
  %v368 = vrot.slane %v367, 4
  %v369 = vadd.f32 %v367, %v368
  %v370 = vrot.slane %v369, 2
  %v371 = vadd.f32 %v369, %v370
  %v372 = vrot.slane %v371, 1
  %v373 = vadd.f32 %v371, %v372
  %374 = vst [vmem:[%s3] sm:$0xff] %v360
  %375 = vst [vmem:[%s4] sm:$0xff] %v373
  // Predicated region
  $region10: #{_lambda_.42} parent=0 // pred_check
    _
  $region11: #{_lambda_.42} parent=0 // pred_check_branch
    %377 = sbr.rel (0) target = $region13
  $region12: #{_lambda_.42} parent=0 // pred_region
    _
  $region13: #{_lambda_.42} parent=0 // pred_fallthru
    _
  // Predicated region
  $region14: #{_lambda_.42} parent=0 // pred_check
    _
  $region15: #{_lambda_.42} parent=0 // pred_check_branch
    %379 = sbr.rel (0) target = $region17
  $region16: #{_lambda_.42} parent=0 // pred_region
    _
  $region17: #{_lambda_.42} parent=0 // pred_fallthru
    _
  // Predicated region
  $region18: #{_lambda_.42} parent=0 // pred_check
    _
  $region19: #{_lambda_.42} parent=0 // pred_check_branch
    %381 = sbr.rel (0) target = $region21
  $region20: #{_lambda_.42} parent=0 // pred_region
    _
  $region21: #{_lambda_.42} parent=0 // pred_fallthru
    _
  // Predicated region
  $region22: #{_lambda_.42} parent=0 // pred_check
    _
  $region23: #{_lambda_.42} parent=0 // pred_check_branch
    %383 = sbr.rel (0) target = $region25
  $region24: #{_lambda_.42} parent=0 // pred_region
    _
  $region25: #{_lambda_.42} parent=0 // pred_fallthru
    _
  // Predicated region
  $region26: #{_lambda_.42} parent=0 // pred_check
    _
  $region27: #{_lambda_.42} parent=0 // pred_check_branch
    %385 = sbr.rel (0) target = $region29
  $region28: #{_lambda_.42} parent=0 // pred_region
    _
  $region29: #{_lambda_.42} parent=0 // pred_fallthru
    _
  // Predicated region
  $region30: #{_lambda_.42} parent=0 // pred_check
    _
  $region31: #{_lambda_.42} parent=0 // pred_check_branch
    %387 = sbr.rel (0) target = $region33
  $region32: #{_lambda_.42} parent=0 // pred_region
    _
  $region33: #{_lambda_.42} parent=0 // pred_fallthru
    _

// kernel: _lambda_.44
$region0: #{_lambda_.44}
  #allocation0 [shape = 'u32[]', space=smem, size = 0x4, offset = 0x4, fixed_abs, tag = 'smem constant byte address 0x4 - core index']
  #allocation1 [shape = 'u32[72,128]{1,0:T(1,128)}', space=vmem, size = 0x9000, scoped, tag = 'internal scratch']
  %s0 = inlined_call_operand.vmem [shape: bf16[32,576], index: 0, kind: input, shape index: {}]
  %s1 = inlined_call_operand.vmem [shape: bf16[576,128], index: 1, kind: input, shape index: {}]
  %s2 = inlined_call_operand.vmem [shape: bf16[32,128], index: 2, kind: output, shape index: {0}]
  %s3 = inlined_call_operand.vmem [shape: f32[1,8,128], index: 3, kind: output, shape index: {1}]
  %s4 = inlined_call_operand.vmem [shape: f32[1,8,128], index: 4, kind: output, shape index: {2}]
  %5 = xla_tuple %s2, %s3, %s4
  %s6 = sld [smem:[#allocation0]]
  $region34: #{_lambda_.44} parent=0
    _
  %s8 = ssub.s32 1, %s6
  %s9 = scalar_select 0, %s8, %s6
  // Predicated region
  $region2: #{_lambda_.44} parent=0 // pred_check
    _
  $region3: #{_lambda_.44} parent=0 // pred_check_branch
    %11 = sbr.rel (0) target = $region5
  $region4: #{_lambda_.44} parent=0 // pred_region
    _
  $region5: #{_lambda_.44} parent=0 // pred_fallthru
    _
  // Predicated region
  $region6: #{_lambda_.44} parent=0 // pred_check
    _
  $region7: #{_lambda_.44} parent=0 // pred_check_branch
    %13 = sbr.rel (0) target = $region9
  $region8: #{_lambda_.44} parent=0 // pred_region
    _
  $region9: #{_lambda_.44} parent=0 // pred_fallthru
    _
  %v15 = vld [vmem:[%s0] sm:$0xff]
  %v16 = vld [vmem:[%s0 + $0x8] sm:$0xff]
  %v17 = vld [vmem:[%s0 + $0x10] sm:$0xf]
  %v18 = vld [vmem:[%s0 + $0x14] sm:$0xff]
  %v19 = vld [vmem:[%s0 + $0x1c] sm:$0xff]
  %v20 = vld [vmem:[%s0 + $0x24] sm:$0xf]
  %v21 = vld [vmem:[%s0 + $0x28] sm:$0xff]
  %v22 = vld [vmem:[%s0 + $0x30] sm:$0xff]
  %v23 = vld [vmem:[%s0 + $0x38] sm:$0xf]
  %v24 = vld [vmem:[%s0 + $0x3c] sm:$0xff]
  %v25 = vld [vmem:[%s0 + $0x44] sm:$0xff]
  %v26 = vld [vmem:[%s0 + $0x4c] sm:$0xf]
  %v27 = vld [vmem:[%s1] sm:$0xf]
  %v28 = vld [vmem:[%s1 + $0x4] sm:$0xf]
  %v29 = vld [vmem:[%s1 + $0x8] sm:$0xf]
  %v30 = vld [vmem:[%s1 + $0xc] sm:$0xf]
  %v31 = vld [vmem:[%s1 + $0x10] sm:$0xf]
  %v32 = vld [vmem:[%s1 + $0x14] sm:$0xf]
  %v33 = vld [vmem:[%s1 + $0x18] sm:$0xf]
  %v34 = vld [vmem:[%s1 + $0x1c] sm:$0xf]
  %v35 = vld [vmem:[%s1 + $0x20] sm:$0xf]
  %v36 = vld [vmem:[%s1 + $0x24] sm:$0xf]
  %v37 = vld [vmem:[%s1 + $0x28] sm:$0xf]
  %v38 = vld [vmem:[%s1 + $0x2c] sm:$0xf]
  %v39 = vld [vmem:[%s1 + $0x30] sm:$0xf]
  %v40 = vld [vmem:[%s1 + $0x34] sm:$0xf]
  %v41 = vld [vmem:[%s1 + $0x38] sm:$0xf]
  %v42 = vld [vmem:[%s1 + $0x3c] sm:$0xf]
  %v43 = vld [vmem:[%s1 + $0x40] sm:$0xf]
  %v44 = vld [vmem:[%s1 + $0x44] sm:$0xf]
  %v45 = vld [vmem:[%s1 + $0x48] sm:$0xf]
  %v46 = vld [vmem:[%s1 + $0x4c] sm:$0xf]
  %v47 = vld [vmem:[%s1 + $0x50] sm:$0xf]
  %v48 = vld [vmem:[%s1 + $0x54] sm:$0xf]
  %v49 = vld [vmem:[%s1 + $0x58] sm:$0xf]
  %v50 = vld [vmem:[%s1 + $0x5c] sm:$0xf]
  %v51 = vld [vmem:[%s1 + $0x60] sm:$0xf]
  %v52 = vld [vmem:[%s1 + $0x64] sm:$0xf]
  %v53 = vld [vmem:[%s1 + $0x68] sm:$0xf]
  %v54 = vld [vmem:[%s1 + $0x6c] sm:$0xf]
  %v55 = vld [vmem:[%s1 + $0x70] sm:$0xf]
  %v56 = vld [vmem:[%s1 + $0x74] sm:$0xf]
  %v57 = vld [vmem:[%s1 + $0x78] sm:$0xf]
  %v58 = vld [vmem:[%s1 + $0x7c] sm:$0xf]
  %v59 = vld [vmem:[%s1 + $0x80] sm:$0xf]
  %v60 = vld [vmem:[%s1 + $0x84] sm:$0xf]
  %v61 = vld [vmem:[%s1 + $0x88] sm:$0xf]
  %v62 = vld [vmem:[%s1 + $0x8c] sm:$0xf]
  %v63 = vld [vmem:[%s1 + $0x90] sm:$0xf]
  %v64 = vld [vmem:[%s1 + $0x94] sm:$0xf]
  %v65 = vld [vmem:[%s1 + $0x98] sm:$0xf]
  %v66 = vld [vmem:[%s1 + $0x9c] sm:$0xf]
  %v67 = vld [vmem:[%s1 + $0xa0] sm:$0xf]
  %v68 = vld [vmem:[%s1 + $0xa4] sm:$0xf]
  %v69 = vld [vmem:[%s1 + $0xa8] sm:$0xf]
  %v70 = vld [vmem:[%s1 + $0xac] sm:$0xf]
  %v71 = vld [vmem:[%s1 + $0xb0] sm:$0xf]
  %v72 = vld [vmem:[%s1 + $0xb4] sm:$0xf]
  %v73 = vld [vmem:[%s1 + $0xb8] sm:$0xf]
  %v74 = vld [vmem:[%s1 + $0xbc] sm:$0xf]
  %v75 = vld [vmem:[%s1 + $0xc0] sm:$0xf]
  %v76 = vld [vmem:[%s1 + $0xc4] sm:$0xf]
  %v77 = vld [vmem:[%s1 + $0xc8] sm:$0xf]
  %v78 = vld [vmem:[%s1 + $0xcc] sm:$0xf]
  %v79 = vld [vmem:[%s1 + $0xd0] sm:$0xf]
  %v80 = vld [vmem:[%s1 + $0xd4] sm:$0xf]
  %v81 = vld [vmem:[%s1 + $0xd8] sm:$0xf]
  %v82 = vld [vmem:[%s1 + $0xdc] sm:$0xf]
  %v83 = vld [vmem:[%s1 + $0xe0] sm:$0xf]
  %v84 = vld [vmem:[%s1 + $0xe4] sm:$0xf]
  %v85 = vld [vmem:[%s1 + $0xe8] sm:$0xf]
  %v86 = vld [vmem:[%s1 + $0xec] sm:$0xf]
  %v87 = vld [vmem:[%s1 + $0xf0] sm:$0xf]
  %v88 = vld [vmem:[%s1 + $0xf4] sm:$0xf]
  %v89 = vld [vmem:[%s1 + $0xf8] sm:$0xf]
  %v90 = vld [vmem:[%s1 + $0xfc] sm:$0xf]
  %v91 = vld [vmem:[%s1 + $0x100] sm:$0xf]
  %v92 = vld [vmem:[%s1 + $0x104] sm:$0xf]
  %v93 = vld [vmem:[%s1 + $0x108] sm:$0xf]
  %v94 = vld [vmem:[%s1 + $0x10c] sm:$0xf]
  %v95 = vld [vmem:[%s1 + $0x110] sm:$0xf]
  %v96 = vld [vmem:[%s1 + $0x114] sm:$0xf]
  %v97 = vld [vmem:[%s1 + $0x118] sm:$0xf]
  %v98 = vld [vmem:[%s1 + $0x11c] sm:$0xf]
  %v111 = vunpack.c.l.b16 %v15
  %v112 = vunpack.c.h.b16 %v15
  %v113 = vunpack.c.l.b16 %v16
  %v114 = vunpack.c.h.b16 %v16
  %v115 = vunpack.c.l.b16 %v17
  %v116 = vunpack.c.l.b16 %v18
  %v117 = vunpack.c.h.b16 %v18
  %v118 = vunpack.c.l.b16 %v19
  %v119 = vunpack.c.h.b16 %v19
  %v120 = vunpack.c.l.b16 %v20
  %v121 = vunpack.c.l.b16 %v21
  %v122 = vunpack.c.h.b16 %v21
  %v123 = vunpack.c.l.b16 %v22
  %v124 = vunpack.c.h.b16 %v22
  %v125 = vunpack.c.l.b16 %v23
  %v126 = vunpack.c.l.b16 %v24
  %v127 = vunpack.c.h.b16 %v24
  %v128 = vunpack.c.l.b16 %v25
  %v129 = vunpack.c.h.b16 %v25
  %v130 = vunpack.c.l.b16 %v26
  %v131 = vpack.c.b16 %v116, %v111
  %v132 = vpack.c.b16 %v117, %v112
  %v133 = vpack.c.b16 %v118, %v113
  %v134 = vpack.c.b16 %v119, %v114
  %v135 = vpack.c.b16 %v120, %v115
  %v136 = vpack.c.b16 %v126, %v121
  %v137 = vpack.c.b16 %v127, %v122
  %v138 = vpack.c.b16 %v128, %v123
  %v139 = vpack.c.b16 %v129, %v124
  %v140 = vpack.c.b16 %v130, %v125
  %v221 = vunpack.c.l.b16 %v27
  %v222 = vunpack.c.l.b16 %v28
  %v223 = vunpack.c.l.b16 %v29
  %v224 = vunpack.c.l.b16 %v30
  %v225 = vunpack.c.l.b16 %v31
  %v226 = vunpack.c.l.b16 %v32
  %v227 = vunpack.c.l.b16 %v33
  %v228 = vunpack.c.l.b16 %v34
  %v229 = vunpack.c.l.b16 %v35
  %v230 = vunpack.c.l.b16 %v36
  %v231 = vunpack.c.l.b16 %v37
  %v232 = vunpack.c.l.b16 %v38
  %v233 = vunpack.c.l.b16 %v39
  %v234 = vunpack.c.l.b16 %v40
  %v235 = vunpack.c.l.b16 %v41
  %v236 = vunpack.c.l.b16 %v42
  %v237 = vunpack.c.l.b16 %v43
  %v238 = vunpack.c.l.b16 %v44
  %v239 = vunpack.c.l.b16 %v45
  %v240 = vunpack.c.l.b16 %v46
  %v241 = vunpack.c.l.b16 %v47
  %v242 = vunpack.c.l.b16 %v48
  %v243 = vunpack.c.l.b16 %v49
  %v244 = vunpack.c.l.b16 %v50
  %v245 = vunpack.c.l.b16 %v51
  %v246 = vunpack.c.l.b16 %v52
  %v247 = vunpack.c.l.b16 %v53
  %v248 = vunpack.c.l.b16 %v54
  %v249 = vunpack.c.l.b16 %v55
  %v250 = vunpack.c.l.b16 %v56
  %v251 = vunpack.c.l.b16 %v57
  %v252 = vunpack.c.l.b16 %v58
  %v253 = vunpack.c.l.b16 %v59
  %v254 = vunpack.c.l.b16 %v60
  %v255 = vunpack.c.l.b16 %v61
  %v256 = vunpack.c.l.b16 %v62
  %v257 = vunpack.c.l.b16 %v63
  %v258 = vunpack.c.l.b16 %v64
  %v259 = vunpack.c.l.b16 %v65
  %v260 = vunpack.c.l.b16 %v66
  %v261 = vunpack.c.l.b16 %v67
  %v262 = vunpack.c.l.b16 %v68
  %v263 = vunpack.c.l.b16 %v69
  %v264 = vunpack.c.l.b16 %v70
  %v265 = vunpack.c.l.b16 %v71
  %v266 = vunpack.c.l.b16 %v72
  %v267 = vunpack.c.l.b16 %v73
  %v268 = vunpack.c.l.b16 %v74
  %v269 = vunpack.c.l.b16 %v75
  %v270 = vunpack.c.l.b16 %v76
  %v271 = vunpack.c.l.b16 %v77
  %v272 = vunpack.c.l.b16 %v78
  %v273 = vunpack.c.l.b16 %v79
  %v274 = vunpack.c.l.b16 %v80
  %v275 = vunpack.c.l.b16 %v81
  %v276 = vunpack.c.l.b16 %v82
  %v277 = vunpack.c.l.b16 %v83
  %v278 = vunpack.c.l.b16 %v84
  %v279 = vunpack.c.l.b16 %v85
  %v280 = vunpack.c.l.b16 %v86
  %v281 = vunpack.c.l.b16 %v87
  %v282 = vunpack.c.l.b16 %v88
  %v283 = vunpack.c.l.b16 %v89
  %v284 = vunpack.c.l.b16 %v90
  %v285 = vunpack.c.l.b16 %v91
  %v286 = vunpack.c.l.b16 %v92
  %v287 = vunpack.c.l.b16 %v93
  %v288 = vunpack.c.l.b16 %v94
  %v289 = vunpack.c.l.b16 %v95
  %v290 = vunpack.c.l.b16 %v96
  %v291 = vunpack.c.l.b16 %v97
  %v292 = vunpack.c.l.b16 %v98
  %v293 = vpack.c.b16 %v222, %v221
  %v294 = vpack.c.b16 %v224, %v223
  %v295 = vpack.c.b16 %v226, %v225
  %v296 = vpack.c.b16 %v228, %v227
  %v297 = vpack.c.b16 %v230, %v229
  %v298 = vpack.c.b16 %v232, %v231
  %v299 = vpack.c.b16 %v234, %v233
  %v300 = vpack.c.b16 %v236, %v235
  %v301 = vpack.c.b16 %v238, %v237
  %v302 = vpack.c.b16 %v240, %v239
  %v303 = vpack.c.b16 %v242, %v241
  %v304 = vpack.c.b16 %v244, %v243
  %v305 = vpack.c.b16 %v246, %v245
  %v306 = vpack.c.b16 %v248, %v247
  %v307 = vpack.c.b16 %v250, %v249
  %v308 = vpack.c.b16 %v252, %v251
  %v309 = vpack.c.b16 %v254, %v253
  %v310 = vpack.c.b16 %v256, %v255
  %v311 = vpack.c.b16 %v258, %v257
  %v312 = vpack.c.b16 %v260, %v259
  %v313 = vpack.c.b16 %v262, %v261
  %v314 = vpack.c.b16 %v264, %v263
  %v315 = vpack.c.b16 %v266, %v265
  %v316 = vpack.c.b16 %v268, %v267
  %v317 = vpack.c.b16 %v270, %v269
  %v318 = vpack.c.b16 %v272, %v271
  %v319 = vpack.c.b16 %v274, %v273
  %v320 = vpack.c.b16 %v276, %v275
  %v321 = vpack.c.b16 %v278, %v277
  %v322 = vpack.c.b16 %v280, %v279
  %v323 = vpack.c.b16 %v282, %v281
  %v324 = vpack.c.b16 %v284, %v283
  %v325 = vpack.c.b16 %v286, %v285
  %v326 = vpack.c.b16 %v288, %v287
  %v327 = vpack.c.b16 %v290, %v289
  %v328 = vpack.c.b16 %v292, %v291
  %vm365 = vcmask 523264
  %v367 = vsel %vm365, %v135, 0
  %v370 = vsel %vm365, %v140, 0
  %372 = vmatpush.bf16.msra.mxu0 %v300
  %373 = vmatpush.bf16.msra.mxu0 %v299
  %374 = vmatpush.bf16.msra.mxu0 %v298
  %375 = vmatpush.bf16.msra.mxu0 %v297
  %376 = vmatpush.bf16.msra.mxu0 %v296
  %377 = vmatpush.bf16.msra.mxu0 %v295
  %378 = vmatpush.bf16.msra.mxu0 %v294
  %379 = vmatpush.bf16.msra.mxu0 %v293
  %380 = vmatmul.bf16.gmra.mxu0 %v131
  %v381 = vpop.f32.mrf.mxu0
  %v382 = vadd.f32 0.0, %v381
  %v383 = vpop.f32.mrf.mxu0
  %v384 = vadd.f32 0.0, %v383
  %385 = vmatmul.bf16.gmra.mxu0 %v136
  %v386 = vpop.f32.mrf.mxu0
  %v387 = vadd.f32 0.0, %v386
  %v388 = vpop.f32.mrf.mxu0
  %v389 = vadd.f32 0.0, %v388
  %390 = vdwg.mxu0
  %391 = vmatpush.bf16.msra.mxu0 %v308
  %392 = vmatpush.bf16.msra.mxu0 %v307
  %393 = vmatpush.bf16.msra.mxu0 %v306
  %394 = vmatpush.bf16.msra.mxu0 %v305
  %395 = vmatpush.bf16.msra.mxu0 %v304
  %396 = vmatpush.bf16.msra.mxu0 %v303
  %397 = vmatpush.bf16.msra.mxu0 %v302
  %398 = vmatpush.bf16.msra.mxu0 %v301
  %399 = vmatmul.bf16.gmra.mxu0 %v132
  %v400 = vpop.f32.mrf.mxu0
  %v401 = vadd.f32 %v382, %v400
  %v402 = vpop.f32.mrf.mxu0
  %v403 = vadd.f32 %v384, %v402
  %404 = vmatmul.bf16.gmra.mxu0 %v137
  %v405 = vpop.f32.mrf.mxu0
  %v406 = vadd.f32 %v387, %v405
  %v407 = vpop.f32.mrf.mxu0
  %v408 = vadd.f32 %v389, %v407
  %409 = vdwg.mxu0
  %410 = vmatpush.bf16.msra.mxu0 %v316
  %411 = vmatpush.bf16.msra.mxu0 %v315
  %412 = vmatpush.bf16.msra.mxu0 %v314
  %413 = vmatpush.bf16.msra.mxu0 %v313
  %414 = vmatpush.bf16.msra.mxu0 %v312
  %415 = vmatpush.bf16.msra.mxu0 %v311
  %416 = vmatpush.bf16.msra.mxu0 %v310
  %417 = vmatpush.bf16.msra.mxu0 %v309
  %418 = vmatmul.bf16.gmra.mxu0 %v133
  %v419 = vpop.f32.mrf.mxu0
  %v420 = vadd.f32 %v401, %v419
  %v421 = vpop.f32.mrf.mxu0
  %v422 = vadd.f32 %v403, %v421
  %423 = vmatmul.bf16.gmra.mxu0 %v138
  %v424 = vpop.f32.mrf.mxu0
  %v425 = vadd.f32 %v406, %v424
  %v426 = vpop.f32.mrf.mxu0
  %v427 = vadd.f32 %v408, %v426
  %428 = vdwg.mxu0
  %429 = vmatpush.bf16.msra.mxu0 %v324
  %430 = vmatpush.bf16.msra.mxu0 %v323
  %431 = vmatpush.bf16.msra.mxu0 %v322
  %432 = vmatpush.bf16.msra.mxu0 %v321
  %433 = vmatpush.bf16.msra.mxu0 %v320
  %434 = vmatpush.bf16.msra.mxu0 %v319
  %435 = vmatpush.bf16.msra.mxu0 %v318
  %436 = vmatpush.bf16.msra.mxu0 %v317
  %437 = vmatmul.bf16.gmra.mxu0 %v134
  %v438 = vpop.f32.mrf.mxu0
  %v439 = vadd.f32 %v420, %v438
  %v440 = vpop.f32.mrf.mxu0
  %v441 = vadd.f32 %v422, %v440
  %442 = vmatmul.bf16.gmra.mxu0 %v139
  %v443 = vpop.f32.mrf.mxu0
  %v444 = vadd.f32 %v425, %v443
  %v445 = vpop.f32.mrf.mxu0
  %v446 = vadd.f32 %v427, %v445
  %447 = vdwg.mxu0
  %448 = vmatpush.bf16.msra.mxu0 0
  %449 = vmatpush.bf16.msra.mxu0 0
  %450 = vmatpush.bf16.msra.mxu0 0
  %451 = vmatpush.bf16.msra.mxu0 0
  %452 = vmatpush.bf16.msra.mxu0 %v328
  %453 = vmatpush.bf16.msra.mxu0 %v327
  %454 = vmatpush.bf16.msra.mxu0 %v326
  %455 = vmatpush.bf16.msra.mxu0 %v325
  %456 = vmatmul.bf16.gmra.mxu0 %v367
  %v457 = vpop.f32.mrf.mxu0
  %v458 = vadd.f32 %v439, %v457
  %v459 = vpop.f32.mrf.mxu0
  %v460 = vadd.f32 %v441, %v459
  %461 = vmatmul.bf16.gmra.mxu0 %v370
  %v462 = vpop.f32.mrf.mxu0
  %v463 = vadd.f32 %v444, %v462
  %v464 = vpop.f32.mrf.mxu0
  %v465 = vadd.f32 %v446, %v464
  %466 = vdwg.mxu0
  %v467 = vpack.c.bf16 %v458, %v458
  %v468 = vpack.c.bf16 %v460, %v460
  %v469 = vpack.c.bf16 %v463, %v463
  %v470 = vpack.c.bf16 %v465, %v465
  %471 = vst [vmem:[%s2] sm:$0xf] %v467
  %472 = vst [vmem:[%s2 + $0x4] sm:$0xf] %v468
  %473 = vst [vmem:[%s2 + $0x8] sm:$0xf] %v469
  %474 = vst [vmem:[%s2 + $0xc] sm:$0xf] %v470
  %v475 = vadd.f32 %v458, %v460
  %v476 = vadd.f32 %v475, %v463
  %v477 = vadd.f32 %v476, %v465
  %v478 = vrot.slane %v477, 4
  %v479 = vadd.f32 %v477, %v478
  %v480 = vrot.slane %v479, 2
  %v481 = vadd.f32 %v479, %v480
  %v482 = vrot.slane %v481, 1
  %v483 = vadd.f32 %v481, %v482
  %v484 = vmul.f32 %v458, %v458
  %v485 = vmul.f32 %v460, %v460
  %v486 = vmul.f32 %v463, %v463
  %v487 = vmul.f32 %v465, %v465
  %v488 = vadd.f32 %v484, %v485
  %v489 = vadd.f32 %v488, %v486
  %v490 = vadd.f32 %v489, %v487
  %v491 = vrot.slane %v490, 4
  %v492 = vadd.f32 %v490, %v491
  %v493 = vrot.slane %v492, 2
  %v494 = vadd.f32 %v492, %v493
  %v495 = vrot.slane %v494, 1
  %v496 = vadd.f32 %v494, %v495
  %497 = vst [vmem:[%s3] sm:$0xff] %v483
  %498 = vst [vmem:[%s4] sm:$0xff] %v496
  // Predicated region
  $region10: #{_lambda_.44} parent=0 // pred_check
    _
  $region11: #{_lambda_.44} parent=0 // pred_check_branch
    %500 = sbr.rel (0) target = $region13
  $region12: #{_lambda_.44} parent=0 // pred_region
    _
  $region13: #{_lambda_.44} parent=0 // pred_fallthru
    _
  // Predicated region
  $region14: #{_lambda_.44} parent=0 // pred_check
    _
  $region15: #{_lambda_.44} parent=0 // pred_check_branch
    %502 = sbr.rel (0) target = $region17
  $region16: #{_lambda_.44} parent=0 // pred_region
    _
  $region17: #{_lambda_.44} parent=0 // pred_fallthru
    _
  // Predicated region
  $region18: #{_lambda_.44} parent=0 // pred_check
    _
  $region19: #{_lambda_.44} parent=0 // pred_check_branch
    %504 = sbr.rel (0) target = $region21
  $region20: #{_lambda_.44} parent=0 // pred_region
    _
  $region21: #{_lambda_.44} parent=0 // pred_fallthru
    _
  // Predicated region
  $region22: #{_lambda_.44} parent=0 // pred_check
    _
  $region23: #{_lambda_.44} parent=0 // pred_check_branch
    %506 = sbr.rel (0) target = $region25
  $region24: #{_lambda_.44} parent=0 // pred_region
    _
  $region25: #{_lambda_.44} parent=0 // pred_fallthru
    _
  // Predicated region
  $region26: #{_lambda_.44} parent=0 // pred_check
    _
  $region27: #{_lambda_.44} parent=0 // pred_check_branch
    %508 = sbr.rel (0) target = $region29
  $region28: #{_lambda_.44} parent=0 // pred_region
    _
  $region29: #{_lambda_.44} parent=0 // pred_fallthru
    _
  // Predicated region
  $region30: #{_lambda_.44} parent=0 // pred_check
    _
  $region31: #{_lambda_.44} parent=0 // pred_check_branch
    %510 = sbr.rel (0) target = $region33
  $region32: #{_lambda_.44} parent=0 // pred_region
    _
  $region33: #{_lambda_.44} parent=0 // pred_fallthru
    _

// kernel: _lambda_.62
$region0: #{_lambda_.62}
  #allocation0 [shape = 'u32[]', space=smem, size = 0x4, offset = 0x4, fixed_abs, tag = 'smem constant byte address 0x4 - core index']
  #allocation1 [shape = 'u32[72,128]{1,0:T(1,128)}', space=vmem, size = 0x9000, scoped, tag = 'internal scratch']
  %s0 = inlined_call_operand.vmem [shape: bf16[128,1024], index: 0, kind: input, shape index: {}]
  %s1 = inlined_call_operand.vmem [shape: bf16[1024,128], index: 1, kind: input, shape index: {}]
  %s2 = inlined_call_operand.vmem [shape: bf16[128,128], index: 2, kind: output, shape index: {0}]
  %s3 = inlined_call_operand.vmem [shape: f32[1,8,128], index: 3, kind: output, shape index: {1}]
  %s4 = inlined_call_operand.vmem [shape: f32[1,8,128], index: 4, kind: output, shape index: {2}]
  %5 = xla_tuple %s2, %s3, %s4
  %s6 = sld [smem:[#allocation0]]
  $region34: #{_lambda_.62} parent=0
    _
  %s8 = ssub.s32 1, %s6
  %s9 = scalar_select 0, %s8, %s6
  // Predicated region
  $region2: #{_lambda_.62} parent=0 // pred_check
    _
  $region3: #{_lambda_.62} parent=0 // pred_check_branch
    %11 = sbr.rel (0) target = $region5
  $region4: #{_lambda_.62} parent=0 // pred_region
    _
  $region5: #{_lambda_.62} parent=0 // pred_fallthru
    _
  // Predicated region
  $region6: #{_lambda_.62} parent=0 // pred_check
    _
  $region7: #{_lambda_.62} parent=0 // pred_check_branch
    %13 = sbr.rel (0) target = $region9
  $region8: #{_lambda_.62} parent=0 // pred_region
    _
  $region9: #{_lambda_.62} parent=0 // pred_fallthru
    _
  %v14 = vld [vmem:[%s0] sm:$0xff]
  %v15 = vld [vmem:[%s0 + $0x8] sm:$0xff]
  %v16 = vld [vmem:[%s0 + $0x10] sm:$0xff]
  %v17 = vld [vmem:[%s0 + $0x18] sm:$0xff]
  %v18 = vld [vmem:[%s0 + $0x20] sm:$0xff]
  %v19 = vld [vmem:[%s0 + $0x28] sm:$0xff]
  %v20 = vld [vmem:[%s0 + $0x30] sm:$0xff]
  %v21 = vld [vmem:[%s0 + $0x38] sm:$0xff]
  %v22 = vld [vmem:[%s0 + $0x40] sm:$0xff]
  %v23 = vld [vmem:[%s0 + $0x48] sm:$0xff]
  %v24 = vld [vmem:[%s0 + $0x50] sm:$0xff]
  %v25 = vld [vmem:[%s0 + $0x58] sm:$0xff]
  %v26 = vld [vmem:[%s0 + $0x60] sm:$0xff]
  %v27 = vld [vmem:[%s0 + $0x68] sm:$0xff]
  %v28 = vld [vmem:[%s0 + $0x70] sm:$0xff]
  %v29 = vld [vmem:[%s0 + $0x78] sm:$0xff]
  %v30 = vld [vmem:[%s0 + $0x80] sm:$0xff]
  %v31 = vld [vmem:[%s0 + $0x88] sm:$0xff]
  %v32 = vld [vmem:[%s0 + $0x90] sm:$0xff]
  %v33 = vld [vmem:[%s0 + $0x98] sm:$0xff]
  %v34 = vld [vmem:[%s0 + $0xa0] sm:$0xff]
  %v35 = vld [vmem:[%s0 + $0xa8] sm:$0xff]
  %v36 = vld [vmem:[%s0 + $0xb0] sm:$0xff]
  %v37 = vld [vmem:[%s0 + $0xb8] sm:$0xff]
  %v38 = vld [vmem:[%s0 + $0xc0] sm:$0xff]
  %v39 = vld [vmem:[%s0 + $0xc8] sm:$0xff]
  %v40 = vld [vmem:[%s0 + $0xd0] sm:$0xff]
  %v41 = vld [vmem:[%s0 + $0xd8] sm:$0xff]
  %v42 = vld [vmem:[%s0 + $0xe0] sm:$0xff]
  %v43 = vld [vmem:[%s0 + $0xe8] sm:$0xff]
  %v44 = vld [vmem:[%s0 + $0xf0] sm:$0xff]
  %v45 = vld [vmem:[%s0 + $0xf8] sm:$0xff]
  %v46 = vld [vmem:[%s0 + $0x100] sm:$0xff]
  %v47 = vld [vmem:[%s0 + $0x108] sm:$0xff]
  %v48 = vld [vmem:[%s0 + $0x110] sm:$0xff]
  %v49 = vld [vmem:[%s0 + $0x118] sm:$0xff]
  %v50 = vld [vmem:[%s0 + $0x120] sm:$0xff]
  %v51 = vld [vmem:[%s0 + $0x128] sm:$0xff]
  %v52 = vld [vmem:[%s0 + $0x130] sm:$0xff]
  %v53 = vld [vmem:[%s0 + $0x138] sm:$0xff]
  %v54 = vld [vmem:[%s0 + $0x140] sm:$0xff]
  %v55 = vld [vmem:[%s0 + $0x148] sm:$0xff]
  %v56 = vld [vmem:[%s0 + $0x150] sm:$0xff]
  %v57 = vld [vmem:[%s0 + $0x158] sm:$0xff]
  %v58 = vld [vmem:[%s0 + $0x160] sm:$0xff]
  %v59 = vld [vmem:[%s0 + $0x168] sm:$0xff]
  %v60 = vld [vmem:[%s0 + $0x170] sm:$0xff]
  %v61 = vld [vmem:[%s0 + $0x178] sm:$0xff]
  %v62 = vld [vmem:[%s0 + $0x180] sm:$0xff]
  %v63 = vld [vmem:[%s0 + $0x188] sm:$0xff]
  %v64 = vld [vmem:[%s0 + $0x190] sm:$0xff]
  %v65 = vld [vmem:[%s0 + $0x198] sm:$0xff]
  %v66 = vld [vmem:[%s0 + $0x1a0] sm:$0xff]
  %v67 = vld [vmem:[%s0 + $0x1a8] sm:$0xff]
  %v68 = vld [vmem:[%s0 + $0x1b0] sm:$0xff]
  %v69 = vld [vmem:[%s0 + $0x1b8] sm:$0xff]
  %v70 = vld [vmem:[%s0 + $0x1c0] sm:$0xff]
  %v71 = vld [vmem:[%s0 + $0x1c8] sm:$0xff]
  %v72 = vld [vmem:[%s0 + $0x1d0] sm:$0xff]
  %v73 = vld [vmem:[%s0 + $0x1d8] sm:$0xff]
  %v74 = vld [vmem:[%s0 + $0x1e0] sm:$0xff]
  %v75 = vld [vmem:[%s0 + $0x1e8] sm:$0xff]
  %v76 = vld [vmem:[%s0 + $0x1f0] sm:$0xff]
  %v77 = vld [vmem:[%s0 + $0x1f8] sm:$0xff]
  %v78 = vld [vmem:[%s1] sm:$0xf]
  %v79 = vld [vmem:[%s1 + $0x4] sm:$0xf]
  %v80 = vld [vmem:[%s1 + $0x8] sm:$0xf]
  %v81 = vld [vmem:[%s1 + $0xc] sm:$0xf]
  %v82 = vld [vmem:[%s1 + $0x10] sm:$0xf]
  %v83 = vld [vmem:[%s1 + $0x14] sm:$0xf]
  %v84 = vld [vmem:[%s1 + $0x18] sm:$0xf]
  %v85 = vld [vmem:[%s1 + $0x1c] sm:$0xf]
  %v86 = vld [vmem:[%s1 + $0x20] sm:$0xf]
  %v87 = vld [vmem:[%s1 + $0x24] sm:$0xf]
  %v88 = vld [vmem:[%s1 + $0x28] sm:$0xf]
  %v89 = vld [vmem:[%s1 + $0x2c] sm:$0xf]
  %v90 = vld [vmem:[%s1 + $0x30] sm:$0xf]
  %v91 = vld [vmem:[%s1 + $0x34] sm:$0xf]
  %v92 = vld [vmem:[%s1 + $0x38] sm:$0xf]
  %v93 = vld [vmem:[%s1 + $0x3c] sm:$0xf]
  %v94 = vld [vmem:[%s1 + $0x40] sm:$0xf]
  %v95 = vld [vmem:[%s1 + $0x44] sm:$0xf]
  %v96 = vld [vmem:[%s1 + $0x48] sm:$0xf]
  %v97 = vld [vmem:[%s1 + $0x4c] sm:$0xf]
  %v98 = vld [vmem:[%s1 + $0x50] sm:$0xf]
  %v99 = vld [vmem:[%s1 + $0x54] sm:$0xf]
  %v100 = vld [vmem:[%s1 + $0x58] sm:$0xf]
  %v101 = vld [vmem:[%s1 + $0x5c] sm:$0xf]
  %v102 = vld [vmem:[%s1 + $0x60] sm:$0xf]
  %v103 = vld [vmem:[%s1 + $0x64] sm:$0xf]
  %v104 = vld [vmem:[%s1 + $0x68] sm:$0xf]
  %v105 = vld [vmem:[%s1 + $0x6c] sm:$0xf]
  %v106 = vld [vmem:[%s1 + $0x70] sm:$0xf]
  %v107 = vld [vmem:[%s1 + $0x74] sm:$0xf]
  %v108 = vld [vmem:[%s1 + $0x78] sm:$0xf]
  %v109 = vld [vmem:[%s1 + $0x7c] sm:$0xf]
  %v110 = vld [vmem:[%s1 + $0x80] sm:$0xf]
  %v111 = vld [vmem:[%s1 + $0x84] sm:$0xf]
  %v112 = vld [vmem:[%s1 + $0x88] sm:$0xf]
  %v113 = vld [vmem:[%s1 + $0x8c] sm:$0xf]
  %v114 = vld [vmem:[%s1 + $0x90] sm:$0xf]
  %v115 = vld [vmem:[%s1 + $0x94] sm:$0xf]
  %v116 = vld [vmem:[%s1 + $0x98] sm:$0xf]
  %v117 = vld [vmem:[%s1 + $0x9c] sm:$0xf]
  %v118 = vld [vmem:[%s1 + $0xa0] sm:$0xf]
  %v119 = vld [vmem:[%s1 + $0xa4] sm:$0xf]
  %v120 = vld [vmem:[%s1 + $0xa8] sm:$0xf]
  %v121 = vld [vmem:[%s1 + $0xac] sm:$0xf]
  %v122 = vld [vmem:[%s1 + $0xb0] sm:$0xf]
  %v123 = vld [vmem:[%s1 + $0xb4] sm:$0xf]
  %v124 = vld [vmem:[%s1 + $0xb8] sm:$0xf]
  %v125 = vld [vmem:[%s1 + $0xbc] sm:$0xf]
  %v126 = vld [vmem:[%s1 + $0xc0] sm:$0xf]
  %v127 = vld [vmem:[%s1 + $0xc4] sm:$0xf]
  %v128 = vld [vmem:[%s1 + $0xc8] sm:$0xf]
  %v129 = vld [vmem:[%s1 + $0xcc] sm:$0xf]
  %v130 = vld [vmem:[%s1 + $0xd0] sm:$0xf]
  %v131 = vld [vmem:[%s1 + $0xd4] sm:$0xf]
  %v132 = vld [vmem:[%s1 + $0xd8] sm:$0xf]
  %v133 = vld [vmem:[%s1 + $0xdc] sm:$0xf]
  %v134 = vld [vmem:[%s1 + $0xe0] sm:$0xf]
  %v135 = vld [vmem:[%s1 + $0xe4] sm:$0xf]
  %v136 = vld [vmem:[%s1 + $0xe8] sm:$0xf]
  %v137 = vld [vmem:[%s1 + $0xec] sm:$0xf]
  %v138 = vld [vmem:[%s1 + $0xf0] sm:$0xf]
  %v139 = vld [vmem:[%s1 + $0xf4] sm:$0xf]
  %v140 = vld [vmem:[%s1 + $0xf8] sm:$0xf]
  %v141 = vld [vmem:[%s1 + $0xfc] sm:$0xf]
  %v142 = vld [vmem:[%s1 + $0x100] sm:$0xf]
  %v143 = vld [vmem:[%s1 + $0x104] sm:$0xf]
  %v144 = vld [vmem:[%s1 + $0x108] sm:$0xf]
  %v145 = vld [vmem:[%s1 + $0x10c] sm:$0xf]
  %v146 = vld [vmem:[%s1 + $0x110] sm:$0xf]
  %v147 = vld [vmem:[%s1 + $0x114] sm:$0xf]
  %v148 = vld [vmem:[%s1 + $0x118] sm:$0xf]
  %v149 = vld [vmem:[%s1 + $0x11c] sm:$0xf]
  %v150 = vld [vmem:[%s1 + $0x120] sm:$0xf]
  %v151 = vld [vmem:[%s1 + $0x124] sm:$0xf]
  %v152 = vld [vmem:[%s1 + $0x128] sm:$0xf]
  %v153 = vld [vmem:[%s1 + $0x12c] sm:$0xf]
  %v154 = vld [vmem:[%s1 + $0x130] sm:$0xf]
  %v155 = vld [vmem:[%s1 + $0x134] sm:$0xf]
  %v156 = vld [vmem:[%s1 + $0x138] sm:$0xf]
  %v157 = vld [vmem:[%s1 + $0x13c] sm:$0xf]
  %v158 = vld [vmem:[%s1 + $0x140] sm:$0xf]
  %v159 = vld [vmem:[%s1 + $0x144] sm:$0xf]
  %v160 = vld [vmem:[%s1 + $0x148] sm:$0xf]
  %v161 = vld [vmem:[%s1 + $0x14c] sm:$0xf]
  %v162 = vld [vmem:[%s1 + $0x150] sm:$0xf]
  %v163 = vld [vmem:[%s1 + $0x154] sm:$0xf]
  %v164 = vld [vmem:[%s1 + $0x158] sm:$0xf]
  %v165 = vld [vmem:[%s1 + $0x15c] sm:$0xf]
  %v166 = vld [vmem:[%s1 + $0x160] sm:$0xf]
  %v167 = vld [vmem:[%s1 + $0x164] sm:$0xf]
  %v168 = vld [vmem:[%s1 + $0x168] sm:$0xf]
  %v169 = vld [vmem:[%s1 + $0x16c] sm:$0xf]
  %v170 = vld [vmem:[%s1 + $0x170] sm:$0xf]
  %v171 = vld [vmem:[%s1 + $0x174] sm:$0xf]
  %v172 = vld [vmem:[%s1 + $0x178] sm:$0xf]
  %v173 = vld [vmem:[%s1 + $0x17c] sm:$0xf]
  %v174 = vld [vmem:[%s1 + $0x180] sm:$0xf]
  %v175 = vld [vmem:[%s1 + $0x184] sm:$0xf]
  %v176 = vld [vmem:[%s1 + $0x188] sm:$0xf]
  %v177 = vld [vmem:[%s1 + $0x18c] sm:$0xf]
  %v178 = vld [vmem:[%s1 + $0x190] sm:$0xf]
  %v179 = vld [vmem:[%s1 + $0x194] sm:$0xf]
  %v180 = vld [vmem:[%s1 + $0x198] sm:$0xf]
  %v181 = vld [vmem:[%s1 + $0x19c] sm:$0xf]
  %v182 = vld [vmem:[%s1 + $0x1a0] sm:$0xf]
  %v183 = vld [vmem:[%s1 + $0x1a4] sm:$0xf]
  %v184 = vld [vmem:[%s1 + $0x1a8] sm:$0xf]
  %v185 = vld [vmem:[%s1 + $0x1ac] sm:$0xf]
  %v186 = vld [vmem:[%s1 + $0x1b0] sm:$0xf]
  %v187 = vld [vmem:[%s1 + $0x1b4] sm:$0xf]
  %v188 = vld [vmem:[%s1 + $0x1b8] sm:$0xf]
  %v189 = vld [vmem:[%s1 + $0x1bc] sm:$0xf]
  %v190 = vld [vmem:[%s1 + $0x1c0] sm:$0xf]
  %v191 = vld [vmem:[%s1 + $0x1c4] sm:$0xf]
  %v192 = vld [vmem:[%s1 + $0x1c8] sm:$0xf]
  %v193 = vld [vmem:[%s1 + $0x1cc] sm:$0xf]
  %v194 = vld [vmem:[%s1 + $0x1d0] sm:$0xf]
  %v195 = vld [vmem:[%s1 + $0x1d4] sm:$0xf]
  %v196 = vld [vmem:[%s1 + $0x1d8] sm:$0xf]
  %v197 = vld [vmem:[%s1 + $0x1dc] sm:$0xf]
  %v198 = vld [vmem:[%s1 + $0x1e0] sm:$0xf]
  %v199 = vld [vmem:[%s1 + $0x1e4] sm:$0xf]
  %v200 = vld [vmem:[%s1 + $0x1e8] sm:$0xf]
  %v201 = vld [vmem:[%s1 + $0x1ec] sm:$0xf]
  %v202 = vld [vmem:[%s1 + $0x1f0] sm:$0xf]
  %v203 = vld [vmem:[%s1 + $0x1f4] sm:$0xf]
  %v204 = vld [vmem:[%s1 + $0x1f8] sm:$0xf]
  %v205 = vld [vmem:[%s1 + $0x1fc] sm:$0xf]
  %v270 = vunpack.c.l.b16 %v14
  %v271 = vunpack.c.h.b16 %v14
  %v272 = vunpack.c.l.b16 %v15
  %v273 = vunpack.c.h.b16 %v15
  %v274 = vunpack.c.l.b16 %v16
  %v275 = vunpack.c.h.b16 %v16
  %v276 = vunpack.c.l.b16 %v17
  %v277 = vunpack.c.h.b16 %v17
  %v278 = vunpack.c.l.b16 %v18
  %v279 = vunpack.c.h.b16 %v18
  %v280 = vunpack.c.l.b16 %v19
  %v281 = vunpack.c.h.b16 %v19
  %v282 = vunpack.c.l.b16 %v20
  %v283 = vunpack.c.h.b16 %v20
  %v284 = vunpack.c.l.b16 %v21
  %v285 = vunpack.c.h.b16 %v21
  %v286 = vunpack.c.l.b16 %v22
  %v287 = vunpack.c.h.b16 %v22
  %v288 = vunpack.c.l.b16 %v23
  %v289 = vunpack.c.h.b16 %v23
  %v290 = vunpack.c.l.b16 %v24
  %v291 = vunpack.c.h.b16 %v24
  %v292 = vunpack.c.l.b16 %v25
  %v293 = vunpack.c.h.b16 %v25
  %v294 = vunpack.c.l.b16 %v26
  %v295 = vunpack.c.h.b16 %v26
  %v296 = vunpack.c.l.b16 %v27
  %v297 = vunpack.c.h.b16 %v27
  %v298 = vunpack.c.l.b16 %v28
  %v299 = vunpack.c.h.b16 %v28
  %v300 = vunpack.c.l.b16 %v29
  %v301 = vunpack.c.h.b16 %v29
  %v302 = vunpack.c.l.b16 %v30
  %v303 = vunpack.c.h.b16 %v30
  %v304 = vunpack.c.l.b16 %v31
  %v305 = vunpack.c.h.b16 %v31
  %v306 = vunpack.c.l.b16 %v32
  %v307 = vunpack.c.h.b16 %v32
  %v308 = vunpack.c.l.b16 %v33
  %v309 = vunpack.c.h.b16 %v33
  %v310 = vunpack.c.l.b16 %v34
  %v311 = vunpack.c.h.b16 %v34
  %v312 = vunpack.c.l.b16 %v35
  %v313 = vunpack.c.h.b16 %v35
  %v314 = vunpack.c.l.b16 %v36
  %v315 = vunpack.c.h.b16 %v36
  %v316 = vunpack.c.l.b16 %v37
  %v317 = vunpack.c.h.b16 %v37
  %v318 = vunpack.c.l.b16 %v38
  %v319 = vunpack.c.h.b16 %v38
  %v320 = vunpack.c.l.b16 %v39
  %v321 = vunpack.c.h.b16 %v39
  %v322 = vunpack.c.l.b16 %v40
  %v323 = vunpack.c.h.b16 %v40
  %v324 = vunpack.c.l.b16 %v41
  %v325 = vunpack.c.h.b16 %v41
  %v326 = vunpack.c.l.b16 %v42
  %v327 = vunpack.c.h.b16 %v42
  %v328 = vunpack.c.l.b16 %v43
  %v329 = vunpack.c.h.b16 %v43
  %v330 = vunpack.c.l.b16 %v44
  %v331 = vunpack.c.h.b16 %v44
  %v332 = vunpack.c.l.b16 %v45
  %v333 = vunpack.c.h.b16 %v45
  %v334 = vunpack.c.l.b16 %v46
  %v335 = vunpack.c.h.b16 %v46
  %v336 = vunpack.c.l.b16 %v47
  %v337 = vunpack.c.h.b16 %v47
  %v338 = vunpack.c.l.b16 %v48
  %v339 = vunpack.c.h.b16 %v48
  %v340 = vunpack.c.l.b16 %v49
  %v341 = vunpack.c.h.b16 %v49
  %v342 = vunpack.c.l.b16 %v50
  %v343 = vunpack.c.h.b16 %v50
  %v344 = vunpack.c.l.b16 %v51
  %v345 = vunpack.c.h.b16 %v51
  %v346 = vunpack.c.l.b16 %v52
  %v347 = vunpack.c.h.b16 %v52
  %v348 = vunpack.c.l.b16 %v53
  %v349 = vunpack.c.h.b16 %v53
  %v350 = vunpack.c.l.b16 %v54
  %v351 = vunpack.c.h.b16 %v54
  %v352 = vunpack.c.l.b16 %v55
  %v353 = vunpack.c.h.b16 %v55
  %v354 = vunpack.c.l.b16 %v56
  %v355 = vunpack.c.h.b16 %v56
  %v356 = vunpack.c.l.b16 %v57
  %v357 = vunpack.c.h.b16 %v57
  %v358 = vunpack.c.l.b16 %v58
  %v359 = vunpack.c.h.b16 %v58
  %v360 = vunpack.c.l.b16 %v59
  %v361 = vunpack.c.h.b16 %v59
  %v362 = vunpack.c.l.b16 %v60
  %v363 = vunpack.c.h.b16 %v60
  %v364 = vunpack.c.l.b16 %v61
  %v365 = vunpack.c.h.b16 %v61
  %v366 = vunpack.c.l.b16 %v62
  %v367 = vunpack.c.h.b16 %v62
  %v368 = vunpack.c.l.b16 %v63
  %v369 = vunpack.c.h.b16 %v63
  %v370 = vunpack.c.l.b16 %v64
  %v371 = vunpack.c.h.b16 %v64
  %v372 = vunpack.c.l.b16 %v65
  %v373 = vunpack.c.h.b16 %v65
  %v374 = vunpack.c.l.b16 %v66
  %v375 = vunpack.c.h.b16 %v66
  %v376 = vunpack.c.l.b16 %v67
  %v377 = vunpack.c.h.b16 %v67
  %v378 = vunpack.c.l.b16 %v68
  %v379 = vunpack.c.h.b16 %v68
  %v380 = vunpack.c.l.b16 %v69
  %v381 = vunpack.c.h.b16 %v69
  %v382 = vunpack.c.l.b16 %v70
  %v383 = vunpack.c.h.b16 %v70
  %v384 = vunpack.c.l.b16 %v71
  %v385 = vunpack.c.h.b16 %v71
  %v386 = vunpack.c.l.b16 %v72
  %v387 = vunpack.c.h.b16 %v72
  %v388 = vunpack.c.l.b16 %v73
  %v389 = vunpack.c.h.b16 %v73
  %v390 = vunpack.c.l.b16 %v74
  %v391 = vunpack.c.h.b16 %v74
  %v392 = vunpack.c.l.b16 %v75
  %v393 = vunpack.c.h.b16 %v75
  %v394 = vunpack.c.l.b16 %v76
  %v395 = vunpack.c.h.b16 %v76
  %v396 = vunpack.c.l.b16 %v77
  %v397 = vunpack.c.h.b16 %v77
  %v398 = vpack.c.b16 %v278, %v270
  %v399 = vpack.c.b16 %v279, %v271
  %v400 = vpack.c.b16 %v280, %v272
  %v401 = vpack.c.b16 %v281, %v273
  %v402 = vpack.c.b16 %v282, %v274
  %v403 = vpack.c.b16 %v283, %v275
  %v404 = vpack.c.b16 %v284, %v276
  %v405 = vpack.c.b16 %v285, %v277
  %v406 = vpack.c.b16 %v294, %v286
  %v407 = vpack.c.b16 %v295, %v287
  %v408 = vpack.c.b16 %v296, %v288
  %v409 = vpack.c.b16 %v297, %v289
  %v410 = vpack.c.b16 %v298, %v290
  %v411 = vpack.c.b16 %v299, %v291
  %v412 = vpack.c.b16 %v300, %v292
  %v413 = vpack.c.b16 %v301, %v293
  %v414 = vpack.c.b16 %v310, %v302
  %v415 = vpack.c.b16 %v311, %v303
  %v416 = vpack.c.b16 %v312, %v304
  %v417 = vpack.c.b16 %v313, %v305
  %v418 = vpack.c.b16 %v314, %v306
  %v419 = vpack.c.b16 %v315, %v307
  %v420 = vpack.c.b16 %v316, %v308
  %v421 = vpack.c.b16 %v317, %v309
  %v422 = vpack.c.b16 %v326, %v318
  %v423 = vpack.c.b16 %v327, %v319
  %v424 = vpack.c.b16 %v328, %v320
  %v425 = vpack.c.b16 %v329, %v321
  %v426 = vpack.c.b16 %v330, %v322
  %v427 = vpack.c.b16 %v331, %v323
  %v428 = vpack.c.b16 %v332, %v324
  %v429 = vpack.c.b16 %v333, %v325
  %v430 = vpack.c.b16 %v342, %v334
  %v431 = vpack.c.b16 %v343, %v335
  %v432 = vpack.c.b16 %v344, %v336
  %v433 = vpack.c.b16 %v345, %v337
  %v434 = vpack.c.b16 %v346, %v338
  %v435 = vpack.c.b16 %v347, %v339
  %v436 = vpack.c.b16 %v348, %v340
  %v437 = vpack.c.b16 %v349, %v341
  %v438 = vpack.c.b16 %v358, %v350
  %v439 = vpack.c.b16 %v359, %v351
  %v440 = vpack.c.b16 %v360, %v352
  %v441 = vpack.c.b16 %v361, %v353
  %v442 = vpack.c.b16 %v362, %v354
  %v443 = vpack.c.b16 %v363, %v355
  %v444 = vpack.c.b16 %v364, %v356
  %v445 = vpack.c.b16 %v365, %v357
  %v446 = vpack.c.b16 %v374, %v366
  %v447 = vpack.c.b16 %v375, %v367
  %v448 = vpack.c.b16 %v376, %v368
  %v449 = vpack.c.b16 %v377, %v369
  %v450 = vpack.c.b16 %v378, %v370
  %v451 = vpack.c.b16 %v379, %v371
  %v452 = vpack.c.b16 %v380, %v372
  %v453 = vpack.c.b16 %v381, %v373
  %v454 = vpack.c.b16 %v390, %v382
  %v455 = vpack.c.b16 %v391, %v383
  %v456 = vpack.c.b16 %v392, %v384
  %v457 = vpack.c.b16 %v393, %v385
  %v458 = vpack.c.b16 %v394, %v386
  %v459 = vpack.c.b16 %v395, %v387
  %v460 = vpack.c.b16 %v396, %v388
  %v461 = vpack.c.b16 %v397, %v389
  %v654 = vunpack.c.l.b16 %v78
  %v655 = vunpack.c.l.b16 %v79
  %v656 = vunpack.c.l.b16 %v80
  %v657 = vunpack.c.l.b16 %v81
  %v658 = vunpack.c.l.b16 %v82
  %v659 = vunpack.c.l.b16 %v83
  %v660 = vunpack.c.l.b16 %v84
  %v661 = vunpack.c.l.b16 %v85
  %v662 = vunpack.c.l.b16 %v86
  %v663 = vunpack.c.l.b16 %v87
  %v664 = vunpack.c.l.b16 %v88
  %v665 = vunpack.c.l.b16 %v89
  %v666 = vunpack.c.l.b16 %v90
  %v667 = vunpack.c.l.b16 %v91
  %v668 = vunpack.c.l.b16 %v92
  %v669 = vunpack.c.l.b16 %v93
  %v670 = vunpack.c.l.b16 %v94
  %v671 = vunpack.c.l.b16 %v95
  %v672 = vunpack.c.l.b16 %v96
  %v673 = vunpack.c.l.b16 %v97
  %v674 = vunpack.c.l.b16 %v98
  %v675 = vunpack.c.l.b16 %v99
  %v676 = vunpack.c.l.b16 %v100
  %v677 = vunpack.c.l.b16 %v101
  %v678 = vunpack.c.l.b16 %v102
  %v679 = vunpack.c.l.b16 %v103
  %v680 = vunpack.c.l.b16 %v104
  %v681 = vunpack.c.l.b16 %v105
  %v682 = vunpack.c.l.b16 %v106
  %v683 = vunpack.c.l.b16 %v107
  %v684 = vunpack.c.l.b16 %v108
  %v685 = vunpack.c.l.b16 %v109
  %v686 = vunpack.c.l.b16 %v110
  %v687 = vunpack.c.l.b16 %v111
  %v688 = vunpack.c.l.b16 %v112
  %v689 = vunpack.c.l.b16 %v113
  %v690 = vunpack.c.l.b16 %v114
  %v691 = vunpack.c.l.b16 %v115
  %v692 = vunpack.c.l.b16 %v116
  %v693 = vunpack.c.l.b16 %v117
  %v694 = vunpack.c.l.b16 %v118
  %v695 = vunpack.c.l.b16 %v119
  %v696 = vunpack.c.l.b16 %v120
  %v697 = vunpack.c.l.b16 %v121
  %v698 = vunpack.c.l.b16 %v122
  %v699 = vunpack.c.l.b16 %v123
  %v700 = vunpack.c.l.b16 %v124
  %v701 = vunpack.c.l.b16 %v125
  %v702 = vunpack.c.l.b16 %v126
  %v703 = vunpack.c.l.b16 %v127
  %v704 = vunpack.c.l.b16 %v128
  %v705 = vunpack.c.l.b16 %v129
  %v706 = vunpack.c.l.b16 %v130
  %v707 = vunpack.c.l.b16 %v131
  %v708 = vunpack.c.l.b16 %v132
  %v709 = vunpack.c.l.b16 %v133
  %v710 = vunpack.c.l.b16 %v134
  %v711 = vunpack.c.l.b16 %v135
  %v712 = vunpack.c.l.b16 %v136
  %v713 = vunpack.c.l.b16 %v137
  %v714 = vunpack.c.l.b16 %v138
  %v715 = vunpack.c.l.b16 %v139
  %v716 = vunpack.c.l.b16 %v140
  %v717 = vunpack.c.l.b16 %v141
  %v718 = vunpack.c.l.b16 %v142
  %v719 = vunpack.c.l.b16 %v143
  %v720 = vunpack.c.l.b16 %v144
  %v721 = vunpack.c.l.b16 %v145
  %v722 = vunpack.c.l.b16 %v146
  %v723 = vunpack.c.l.b16 %v147
  %v724 = vunpack.c.l.b16 %v148
  %v725 = vunpack.c.l.b16 %v149
  %v726 = vunpack.c.l.b16 %v150
  %v727 = vunpack.c.l.b16 %v151
  %v728 = vunpack.c.l.b16 %v152
  %v729 = vunpack.c.l.b16 %v153
  %v730 = vunpack.c.l.b16 %v154
  %v731 = vunpack.c.l.b16 %v155
  %v732 = vunpack.c.l.b16 %v156
  %v733 = vunpack.c.l.b16 %v157
  %v734 = vunpack.c.l.b16 %v158
  %v735 = vunpack.c.l.b16 %v159
  %v736 = vunpack.c.l.b16 %v160
  %v737 = vunpack.c.l.b16 %v161
  %v738 = vunpack.c.l.b16 %v162
  %v739 = vunpack.c.l.b16 %v163
  %v740 = vunpack.c.l.b16 %v164
  %v741 = vunpack.c.l.b16 %v165
  %v742 = vunpack.c.l.b16 %v166
  %v743 = vunpack.c.l.b16 %v167
  %v744 = vunpack.c.l.b16 %v168
  %v745 = vunpack.c.l.b16 %v169
  %v746 = vunpack.c.l.b16 %v170
  %v747 = vunpack.c.l.b16 %v171
  %v748 = vunpack.c.l.b16 %v172
  %v749 = vunpack.c.l.b16 %v173
  %v750 = vunpack.c.l.b16 %v174
  %v751 = vunpack.c.l.b16 %v175
  %v752 = vunpack.c.l.b16 %v176
  %v753 = vunpack.c.l.b16 %v177
  %v754 = vunpack.c.l.b16 %v178
  %v755 = vunpack.c.l.b16 %v179
  %v756 = vunpack.c.l.b16 %v180
  %v757 = vunpack.c.l.b16 %v181
  %v758 = vunpack.c.l.b16 %v182
  %v759 = vunpack.c.l.b16 %v183
  %v760 = vunpack.c.l.b16 %v184
  %v761 = vunpack.c.l.b16 %v185
  %v762 = vunpack.c.l.b16 %v186
  %v763 = vunpack.c.l.b16 %v187
  %v764 = vunpack.c.l.b16 %v188
  %v765 = vunpack.c.l.b16 %v189
  %v766 = vunpack.c.l.b16 %v190
  %v767 = vunpack.c.l.b16 %v191
  %v768 = vunpack.c.l.b16 %v192
  %v769 = vunpack.c.l.b16 %v193
  %v770 = vunpack.c.l.b16 %v194
  %v771 = vunpack.c.l.b16 %v195
  %v772 = vunpack.c.l.b16 %v196
  %v773 = vunpack.c.l.b16 %v197
  %v774 = vunpack.c.l.b16 %v198
  %v775 = vunpack.c.l.b16 %v199
  %v776 = vunpack.c.l.b16 %v200
  %v777 = vunpack.c.l.b16 %v201
  %v778 = vunpack.c.l.b16 %v202
  %v779 = vunpack.c.l.b16 %v203
  %v780 = vunpack.c.l.b16 %v204
  %v781 = vunpack.c.l.b16 %v205
  %v782 = vpack.c.b16 %v655, %v654
  %v783 = vpack.c.b16 %v657, %v656
  %v784 = vpack.c.b16 %v659, %v658
  %v785 = vpack.c.b16 %v661, %v660
  %v786 = vpack.c.b16 %v663, %v662
  %v787 = vpack.c.b16 %v665, %v664
  %v788 = vpack.c.b16 %v667, %v666
  %v789 = vpack.c.b16 %v669, %v668
  %v790 = vpack.c.b16 %v671, %v670
  %v791 = vpack.c.b16 %v673, %v672
  %v792 = vpack.c.b16 %v675, %v674
  %v793 = vpack.c.b16 %v677, %v676
  %v794 = vpack.c.b16 %v679, %v678
  %v795 = vpack.c.b16 %v681, %v680
  %v796 = vpack.c.b16 %v683, %v682
  %v797 = vpack.c.b16 %v685, %v684
  %v798 = vpack.c.b16 %v687, %v686
  %v799 = vpack.c.b16 %v689, %v688
  %v800 = vpack.c.b16 %v691, %v690
  %v801 = vpack.c.b16 %v693, %v692
  %v802 = vpack.c.b16 %v695, %v694
  %v803 = vpack.c.b16 %v697, %v696
  %v804 = vpack.c.b16 %v699, %v698
  %v805 = vpack.c.b16 %v701, %v700
  %v806 = vpack.c.b16 %v703, %v702
  %v807 = vpack.c.b16 %v705, %v704
  %v808 = vpack.c.b16 %v707, %v706
  %v809 = vpack.c.b16 %v709, %v708
  %v810 = vpack.c.b16 %v711, %v710
  %v811 = vpack.c.b16 %v713, %v712
  %v812 = vpack.c.b16 %v715, %v714
  %v813 = vpack.c.b16 %v717, %v716
  %v814 = vpack.c.b16 %v719, %v718
  %v815 = vpack.c.b16 %v721, %v720
  %v816 = vpack.c.b16 %v723, %v722
  %v817 = vpack.c.b16 %v725, %v724
  %v818 = vpack.c.b16 %v727, %v726
  %v819 = vpack.c.b16 %v729, %v728
  %v820 = vpack.c.b16 %v731, %v730
  %v821 = vpack.c.b16 %v733, %v732
  %v822 = vpack.c.b16 %v735, %v734
  %v823 = vpack.c.b16 %v737, %v736
  %v824 = vpack.c.b16 %v739, %v738
  %v825 = vpack.c.b16 %v741, %v740
  %v826 = vpack.c.b16 %v743, %v742
  %v827 = vpack.c.b16 %v745, %v744
  %v828 = vpack.c.b16 %v747, %v746
  %v829 = vpack.c.b16 %v749, %v748
  %v830 = vpack.c.b16 %v751, %v750
  %v831 = vpack.c.b16 %v753, %v752
  %v832 = vpack.c.b16 %v755, %v754
  %v833 = vpack.c.b16 %v757, %v756
  %v834 = vpack.c.b16 %v759, %v758
  %v835 = vpack.c.b16 %v761, %v760
  %v836 = vpack.c.b16 %v763, %v762
  %v837 = vpack.c.b16 %v765, %v764
  %v838 = vpack.c.b16 %v767, %v766
  %v839 = vpack.c.b16 %v769, %v768
  %v840 = vpack.c.b16 %v771, %v770
  %v841 = vpack.c.b16 %v773, %v772
  %v842 = vpack.c.b16 %v775, %v774
  %v843 = vpack.c.b16 %v777, %v776
  %v844 = vpack.c.b16 %v779, %v778
  %v845 = vpack.c.b16 %v781, %v780
  %910 = vmatpush.bf16.msra.mxu0 %v789
  %911 = vmatpush.bf16.msra.mxu0 %v788
  %912 = vmatpush.bf16.msra.mxu0 %v787
  %913 = vmatpush.bf16.msra.mxu0 %v786
  %914 = vmatpush.bf16.msra.mxu0 %v785
  %915 = vmatpush.bf16.msra.mxu0 %v784
  %916 = vmatpush.bf16.msra.mxu0 %v783
  %917 = vmatpush.bf16.msra.mxu0 %v782
  %918 = vmatmul.bf16.gmra.mxu0 %v398
  %v919 = vpop.f32.mrf.mxu0
  %v920 = vadd.f32 0.0, %v919
  %v921 = vpop.f32.mrf.mxu0
  %v922 = vadd.f32 0.0, %v921
  %923 = vmatmul.bf16.gmra.mxu0 %v406
  %v924 = vpop.f32.mrf.mxu0
  %v925 = vadd.f32 0.0, %v924
  %v926 = vpop.f32.mrf.mxu0
  %v927 = vadd.f32 0.0, %v926
  %928 = vmatmul.bf16.gmra.mxu0 %v414
  %v929 = vpop.f32.mrf.mxu0
  %v930 = vadd.f32 0.0, %v929
  %v931 = vpop.f32.mrf.mxu0
  %v932 = vadd.f32 0.0, %v931
  %933 = vmatmul.bf16.gmra.mxu0 %v422
  %v934 = vpop.f32.mrf.mxu0
  %v935 = vadd.f32 0.0, %v934
  %v936 = vpop.f32.mrf.mxu0
  %v937 = vadd.f32 0.0, %v936
  %938 = vmatmul.bf16.gmra.mxu0 %v430
  %v939 = vpop.f32.mrf.mxu0
  %v940 = vadd.f32 0.0, %v939
  %v941 = vpop.f32.mrf.mxu0
  %v942 = vadd.f32 0.0, %v941
  %943 = vmatmul.bf16.gmra.mxu0 %v438
  %v944 = vpop.f32.mrf.mxu0
  %v945 = vadd.f32 0.0, %v944
  %v946 = vpop.f32.mrf.mxu0
  %v947 = vadd.f32 0.0, %v946
  %948 = vmatmul.bf16.gmra.mxu0 %v446
  %v949 = vpop.f32.mrf.mxu0
  %v950 = vadd.f32 0.0, %v949
  %v951 = vpop.f32.mrf.mxu0
  %v952 = vadd.f32 0.0, %v951
  %953 = vmatmul.bf16.gmra.mxu0 %v454
  %v954 = vpop.f32.mrf.mxu0
  %v955 = vadd.f32 0.0, %v954
  %v956 = vpop.f32.mrf.mxu0
  %v957 = vadd.f32 0.0, %v956
  %958 = vdwg.mxu0
  %959 = vmatpush.bf16.msra.mxu0 %v797
  %960 = vmatpush.bf16.msra.mxu0 %v796
  %961 = vmatpush.bf16.msra.mxu0 %v795
  %962 = vmatpush.bf16.msra.mxu0 %v794
  %963 = vmatpush.bf16.msra.mxu0 %v793
  %964 = vmatpush.bf16.msra.mxu0 %v792
  %965 = vmatpush.bf16.msra.mxu0 %v791
  %966 = vmatpush.bf16.msra.mxu0 %v790
  %967 = vmatmul.bf16.gmra.mxu0 %v399
  %v968 = vpop.f32.mrf.mxu0
  %v969 = vadd.f32 %v920, %v968
  %v970 = vpop.f32.mrf.mxu0
  %v971 = vadd.f32 %v922, %v970
  %972 = vmatmul.bf16.gmra.mxu0 %v407
  %v973 = vpop.f32.mrf.mxu0
  %v974 = vadd.f32 %v925, %v973
  %v975 = vpop.f32.mrf.mxu0
  %v976 = vadd.f32 %v927, %v975
  %977 = vmatmul.bf16.gmra.mxu0 %v415
  %v978 = vpop.f32.mrf.mxu0
  %v979 = vadd.f32 %v930, %v978
  %v980 = vpop.f32.mrf.mxu0
  %v981 = vadd.f32 %v932, %v980
  %982 = vmatmul.bf16.gmra.mxu0 %v423
  %v983 = vpop.f32.mrf.mxu0
  %v984 = vadd.f32 %v935, %v983
  %v985 = vpop.f32.mrf.mxu0
  %v986 = vadd.f32 %v937, %v985
  %987 = vmatmul.bf16.gmra.mxu0 %v431
  %v988 = vpop.f32.mrf.mxu0
  %v989 = vadd.f32 %v940, %v988
  %v990 = vpop.f32.mrf.mxu0
  %v991 = vadd.f32 %v942, %v990
  %992 = vmatmul.bf16.gmra.mxu0 %v439
  %v993 = vpop.f32.mrf.mxu0
  %v994 = vadd.f32 %v945, %v993
  %v995 = vpop.f32.mrf.mxu0
  %v996 = vadd.f32 %v947, %v995
  %997 = vmatmul.bf16.gmra.mxu0 %v447
  %v998 = vpop.f32.mrf.mxu0
  %v999 = vadd.f32 %v950, %v998
  %v1000 = vpop.f32.mrf.mxu0
  %v1001 = vadd.f32 %v952, %v1000
  %1002 = vmatmul.bf16.gmra.mxu0 %v455
  %v1003 = vpop.f32.mrf.mxu0
  %v1004 = vadd.f32 %v955, %v1003
  %v1005 = vpop.f32.mrf.mxu0
  %v1006 = vadd.f32 %v957, %v1005
  %1007 = vdwg.mxu0
  %1008 = vmatpush.bf16.msra.mxu0 %v805
  %1009 = vmatpush.bf16.msra.mxu0 %v804
  %1010 = vmatpush.bf16.msra.mxu0 %v803
  %1011 = vmatpush.bf16.msra.mxu0 %v802
  %1012 = vmatpush.bf16.msra.mxu0 %v801
  %1013 = vmatpush.bf16.msra.mxu0 %v800
  %1014 = vmatpush.bf16.msra.mxu0 %v799
  %1015 = vmatpush.bf16.msra.mxu0 %v798
  %1016 = vmatmul.bf16.gmra.mxu0 %v400
  %v1017 = vpop.f32.mrf.mxu0
  %v1018 = vadd.f32 %v969, %v1017
  %v1019 = vpop.f32.mrf.mxu0
  %v1020 = vadd.f32 %v971, %v1019
  %1021 = vmatmul.bf16.gmra.mxu0 %v408
  %v1022 = vpop.f32.mrf.mxu0
  %v1023 = vadd.f32 %v974, %v1022
  %v1024 = vpop.f32.mrf.mxu0
  %v1025 = vadd.f32 %v976, %v1024
  %1026 = vmatmul.bf16.gmra.mxu0 %v416
  %v1027 = vpop.f32.mrf.mxu0
  %v1028 = vadd.f32 %v979, %v1027
  %v1029 = vpop.f32.mrf.mxu0
  %v1030 = vadd.f32 %v981, %v1029
  %1031 = vmatmul.bf16.gmra.mxu0 %v424
  %v1032 = vpop.f32.mrf.mxu0
  %v1033 = vadd.f32 %v984, %v1032
  %v1034 = vpop.f32.mrf.mxu0
  %v1035 = vadd.f32 %v986, %v1034
  %1036 = vmatmul.bf16.gmra.mxu0 %v432
  %v1037 = vpop.f32.mrf.mxu0
  %v1038 = vadd.f32 %v989, %v1037
  %v1039 = vpop.f32.mrf.mxu0
  %v1040 = vadd.f32 %v991, %v1039
  %1041 = vmatmul.bf16.gmra.mxu0 %v440
  %v1042 = vpop.f32.mrf.mxu0
  %v1043 = vadd.f32 %v994, %v1042
  %v1044 = vpop.f32.mrf.mxu0
  %v1045 = vadd.f32 %v996, %v1044
  %1046 = vmatmul.bf16.gmra.mxu0 %v448
  %v1047 = vpop.f32.mrf.mxu0
  %v1048 = vadd.f32 %v999, %v1047
  %v1049 = vpop.f32.mrf.mxu0
  %v1050 = vadd.f32 %v1001, %v1049
  %1051 = vmatmul.bf16.gmra.mxu0 %v456
  %v1052 = vpop.f32.mrf.mxu0
  %v1053 = vadd.f32 %v1004, %v1052
  %v1054 = vpop.f32.mrf.mxu0
  %v1055 = vadd.f32 %v1006, %v1054
  %1056 = vdwg.mxu0
  %1057 = vmatpush.bf16.msra.mxu0 %v813
  %1058 = vmatpush.bf16.msra.mxu0 %v812
  %1059 = vmatpush.bf16.msra.mxu0 %v811
  %1060 = vmatpush.bf16.msra.mxu0 %v810
  %1061 = vmatpush.bf16.msra.mxu0 %v809
  %1062 = vmatpush.bf16.msra.mxu0 %v808
  %1063 = vmatpush.bf16.msra.mxu0 %v807
  %1064 = vmatpush.bf16.msra.mxu0 %v806
  %1065 = vmatmul.bf16.gmra.mxu0 %v401
  %v1066 = vpop.f32.mrf.mxu0
  %v1067 = vadd.f32 %v1018, %v1066
  %v1068 = vpop.f32.mrf.mxu0
  %v1069 = vadd.f32 %v1020, %v1068
  %1070 = vmatmul.bf16.gmra.mxu0 %v409
  %v1071 = vpop.f32.mrf.mxu0
  %v1072 = vadd.f32 %v1023, %v1071
  %v1073 = vpop.f32.mrf.mxu0
  %v1074 = vadd.f32 %v1025, %v1073
  %1075 = vmatmul.bf16.gmra.mxu0 %v417
  %v1076 = vpop.f32.mrf.mxu0
  %v1077 = vadd.f32 %v1028, %v1076
  %v1078 = vpop.f32.mrf.mxu0
  %v1079 = vadd.f32 %v1030, %v1078
  %1080 = vmatmul.bf16.gmra.mxu0 %v425
  %v1081 = vpop.f32.mrf.mxu0
  %v1082 = vadd.f32 %v1033, %v1081
  %v1083 = vpop.f32.mrf.mxu0
  %v1084 = vadd.f32 %v1035, %v1083
  %1085 = vmatmul.bf16.gmra.mxu0 %v433
  %v1086 = vpop.f32.mrf.mxu0
  %v1087 = vadd.f32 %v1038, %v1086
  %v1088 = vpop.f32.mrf.mxu0
  %v1089 = vadd.f32 %v1040, %v1088
  %1090 = vmatmul.bf16.gmra.mxu0 %v441
  %v1091 = vpop.f32.mrf.mxu0
  %v1092 = vadd.f32 %v1043, %v1091
  %v1093 = vpop.f32.mrf.mxu0
  %v1094 = vadd.f32 %v1045, %v1093
  %1095 = vmatmul.bf16.gmra.mxu0 %v449
  %v1096 = vpop.f32.mrf.mxu0
  %v1097 = vadd.f32 %v1048, %v1096
  %v1098 = vpop.f32.mrf.mxu0
  %v1099 = vadd.f32 %v1050, %v1098
  %1100 = vmatmul.bf16.gmra.mxu0 %v457
  %v1101 = vpop.f32.mrf.mxu0
  %v1102 = vadd.f32 %v1053, %v1101
  %v1103 = vpop.f32.mrf.mxu0
  %v1104 = vadd.f32 %v1055, %v1103
  %1105 = vdwg.mxu0
  %1106 = vmatpush.bf16.msra.mxu0 %v821
  %1107 = vmatpush.bf16.msra.mxu0 %v820
  %1108 = vmatpush.bf16.msra.mxu0 %v819
  %1109 = vmatpush.bf16.msra.mxu0 %v818
  %1110 = vmatpush.bf16.msra.mxu0 %v817
  %1111 = vmatpush.bf16.msra.mxu0 %v816
  %1112 = vmatpush.bf16.msra.mxu0 %v815
  %1113 = vmatpush.bf16.msra.mxu0 %v814
  %1114 = vmatmul.bf16.gmra.mxu0 %v402
  %v1115 = vpop.f32.mrf.mxu0
  %v1116 = vadd.f32 %v1067, %v1115
  %v1117 = vpop.f32.mrf.mxu0
  %v1118 = vadd.f32 %v1069, %v1117
  %1119 = vmatmul.bf16.gmra.mxu0 %v410
  %v1120 = vpop.f32.mrf.mxu0
  %v1121 = vadd.f32 %v1072, %v1120
  %v1122 = vpop.f32.mrf.mxu0
  %v1123 = vadd.f32 %v1074, %v1122
  %1124 = vmatmul.bf16.gmra.mxu0 %v418
  %v1125 = vpop.f32.mrf.mxu0
  %v1126 = vadd.f32 %v1077, %v1125
  %v1127 = vpop.f32.mrf.mxu0
  %v1128 = vadd.f32 %v1079, %v1127
  %1129 = vmatmul.bf16.gmra.mxu0 %v426
  %v1130 = vpop.f32.mrf.mxu0
  %v1131 = vadd.f32 %v1082, %v1130
  %v1132 = vpop.f32.mrf.mxu0
  %v1133 = vadd.f32 %v1084, %v1132
  %1134 = vmatmul.bf16.gmra.mxu0 %v434
  %v1135 = vpop.f32.mrf.mxu0
  %v1136 = vadd.f32 %v1087, %v1135
  %v1137 = vpop.f32.mrf.mxu0
  %v1138 = vadd.f32 %v1089, %v1137
  %1139 = vmatmul.bf16.gmra.mxu0 %v442
  %v1140 = vpop.f32.mrf.mxu0
  %v1141 = vadd.f32 %v1092, %v1140
  %v1142 = vpop.f32.mrf.mxu0
  %v1143 = vadd.f32 %v1094, %v1142
  %1144 = vmatmul.bf16.gmra.mxu0 %v450
  %v1145 = vpop.f32.mrf.mxu0
  %v1146 = vadd.f32 %v1097, %v1145
  %v1147 = vpop.f32.mrf.mxu0
  %v1148 = vadd.f32 %v1099, %v1147
  %1149 = vmatmul.bf16.gmra.mxu0 %v458
  %v1150 = vpop.f32.mrf.mxu0
  %v1151 = vadd.f32 %v1102, %v1150
  %v1152 = vpop.f32.mrf.mxu0
  %v1153 = vadd.f32 %v1104, %v1152
  %1154 = vdwg.mxu0
  %1155 = vmatpush.bf16.msra.mxu0 %v829
  %1156 = vmatpush.bf16.msra.mxu0 %v828
  %1157 = vmatpush.bf16.msra.mxu0 %v827
  %1158 = vmatpush.bf16.msra.mxu0 %v826
  %1159 = vmatpush.bf16.msra.mxu0 %v825
  %1160 = vmatpush.bf16.msra.mxu0 %v824
  %1161 = vmatpush.bf16.msra.mxu0 %v823
  %1162 = vmatpush.bf16.msra.mxu0 %v822
  %1163 = vmatmul.bf16.gmra.mxu0 %v403
  %v1164 = vpop.f32.mrf.mxu0
  %v1165 = vadd.f32 %v1116, %v1164
  %v1166 = vpop.f32.mrf.mxu0
  %v1167 = vadd.f32 %v1118, %v1166
  %1168 = vmatmul.bf16.gmra.mxu0 %v411
  %v1169 = vpop.f32.mrf.mxu0
  %v1170 = vadd.f32 %v1121, %v1169
  %v1171 = vpop.f32.mrf.mxu0
  %v1172 = vadd.f32 %v1123, %v1171
  %1173 = vmatmul.bf16.gmra.mxu0 %v419
  %v1174 = vpop.f32.mrf.mxu0
  %v1175 = vadd.f32 %v1126, %v1174
  %v1176 = vpop.f32.mrf.mxu0
  %v1177 = vadd.f32 %v1128, %v1176
  %1178 = vmatmul.bf16.gmra.mxu0 %v427
  %v1179 = vpop.f32.mrf.mxu0
  %v1180 = vadd.f32 %v1131, %v1179
  %v1181 = vpop.f32.mrf.mxu0
  %v1182 = vadd.f32 %v1133, %v1181
  %1183 = vmatmul.bf16.gmra.mxu0 %v435
  %v1184 = vpop.f32.mrf.mxu0
  %v1185 = vadd.f32 %v1136, %v1184
  %v1186 = vpop.f32.mrf.mxu0
  %v1187 = vadd.f32 %v1138, %v1186
  %1188 = vmatmul.bf16.gmra.mxu0 %v443
  %v1189 = vpop.f32.mrf.mxu0
  %v1190 = vadd.f32 %v1141, %v1189
  %v1191 = vpop.f32.mrf.mxu0
  %v1192 = vadd.f32 %v1143, %v1191
  %1193 = vmatmul.bf16.gmra.mxu0 %v451
  %v1194 = vpop.f32.mrf.mxu0
  %v1195 = vadd.f32 %v1146, %v1194
  %v1196 = vpop.f32.mrf.mxu0
  %v1197 = vadd.f32 %v1148, %v1196
  %1198 = vmatmul.bf16.gmra.mxu0 %v459
  %v1199 = vpop.f32.mrf.mxu0
  %v1200 = vadd.f32 %v1151, %v1199
  %v1201 = vpop.f32.mrf.mxu0
  %v1202 = vadd.f32 %v1153, %v1201
  %1203 = vdwg.mxu0
  %1204 = vmatpush.bf16.msra.mxu0 %v837
  %1205 = vmatpush.bf16.msra.mxu0 %v836
  %1206 = vmatpush.bf16.msra.mxu0 %v835
  %1207 = vmatpush.bf16.msra.mxu0 %v834
  %1208 = vmatpush.bf16.msra.mxu0 %v833
  %1209 = vmatpush.bf16.msra.mxu0 %v832
  %1210 = vmatpush.bf16.msra.mxu0 %v831
  %1211 = vmatpush.bf16.msra.mxu0 %v830
  %1212 = vmatmul.bf16.gmra.mxu0 %v404
  %v1213 = vpop.f32.mrf.mxu0
  %v1214 = vadd.f32 %v1165, %v1213
  %v1215 = vpop.f32.mrf.mxu0
  %v1216 = vadd.f32 %v1167, %v1215
  %1217 = vmatmul.bf16.gmra.mxu0 %v412
  %v1218 = vpop.f32.mrf.mxu0
  %v1219 = vadd.f32 %v1170, %v1218
  %v1220 = vpop.f32.mrf.mxu0
  %v1221 = vadd.f32 %v1172, %v1220
  %1222 = vmatmul.bf16.gmra.mxu0 %v420
  %v1223 = vpop.f32.mrf.mxu0
  %v1224 = vadd.f32 %v1175, %v1223
  %v1225 = vpop.f32.mrf.mxu0
  %v1226 = vadd.f32 %v1177, %v1225
  %1227 = vmatmul.bf16.gmra.mxu0 %v428
  %v1228 = vpop.f32.mrf.mxu0
  %v1229 = vadd.f32 %v1180, %v1228
  %v1230 = vpop.f32.mrf.mxu0
  %v1231 = vadd.f32 %v1182, %v1230
  %1232 = vmatmul.bf16.gmra.mxu0 %v436
  %v1233 = vpop.f32.mrf.mxu0
  %v1234 = vadd.f32 %v1185, %v1233
  %v1235 = vpop.f32.mrf.mxu0
  %v1236 = vadd.f32 %v1187, %v1235
  %1237 = vmatmul.bf16.gmra.mxu0 %v444
  %v1238 = vpop.f32.mrf.mxu0
  %v1239 = vadd.f32 %v1190, %v1238
  %v1240 = vpop.f32.mrf.mxu0
  %v1241 = vadd.f32 %v1192, %v1240
  %1242 = vmatmul.bf16.gmra.mxu0 %v452
  %v1243 = vpop.f32.mrf.mxu0
  %v1244 = vadd.f32 %v1195, %v1243
  %v1245 = vpop.f32.mrf.mxu0
  %v1246 = vadd.f32 %v1197, %v1245
  %1247 = vmatmul.bf16.gmra.mxu0 %v460
  %v1248 = vpop.f32.mrf.mxu0
  %v1249 = vadd.f32 %v1200, %v1248
  %v1250 = vpop.f32.mrf.mxu0
  %v1251 = vadd.f32 %v1202, %v1250
  %1252 = vdwg.mxu0
  %1253 = vmatpush.bf16.msra.mxu0 %v845
  %1254 = vmatpush.bf16.msra.mxu0 %v844
  %1255 = vmatpush.bf16.msra.mxu0 %v843
  %1256 = vmatpush.bf16.msra.mxu0 %v842
  %1257 = vmatpush.bf16.msra.mxu0 %v841
  %1258 = vmatpush.bf16.msra.mxu0 %v840
  %1259 = vmatpush.bf16.msra.mxu0 %v839
  %1260 = vmatpush.bf16.msra.mxu0 %v838
  %1261 = vmatmul.bf16.gmra.mxu0 %v405
  %v1262 = vpop.f32.mrf.mxu0
  %v1263 = vadd.f32 %v1214, %v1262
  %v1264 = vpop.f32.mrf.mxu0
  %v1265 = vadd.f32 %v1216, %v1264
  %1266 = vmatmul.bf16.gmra.mxu0 %v413
  %v1267 = vpop.f32.mrf.mxu0
  %v1268 = vadd.f32 %v1219, %v1267
  %v1269 = vpop.f32.mrf.mxu0
  %v1270 = vadd.f32 %v1221, %v1269
  %1271 = vmatmul.bf16.gmra.mxu0 %v421
  %v1272 = vpop.f32.mrf.mxu0
  %v1273 = vadd.f32 %v1224, %v1272
  %v1274 = vpop.f32.mrf.mxu0
  %v1275 = vadd.f32 %v1226, %v1274
  %1276 = vmatmul.bf16.gmra.mxu0 %v429
  %v1277 = vpop.f32.mrf.mxu0
  %v1278 = vadd.f32 %v1229, %v1277
  %v1279 = vpop.f32.mrf.mxu0
  %v1280 = vadd.f32 %v1231, %v1279
  %1281 = vmatmul.bf16.gmra.mxu0 %v437
  %v1282 = vpop.f32.mrf.mxu0
  %v1283 = vadd.f32 %v1234, %v1282
  %v1284 = vpop.f32.mrf.mxu0
  %v1285 = vadd.f32 %v1236, %v1284
  %1286 = vmatmul.bf16.gmra.mxu0 %v445
  %v1287 = vpop.f32.mrf.mxu0
  %v1288 = vadd.f32 %v1239, %v1287
  %v1289 = vpop.f32.mrf.mxu0
  %v1290 = vadd.f32 %v1241, %v1289
  %1291 = vmatmul.bf16.gmra.mxu0 %v453
  %v1292 = vpop.f32.mrf.mxu0
  %v1293 = vadd.f32 %v1244, %v1292
  %v1294 = vpop.f32.mrf.mxu0
  %v1295 = vadd.f32 %v1246, %v1294
  %1296 = vmatmul.bf16.gmra.mxu0 %v461
  %v1297 = vpop.f32.mrf.mxu0
  %v1298 = vadd.f32 %v1249, %v1297
  %v1299 = vpop.f32.mrf.mxu0
  %v1300 = vadd.f32 %v1251, %v1299
  %1301 = vdwg.mxu0
  %v1302 = vpack.c.bf16 %v1263, %v1263
  %v1303 = vpack.c.bf16 %v1265, %v1265
  %v1304 = vpack.c.bf16 %v1268, %v1268
  %v1305 = vpack.c.bf16 %v1270, %v1270
  %v1306 = vpack.c.bf16 %v1273, %v1273
  %v1307 = vpack.c.bf16 %v1275, %v1275
  %v1308 = vpack.c.bf16 %v1278, %v1278
  %v1309 = vpack.c.bf16 %v1280, %v1280
  %v1310 = vpack.c.bf16 %v1283, %v1283
  %v1311 = vpack.c.bf16 %v1285, %v1285
  %v1312 = vpack.c.bf16 %v1288, %v1288
  %v1313 = vpack.c.bf16 %v1290, %v1290
  %v1314 = vpack.c.bf16 %v1293, %v1293
  %v1315 = vpack.c.bf16 %v1295, %v1295
  %v1316 = vpack.c.bf16 %v1298, %v1298
  %v1317 = vpack.c.bf16 %v1300, %v1300
  %1318 = vst [vmem:[%s2] sm:$0xf] %v1302
  %1319 = vst [vmem:[%s2 + $0x4] sm:$0xf] %v1303
  %1320 = vst [vmem:[%s2 + $0x8] sm:$0xf] %v1304
  %1321 = vst [vmem:[%s2 + $0xc] sm:$0xf] %v1305
  %1322 = vst [vmem:[%s2 + $0x10] sm:$0xf] %v1306
  %1323 = vst [vmem:[%s2 + $0x14] sm:$0xf] %v1307
  %1324 = vst [vmem:[%s2 + $0x18] sm:$0xf] %v1308
  %1325 = vst [vmem:[%s2 + $0x1c] sm:$0xf] %v1309
  %1326 = vst [vmem:[%s2 + $0x20] sm:$0xf] %v1310
  %1327 = vst [vmem:[%s2 + $0x24] sm:$0xf] %v1311
  %1328 = vst [vmem:[%s2 + $0x28] sm:$0xf] %v1312
  %1329 = vst [vmem:[%s2 + $0x2c] sm:$0xf] %v1313
  %1330 = vst [vmem:[%s2 + $0x30] sm:$0xf] %v1314
  %1331 = vst [vmem:[%s2 + $0x34] sm:$0xf] %v1315
  %1332 = vst [vmem:[%s2 + $0x38] sm:$0xf] %v1316
  %1333 = vst [vmem:[%s2 + $0x3c] sm:$0xf] %v1317
  %v1334 = vadd.f32 %v1263, %v1265
  %v1335 = vadd.f32 %v1334, %v1268
  %v1336 = vadd.f32 %v1335, %v1270
  %v1337 = vadd.f32 %v1336, %v1273
  %v1338 = vadd.f32 %v1337, %v1275
  %v1339 = vadd.f32 %v1338, %v1278
  %v1340 = vadd.f32 %v1339, %v1280
  %v1341 = vadd.f32 %v1340, %v1283
  %v1342 = vadd.f32 %v1341, %v1285
  %v1343 = vadd.f32 %v1342, %v1288
  %v1344 = vadd.f32 %v1343, %v1290
  %v1345 = vadd.f32 %v1344, %v1293
  %v1346 = vadd.f32 %v1345, %v1295
  %v1347 = vadd.f32 %v1346, %v1298
  %v1348 = vadd.f32 %v1347, %v1300
  %v1349 = vrot.slane %v1348, 4
  %v1350 = vadd.f32 %v1348, %v1349
  %v1351 = vrot.slane %v1350, 2
  %v1352 = vadd.f32 %v1350, %v1351
  %v1353 = vrot.slane %v1352, 1
  %v1354 = vadd.f32 %v1352, %v1353
  %v1355 = vmul.f32 %v1263, %v1263
  %v1356 = vmul.f32 %v1265, %v1265
  %v1357 = vmul.f32 %v1268, %v1268
  %v1358 = vmul.f32 %v1270, %v1270
  %v1359 = vmul.f32 %v1273, %v1273
  %v1360 = vmul.f32 %v1275, %v1275
  %v1361 = vmul.f32 %v1278, %v1278
  %v1362 = vmul.f32 %v1280, %v1280
  %v1363 = vmul.f32 %v1283, %v1283
  %v1364 = vmul.f32 %v1285, %v1285
  %v1365 = vmul.f32 %v1288, %v1288
  %v1366 = vmul.f32 %v1290, %v1290
  %v1367 = vmul.f32 %v1293, %v1293
  %v1368 = vmul.f32 %v1295, %v1295
  %v1369 = vmul.f32 %v1298, %v1298
  %v1370 = vmul.f32 %v1300, %v1300
  %v1371 = vadd.f32 %v1355, %v1356
  %v1372 = vadd.f32 %v1371, %v1357
  %v1373 = vadd.f32 %v1372, %v1358
  %v1374 = vadd.f32 %v1373, %v1359
  %v1375 = vadd.f32 %v1374, %v1360
  %v1376 = vadd.f32 %v1375, %v1361
  %v1377 = vadd.f32 %v1376, %v1362
  %v1378 = vadd.f32 %v1377, %v1363
  %v1379 = vadd.f32 %v1378, %v1364
  %v1380 = vadd.f32 %v1379, %v1365
  %v1381 = vadd.f32 %v1380, %v1366
  %v1382 = vadd.f32 %v1381, %v1367
  %v1383 = vadd.f32 %v1382, %v1368
  %v1384 = vadd.f32 %v1383, %v1369
  %v1385 = vadd.f32 %v1384, %v1370
  %v1386 = vrot.slane %v1385, 4
  %v1387 = vadd.f32 %v1385, %v1386
  %v1388 = vrot.slane %v1387, 2
  %v1389 = vadd.f32 %v1387, %v1388
  %v1390 = vrot.slane %v1389, 1
  %v1391 = vadd.f32 %v1389, %v1390
  %1392 = vst [vmem:[%s3] sm:$0xff] %v1354
  %1393 = vst [vmem:[%s4] sm:$0xff] %v1391
  // Predicated region
  $region10: #{_lambda_.62} parent=0 // pred_check
    _
  $region11: #{_lambda_.62} parent=0 // pred_check_branch
    %1395 = sbr.rel (0) target = $region13
  $region12: #{_lambda_.62} parent=0 // pred_region
    _
  $region13: #{_lambda_.62} parent=0 // pred_fallthru
    _
  // Predicated region
  $region14: #{_lambda_.62} parent=0 // pred_check
    _
  $region15: #{_lambda_.62} parent=0 // pred_check_branch
    %1397 = sbr.rel (0) target = $region17
  $region16: #{_lambda_.62} parent=0 // pred_region
    _
  $region17: #{_lambda_.62} parent=0 // pred_fallthru
    _
  // Predicated region
  $region18: #{_lambda_.62} parent=0 // pred_check
    _
  $region19: #{_lambda_.62} parent=0 // pred_check_branch
    %1399 = sbr.rel (0) target = $region21
  $region20: #{_lambda_.62} parent=0 // pred_region
    _
  $region21: #{_lambda_.62} parent=0 // pred_fallthru
    _
  // Predicated region
  $region22: #{_lambda_.62} parent=0 // pred_check
    _
  $region23: #{_lambda_.62} parent=0 // pred_check_branch
    %1401 = sbr.rel (0) target = $region25
  $region24: #{_lambda_.62} parent=0 // pred_region
    _
  $region25: #{_lambda_.62} parent=0 // pred_fallthru
    _
  // Predicated region
  $region26: #{_lambda_.62} parent=0 // pred_check
    _
  $region27: #{_lambda_.62} parent=0 // pred_check_branch
    %1403 = sbr.rel (0) target = $region29
  $region28: #{_lambda_.62} parent=0 // pred_region
    _
  $region29: #{_lambda_.62} parent=0 // pred_fallthru
    _
  // Predicated region
  $region30: #{_lambda_.62} parent=0 // pred_check
    _
  $region31: #{_lambda_.62} parent=0 // pred_check_branch
    %1405 = sbr.rel (0) target = $region33
  $region32: #{_lambda_.62} parent=0 // pred_region
    _
  $region33: #{_lambda_.62} parent=0 // pred_fallthru
    _

// kernel: _lambda_.64
$region0: #{_lambda_.64}
  #allocation0 [shape = 'u32[]', space=smem, size = 0x4, offset = 0x4, fixed_abs, tag = 'smem constant byte address 0x4 - core index']
  #allocation1 [shape = 'u32[72,128]{1,0:T(1,128)}', space=vmem, size = 0x9000, scoped, tag = 'internal scratch']
  %s0 = inlined_call_operand.vmem [shape: bf16[128,144], index: 0, kind: input, shape index: {}]
  %s1 = inlined_call_operand.vmem [shape: bf16[144,128], index: 1, kind: input, shape index: {}]
  %s2 = inlined_call_operand.vmem [shape: bf16[128,128], index: 2, kind: output, shape index: {0}]
  %s3 = inlined_call_operand.vmem [shape: f32[1,8,128], index: 3, kind: output, shape index: {1}]
  %s4 = inlined_call_operand.vmem [shape: f32[1,8,128], index: 4, kind: output, shape index: {2}]
  %5 = xla_tuple %s2, %s3, %s4
  %s6 = sld [smem:[#allocation0]]
  $region34: #{_lambda_.64} parent=0
    _
  %s8 = ssub.s32 1, %s6
  %s9 = scalar_select 0, %s8, %s6
  // Predicated region
  $region2: #{_lambda_.64} parent=0 // pred_check
    _
  $region3: #{_lambda_.64} parent=0 // pred_check_branch
    %11 = sbr.rel (0) target = $region5
  $region4: #{_lambda_.64} parent=0 // pred_region
    _
  $region5: #{_lambda_.64} parent=0 // pred_fallthru
    _
  // Predicated region
  $region6: #{_lambda_.64} parent=0 // pred_check
    _
  $region7: #{_lambda_.64} parent=0 // pred_check_branch
    %13 = sbr.rel (0) target = $region9
  $region8: #{_lambda_.64} parent=0 // pred_region
    _
  $region9: #{_lambda_.64} parent=0 // pred_fallthru
    _
  %v15 = vld [vmem:[%s0] sm:$0xff]
  %v16 = vld [vmem:[%s0 + $0x8] sm:$0xff]
  %v17 = vld [vmem:[%s0 + $0x10] sm:$0xff]
  %v18 = vld [vmem:[%s0 + $0x18] sm:$0xff]
  %v19 = vld [vmem:[%s0 + $0x20] sm:$0xff]
  %v20 = vld [vmem:[%s0 + $0x28] sm:$0xff]
  %v21 = vld [vmem:[%s0 + $0x30] sm:$0xff]
  %v22 = vld [vmem:[%s0 + $0x38] sm:$0xff]
  %v23 = vld [vmem:[%s0 + $0x40] sm:$0xff]
  %v24 = vld [vmem:[%s0 + $0x48] sm:$0xff]
  %v25 = vld [vmem:[%s0 + $0x50] sm:$0xff]
  %v26 = vld [vmem:[%s0 + $0x58] sm:$0xff]
  %v27 = vld [vmem:[%s0 + $0x60] sm:$0xff]
  %v28 = vld [vmem:[%s0 + $0x68] sm:$0xff]
  %v29 = vld [vmem:[%s0 + $0x70] sm:$0xff]
  %v30 = vld [vmem:[%s0 + $0x78] sm:$0xff]
  %v31 = vld [vmem:[%s1] sm:$0xf]
  %v32 = vld [vmem:[%s1 + $0x4] sm:$0xf]
  %v33 = vld [vmem:[%s1 + $0x8] sm:$0xf]
  %v34 = vld [vmem:[%s1 + $0xc] sm:$0xf]
  %v35 = vld [vmem:[%s1 + $0x10] sm:$0xf]
  %v36 = vld [vmem:[%s1 + $0x14] sm:$0xf]
  %v37 = vld [vmem:[%s1 + $0x18] sm:$0xf]
  %v38 = vld [vmem:[%s1 + $0x1c] sm:$0xf]
  %v39 = vld [vmem:[%s1 + $0x20] sm:$0xf]
  %v40 = vld [vmem:[%s1 + $0x24] sm:$0xf]
  %v41 = vld [vmem:[%s1 + $0x28] sm:$0xf]
  %v42 = vld [vmem:[%s1 + $0x2c] sm:$0xf]
  %v43 = vld [vmem:[%s1 + $0x30] sm:$0xf]
  %v44 = vld [vmem:[%s1 + $0x34] sm:$0xf]
  %v45 = vld [vmem:[%s1 + $0x38] sm:$0xf]
  %v46 = vld [vmem:[%s1 + $0x3c] sm:$0xf]
  %v47 = vld [vmem:[%s1 + $0x40] sm:$0xf]
  %v48 = vld [vmem:[%s1 + $0x44] sm:$0xf]
  %v65 = vunpack.c.l.b16 %v15
  %v66 = vunpack.c.h.b16 %v15
  %v67 = vunpack.c.l.b16 %v16
  %v68 = vunpack.c.h.b16 %v16
  %v69 = vunpack.c.l.b16 %v17
  %v70 = vunpack.c.h.b16 %v17
  %v71 = vunpack.c.l.b16 %v18
  %v72 = vunpack.c.h.b16 %v18
  %v73 = vunpack.c.l.b16 %v19
  %v74 = vunpack.c.h.b16 %v19
  %v75 = vunpack.c.l.b16 %v20
  %v76 = vunpack.c.h.b16 %v20
  %v77 = vunpack.c.l.b16 %v21
  %v78 = vunpack.c.h.b16 %v21
  %v79 = vunpack.c.l.b16 %v22
  %v80 = vunpack.c.h.b16 %v22
  %v81 = vunpack.c.l.b16 %v23
  %v82 = vunpack.c.h.b16 %v23
  %v83 = vunpack.c.l.b16 %v24
  %v84 = vunpack.c.h.b16 %v24
  %v85 = vunpack.c.l.b16 %v25
  %v86 = vunpack.c.h.b16 %v25
  %v87 = vunpack.c.l.b16 %v26
  %v88 = vunpack.c.h.b16 %v26
  %v89 = vunpack.c.l.b16 %v27
  %v90 = vunpack.c.h.b16 %v27
  %v91 = vunpack.c.l.b16 %v28
  %v92 = vunpack.c.h.b16 %v28
  %v93 = vunpack.c.l.b16 %v29
  %v94 = vunpack.c.h.b16 %v29
  %v95 = vunpack.c.l.b16 %v30
  %v96 = vunpack.c.h.b16 %v30
  %v97 = vpack.c.b16 %v67, %v65
  %v98 = vpack.c.b16 %v68, %v66
  %v99 = vpack.c.b16 %v71, %v69
  %v100 = vpack.c.b16 %v72, %v70
  %v101 = vpack.c.b16 %v75, %v73
  %v102 = vpack.c.b16 %v76, %v74
  %v103 = vpack.c.b16 %v79, %v77
  %v104 = vpack.c.b16 %v80, %v78
  %v105 = vpack.c.b16 %v83, %v81
  %v106 = vpack.c.b16 %v84, %v82
  %v107 = vpack.c.b16 %v87, %v85
  %v108 = vpack.c.b16 %v88, %v86
  %v109 = vpack.c.b16 %v91, %v89
  %v110 = vpack.c.b16 %v92, %v90
  %v111 = vpack.c.b16 %v95, %v93
  %v112 = vpack.c.b16 %v96, %v94
  %v139 = vunpack.c.l.b16 %v31
  %v140 = vunpack.c.l.b16 %v32
  %v141 = vunpack.c.l.b16 %v33
  %v142 = vunpack.c.l.b16 %v34
  %v143 = vunpack.c.l.b16 %v35
  %v144 = vunpack.c.l.b16 %v36
  %v145 = vunpack.c.l.b16 %v37
  %v146 = vunpack.c.l.b16 %v38
  %v147 = vunpack.c.l.b16 %v39
  %v148 = vunpack.c.l.b16 %v40
  %v149 = vunpack.c.l.b16 %v41
  %v150 = vunpack.c.l.b16 %v42
  %v151 = vunpack.c.l.b16 %v43
  %v152 = vunpack.c.l.b16 %v44
  %v153 = vunpack.c.l.b16 %v45
  %v154 = vunpack.c.l.b16 %v46
  %v155 = vunpack.c.l.b16 %v47
  %v156 = vunpack.c.l.b16 %v48
  %v157 = vpack.c.b16 %v140, %v139
  %v158 = vpack.c.b16 %v142, %v141
  %v159 = vpack.c.b16 %v144, %v143
  %v160 = vpack.c.b16 %v146, %v145
  %v161 = vpack.c.b16 %v148, %v147
  %v162 = vpack.c.b16 %v150, %v149
  %v163 = vpack.c.b16 %v152, %v151
  %v164 = vpack.c.b16 %v154, %v153
  %v165 = vpack.c.b16 %v156, %v155
  %vm175 = vcmask 130048
  %v177 = vsel %vm175, %v98, 0
  %v180 = vsel %vm175, %v100, 0
  %v183 = vsel %vm175, %v102, 0
  %v186 = vsel %vm175, %v104, 0
  %v189 = vsel %vm175, %v106, 0
  %v192 = vsel %vm175, %v108, 0
  %v195 = vsel %vm175, %v110, 0
  %v198 = vsel %vm175, %v112, 0
  %200 = vmatpush.bf16.msra.mxu0 %v164
  %201 = vmatpush.bf16.msra.mxu0 %v163
  %202 = vmatpush.bf16.msra.mxu0 %v162
  %203 = vmatpush.bf16.msra.mxu0 %v161
  %204 = vmatpush.bf16.msra.mxu0 %v160
  %205 = vmatpush.bf16.msra.mxu0 %v159
  %206 = vmatpush.bf16.msra.mxu0 %v158
  %207 = vmatpush.bf16.msra.mxu0 %v157
  %208 = vmatmul.bf16.gmra.mxu0 %v97
  %v209 = vpop.f32.mrf.mxu0
  %v210 = vadd.f32 0.0, %v209
  %v211 = vpop.f32.mrf.mxu0
  %v212 = vadd.f32 0.0, %v211
  %213 = vmatmul.bf16.gmra.mxu0 %v99
  %v214 = vpop.f32.mrf.mxu0
  %v215 = vadd.f32 0.0, %v214
  %v216 = vpop.f32.mrf.mxu0
  %v217 = vadd.f32 0.0, %v216
  %218 = vmatmul.bf16.gmra.mxu0 %v101
  %v219 = vpop.f32.mrf.mxu0
  %v220 = vadd.f32 0.0, %v219
  %v221 = vpop.f32.mrf.mxu0
  %v222 = vadd.f32 0.0, %v221
  %223 = vmatmul.bf16.gmra.mxu0 %v103
  %v224 = vpop.f32.mrf.mxu0
  %v225 = vadd.f32 0.0, %v224
  %v226 = vpop.f32.mrf.mxu0
  %v227 = vadd.f32 0.0, %v226
  %228 = vmatmul.bf16.gmra.mxu0 %v105
  %v229 = vpop.f32.mrf.mxu0
  %v230 = vadd.f32 0.0, %v229
  %v231 = vpop.f32.mrf.mxu0
  %v232 = vadd.f32 0.0, %v231
  %233 = vmatmul.bf16.gmra.mxu0 %v107
  %v234 = vpop.f32.mrf.mxu0
  %v235 = vadd.f32 0.0, %v234
  %v236 = vpop.f32.mrf.mxu0
  %v237 = vadd.f32 0.0, %v236
  %238 = vmatmul.bf16.gmra.mxu0 %v109
  %v239 = vpop.f32.mrf.mxu0
  %v240 = vadd.f32 0.0, %v239
  %v241 = vpop.f32.mrf.mxu0
  %v242 = vadd.f32 0.0, %v241
  %243 = vmatmul.bf16.gmra.mxu0 %v111
  %v244 = vpop.f32.mrf.mxu0
  %v245 = vadd.f32 0.0, %v244
  %v246 = vpop.f32.mrf.mxu0
  %v247 = vadd.f32 0.0, %v246
  %248 = vdwg.mxu0
  %249 = vmatpush.bf16.msra.mxu0 0
  %250 = vmatpush.bf16.msra.mxu0 0
  %251 = vmatpush.bf16.msra.mxu0 0
  %252 = vmatpush.bf16.msra.mxu0 0
  %253 = vmatpush.bf16.msra.mxu0 0
  %254 = vmatpush.bf16.msra.mxu0 0
  %255 = vmatpush.bf16.msra.mxu0 0
  %256 = vmatpush.bf16.msra.mxu0 %v165
  %257 = vmatmul.bf16.gmra.mxu0 %v177
  %v258 = vpop.f32.mrf.mxu0
  %v259 = vadd.f32 %v210, %v258
  %v260 = vpop.f32.mrf.mxu0
  %v261 = vadd.f32 %v212, %v260
  %262 = vmatmul.bf16.gmra.mxu0 %v180
  %v263 = vpop.f32.mrf.mxu0
  %v264 = vadd.f32 %v215, %v263
  %v265 = vpop.f32.mrf.mxu0
  %v266 = vadd.f32 %v217, %v265
  %267 = vmatmul.bf16.gmra.mxu0 %v183
  %v268 = vpop.f32.mrf.mxu0
  %v269 = vadd.f32 %v220, %v268
  %v270 = vpop.f32.mrf.mxu0
  %v271 = vadd.f32 %v222, %v270
  %272 = vmatmul.bf16.gmra.mxu0 %v186
  %v273 = vpop.f32.mrf.mxu0
  %v274 = vadd.f32 %v225, %v273
  %v275 = vpop.f32.mrf.mxu0
  %v276 = vadd.f32 %v227, %v275
  %277 = vmatmul.bf16.gmra.mxu0 %v189
  %v278 = vpop.f32.mrf.mxu0
  %v279 = vadd.f32 %v230, %v278
  %v280 = vpop.f32.mrf.mxu0
  %v281 = vadd.f32 %v232, %v280
  %282 = vmatmul.bf16.gmra.mxu0 %v192
  %v283 = vpop.f32.mrf.mxu0
  %v284 = vadd.f32 %v235, %v283
  %v285 = vpop.f32.mrf.mxu0
  %v286 = vadd.f32 %v237, %v285
  %287 = vmatmul.bf16.gmra.mxu0 %v195
  %v288 = vpop.f32.mrf.mxu0
  %v289 = vadd.f32 %v240, %v288
  %v290 = vpop.f32.mrf.mxu0
  %v291 = vadd.f32 %v242, %v290
  %292 = vmatmul.bf16.gmra.mxu0 %v198
  %v293 = vpop.f32.mrf.mxu0
  %v294 = vadd.f32 %v245, %v293
  %v295 = vpop.f32.mrf.mxu0
  %v296 = vadd.f32 %v247, %v295
  %297 = vdwg.mxu0
  %v298 = vpack.c.bf16 %v259, %v259
  %v299 = vpack.c.bf16 %v261, %v261
  %v300 = vpack.c.bf16 %v264, %v264
  %v301 = vpack.c.bf16 %v266, %v266
  %v302 = vpack.c.bf16 %v269, %v269
  %v303 = vpack.c.bf16 %v271, %v271
  %v304 = vpack.c.bf16 %v274, %v274
  %v305 = vpack.c.bf16 %v276, %v276
  %v306 = vpack.c.bf16 %v279, %v279
  %v307 = vpack.c.bf16 %v281, %v281
  %v308 = vpack.c.bf16 %v284, %v284
  %v309 = vpack.c.bf16 %v286, %v286
  %v310 = vpack.c.bf16 %v289, %v289
  %v311 = vpack.c.bf16 %v291, %v291
  %v312 = vpack.c.bf16 %v294, %v294
  %v313 = vpack.c.bf16 %v296, %v296
  %314 = vst [vmem:[%s2] sm:$0xf] %v298
  %315 = vst [vmem:[%s2 + $0x4] sm:$0xf] %v299
  %316 = vst [vmem:[%s2 + $0x8] sm:$0xf] %v300
  %317 = vst [vmem:[%s2 + $0xc] sm:$0xf] %v301
  %318 = vst [vmem:[%s2 + $0x10] sm:$0xf] %v302
  %319 = vst [vmem:[%s2 + $0x14] sm:$0xf] %v303
  %320 = vst [vmem:[%s2 + $0x18] sm:$0xf] %v304
  %321 = vst [vmem:[%s2 + $0x1c] sm:$0xf] %v305
  %322 = vst [vmem:[%s2 + $0x20] sm:$0xf] %v306
  %323 = vst [vmem:[%s2 + $0x24] sm:$0xf] %v307
  %324 = vst [vmem:[%s2 + $0x28] sm:$0xf] %v308
  %325 = vst [vmem:[%s2 + $0x2c] sm:$0xf] %v309
  %326 = vst [vmem:[%s2 + $0x30] sm:$0xf] %v310
  %327 = vst [vmem:[%s2 + $0x34] sm:$0xf] %v311
  %328 = vst [vmem:[%s2 + $0x38] sm:$0xf] %v312
  %329 = vst [vmem:[%s2 + $0x3c] sm:$0xf] %v313
  %v330 = vadd.f32 %v259, %v261
  %v331 = vadd.f32 %v330, %v264
  %v332 = vadd.f32 %v331, %v266
  %v333 = vadd.f32 %v332, %v269
  %v334 = vadd.f32 %v333, %v271
  %v335 = vadd.f32 %v334, %v274
  %v336 = vadd.f32 %v335, %v276
  %v337 = vadd.f32 %v336, %v279
  %v338 = vadd.f32 %v337, %v281
  %v339 = vadd.f32 %v338, %v284
  %v340 = vadd.f32 %v339, %v286
  %v341 = vadd.f32 %v340, %v289
  %v342 = vadd.f32 %v341, %v291
  %v343 = vadd.f32 %v342, %v294
  %v344 = vadd.f32 %v343, %v296
  %v345 = vrot.slane %v344, 4
  %v346 = vadd.f32 %v344, %v345
  %v347 = vrot.slane %v346, 2
  %v348 = vadd.f32 %v346, %v347
  %v349 = vrot.slane %v348, 1
  %v350 = vadd.f32 %v348, %v349
  %v351 = vmul.f32 %v259, %v259
  %v352 = vmul.f32 %v261, %v261
  %v353 = vmul.f32 %v264, %v264
  %v354 = vmul.f32 %v266, %v266
  %v355 = vmul.f32 %v269, %v269
  %v356 = vmul.f32 %v271, %v271
  %v357 = vmul.f32 %v274, %v274
  %v358 = vmul.f32 %v276, %v276
  %v359 = vmul.f32 %v279, %v279
  %v360 = vmul.f32 %v281, %v281
  %v361 = vmul.f32 %v284, %v284
  %v362 = vmul.f32 %v286, %v286
  %v363 = vmul.f32 %v289, %v289
  %v364 = vmul.f32 %v291, %v291
  %v365 = vmul.f32 %v294, %v294
  %v366 = vmul.f32 %v296, %v296
  %v367 = vadd.f32 %v351, %v352
  %v368 = vadd.f32 %v367, %v353
  %v369 = vadd.f32 %v368, %v354
  %v370 = vadd.f32 %v369, %v355
  %v371 = vadd.f32 %v370, %v356
  %v372 = vadd.f32 %v371, %v357
  %v373 = vadd.f32 %v372, %v358
  %v374 = vadd.f32 %v373, %v359
  %v375 = vadd.f32 %v374, %v360
  %v376 = vadd.f32 %v375, %v361
  %v377 = vadd.f32 %v376, %v362
  %v378 = vadd.f32 %v377, %v363
  %v379 = vadd.f32 %v378, %v364
  %v380 = vadd.f32 %v379, %v365
  %v381 = vadd.f32 %v380, %v366
  %v382 = vrot.slane %v381, 4
  %v383 = vadd.f32 %v381, %v382
  %v384 = vrot.slane %v383, 2
  %v385 = vadd.f32 %v383, %v384
  %v386 = vrot.slane %v385, 1
  %v387 = vadd.f32 %v385, %v386
  %388 = vst [vmem:[%s3] sm:$0xff] %v350
  %389 = vst [vmem:[%s4] sm:$0xff] %v387
  // Predicated region
  $region10: #{_lambda_.64} parent=0 // pred_check
    _
  $region11: #{_lambda_.64} parent=0 // pred_check_branch
    %391 = sbr.rel (0) target = $region13
  $region12: #{_lambda_.64} parent=0 // pred_region
    _
  $region13: #{_lambda_.64} parent=0 // pred_fallthru
    _
  // Predicated region
  $region14: #{_lambda_.64} parent=0 // pred_check
    _
  $region15: #{_lambda_.64} parent=0 // pred_check_branch
    %393 = sbr.rel (0) target = $region17
  $region16: #{_lambda_.64} parent=0 // pred_region
    _
  $region17: #{_lambda_.64} parent=0 // pred_fallthru
    _
  // Predicated region
  $region18: #{_lambda_.64} parent=0 // pred_check
    _
  $region19: #{_lambda_.64} parent=0 // pred_check_branch
    %395 = sbr.rel (0) target = $region21
  $region20: #{_lambda_.64} parent=0 // pred_region
    _
  $region21: #{_lambda_.64} parent=0 // pred_fallthru
    _
  // Predicated region
  $region22: #{_lambda_.64} parent=0 // pred_check
    _
  $region23: #{_lambda_.64} parent=0 // pred_check_branch
    %397 = sbr.rel (0) target = $region25
  $region24: #{_lambda_.64} parent=0 // pred_region
    _
  $region25: #{_lambda_.64} parent=0 // pred_fallthru
    _
  // Predicated region
  $region26: #{_lambda_.64} parent=0 // pred_check
    _
  $region27: #{_lambda_.64} parent=0 // pred_check_branch
    %399 = sbr.rel (0) target = $region29
  $region28: #{_lambda_.64} parent=0 // pred_region
    _
  $region29: #{_lambda_.64} parent=0 // pred_fallthru
    _
  // Predicated region
  $region30: #{_lambda_.64} parent=0 // pred_check
    _
  $region31: #{_lambda_.64} parent=0 // pred_check_branch
    %401 = sbr.rel (0) target = $region33
  $region32: #{_lambda_.64} parent=0 // pred_region
    _
  $region33: #{_lambda_.64} parent=0 // pred_fallthru
    _

// kernel: _lambda_.66
$region0: #{_lambda_.66}
  #allocation0 [shape = 'u32[]', space=smem, size = 0x4, offset = 0x4, fixed_abs, tag = 'smem constant byte address 0x4 - core index']
  #allocation1 [shape = 'u32[72,128]{1,0:T(1,128)}', space=vmem, size = 0x9000, scoped, tag = 'internal scratch']
  %s0 = inlined_call_operand.vmem [shape: bf16[512,256], index: 0, kind: input, shape index: {}]
  %s1 = inlined_call_operand.vmem [shape: bf16[256,128], index: 1, kind: input, shape index: {}]
  %s2 = inlined_call_operand.vmem [shape: bf16[512,128], index: 2, kind: output, shape index: {0}]
  %s3 = inlined_call_operand.vmem [shape: f32[1,8,128], index: 3, kind: output, shape index: {1}]
  %s4 = inlined_call_operand.vmem [shape: f32[1,8,128], index: 4, kind: output, shape index: {2}]
  %5 = xla_tuple %s2, %s3, %s4
  %s6 = sld [smem:[#allocation0]]
  $region34: #{_lambda_.66} parent=0
    _
  %s8 = ssub.s32 1, %s6
  %s9 = scalar_select 0, %s8, %s6
  // Predicated region
  $region2: #{_lambda_.66} parent=0 // pred_check
    _
  $region3: #{_lambda_.66} parent=0 // pred_check_branch
    %11 = sbr.rel (0) target = $region5
  $region4: #{_lambda_.66} parent=0 // pred_region
    _
  $region5: #{_lambda_.66} parent=0 // pred_fallthru
    _
  // Predicated region
  $region6: #{_lambda_.66} parent=0 // pred_check
    _
  $region7: #{_lambda_.66} parent=0 // pred_check_branch
    %13 = sbr.rel (0) target = $region9
  $region8: #{_lambda_.66} parent=0 // pred_region
    _
  $region9: #{_lambda_.66} parent=0 // pred_fallthru
    _
  %v14 = vld [vmem:[%s0] sm:$0xff]
  %v15 = vld [vmem:[%s0 + $0x8] sm:$0xff]
  %v16 = vld [vmem:[%s0 + $0x10] sm:$0xff]
  %v17 = vld [vmem:[%s0 + $0x18] sm:$0xff]
  %v18 = vld [vmem:[%s0 + $0x20] sm:$0xff]
  %v19 = vld [vmem:[%s0 + $0x28] sm:$0xff]
  %v20 = vld [vmem:[%s0 + $0x30] sm:$0xff]
  %v21 = vld [vmem:[%s0 + $0x38] sm:$0xff]
  %v22 = vld [vmem:[%s0 + $0x40] sm:$0xff]
  %v23 = vld [vmem:[%s0 + $0x48] sm:$0xff]
  %v24 = vld [vmem:[%s0 + $0x50] sm:$0xff]
  %v25 = vld [vmem:[%s0 + $0x58] sm:$0xff]
  %v26 = vld [vmem:[%s0 + $0x60] sm:$0xff]
  %v27 = vld [vmem:[%s0 + $0x68] sm:$0xff]
  %v28 = vld [vmem:[%s0 + $0x70] sm:$0xff]
  %v29 = vld [vmem:[%s0 + $0x78] sm:$0xff]
  %v30 = vld [vmem:[%s0 + $0x80] sm:$0xff]
  %v31 = vld [vmem:[%s0 + $0x88] sm:$0xff]
  %v32 = vld [vmem:[%s0 + $0x90] sm:$0xff]
  %v33 = vld [vmem:[%s0 + $0x98] sm:$0xff]
  %v34 = vld [vmem:[%s0 + $0xa0] sm:$0xff]
  %v35 = vld [vmem:[%s0 + $0xa8] sm:$0xff]
  %v36 = vld [vmem:[%s0 + $0xb0] sm:$0xff]
  %v37 = vld [vmem:[%s0 + $0xb8] sm:$0xff]
  %v38 = vld [vmem:[%s0 + $0xc0] sm:$0xff]
  %v39 = vld [vmem:[%s0 + $0xc8] sm:$0xff]
  %v40 = vld [vmem:[%s0 + $0xd0] sm:$0xff]
  %v41 = vld [vmem:[%s0 + $0xd8] sm:$0xff]
  %v42 = vld [vmem:[%s0 + $0xe0] sm:$0xff]
  %v43 = vld [vmem:[%s0 + $0xe8] sm:$0xff]
  %v44 = vld [vmem:[%s0 + $0xf0] sm:$0xff]
  %v45 = vld [vmem:[%s0 + $0xf8] sm:$0xff]
  %v46 = vld [vmem:[%s0 + $0x100] sm:$0xff]
  %v47 = vld [vmem:[%s0 + $0x108] sm:$0xff]
  %v48 = vld [vmem:[%s0 + $0x110] sm:$0xff]
  %v49 = vld [vmem:[%s0 + $0x118] sm:$0xff]
  %v50 = vld [vmem:[%s0 + $0x120] sm:$0xff]
  %v51 = vld [vmem:[%s0 + $0x128] sm:$0xff]
  %v52 = vld [vmem:[%s0 + $0x130] sm:$0xff]
  %v53 = vld [vmem:[%s0 + $0x138] sm:$0xff]
  %v54 = vld [vmem:[%s0 + $0x140] sm:$0xff]
  %v55 = vld [vmem:[%s0 + $0x148] sm:$0xff]
  %v56 = vld [vmem:[%s0 + $0x150] sm:$0xff]
  %v57 = vld [vmem:[%s0 + $0x158] sm:$0xff]
  %v58 = vld [vmem:[%s0 + $0x160] sm:$0xff]
  %v59 = vld [vmem:[%s0 + $0x168] sm:$0xff]
  %v60 = vld [vmem:[%s0 + $0x170] sm:$0xff]
  %v61 = vld [vmem:[%s0 + $0x178] sm:$0xff]
  %v62 = vld [vmem:[%s0 + $0x180] sm:$0xff]
  %v63 = vld [vmem:[%s0 + $0x188] sm:$0xff]
  %v64 = vld [vmem:[%s0 + $0x190] sm:$0xff]
  %v65 = vld [vmem:[%s0 + $0x198] sm:$0xff]
  %v66 = vld [vmem:[%s0 + $0x1a0] sm:$0xff]
  %v67 = vld [vmem:[%s0 + $0x1a8] sm:$0xff]
  %v68 = vld [vmem:[%s0 + $0x1b0] sm:$0xff]
  %v69 = vld [vmem:[%s0 + $0x1b8] sm:$0xff]
  %v70 = vld [vmem:[%s0 + $0x1c0] sm:$0xff]
  %v71 = vld [vmem:[%s0 + $0x1c8] sm:$0xff]
  %v72 = vld [vmem:[%s0 + $0x1d0] sm:$0xff]
  %v73 = vld [vmem:[%s0 + $0x1d8] sm:$0xff]
  %v74 = vld [vmem:[%s0 + $0x1e0] sm:$0xff]
  %v75 = vld [vmem:[%s0 + $0x1e8] sm:$0xff]
  %v76 = vld [vmem:[%s0 + $0x1f0] sm:$0xff]
  %v77 = vld [vmem:[%s0 + $0x1f8] sm:$0xff]
  %v78 = vld [vmem:[%s1] sm:$0xf]
  %v79 = vld [vmem:[%s1 + $0x4] sm:$0xf]
  %v80 = vld [vmem:[%s1 + $0x8] sm:$0xf]
  %v81 = vld [vmem:[%s1 + $0xc] sm:$0xf]
  %v82 = vld [vmem:[%s1 + $0x10] sm:$0xf]
  %v83 = vld [vmem:[%s1 + $0x14] sm:$0xf]
  %v84 = vld [vmem:[%s1 + $0x18] sm:$0xf]
  %v85 = vld [vmem:[%s1 + $0x1c] sm:$0xf]
  %v86 = vld [vmem:[%s1 + $0x20] sm:$0xf]
  %v87 = vld [vmem:[%s1 + $0x24] sm:$0xf]
  %v88 = vld [vmem:[%s1 + $0x28] sm:$0xf]
  %v89 = vld [vmem:[%s1 + $0x2c] sm:$0xf]
  %v90 = vld [vmem:[%s1 + $0x30] sm:$0xf]
  %v91 = vld [vmem:[%s1 + $0x34] sm:$0xf]
  %v92 = vld [vmem:[%s1 + $0x38] sm:$0xf]
  %v93 = vld [vmem:[%s1 + $0x3c] sm:$0xf]
  %v94 = vld [vmem:[%s1 + $0x40] sm:$0xf]
  %v95 = vld [vmem:[%s1 + $0x44] sm:$0xf]
  %v96 = vld [vmem:[%s1 + $0x48] sm:$0xf]
  %v97 = vld [vmem:[%s1 + $0x4c] sm:$0xf]
  %v98 = vld [vmem:[%s1 + $0x50] sm:$0xf]
  %v99 = vld [vmem:[%s1 + $0x54] sm:$0xf]
  %v100 = vld [vmem:[%s1 + $0x58] sm:$0xf]
  %v101 = vld [vmem:[%s1 + $0x5c] sm:$0xf]
  %v102 = vld [vmem:[%s1 + $0x60] sm:$0xf]
  %v103 = vld [vmem:[%s1 + $0x64] sm:$0xf]
  %v104 = vld [vmem:[%s1 + $0x68] sm:$0xf]
  %v105 = vld [vmem:[%s1 + $0x6c] sm:$0xf]
  %v106 = vld [vmem:[%s1 + $0x70] sm:$0xf]
  %v107 = vld [vmem:[%s1 + $0x74] sm:$0xf]
  %v108 = vld [vmem:[%s1 + $0x78] sm:$0xf]
  %v109 = vld [vmem:[%s1 + $0x7c] sm:$0xf]
  %v174 = vunpack.c.l.b16 %v14
  %v175 = vunpack.c.h.b16 %v14
  %v176 = vunpack.c.l.b16 %v15
  %v177 = vunpack.c.h.b16 %v15
  %v178 = vunpack.c.l.b16 %v16
  %v179 = vunpack.c.h.b16 %v16
  %v180 = vunpack.c.l.b16 %v17
  %v181 = vunpack.c.h.b16 %v17
  %v182 = vunpack.c.l.b16 %v18
  %v183 = vunpack.c.h.b16 %v18
  %v184 = vunpack.c.l.b16 %v19
  %v185 = vunpack.c.h.b16 %v19
  %v186 = vunpack.c.l.b16 %v20
  %v187 = vunpack.c.h.b16 %v20
  %v188 = vunpack.c.l.b16 %v21
  %v189 = vunpack.c.h.b16 %v21
  %v190 = vunpack.c.l.b16 %v22
  %v191 = vunpack.c.h.b16 %v22
  %v192 = vunpack.c.l.b16 %v23
  %v193 = vunpack.c.h.b16 %v23
  %v194 = vunpack.c.l.b16 %v24
  %v195 = vunpack.c.h.b16 %v24
  %v196 = vunpack.c.l.b16 %v25
  %v197 = vunpack.c.h.b16 %v25
  %v198 = vunpack.c.l.b16 %v26
  %v199 = vunpack.c.h.b16 %v26
  %v200 = vunpack.c.l.b16 %v27
  %v201 = vunpack.c.h.b16 %v27
  %v202 = vunpack.c.l.b16 %v28
  %v203 = vunpack.c.h.b16 %v28
  %v204 = vunpack.c.l.b16 %v29
  %v205 = vunpack.c.h.b16 %v29
  %v206 = vunpack.c.l.b16 %v30
  %v207 = vunpack.c.h.b16 %v30
  %v208 = vunpack.c.l.b16 %v31
  %v209 = vunpack.c.h.b16 %v31
  %v210 = vunpack.c.l.b16 %v32
  %v211 = vunpack.c.h.b16 %v32
  %v212 = vunpack.c.l.b16 %v33
  %v213 = vunpack.c.h.b16 %v33
  %v214 = vunpack.c.l.b16 %v34
  %v215 = vunpack.c.h.b16 %v34
  %v216 = vunpack.c.l.b16 %v35
  %v217 = vunpack.c.h.b16 %v35
  %v218 = vunpack.c.l.b16 %v36
  %v219 = vunpack.c.h.b16 %v36
  %v220 = vunpack.c.l.b16 %v37
  %v221 = vunpack.c.h.b16 %v37
  %v222 = vunpack.c.l.b16 %v38
  %v223 = vunpack.c.h.b16 %v38
  %v224 = vunpack.c.l.b16 %v39
  %v225 = vunpack.c.h.b16 %v39
  %v226 = vunpack.c.l.b16 %v40
  %v227 = vunpack.c.h.b16 %v40
  %v228 = vunpack.c.l.b16 %v41
  %v229 = vunpack.c.h.b16 %v41
  %v230 = vunpack.c.l.b16 %v42
  %v231 = vunpack.c.h.b16 %v42
  %v232 = vunpack.c.l.b16 %v43
  %v233 = vunpack.c.h.b16 %v43
  %v234 = vunpack.c.l.b16 %v44
  %v235 = vunpack.c.h.b16 %v44
  %v236 = vunpack.c.l.b16 %v45
  %v237 = vunpack.c.h.b16 %v45
  %v238 = vunpack.c.l.b16 %v46
  %v239 = vunpack.c.h.b16 %v46
  %v240 = vunpack.c.l.b16 %v47
  %v241 = vunpack.c.h.b16 %v47
  %v242 = vunpack.c.l.b16 %v48
  %v243 = vunpack.c.h.b16 %v48
  %v244 = vunpack.c.l.b16 %v49
  %v245 = vunpack.c.h.b16 %v49
  %v246 = vunpack.c.l.b16 %v50
  %v247 = vunpack.c.h.b16 %v50
  %v248 = vunpack.c.l.b16 %v51
  %v249 = vunpack.c.h.b16 %v51
  %v250 = vunpack.c.l.b16 %v52
  %v251 = vunpack.c.h.b16 %v52
  %v252 = vunpack.c.l.b16 %v53
  %v253 = vunpack.c.h.b16 %v53
  %v254 = vunpack.c.l.b16 %v54
  %v255 = vunpack.c.h.b16 %v54
  %v256 = vunpack.c.l.b16 %v55
  %v257 = vunpack.c.h.b16 %v55
  %v258 = vunpack.c.l.b16 %v56
  %v259 = vunpack.c.h.b16 %v56
  %v260 = vunpack.c.l.b16 %v57
  %v261 = vunpack.c.h.b16 %v57
  %v262 = vunpack.c.l.b16 %v58
  %v263 = vunpack.c.h.b16 %v58
  %v264 = vunpack.c.l.b16 %v59
  %v265 = vunpack.c.h.b16 %v59
  %v266 = vunpack.c.l.b16 %v60
  %v267 = vunpack.c.h.b16 %v60
  %v268 = vunpack.c.l.b16 %v61
  %v269 = vunpack.c.h.b16 %v61
  %v270 = vunpack.c.l.b16 %v62
  %v271 = vunpack.c.h.b16 %v62
  %v272 = vunpack.c.l.b16 %v63
  %v273 = vunpack.c.h.b16 %v63
  %v274 = vunpack.c.l.b16 %v64
  %v275 = vunpack.c.h.b16 %v64
  %v276 = vunpack.c.l.b16 %v65
  %v277 = vunpack.c.h.b16 %v65
  %v278 = vunpack.c.l.b16 %v66
  %v279 = vunpack.c.h.b16 %v66
  %v280 = vunpack.c.l.b16 %v67
  %v281 = vunpack.c.h.b16 %v67
  %v282 = vunpack.c.l.b16 %v68
  %v283 = vunpack.c.h.b16 %v68
  %v284 = vunpack.c.l.b16 %v69
  %v285 = vunpack.c.h.b16 %v69
  %v286 = vunpack.c.l.b16 %v70
  %v287 = vunpack.c.h.b16 %v70
  %v288 = vunpack.c.l.b16 %v71
  %v289 = vunpack.c.h.b16 %v71
  %v290 = vunpack.c.l.b16 %v72
  %v291 = vunpack.c.h.b16 %v72
  %v292 = vunpack.c.l.b16 %v73
  %v293 = vunpack.c.h.b16 %v73
  %v294 = vunpack.c.l.b16 %v74
  %v295 = vunpack.c.h.b16 %v74
  %v296 = vunpack.c.l.b16 %v75
  %v297 = vunpack.c.h.b16 %v75
  %v298 = vunpack.c.l.b16 %v76
  %v299 = vunpack.c.h.b16 %v76
  %v300 = vunpack.c.l.b16 %v77
  %v301 = vunpack.c.h.b16 %v77
  %v302 = vpack.c.b16 %v176, %v174
  %v303 = vpack.c.b16 %v177, %v175
  %v304 = vpack.c.b16 %v180, %v178
  %v305 = vpack.c.b16 %v181, %v179
  %v306 = vpack.c.b16 %v184, %v182
  %v307 = vpack.c.b16 %v185, %v183
  %v308 = vpack.c.b16 %v188, %v186
  %v309 = vpack.c.b16 %v189, %v187
  %v310 = vpack.c.b16 %v192, %v190
  %v311 = vpack.c.b16 %v193, %v191
  %v312 = vpack.c.b16 %v196, %v194
  %v313 = vpack.c.b16 %v197, %v195
  %v314 = vpack.c.b16 %v200, %v198
  %v315 = vpack.c.b16 %v201, %v199
  %v316 = vpack.c.b16 %v204, %v202
  %v317 = vpack.c.b16 %v205, %v203
  %v318 = vpack.c.b16 %v208, %v206
  %v319 = vpack.c.b16 %v209, %v207
  %v320 = vpack.c.b16 %v212, %v210
  %v321 = vpack.c.b16 %v213, %v211
  %v322 = vpack.c.b16 %v216, %v214
  %v323 = vpack.c.b16 %v217, %v215
  %v324 = vpack.c.b16 %v220, %v218
  %v325 = vpack.c.b16 %v221, %v219
  %v326 = vpack.c.b16 %v224, %v222
  %v327 = vpack.c.b16 %v225, %v223
  %v328 = vpack.c.b16 %v228, %v226
  %v329 = vpack.c.b16 %v229, %v227
  %v330 = vpack.c.b16 %v232, %v230
  %v331 = vpack.c.b16 %v233, %v231
  %v332 = vpack.c.b16 %v236, %v234
  %v333 = vpack.c.b16 %v237, %v235
  %v334 = vpack.c.b16 %v240, %v238
  %v335 = vpack.c.b16 %v241, %v239
  %v336 = vpack.c.b16 %v244, %v242
  %v337 = vpack.c.b16 %v245, %v243
  %v338 = vpack.c.b16 %v248, %v246
  %v339 = vpack.c.b16 %v249, %v247
  %v340 = vpack.c.b16 %v252, %v250
  %v341 = vpack.c.b16 %v253, %v251
  %v342 = vpack.c.b16 %v256, %v254
  %v343 = vpack.c.b16 %v257, %v255
  %v344 = vpack.c.b16 %v260, %v258
  %v345 = vpack.c.b16 %v261, %v259
  %v346 = vpack.c.b16 %v264, %v262
  %v347 = vpack.c.b16 %v265, %v263
  %v348 = vpack.c.b16 %v268, %v266
  %v349 = vpack.c.b16 %v269, %v267
  %v350 = vpack.c.b16 %v272, %v270
  %v351 = vpack.c.b16 %v273, %v271
  %v352 = vpack.c.b16 %v276, %v274
  %v353 = vpack.c.b16 %v277, %v275
  %v354 = vpack.c.b16 %v280, %v278
  %v355 = vpack.c.b16 %v281, %v279
  %v356 = vpack.c.b16 %v284, %v282
  %v357 = vpack.c.b16 %v285, %v283
  %v358 = vpack.c.b16 %v288, %v286
  %v359 = vpack.c.b16 %v289, %v287
  %v360 = vpack.c.b16 %v292, %v290
  %v361 = vpack.c.b16 %v293, %v291
  %v362 = vpack.c.b16 %v296, %v294
  %v363 = vpack.c.b16 %v297, %v295
  %v364 = vpack.c.b16 %v300, %v298
  %v365 = vpack.c.b16 %v301, %v299
  %v462 = vunpack.c.l.b16 %v78
  %v463 = vunpack.c.l.b16 %v79
  %v464 = vunpack.c.l.b16 %v80
  %v465 = vunpack.c.l.b16 %v81
  %v466 = vunpack.c.l.b16 %v82
  %v467 = vunpack.c.l.b16 %v83
  %v468 = vunpack.c.l.b16 %v84
  %v469 = vunpack.c.l.b16 %v85
  %v470 = vunpack.c.l.b16 %v86
  %v471 = vunpack.c.l.b16 %v87
  %v472 = vunpack.c.l.b16 %v88
  %v473 = vunpack.c.l.b16 %v89
  %v474 = vunpack.c.l.b16 %v90
  %v475 = vunpack.c.l.b16 %v91
  %v476 = vunpack.c.l.b16 %v92
  %v477 = vunpack.c.l.b16 %v93
  %v478 = vunpack.c.l.b16 %v94
  %v479 = vunpack.c.l.b16 %v95
  %v480 = vunpack.c.l.b16 %v96
  %v481 = vunpack.c.l.b16 %v97
  %v482 = vunpack.c.l.b16 %v98
  %v483 = vunpack.c.l.b16 %v99
  %v484 = vunpack.c.l.b16 %v100
  %v485 = vunpack.c.l.b16 %v101
  %v486 = vunpack.c.l.b16 %v102
  %v487 = vunpack.c.l.b16 %v103
  %v488 = vunpack.c.l.b16 %v104
  %v489 = vunpack.c.l.b16 %v105
  %v490 = vunpack.c.l.b16 %v106
  %v491 = vunpack.c.l.b16 %v107
  %v492 = vunpack.c.l.b16 %v108
  %v493 = vunpack.c.l.b16 %v109
  %v494 = vpack.c.b16 %v463, %v462
  %v495 = vpack.c.b16 %v465, %v464
  %v496 = vpack.c.b16 %v467, %v466
  %v497 = vpack.c.b16 %v469, %v468
  %v498 = vpack.c.b16 %v471, %v470
  %v499 = vpack.c.b16 %v473, %v472
  %v500 = vpack.c.b16 %v475, %v474
  %v501 = vpack.c.b16 %v477, %v476
  %v502 = vpack.c.b16 %v479, %v478
  %v503 = vpack.c.b16 %v481, %v480
  %v504 = vpack.c.b16 %v483, %v482
  %v505 = vpack.c.b16 %v485, %v484
  %v506 = vpack.c.b16 %v487, %v486
  %v507 = vpack.c.b16 %v489, %v488
  %v508 = vpack.c.b16 %v491, %v490
  %v509 = vpack.c.b16 %v493, %v492
  %526 = vmatpush.bf16.msra.mxu0 %v501
  %527 = vmatpush.bf16.msra.mxu0 %v500
  %528 = vmatpush.bf16.msra.mxu0 %v499
  %529 = vmatpush.bf16.msra.mxu0 %v498
  %530 = vmatpush.bf16.msra.mxu0 %v497
  %531 = vmatpush.bf16.msra.mxu0 %v496
  %532 = vmatpush.bf16.msra.mxu0 %v495
  %533 = vmatpush.bf16.msra.mxu0 %v494
  %534 = vmatmul.bf16.gmra.mxu0 %v302
  %v535 = vpop.f32.mrf.mxu0
  %v536 = vadd.f32 0.0, %v535
  %v537 = vpop.f32.mrf.mxu0
  %v538 = vadd.f32 0.0, %v537
  %539 = vmatmul.bf16.gmra.mxu0 %v304
  %v540 = vpop.f32.mrf.mxu0
  %v541 = vadd.f32 0.0, %v540
  %v542 = vpop.f32.mrf.mxu0
  %v543 = vadd.f32 0.0, %v542
  %544 = vmatmul.bf16.gmra.mxu0 %v306
  %v545 = vpop.f32.mrf.mxu0
  %v546 = vadd.f32 0.0, %v545
  %v547 = vpop.f32.mrf.mxu0
  %v548 = vadd.f32 0.0, %v547
  %549 = vmatmul.bf16.gmra.mxu0 %v308
  %v550 = vpop.f32.mrf.mxu0
  %v551 = vadd.f32 0.0, %v550
  %v552 = vpop.f32.mrf.mxu0
  %v553 = vadd.f32 0.0, %v552
  %554 = vmatmul.bf16.gmra.mxu0 %v310
  %v555 = vpop.f32.mrf.mxu0
  %v556 = vadd.f32 0.0, %v555
  %v557 = vpop.f32.mrf.mxu0
  %v558 = vadd.f32 0.0, %v557
  %559 = vmatmul.bf16.gmra.mxu0 %v312
  %v560 = vpop.f32.mrf.mxu0
  %v561 = vadd.f32 0.0, %v560
  %v562 = vpop.f32.mrf.mxu0
  %v563 = vadd.f32 0.0, %v562
  %564 = vmatmul.bf16.gmra.mxu0 %v314
  %v565 = vpop.f32.mrf.mxu0
  %v566 = vadd.f32 0.0, %v565
  %v567 = vpop.f32.mrf.mxu0
  %v568 = vadd.f32 0.0, %v567
  %569 = vmatmul.bf16.gmra.mxu0 %v316
  %v570 = vpop.f32.mrf.mxu0
  %v571 = vadd.f32 0.0, %v570
  %v572 = vpop.f32.mrf.mxu0
  %v573 = vadd.f32 0.0, %v572
  %574 = vmatmul.bf16.gmra.mxu0 %v318
  %v575 = vpop.f32.mrf.mxu0
  %v576 = vadd.f32 0.0, %v575
  %v577 = vpop.f32.mrf.mxu0
  %v578 = vadd.f32 0.0, %v577
  %579 = vmatmul.bf16.gmra.mxu0 %v320
  %v580 = vpop.f32.mrf.mxu0
  %v581 = vadd.f32 0.0, %v580
  %v582 = vpop.f32.mrf.mxu0
  %v583 = vadd.f32 0.0, %v582
  %584 = vmatmul.bf16.gmra.mxu0 %v322
  %v585 = vpop.f32.mrf.mxu0
  %v586 = vadd.f32 0.0, %v585
  %v587 = vpop.f32.mrf.mxu0
  %v588 = vadd.f32 0.0, %v587
  %589 = vmatmul.bf16.gmra.mxu0 %v324
  %v590 = vpop.f32.mrf.mxu0
  %v591 = vadd.f32 0.0, %v590
  %v592 = vpop.f32.mrf.mxu0
  %v593 = vadd.f32 0.0, %v592
  %594 = vmatmul.bf16.gmra.mxu0 %v326
  %v595 = vpop.f32.mrf.mxu0
  %v596 = vadd.f32 0.0, %v595
  %v597 = vpop.f32.mrf.mxu0
  %v598 = vadd.f32 0.0, %v597
  %599 = vmatmul.bf16.gmra.mxu0 %v328
  %v600 = vpop.f32.mrf.mxu0
  %v601 = vadd.f32 0.0, %v600
  %v602 = vpop.f32.mrf.mxu0
  %v603 = vadd.f32 0.0, %v602
  %604 = vmatmul.bf16.gmra.mxu0 %v330
  %v605 = vpop.f32.mrf.mxu0
  %v606 = vadd.f32 0.0, %v605
  %v607 = vpop.f32.mrf.mxu0
  %v608 = vadd.f32 0.0, %v607
  %609 = vmatmul.bf16.gmra.mxu0 %v332
  %v610 = vpop.f32.mrf.mxu0
  %v611 = vadd.f32 0.0, %v610
  %v612 = vpop.f32.mrf.mxu0
  %v613 = vadd.f32 0.0, %v612
  %614 = vmatmul.bf16.gmra.mxu0 %v334
  %v615 = vpop.f32.mrf.mxu0
  %v616 = vadd.f32 0.0, %v615
  %v617 = vpop.f32.mrf.mxu0
  %v618 = vadd.f32 0.0, %v617
  %619 = vmatmul.bf16.gmra.mxu0 %v336
  %v620 = vpop.f32.mrf.mxu0
  %v621 = vadd.f32 0.0, %v620
  %v622 = vpop.f32.mrf.mxu0
  %v623 = vadd.f32 0.0, %v622
  %624 = vmatmul.bf16.gmra.mxu0 %v338
  %v625 = vpop.f32.mrf.mxu0
  %v626 = vadd.f32 0.0, %v625
  %v627 = vpop.f32.mrf.mxu0
  %v628 = vadd.f32 0.0, %v627
  %629 = vmatmul.bf16.gmra.mxu0 %v340
  %v630 = vpop.f32.mrf.mxu0
  %v631 = vadd.f32 0.0, %v630
  %v632 = vpop.f32.mrf.mxu0
  %v633 = vadd.f32 0.0, %v632
  %634 = vmatmul.bf16.gmra.mxu0 %v342
  %v635 = vpop.f32.mrf.mxu0
  %v636 = vadd.f32 0.0, %v635
  %v637 = vpop.f32.mrf.mxu0
  %v638 = vadd.f32 0.0, %v637
  %639 = vmatmul.bf16.gmra.mxu0 %v344
  %v640 = vpop.f32.mrf.mxu0
  %v641 = vadd.f32 0.0, %v640
  %v642 = vpop.f32.mrf.mxu0
  %v643 = vadd.f32 0.0, %v642
  %644 = vmatmul.bf16.gmra.mxu0 %v346
  %v645 = vpop.f32.mrf.mxu0
  %v646 = vadd.f32 0.0, %v645
  %v647 = vpop.f32.mrf.mxu0
  %v648 = vadd.f32 0.0, %v647
  %649 = vmatmul.bf16.gmra.mxu0 %v348
  %v650 = vpop.f32.mrf.mxu0
  %v651 = vadd.f32 0.0, %v650
  %v652 = vpop.f32.mrf.mxu0
  %v653 = vadd.f32 0.0, %v652
  %654 = vmatmul.bf16.gmra.mxu0 %v350
  %v655 = vpop.f32.mrf.mxu0
  %v656 = vadd.f32 0.0, %v655
  %v657 = vpop.f32.mrf.mxu0
  %v658 = vadd.f32 0.0, %v657
  %659 = vmatmul.bf16.gmra.mxu0 %v352
  %v660 = vpop.f32.mrf.mxu0
  %v661 = vadd.f32 0.0, %v660
  %v662 = vpop.f32.mrf.mxu0
  %v663 = vadd.f32 0.0, %v662
  %664 = vmatmul.bf16.gmra.mxu0 %v354
  %v665 = vpop.f32.mrf.mxu0
  %v666 = vadd.f32 0.0, %v665
  %v667 = vpop.f32.mrf.mxu0
  %v668 = vadd.f32 0.0, %v667
  %669 = vmatmul.bf16.gmra.mxu0 %v356
  %v670 = vpop.f32.mrf.mxu0
  %v671 = vadd.f32 0.0, %v670
  %v672 = vpop.f32.mrf.mxu0
  %v673 = vadd.f32 0.0, %v672
  %674 = vmatmul.bf16.gmra.mxu0 %v358
  %v675 = vpop.f32.mrf.mxu0
  %v676 = vadd.f32 0.0, %v675
  %v677 = vpop.f32.mrf.mxu0
  %v678 = vadd.f32 0.0, %v677
  %679 = vmatmul.bf16.gmra.mxu0 %v360
  %v680 = vpop.f32.mrf.mxu0
  %v681 = vadd.f32 0.0, %v680
  %v682 = vpop.f32.mrf.mxu0
  %v683 = vadd.f32 0.0, %v682
  %684 = vmatmul.bf16.gmra.mxu0 %v362
  %v685 = vpop.f32.mrf.mxu0
  %v686 = vadd.f32 0.0, %v685
  %v687 = vpop.f32.mrf.mxu0
  %v688 = vadd.f32 0.0, %v687
  %689 = vmatmul.bf16.gmra.mxu0 %v364
  %v690 = vpop.f32.mrf.mxu0
  %v691 = vadd.f32 0.0, %v690
  %v692 = vpop.f32.mrf.mxu0
  %v693 = vadd.f32 0.0, %v692
  %694 = vdwg.mxu0
  %695 = vmatpush.bf16.msra.mxu0 %v509
  %696 = vmatpush.bf16.msra.mxu0 %v508
  %697 = vmatpush.bf16.msra.mxu0 %v507
  %698 = vmatpush.bf16.msra.mxu0 %v506
  %699 = vmatpush.bf16.msra.mxu0 %v505
  %700 = vmatpush.bf16.msra.mxu0 %v504
  %701 = vmatpush.bf16.msra.mxu0 %v503
  %702 = vmatpush.bf16.msra.mxu0 %v502
  %703 = vmatmul.bf16.gmra.mxu0 %v303
  %v704 = vpop.f32.mrf.mxu0
  %v705 = vadd.f32 %v536, %v704
  %v706 = vpop.f32.mrf.mxu0
  %v707 = vadd.f32 %v538, %v706
  %708 = vmatmul.bf16.gmra.mxu0 %v305
  %v709 = vpop.f32.mrf.mxu0
  %v710 = vadd.f32 %v541, %v709
  %v711 = vpop.f32.mrf.mxu0
  %v712 = vadd.f32 %v543, %v711
  %713 = vmatmul.bf16.gmra.mxu0 %v307
  %v714 = vpop.f32.mrf.mxu0
  %v715 = vadd.f32 %v546, %v714
  %v716 = vpop.f32.mrf.mxu0
  %v717 = vadd.f32 %v548, %v716
  %718 = vmatmul.bf16.gmra.mxu0 %v309
  %v719 = vpop.f32.mrf.mxu0
  %v720 = vadd.f32 %v551, %v719
  %v721 = vpop.f32.mrf.mxu0
  %v722 = vadd.f32 %v553, %v721
  %723 = vmatmul.bf16.gmra.mxu0 %v311
  %v724 = vpop.f32.mrf.mxu0
  %v725 = vadd.f32 %v556, %v724
  %v726 = vpop.f32.mrf.mxu0
  %v727 = vadd.f32 %v558, %v726
  %728 = vmatmul.bf16.gmra.mxu0 %v313
  %v729 = vpop.f32.mrf.mxu0
  %v730 = vadd.f32 %v561, %v729
  %v731 = vpop.f32.mrf.mxu0
  %v732 = vadd.f32 %v563, %v731
  %733 = vmatmul.bf16.gmra.mxu0 %v315
  %v734 = vpop.f32.mrf.mxu0
  %v735 = vadd.f32 %v566, %v734
  %v736 = vpop.f32.mrf.mxu0
  %v737 = vadd.f32 %v568, %v736
  %738 = vmatmul.bf16.gmra.mxu0 %v317
  %v739 = vpop.f32.mrf.mxu0
  %v740 = vadd.f32 %v571, %v739
  %v741 = vpop.f32.mrf.mxu0
  %v742 = vadd.f32 %v573, %v741
  %743 = vmatmul.bf16.gmra.mxu0 %v319
  %v744 = vpop.f32.mrf.mxu0
  %v745 = vadd.f32 %v576, %v744
  %v746 = vpop.f32.mrf.mxu0
  %v747 = vadd.f32 %v578, %v746
  %748 = vmatmul.bf16.gmra.mxu0 %v321
  %v749 = vpop.f32.mrf.mxu0
  %v750 = vadd.f32 %v581, %v749
  %v751 = vpop.f32.mrf.mxu0
  %v752 = vadd.f32 %v583, %v751
  %753 = vmatmul.bf16.gmra.mxu0 %v323
  %v754 = vpop.f32.mrf.mxu0
  %v755 = vadd.f32 %v586, %v754
  %v756 = vpop.f32.mrf.mxu0
  %v757 = vadd.f32 %v588, %v756
  %758 = vmatmul.bf16.gmra.mxu0 %v325
  %v759 = vpop.f32.mrf.mxu0
  %v760 = vadd.f32 %v591, %v759
  %v761 = vpop.f32.mrf.mxu0
  %v762 = vadd.f32 %v593, %v761
  %763 = vmatmul.bf16.gmra.mxu0 %v327
  %v764 = vpop.f32.mrf.mxu0
  %v765 = vadd.f32 %v596, %v764
  %v766 = vpop.f32.mrf.mxu0
  %v767 = vadd.f32 %v598, %v766
  %768 = vmatmul.bf16.gmra.mxu0 %v329
  %v769 = vpop.f32.mrf.mxu0
  %v770 = vadd.f32 %v601, %v769
  %v771 = vpop.f32.mrf.mxu0
  %v772 = vadd.f32 %v603, %v771
  %773 = vmatmul.bf16.gmra.mxu0 %v331
  %v774 = vpop.f32.mrf.mxu0
  %v775 = vadd.f32 %v606, %v774
  %v776 = vpop.f32.mrf.mxu0
  %v777 = vadd.f32 %v608, %v776
  %778 = vmatmul.bf16.gmra.mxu0 %v333
  %v779 = vpop.f32.mrf.mxu0
  %v780 = vadd.f32 %v611, %v779
  %v781 = vpop.f32.mrf.mxu0
  %v782 = vadd.f32 %v613, %v781
  %783 = vmatmul.bf16.gmra.mxu0 %v335
  %v784 = vpop.f32.mrf.mxu0
  %v785 = vadd.f32 %v616, %v784
  %v786 = vpop.f32.mrf.mxu0
  %v787 = vadd.f32 %v618, %v786
  %788 = vmatmul.bf16.gmra.mxu0 %v337
  %v789 = vpop.f32.mrf.mxu0
  %v790 = vadd.f32 %v621, %v789
  %v791 = vpop.f32.mrf.mxu0
  %v792 = vadd.f32 %v623, %v791
  %793 = vmatmul.bf16.gmra.mxu0 %v339
  %v794 = vpop.f32.mrf.mxu0
  %v795 = vadd.f32 %v626, %v794
  %v796 = vpop.f32.mrf.mxu0
  %v797 = vadd.f32 %v628, %v796
  %798 = vmatmul.bf16.gmra.mxu0 %v341
  %v799 = vpop.f32.mrf.mxu0
  %v800 = vadd.f32 %v631, %v799
  %v801 = vpop.f32.mrf.mxu0
  %v802 = vadd.f32 %v633, %v801
  %803 = vmatmul.bf16.gmra.mxu0 %v343
  %v804 = vpop.f32.mrf.mxu0
  %v805 = vadd.f32 %v636, %v804
  %v806 = vpop.f32.mrf.mxu0
  %v807 = vadd.f32 %v638, %v806
  %808 = vmatmul.bf16.gmra.mxu0 %v345
  %v809 = vpop.f32.mrf.mxu0
  %v810 = vadd.f32 %v641, %v809
  %v811 = vpop.f32.mrf.mxu0
  %v812 = vadd.f32 %v643, %v811
  %813 = vmatmul.bf16.gmra.mxu0 %v347
  %v814 = vpop.f32.mrf.mxu0
  %v815 = vadd.f32 %v646, %v814
  %v816 = vpop.f32.mrf.mxu0
  %v817 = vadd.f32 %v648, %v816
  %818 = vmatmul.bf16.gmra.mxu0 %v349
  %v819 = vpop.f32.mrf.mxu0
  %v820 = vadd.f32 %v651, %v819
  %v821 = vpop.f32.mrf.mxu0
  %v822 = vadd.f32 %v653, %v821
  %823 = vmatmul.bf16.gmra.mxu0 %v351
  %v824 = vpop.f32.mrf.mxu0
  %v825 = vadd.f32 %v656, %v824
  %v826 = vpop.f32.mrf.mxu0
  %v827 = vadd.f32 %v658, %v826
  %828 = vmatmul.bf16.gmra.mxu0 %v353
  %v829 = vpop.f32.mrf.mxu0
  %v830 = vadd.f32 %v661, %v829
  %v831 = vpop.f32.mrf.mxu0
  %v832 = vadd.f32 %v663, %v831
  %833 = vmatmul.bf16.gmra.mxu0 %v355
  %v834 = vpop.f32.mrf.mxu0
  %v835 = vadd.f32 %v666, %v834
  %v836 = vpop.f32.mrf.mxu0
  %v837 = vadd.f32 %v668, %v836
  %838 = vmatmul.bf16.gmra.mxu0 %v357
  %v839 = vpop.f32.mrf.mxu0
  %v840 = vadd.f32 %v671, %v839
  %v841 = vpop.f32.mrf.mxu0
  %v842 = vadd.f32 %v673, %v841
  %843 = vmatmul.bf16.gmra.mxu0 %v359
  %v844 = vpop.f32.mrf.mxu0
  %v845 = vadd.f32 %v676, %v844
  %v846 = vpop.f32.mrf.mxu0
  %v847 = vadd.f32 %v678, %v846
  %848 = vmatmul.bf16.gmra.mxu0 %v361
  %v849 = vpop.f32.mrf.mxu0
  %v850 = vadd.f32 %v681, %v849
  %v851 = vpop.f32.mrf.mxu0
  %v852 = vadd.f32 %v683, %v851
  %853 = vmatmul.bf16.gmra.mxu0 %v363
  %v854 = vpop.f32.mrf.mxu0
  %v855 = vadd.f32 %v686, %v854
  %v856 = vpop.f32.mrf.mxu0
  %v857 = vadd.f32 %v688, %v856
  %858 = vmatmul.bf16.gmra.mxu0 %v365
  %v859 = vpop.f32.mrf.mxu0
  %v860 = vadd.f32 %v691, %v859
  %v861 = vpop.f32.mrf.mxu0
  %v862 = vadd.f32 %v693, %v861
  %863 = vdwg.mxu0
  %v864 = vpack.c.bf16 %v705, %v705
  %v865 = vpack.c.bf16 %v707, %v707
  %v866 = vpack.c.bf16 %v710, %v710
  %v867 = vpack.c.bf16 %v712, %v712
  %v868 = vpack.c.bf16 %v715, %v715
  %v869 = vpack.c.bf16 %v717, %v717
  %v870 = vpack.c.bf16 %v720, %v720
  %v871 = vpack.c.bf16 %v722, %v722
  %v872 = vpack.c.bf16 %v725, %v725
  %v873 = vpack.c.bf16 %v727, %v727
  %v874 = vpack.c.bf16 %v730, %v730
  %v875 = vpack.c.bf16 %v732, %v732
  %v876 = vpack.c.bf16 %v735, %v735
  %v877 = vpack.c.bf16 %v737, %v737
  %v878 = vpack.c.bf16 %v740, %v740
  %v879 = vpack.c.bf16 %v742, %v742
  %v880 = vpack.c.bf16 %v745, %v745
  %v881 = vpack.c.bf16 %v747, %v747
  %v882 = vpack.c.bf16 %v750, %v750
  %v883 = vpack.c.bf16 %v752, %v752
  %v884 = vpack.c.bf16 %v755, %v755
  %v885 = vpack.c.bf16 %v757, %v757
  %v886 = vpack.c.bf16 %v760, %v760
  %v887 = vpack.c.bf16 %v762, %v762
  %v888 = vpack.c.bf16 %v765, %v765
  %v889 = vpack.c.bf16 %v767, %v767
  %v890 = vpack.c.bf16 %v770, %v770
  %v891 = vpack.c.bf16 %v772, %v772
  %v892 = vpack.c.bf16 %v775, %v775
  %v893 = vpack.c.bf16 %v777, %v777
  %v894 = vpack.c.bf16 %v780, %v780
  %v895 = vpack.c.bf16 %v782, %v782
  %v896 = vpack.c.bf16 %v785, %v785
  %v897 = vpack.c.bf16 %v787, %v787
  %v898 = vpack.c.bf16 %v790, %v790
  %v899 = vpack.c.bf16 %v792, %v792
  %v900 = vpack.c.bf16 %v795, %v795
  %v901 = vpack.c.bf16 %v797, %v797
  %v902 = vpack.c.bf16 %v800, %v800
  %v903 = vpack.c.bf16 %v802, %v802
  %v904 = vpack.c.bf16 %v805, %v805
  %v905 = vpack.c.bf16 %v807, %v807
  %v906 = vpack.c.bf16 %v810, %v810
  %v907 = vpack.c.bf16 %v812, %v812
  %v908 = vpack.c.bf16 %v815, %v815
  %v909 = vpack.c.bf16 %v817, %v817
  %v910 = vpack.c.bf16 %v820, %v820
  %v911 = vpack.c.bf16 %v822, %v822
  %v912 = vpack.c.bf16 %v825, %v825
  %v913 = vpack.c.bf16 %v827, %v827
  %v914 = vpack.c.bf16 %v830, %v830
  %v915 = vpack.c.bf16 %v832, %v832
  %v916 = vpack.c.bf16 %v835, %v835
  %v917 = vpack.c.bf16 %v837, %v837
  %v918 = vpack.c.bf16 %v840, %v840
  %v919 = vpack.c.bf16 %v842, %v842
  %v920 = vpack.c.bf16 %v845, %v845
  %v921 = vpack.c.bf16 %v847, %v847
  %v922 = vpack.c.bf16 %v850, %v850
  %v923 = vpack.c.bf16 %v852, %v852
  %v924 = vpack.c.bf16 %v855, %v855
  %v925 = vpack.c.bf16 %v857, %v857
  %v926 = vpack.c.bf16 %v860, %v860
  %v927 = vpack.c.bf16 %v862, %v862
  %928 = vst [vmem:[%s2] sm:$0xf] %v864
  %929 = vst [vmem:[%s2 + $0x4] sm:$0xf] %v865
  %930 = vst [vmem:[%s2 + $0x8] sm:$0xf] %v866
  %931 = vst [vmem:[%s2 + $0xc] sm:$0xf] %v867
  %932 = vst [vmem:[%s2 + $0x10] sm:$0xf] %v868
  %933 = vst [vmem:[%s2 + $0x14] sm:$0xf] %v869
  %934 = vst [vmem:[%s2 + $0x18] sm:$0xf] %v870
  %935 = vst [vmem:[%s2 + $0x1c] sm:$0xf] %v871
  %936 = vst [vmem:[%s2 + $0x20] sm:$0xf] %v872
  %937 = vst [vmem:[%s2 + $0x24] sm:$0xf] %v873
  %938 = vst [vmem:[%s2 + $0x28] sm:$0xf] %v874
  %939 = vst [vmem:[%s2 + $0x2c] sm:$0xf] %v875
  %940 = vst [vmem:[%s2 + $0x30] sm:$0xf] %v876
  %941 = vst [vmem:[%s2 + $0x34] sm:$0xf] %v877
  %942 = vst [vmem:[%s2 + $0x38] sm:$0xf] %v878
  %943 = vst [vmem:[%s2 + $0x3c] sm:$0xf] %v879
  %944 = vst [vmem:[%s2 + $0x40] sm:$0xf] %v880
  %945 = vst [vmem:[%s2 + $0x44] sm:$0xf] %v881
  %946 = vst [vmem:[%s2 + $0x48] sm:$0xf] %v882
  %947 = vst [vmem:[%s2 + $0x4c] sm:$0xf] %v883
  %948 = vst [vmem:[%s2 + $0x50] sm:$0xf] %v884
  %949 = vst [vmem:[%s2 + $0x54] sm:$0xf] %v885
  %950 = vst [vmem:[%s2 + $0x58] sm:$0xf] %v886
  %951 = vst [vmem:[%s2 + $0x5c] sm:$0xf] %v887
  %952 = vst [vmem:[%s2 + $0x60] sm:$0xf] %v888
  %953 = vst [vmem:[%s2 + $0x64] sm:$0xf] %v889
  %954 = vst [vmem:[%s2 + $0x68] sm:$0xf] %v890
  %955 = vst [vmem:[%s2 + $0x6c] sm:$0xf] %v891
  %956 = vst [vmem:[%s2 + $0x70] sm:$0xf] %v892
  %957 = vst [vmem:[%s2 + $0x74] sm:$0xf] %v893
  %958 = vst [vmem:[%s2 + $0x78] sm:$0xf] %v894
  %959 = vst [vmem:[%s2 + $0x7c] sm:$0xf] %v895
  %960 = vst [vmem:[%s2 + $0x80] sm:$0xf] %v896
  %961 = vst [vmem:[%s2 + $0x84] sm:$0xf] %v897
  %962 = vst [vmem:[%s2 + $0x88] sm:$0xf] %v898
  %963 = vst [vmem:[%s2 + $0x8c] sm:$0xf] %v899
  %964 = vst [vmem:[%s2 + $0x90] sm:$0xf] %v900
  %965 = vst [vmem:[%s2 + $0x94] sm:$0xf] %v901
  %966 = vst [vmem:[%s2 + $0x98] sm:$0xf] %v902
  %967 = vst [vmem:[%s2 + $0x9c] sm:$0xf] %v903
  %968 = vst [vmem:[%s2 + $0xa0] sm:$0xf] %v904
  %969 = vst [vmem:[%s2 + $0xa4] sm:$0xf] %v905
  %970 = vst [vmem:[%s2 + $0xa8] sm:$0xf] %v906
  %971 = vst [vmem:[%s2 + $0xac] sm:$0xf] %v907
  %972 = vst [vmem:[%s2 + $0xb0] sm:$0xf] %v908
  %973 = vst [vmem:[%s2 + $0xb4] sm:$0xf] %v909
  %974 = vst [vmem:[%s2 + $0xb8] sm:$0xf] %v910
  %975 = vst [vmem:[%s2 + $0xbc] sm:$0xf] %v911
  %976 = vst [vmem:[%s2 + $0xc0] sm:$0xf] %v912
  %977 = vst [vmem:[%s2 + $0xc4] sm:$0xf] %v913
  %978 = vst [vmem:[%s2 + $0xc8] sm:$0xf] %v914
  %979 = vst [vmem:[%s2 + $0xcc] sm:$0xf] %v915
  %980 = vst [vmem:[%s2 + $0xd0] sm:$0xf] %v916
  %981 = vst [vmem:[%s2 + $0xd4] sm:$0xf] %v917
  %982 = vst [vmem:[%s2 + $0xd8] sm:$0xf] %v918
  %983 = vst [vmem:[%s2 + $0xdc] sm:$0xf] %v919
  %984 = vst [vmem:[%s2 + $0xe0] sm:$0xf] %v920
  %985 = vst [vmem:[%s2 + $0xe4] sm:$0xf] %v921
  %986 = vst [vmem:[%s2 + $0xe8] sm:$0xf] %v922
  %987 = vst [vmem:[%s2 + $0xec] sm:$0xf] %v923
  %988 = vst [vmem:[%s2 + $0xf0] sm:$0xf] %v924
  %989 = vst [vmem:[%s2 + $0xf4] sm:$0xf] %v925
  %990 = vst [vmem:[%s2 + $0xf8] sm:$0xf] %v926
  %991 = vst [vmem:[%s2 + $0xfc] sm:$0xf] %v927
  %v992 = vadd.f32 %v705, %v707
  %v993 = vadd.f32 %v992, %v710
  %v994 = vadd.f32 %v993, %v712
  %v995 = vadd.f32 %v994, %v715
  %v996 = vadd.f32 %v995, %v717
  %v997 = vadd.f32 %v996, %v720
  %v998 = vadd.f32 %v997, %v722
  %v999 = vadd.f32 %v998, %v725
  %v1000 = vadd.f32 %v999, %v727
  %v1001 = vadd.f32 %v1000, %v730
  %v1002 = vadd.f32 %v1001, %v732
  %v1003 = vadd.f32 %v1002, %v735
  %v1004 = vadd.f32 %v1003, %v737
  %v1005 = vadd.f32 %v1004, %v740
  %v1006 = vadd.f32 %v1005, %v742
  %v1007 = vadd.f32 %v1006, %v745
  %v1008 = vadd.f32 %v1007, %v747
  %v1009 = vadd.f32 %v1008, %v750
  %v1010 = vadd.f32 %v1009, %v752
  %v1011 = vadd.f32 %v1010, %v755
  %v1012 = vadd.f32 %v1011, %v757
  %v1013 = vadd.f32 %v1012, %v760
  %v1014 = vadd.f32 %v1013, %v762
  %v1015 = vadd.f32 %v1014, %v765
  %v1016 = vadd.f32 %v1015, %v767
  %v1017 = vadd.f32 %v1016, %v770
  %v1018 = vadd.f32 %v1017, %v772
  %v1019 = vadd.f32 %v1018, %v775
  %v1020 = vadd.f32 %v1019, %v777
  %v1021 = vadd.f32 %v1020, %v780
  %v1022 = vadd.f32 %v1021, %v782
  %v1023 = vadd.f32 %v1022, %v785
  %v1024 = vadd.f32 %v1023, %v787
  %v1025 = vadd.f32 %v1024, %v790
  %v1026 = vadd.f32 %v1025, %v792
  %v1027 = vadd.f32 %v1026, %v795
  %v1028 = vadd.f32 %v1027, %v797
  %v1029 = vadd.f32 %v1028, %v800
  %v1030 = vadd.f32 %v1029, %v802
  %v1031 = vadd.f32 %v1030, %v805
  %v1032 = vadd.f32 %v1031, %v807
  %v1033 = vadd.f32 %v1032, %v810
  %v1034 = vadd.f32 %v1033, %v812
  %v1035 = vadd.f32 %v1034, %v815
  %v1036 = vadd.f32 %v1035, %v817
  %v1037 = vadd.f32 %v1036, %v820
  %v1038 = vadd.f32 %v1037, %v822
  %v1039 = vadd.f32 %v1038, %v825
  %v1040 = vadd.f32 %v1039, %v827
  %v1041 = vadd.f32 %v1040, %v830
  %v1042 = vadd.f32 %v1041, %v832
  %v1043 = vadd.f32 %v1042, %v835
  %v1044 = vadd.f32 %v1043, %v837
  %v1045 = vadd.f32 %v1044, %v840
  %v1046 = vadd.f32 %v1045, %v842
  %v1047 = vadd.f32 %v1046, %v845
  %v1048 = vadd.f32 %v1047, %v847
  %v1049 = vadd.f32 %v1048, %v850
  %v1050 = vadd.f32 %v1049, %v852
  %v1051 = vadd.f32 %v1050, %v855
  %v1052 = vadd.f32 %v1051, %v857
  %v1053 = vadd.f32 %v1052, %v860
  %v1054 = vadd.f32 %v1053, %v862
  %v1055 = vrot.slane %v1054, 4
  %v1056 = vadd.f32 %v1054, %v1055
  %v1057 = vrot.slane %v1056, 2
  %v1058 = vadd.f32 %v1056, %v1057
  %v1059 = vrot.slane %v1058, 1
  %v1060 = vadd.f32 %v1058, %v1059
  %v1061 = vmul.f32 %v705, %v705
  %v1062 = vmul.f32 %v707, %v707
  %v1063 = vmul.f32 %v710, %v710
  %v1064 = vmul.f32 %v712, %v712
  %v1065 = vmul.f32 %v715, %v715
  %v1066 = vmul.f32 %v717, %v717
  %v1067 = vmul.f32 %v720, %v720
  %v1068 = vmul.f32 %v722, %v722
  %v1069 = vmul.f32 %v725, %v725
  %v1070 = vmul.f32 %v727, %v727
  %v1071 = vmul.f32 %v730, %v730
  %v1072 = vmul.f32 %v732, %v732
  %v1073 = vmul.f32 %v735, %v735
  %v1074 = vmul.f32 %v737, %v737
  %v1075 = vmul.f32 %v740, %v740
  %v1076 = vmul.f32 %v742, %v742
  %v1077 = vmul.f32 %v745, %v745
  %v1078 = vmul.f32 %v747, %v747
  %v1079 = vmul.f32 %v750, %v750
  %v1080 = vmul.f32 %v752, %v752
  %v1081 = vmul.f32 %v755, %v755
  %v1082 = vmul.f32 %v757, %v757
  %v1083 = vmul.f32 %v760, %v760
  %v1084 = vmul.f32 %v762, %v762
  %v1085 = vmul.f32 %v765, %v765
  %v1086 = vmul.f32 %v767, %v767
  %v1087 = vmul.f32 %v770, %v770
  %v1088 = vmul.f32 %v772, %v772
  %v1089 = vmul.f32 %v775, %v775
  %v1090 = vmul.f32 %v777, %v777
  %v1091 = vmul.f32 %v780, %v780
  %v1092 = vmul.f32 %v782, %v782
  %v1093 = vmul.f32 %v785, %v785
  %v1094 = vmul.f32 %v787, %v787
  %v1095 = vmul.f32 %v790, %v790
  %v1096 = vmul.f32 %v792, %v792
  %v1097 = vmul.f32 %v795, %v795
  %v1098 = vmul.f32 %v797, %v797
  %v1099 = vmul.f32 %v800, %v800
  %v1100 = vmul.f32 %v802, %v802
  %v1101 = vmul.f32 %v805, %v805
  %v1102 = vmul.f32 %v807, %v807
  %v1103 = vmul.f32 %v810, %v810
  %v1104 = vmul.f32 %v812, %v812
  %v1105 = vmul.f32 %v815, %v815
  %v1106 = vmul.f32 %v817, %v817
  %v1107 = vmul.f32 %v820, %v820
  %v1108 = vmul.f32 %v822, %v822
  %v1109 = vmul.f32 %v825, %v825
  %v1110 = vmul.f32 %v827, %v827
  %v1111 = vmul.f32 %v830, %v830
  %v1112 = vmul.f32 %v832, %v832
  %v1113 = vmul.f32 %v835, %v835
  %v1114 = vmul.f32 %v837, %v837
  %v1115 = vmul.f32 %v840, %v840
  %v1116 = vmul.f32 %v842, %v842
  %v1117 = vmul.f32 %v845, %v845
  %v1118 = vmul.f32 %v847, %v847
  %v1119 = vmul.f32 %v850, %v850
  %v1120 = vmul.f32 %v852, %v852
  %v1121 = vmul.f32 %v855, %v855
  %v1122 = vmul.f32 %v857, %v857
  %v1123 = vmul.f32 %v860, %v860
  %v1124 = vmul.f32 %v862, %v862
  %v1125 = vadd.f32 %v1061, %v1062
  %v1126 = vadd.f32 %v1125, %v1063
  %v1127 = vadd.f32 %v1126, %v1064
  %v1128 = vadd.f32 %v1127, %v1065
  %v1129 = vadd.f32 %v1128, %v1066
  %v1130 = vadd.f32 %v1129, %v1067
  %v1131 = vadd.f32 %v1130, %v1068
  %v1132 = vadd.f32 %v1131, %v1069
  %v1133 = vadd.f32 %v1132, %v1070
  %v1134 = vadd.f32 %v1133, %v1071
  %v1135 = vadd.f32 %v1134, %v1072
  %v1136 = vadd.f32 %v1135, %v1073
  %v1137 = vadd.f32 %v1136, %v1074
  %v1138 = vadd.f32 %v1137, %v1075
  %v1139 = vadd.f32 %v1138, %v1076
  %v1140 = vadd.f32 %v1139, %v1077
  %v1141 = vadd.f32 %v1140, %v1078
  %v1142 = vadd.f32 %v1141, %v1079
  %v1143 = vadd.f32 %v1142, %v1080
  %v1144 = vadd.f32 %v1143, %v1081
  %v1145 = vadd.f32 %v1144, %v1082
  %v1146 = vadd.f32 %v1145, %v1083
  %v1147 = vadd.f32 %v1146, %v1084
  %v1148 = vadd.f32 %v1147, %v1085
  %v1149 = vadd.f32 %v1148, %v1086
  %v1150 = vadd.f32 %v1149, %v1087
  %v1151 = vadd.f32 %v1150, %v1088
  %v1152 = vadd.f32 %v1151, %v1089
  %v1153 = vadd.f32 %v1152, %v1090
  %v1154 = vadd.f32 %v1153, %v1091
  %v1155 = vadd.f32 %v1154, %v1092
  %v1156 = vadd.f32 %v1155, %v1093
  %v1157 = vadd.f32 %v1156, %v1094
  %v1158 = vadd.f32 %v1157, %v1095
  %v1159 = vadd.f32 %v1158, %v1096
  %v1160 = vadd.f32 %v1159, %v1097
  %v1161 = vadd.f32 %v1160, %v1098
  %v1162 = vadd.f32 %v1161, %v1099
  %v1163 = vadd.f32 %v1162, %v1100
  %v1164 = vadd.f32 %v1163, %v1101
  %v1165 = vadd.f32 %v1164, %v1102
  %v1166 = vadd.f32 %v1165, %v1103
  %v1167 = vadd.f32 %v1166, %v1104
  %v1168 = vadd.f32 %v1167, %v1105
  %v1169 = vadd.f32 %v1168, %v1106
  %v1170 = vadd.f32 %v1169, %v1107
  %v1171 = vadd.f32 %v1170, %v1108
  %v1172 = vadd.f32 %v1171, %v1109
  %v1173 = vadd.f32 %v1172, %v1110
  %v1174 = vadd.f32 %v1173, %v1111
  %v1175 = vadd.f32 %v1174, %v1112
  %v1176 = vadd.f32 %v1175, %v1113
  %v1177 = vadd.f32 %v1176, %v1114
  %v1178 = vadd.f32 %v1177, %v1115
  %v1179 = vadd.f32 %v1178, %v1116
  %v1180 = vadd.f32 %v1179, %v1117
  %v1181 = vadd.f32 %v1180, %v1118
  %v1182 = vadd.f32 %v1181, %v1119
  %v1183 = vadd.f32 %v1182, %v1120
  %v1184 = vadd.f32 %v1183, %v1121
  %v1185 = vadd.f32 %v1184, %v1122
  %v1186 = vadd.f32 %v1185, %v1123
  %v1187 = vadd.f32 %v1186, %v1124
  %v1188 = vrot.slane %v1187, 4
  %v1189 = vadd.f32 %v1187, %v1188
  %v1190 = vrot.slane %v1189, 2
  %v1191 = vadd.f32 %v1189, %v1190
  %v1192 = vrot.slane %v1191, 1
  %v1193 = vadd.f32 %v1191, %v1192
  %1194 = vst [vmem:[%s3] sm:$0xff] %v1060
  %1195 = vst [vmem:[%s4] sm:$0xff] %v1193
  // Predicated region
  $region10: #{_lambda_.66} parent=0 // pred_check
    _
  $region11: #{_lambda_.66} parent=0 // pred_check_branch
    %1197 = sbr.rel (0) target = $region13
  $region12: #{_lambda_.66} parent=0 // pred_region
    _
  $region13: #{_lambda_.66} parent=0 // pred_fallthru
    _
  // Predicated region
  $region14: #{_lambda_.66} parent=0 // pred_check
    _
  $region15: #{_lambda_.66} parent=0 // pred_check_branch
    %1199 = sbr.rel (0) target = $region17
  $region16: #{_lambda_.66} parent=0 // pred_region
    _
  $region17: #{_lambda_.66} parent=0 // pred_fallthru
    _
  // Predicated region
  $region18: #{_lambda_.66} parent=0 // pred_check
    _
  $region19: #{_lambda_.66} parent=0 // pred_check_branch
    %1201 = sbr.rel (0) target = $region21
  $region20: #{_lambda_.66} parent=0 // pred_region
    _
  $region21: #{_lambda_.66} parent=0 // pred_fallthru
    _
  // Predicated region
  $region22: #{_lambda_.66} parent=0 // pred_check
    _
  $region23: #{_lambda_.66} parent=0 // pred_check_branch
    %1203 = sbr.rel (0) target = $region25
  $region24: #{_lambda_.66} parent=0 // pred_region
    _
  $region25: #{_lambda_.66} parent=0 // pred_fallthru
    _
  // Predicated region
  $region26: #{_lambda_.66} parent=0 // pred_check
    _
  $region27: #{_lambda_.66} parent=0 // pred_check_branch
    %1205 = sbr.rel (0) target = $region29
  $region28: #{_lambda_.66} parent=0 // pred_region
    _
  $region29: #{_lambda_.66} parent=0 // pred_fallthru
    _
  // Predicated region
  $region30: #{_lambda_.66} parent=0 // pred_check
    _
  $region31: #{_lambda_.66} parent=0 // pred_check_branch
    %1207 = sbr.rel (0) target = $region33
  $region32: #{_lambda_.66} parent=0 // pred_region
    _
  $region33: #{_lambda_.66} parent=0 // pred_fallthru
    _

// kernel: _lambda_.70
$region0: #{_lambda_.70}
  #allocation0 [shape = 'u32[]', space=smem, size = 0x4, offset = 0x4, fixed_abs, tag = 'smem constant byte address 0x4 - core index']
  #allocation1 [shape = 'u32[72,128]{1,0:T(1,128)}', space=vmem, size = 0x9000, scoped, tag = 'internal scratch']
  %s0 = inlined_call_operand.vmem [shape: bf16[512,36], index: 0, kind: input, shape index: {}]
  %s1 = inlined_call_operand.vmem [shape: bf16[36,128], index: 1, kind: input, shape index: {}]
  %s2 = inlined_call_operand.vmem [shape: bf16[512,128], index: 2, kind: output, shape index: {0}]
  %s3 = inlined_call_operand.hbm [shape: f32[1,8,128], index: 3, kind: output, shape index: {1}]
  %s4 = inlined_call_operand.hbm [shape: f32[1,8,128], index: 4, kind: output, shape index: {2}]
  %5 = xla_tuple %s2, %s3, %s4
  %s6 = sld [smem:[#allocation0]]
  $region34: #{_lambda_.70} parent=0
    _
  %s8 = ssub.s32 1, %s6
  %s9 = scalar_select 0, %s8, %s6
  $region1: #{_lambda_.70} parent=0
    #allocation2 [shape = 'u8[4096]{0}', space=vmem, size = 0x1000, scoped, tag = 'output window, operand 1, single buffered']
    #allocation3 [shape = 's32[1]{0}', space=sflag, size = 0x4, scoped, tag = 'scoped memory for _lambda_.70']
    #allocation4 [shape = 'u8[4096]{0}', space=vmem, size = 0x1000, scoped, tag = 'output window, operand 2, single buffered']
    #allocation5 [shape = 's32[1]{0}', space=sflag, size = 0x4, scoped, tag = 'scoped memory for _lambda_.70']
    %10 = vsyncpa [#allocation3], 0
    %11 = vsyncpa [#allocation5], 0
    // Predicated region
    $region2: #{_lambda_.70} parent=1 // pred_check
      _
    $region3: #{_lambda_.70} parent=1 // pred_check_branch
      %13 = sbr.rel (0) target = $region5
    $region4: #{_lambda_.70} parent=1 // pred_region
      _
    $region5: #{_lambda_.70} parent=1 // pred_fallthru
      _
    // Predicated region
    $region6: #{_lambda_.70} parent=1 // pred_check
      _
    $region7: #{_lambda_.70} parent=1 // pred_check_branch
      %15 = sbr.rel (0) target = $region9
    $region8: #{_lambda_.70} parent=1 // pred_region
      _
    $region9: #{_lambda_.70} parent=1 // pred_fallthru
      _
    %v17 = vld [vmem:[%s0] sm:$0xf]
    %v18 = vld [vmem:[%s0 + $0x4] sm:$0xf]
    %v19 = vld [vmem:[%s0 + $0x8] sm:$0xf]
    %v20 = vld [vmem:[%s0 + $0xc] sm:$0xf]
    %v21 = vld [vmem:[%s0 + $0x10] sm:$0xf]
    %v22 = vld [vmem:[%s0 + $0x14] sm:$0xf]
    %v23 = vld [vmem:[%s0 + $0x18] sm:$0xf]
    %v24 = vld [vmem:[%s0 + $0x1c] sm:$0xf]
    %v25 = vld [vmem:[%s0 + $0x20] sm:$0xf]
    %v26 = vld [vmem:[%s0 + $0x24] sm:$0xf]
    %v27 = vld [vmem:[%s0 + $0x28] sm:$0xf]
    %v28 = vld [vmem:[%s0 + $0x2c] sm:$0xf]
    %v29 = vld [vmem:[%s0 + $0x30] sm:$0xf]
    %v30 = vld [vmem:[%s0 + $0x34] sm:$0xf]
    %v31 = vld [vmem:[%s0 + $0x38] sm:$0xf]
    %v32 = vld [vmem:[%s0 + $0x3c] sm:$0xf]
    %v33 = vld [vmem:[%s0 + $0x40] sm:$0xf]
    %v34 = vld [vmem:[%s0 + $0x44] sm:$0xf]
    %v35 = vld [vmem:[%s0 + $0x48] sm:$0xf]
    %v36 = vld [vmem:[%s0 + $0x4c] sm:$0xf]
    %v37 = vld [vmem:[%s0 + $0x50] sm:$0xf]
    %v38 = vld [vmem:[%s0 + $0x54] sm:$0xf]
    %v39 = vld [vmem:[%s0 + $0x58] sm:$0xf]
    %v40 = vld [vmem:[%s0 + $0x5c] sm:$0xf]
    %v41 = vld [vmem:[%s0 + $0x60] sm:$0xf]
    %v42 = vld [vmem:[%s0 + $0x64] sm:$0xf]
    %v43 = vld [vmem:[%s0 + $0x68] sm:$0xf]
    %v44 = vld [vmem:[%s0 + $0x6c] sm:$0xf]
    %v45 = vld [vmem:[%s0 + $0x70] sm:$0xf]
    %v46 = vld [vmem:[%s0 + $0x74] sm:$0xf]
    %v47 = vld [vmem:[%s0 + $0x78] sm:$0xf]
    %v48 = vld [vmem:[%s0 + $0x7c] sm:$0xf]
    %v49 = vld [vmem:[%s0 + $0x80] sm:$0xf]
    %v50 = vld [vmem:[%s0 + $0x84] sm:$0xf]
    %v51 = vld [vmem:[%s0 + $0x88] sm:$0xf]
    %v52 = vld [vmem:[%s0 + $0x8c] sm:$0xf]
    %v53 = vld [vmem:[%s0 + $0x90] sm:$0xf]
    %v54 = vld [vmem:[%s0 + $0x94] sm:$0xf]
    %v55 = vld [vmem:[%s0 + $0x98] sm:$0xf]
    %v56 = vld [vmem:[%s0 + $0x9c] sm:$0xf]
    %v57 = vld [vmem:[%s0 + $0xa0] sm:$0xf]
    %v58 = vld [vmem:[%s0 + $0xa4] sm:$0xf]
    %v59 = vld [vmem:[%s0 + $0xa8] sm:$0xf]
    %v60 = vld [vmem:[%s0 + $0xac] sm:$0xf]
    %v61 = vld [vmem:[%s0 + $0xb0] sm:$0xf]
    %v62 = vld [vmem:[%s0 + $0xb4] sm:$0xf]
    %v63 = vld [vmem:[%s0 + $0xb8] sm:$0xf]
    %v64 = vld [vmem:[%s0 + $0xbc] sm:$0xf]
    %v65 = vld [vmem:[%s0 + $0xc0] sm:$0xf]
    %v66 = vld [vmem:[%s0 + $0xc4] sm:$0xf]
    %v67 = vld [vmem:[%s0 + $0xc8] sm:$0xf]
    %v68 = vld [vmem:[%s0 + $0xcc] sm:$0xf]
    %v69 = vld [vmem:[%s0 + $0xd0] sm:$0xf]
    %v70 = vld [vmem:[%s0 + $0xd4] sm:$0xf]
    %v71 = vld [vmem:[%s0 + $0xd8] sm:$0xf]
    %v72 = vld [vmem:[%s0 + $0xdc] sm:$0xf]
    %v73 = vld [vmem:[%s0 + $0xe0] sm:$0xf]
    %v74 = vld [vmem:[%s0 + $0xe4] sm:$0xf]
    %v75 = vld [vmem:[%s0 + $0xe8] sm:$0xf]
    %v76 = vld [vmem:[%s0 + $0xec] sm:$0xf]
    %v77 = vld [vmem:[%s0 + $0xf0] sm:$0xf]
    %v78 = vld [vmem:[%s0 + $0xf4] sm:$0xf]
    %v79 = vld [vmem:[%s0 + $0xf8] sm:$0xf]
    %v80 = vld [vmem:[%s0 + $0xfc] sm:$0xf]
    %v81 = vld [vmem:[%s1] sm:$0xf]
    %v82 = vld [vmem:[%s1 + $0x4] sm:$0xf]
    %v83 = vld [vmem:[%s1 + $0x8] sm:$0xf]
    %v84 = vld [vmem:[%s1 + $0xc] sm:$0xf]
    %v85 = vld [vmem:[%s1 + $0x10] sm:$0x3]
    %v150 = vunpack.c.l.b16 %v17
    %v151 = vunpack.c.l.b16 %v18
    %v152 = vunpack.c.l.b16 %v19
    %v153 = vunpack.c.l.b16 %v20
    %v154 = vunpack.c.l.b16 %v21
    %v155 = vunpack.c.l.b16 %v22
    %v156 = vunpack.c.l.b16 %v23
    %v157 = vunpack.c.l.b16 %v24
    %v158 = vunpack.c.l.b16 %v25
    %v159 = vunpack.c.l.b16 %v26
    %v160 = vunpack.c.l.b16 %v27
    %v161 = vunpack.c.l.b16 %v28
    %v162 = vunpack.c.l.b16 %v29
    %v163 = vunpack.c.l.b16 %v30
    %v164 = vunpack.c.l.b16 %v31
    %v165 = vunpack.c.l.b16 %v32
    %v166 = vunpack.c.l.b16 %v33
    %v167 = vunpack.c.l.b16 %v34
    %v168 = vunpack.c.l.b16 %v35
    %v169 = vunpack.c.l.b16 %v36
    %v170 = vunpack.c.l.b16 %v37
    %v171 = vunpack.c.l.b16 %v38
    %v172 = vunpack.c.l.b16 %v39
    %v173 = vunpack.c.l.b16 %v40
    %v174 = vunpack.c.l.b16 %v41
    %v175 = vunpack.c.l.b16 %v42
    %v176 = vunpack.c.l.b16 %v43
    %v177 = vunpack.c.l.b16 %v44
    %v178 = vunpack.c.l.b16 %v45
    %v179 = vunpack.c.l.b16 %v46
    %v180 = vunpack.c.l.b16 %v47
    %v181 = vunpack.c.l.b16 %v48
    %v182 = vunpack.c.l.b16 %v49
    %v183 = vunpack.c.l.b16 %v50
    %v184 = vunpack.c.l.b16 %v51
    %v185 = vunpack.c.l.b16 %v52
    %v186 = vunpack.c.l.b16 %v53
    %v187 = vunpack.c.l.b16 %v54
    %v188 = vunpack.c.l.b16 %v55
    %v189 = vunpack.c.l.b16 %v56
    %v190 = vunpack.c.l.b16 %v57
    %v191 = vunpack.c.l.b16 %v58
    %v192 = vunpack.c.l.b16 %v59
    %v193 = vunpack.c.l.b16 %v60
    %v194 = vunpack.c.l.b16 %v61
    %v195 = vunpack.c.l.b16 %v62
    %v196 = vunpack.c.l.b16 %v63
    %v197 = vunpack.c.l.b16 %v64
    %v198 = vunpack.c.l.b16 %v65
    %v199 = vunpack.c.l.b16 %v66
    %v200 = vunpack.c.l.b16 %v67
    %v201 = vunpack.c.l.b16 %v68
    %v202 = vunpack.c.l.b16 %v69
    %v203 = vunpack.c.l.b16 %v70
    %v204 = vunpack.c.l.b16 %v71
    %v205 = vunpack.c.l.b16 %v72
    %v206 = vunpack.c.l.b16 %v73
    %v207 = vunpack.c.l.b16 %v74
    %v208 = vunpack.c.l.b16 %v75
    %v209 = vunpack.c.l.b16 %v76
    %v210 = vunpack.c.l.b16 %v77
    %v211 = vunpack.c.l.b16 %v78
    %v212 = vunpack.c.l.b16 %v79
    %v213 = vunpack.c.l.b16 %v80
    %v214 = vpack.c.b16 %v151, %v150
    %v215 = vpack.c.b16 %v153, %v152
    %v216 = vpack.c.b16 %v155, %v154
    %v217 = vpack.c.b16 %v157, %v156
    %v218 = vpack.c.b16 %v159, %v158
    %v219 = vpack.c.b16 %v161, %v160
    %v220 = vpack.c.b16 %v163, %v162
    %v221 = vpack.c.b16 %v165, %v164
    %v222 = vpack.c.b16 %v167, %v166
    %v223 = vpack.c.b16 %v169, %v168
    %v224 = vpack.c.b16 %v171, %v170
    %v225 = vpack.c.b16 %v173, %v172
    %v226 = vpack.c.b16 %v175, %v174
    %v227 = vpack.c.b16 %v177, %v176
    %v228 = vpack.c.b16 %v179, %v178
    %v229 = vpack.c.b16 %v181, %v180
    %v230 = vpack.c.b16 %v183, %v182
    %v231 = vpack.c.b16 %v185, %v184
    %v232 = vpack.c.b16 %v187, %v186
    %v233 = vpack.c.b16 %v189, %v188
    %v234 = vpack.c.b16 %v191, %v190
    %v235 = vpack.c.b16 %v193, %v192
    %v236 = vpack.c.b16 %v195, %v194
    %v237 = vpack.c.b16 %v197, %v196
    %v238 = vpack.c.b16 %v199, %v198
    %v239 = vpack.c.b16 %v201, %v200
    %v240 = vpack.c.b16 %v203, %v202
    %v241 = vpack.c.b16 %v205, %v204
    %v242 = vpack.c.b16 %v207, %v206
    %v243 = vpack.c.b16 %v209, %v208
    %v244 = vpack.c.b16 %v211, %v210
    %v245 = vpack.c.b16 %v213, %v212
    %v251 = vunpack.c.l.b16 %v81
    %v252 = vunpack.c.l.b16 %v82
    %v253 = vunpack.c.l.b16 %v83
    %v254 = vunpack.c.l.b16 %v84
    %v255 = vunpack.c.l.b16 %v85
    %v256 = vpack.c.b16 %v252, %v251
    %v257 = vpack.c.b16 %v254, %v253
    %v258 = vpack.c.b16 %v255, %v255
    %vm261 = vcmask 293888
    %v263 = vsel %vm261, %v214, 0
    %v266 = vsel %vm261, %v215, 0
    %v269 = vsel %vm261, %v216, 0
    %v272 = vsel %vm261, %v217, 0
    %v275 = vsel %vm261, %v218, 0
    %v278 = vsel %vm261, %v219, 0
    %v281 = vsel %vm261, %v220, 0
    %v284 = vsel %vm261, %v221, 0
    %v287 = vsel %vm261, %v222, 0
    %v290 = vsel %vm261, %v223, 0
    %v293 = vsel %vm261, %v224, 0
    %v296 = vsel %vm261, %v225, 0
    %v299 = vsel %vm261, %v226, 0
    %v302 = vsel %vm261, %v227, 0
    %v305 = vsel %vm261, %v228, 0
    %v308 = vsel %vm261, %v229, 0
    %v311 = vsel %vm261, %v230, 0
    %v314 = vsel %vm261, %v231, 0
    %v317 = vsel %vm261, %v232, 0
    %v320 = vsel %vm261, %v233, 0
    %v323 = vsel %vm261, %v234, 0
    %v326 = vsel %vm261, %v235, 0
    %v329 = vsel %vm261, %v236, 0
    %v332 = vsel %vm261, %v237, 0
    %v335 = vsel %vm261, %v238, 0
    %v338 = vsel %vm261, %v239, 0
    %v341 = vsel %vm261, %v240, 0
    %v344 = vsel %vm261, %v241, 0
    %v347 = vsel %vm261, %v242, 0
    %v350 = vsel %vm261, %v243, 0
    %v353 = vsel %vm261, %v244, 0
    %v356 = vsel %vm261, %v245, 0
    %vm358 = vcmask 1041408
    %v360 = vsel %vm358, %v258, 0
    %362 = vmatpush.bf16.msra.mxu0 0
    %363 = vmatpush.bf16.msra.mxu0 0
    %364 = vmatpush.bf16.msra.mxu0 0
    %365 = vmatpush.bf16.msra.mxu0 0
    %366 = vmatpush.bf16.msra.mxu0 0
    %367 = vmatpush.bf16.msra.mxu0 %v360
    %368 = vmatpush.bf16.msra.mxu0 %v257
    %369 = vmatpush.bf16.msra.mxu0 %v256
    %370 = vmatmul.bf16.gmra.mxu0 %v263
    %v371 = vpop.f32.mrf.mxu0
    %v372 = vadd.f32 0.0, %v371
    %v373 = vpop.f32.mrf.mxu0
    %v374 = vadd.f32 0.0, %v373
    %375 = vmatmul.bf16.gmra.mxu0 %v266
    %v376 = vpop.f32.mrf.mxu0
    %v377 = vadd.f32 0.0, %v376
    %v378 = vpop.f32.mrf.mxu0
    %v379 = vadd.f32 0.0, %v378
    %380 = vmatmul.bf16.gmra.mxu0 %v269
    %v381 = vpop.f32.mrf.mxu0
    %v382 = vadd.f32 0.0, %v381
    %v383 = vpop.f32.mrf.mxu0
    %v384 = vadd.f32 0.0, %v383
    %385 = vmatmul.bf16.gmra.mxu0 %v272
    %v386 = vpop.f32.mrf.mxu0
    %v387 = vadd.f32 0.0, %v386
    %v388 = vpop.f32.mrf.mxu0
    %v389 = vadd.f32 0.0, %v388
    %390 = vmatmul.bf16.gmra.mxu0 %v275
    %v391 = vpop.f32.mrf.mxu0
    %v392 = vadd.f32 0.0, %v391
    %v393 = vpop.f32.mrf.mxu0
    %v394 = vadd.f32 0.0, %v393
    %395 = vmatmul.bf16.gmra.mxu0 %v278
    %v396 = vpop.f32.mrf.mxu0
    %v397 = vadd.f32 0.0, %v396
    %v398 = vpop.f32.mrf.mxu0
    %v399 = vadd.f32 0.0, %v398
    %400 = vmatmul.bf16.gmra.mxu0 %v281
    %v401 = vpop.f32.mrf.mxu0
    %v402 = vadd.f32 0.0, %v401
    %v403 = vpop.f32.mrf.mxu0
    %v404 = vadd.f32 0.0, %v403
    %405 = vmatmul.bf16.gmra.mxu0 %v284
    %v406 = vpop.f32.mrf.mxu0
    %v407 = vadd.f32 0.0, %v406
    %v408 = vpop.f32.mrf.mxu0
    %v409 = vadd.f32 0.0, %v408
    %410 = vmatmul.bf16.gmra.mxu0 %v287
    %v411 = vpop.f32.mrf.mxu0
    %v412 = vadd.f32 0.0, %v411
    %v413 = vpop.f32.mrf.mxu0
    %v414 = vadd.f32 0.0, %v413
    %415 = vmatmul.bf16.gmra.mxu0 %v290
    %v416 = vpop.f32.mrf.mxu0
    %v417 = vadd.f32 0.0, %v416
    %v418 = vpop.f32.mrf.mxu0
    %v419 = vadd.f32 0.0, %v418
    %420 = vmatmul.bf16.gmra.mxu0 %v293
    %v421 = vpop.f32.mrf.mxu0
    %v422 = vadd.f32 0.0, %v421
    %v423 = vpop.f32.mrf.mxu0
    %v424 = vadd.f32 0.0, %v423
    %425 = vmatmul.bf16.gmra.mxu0 %v296
    %v426 = vpop.f32.mrf.mxu0
    %v427 = vadd.f32 0.0, %v426
    %v428 = vpop.f32.mrf.mxu0
    %v429 = vadd.f32 0.0, %v428
    %430 = vmatmul.bf16.gmra.mxu0 %v299
    %v431 = vpop.f32.mrf.mxu0
    %v432 = vadd.f32 0.0, %v431
    %v433 = vpop.f32.mrf.mxu0
    %v434 = vadd.f32 0.0, %v433
    %435 = vmatmul.bf16.gmra.mxu0 %v302
    %v436 = vpop.f32.mrf.mxu0
    %v437 = vadd.f32 0.0, %v436
    %v438 = vpop.f32.mrf.mxu0
    %v439 = vadd.f32 0.0, %v438
    %440 = vmatmul.bf16.gmra.mxu0 %v305
    %v441 = vpop.f32.mrf.mxu0
    %v442 = vadd.f32 0.0, %v441
    %v443 = vpop.f32.mrf.mxu0
    %v444 = vadd.f32 0.0, %v443
    %445 = vmatmul.bf16.gmra.mxu0 %v308
    %v446 = vpop.f32.mrf.mxu0
    %v447 = vadd.f32 0.0, %v446
    %v448 = vpop.f32.mrf.mxu0
    %v449 = vadd.f32 0.0, %v448
    %450 = vmatmul.bf16.gmra.mxu0 %v311
    %v451 = vpop.f32.mrf.mxu0
    %v452 = vadd.f32 0.0, %v451
    %v453 = vpop.f32.mrf.mxu0
    %v454 = vadd.f32 0.0, %v453
    %455 = vmatmul.bf16.gmra.mxu0 %v314
    %v456 = vpop.f32.mrf.mxu0
    %v457 = vadd.f32 0.0, %v456
    %v458 = vpop.f32.mrf.mxu0
    %v459 = vadd.f32 0.0, %v458
    %460 = vmatmul.bf16.gmra.mxu0 %v317
    %v461 = vpop.f32.mrf.mxu0
    %v462 = vadd.f32 0.0, %v461
    %v463 = vpop.f32.mrf.mxu0
    %v464 = vadd.f32 0.0, %v463
    %465 = vmatmul.bf16.gmra.mxu0 %v320
    %v466 = vpop.f32.mrf.mxu0
    %v467 = vadd.f32 0.0, %v466
    %v468 = vpop.f32.mrf.mxu0
    %v469 = vadd.f32 0.0, %v468
    %470 = vmatmul.bf16.gmra.mxu0 %v323
    %v471 = vpop.f32.mrf.mxu0
    %v472 = vadd.f32 0.0, %v471
    %v473 = vpop.f32.mrf.mxu0
    %v474 = vadd.f32 0.0, %v473
    %475 = vmatmul.bf16.gmra.mxu0 %v326
    %v476 = vpop.f32.mrf.mxu0
    %v477 = vadd.f32 0.0, %v476
    %v478 = vpop.f32.mrf.mxu0
    %v479 = vadd.f32 0.0, %v478
    %480 = vmatmul.bf16.gmra.mxu0 %v329
    %v481 = vpop.f32.mrf.mxu0
    %v482 = vadd.f32 0.0, %v481
    %v483 = vpop.f32.mrf.mxu0
    %v484 = vadd.f32 0.0, %v483
    %485 = vmatmul.bf16.gmra.mxu0 %v332
    %v486 = vpop.f32.mrf.mxu0
    %v487 = vadd.f32 0.0, %v486
    %v488 = vpop.f32.mrf.mxu0
    %v489 = vadd.f32 0.0, %v488
    %490 = vmatmul.bf16.gmra.mxu0 %v335
    %v491 = vpop.f32.mrf.mxu0
    %v492 = vadd.f32 0.0, %v491
    %v493 = vpop.f32.mrf.mxu0
    %v494 = vadd.f32 0.0, %v493
    %495 = vmatmul.bf16.gmra.mxu0 %v338
    %v496 = vpop.f32.mrf.mxu0
    %v497 = vadd.f32 0.0, %v496
    %v498 = vpop.f32.mrf.mxu0
    %v499 = vadd.f32 0.0, %v498
    %500 = vmatmul.bf16.gmra.mxu0 %v341
    %v501 = vpop.f32.mrf.mxu0
    %v502 = vadd.f32 0.0, %v501
    %v503 = vpop.f32.mrf.mxu0
    %v504 = vadd.f32 0.0, %v503
    %505 = vmatmul.bf16.gmra.mxu0 %v344
    %v506 = vpop.f32.mrf.mxu0
    %v507 = vadd.f32 0.0, %v506
    %v508 = vpop.f32.mrf.mxu0
    %v509 = vadd.f32 0.0, %v508
    %510 = vmatmul.bf16.gmra.mxu0 %v347
    %v511 = vpop.f32.mrf.mxu0
    %v512 = vadd.f32 0.0, %v511
    %v513 = vpop.f32.mrf.mxu0
    %v514 = vadd.f32 0.0, %v513
    %515 = vmatmul.bf16.gmra.mxu0 %v350
    %v516 = vpop.f32.mrf.mxu0
    %v517 = vadd.f32 0.0, %v516
    %v518 = vpop.f32.mrf.mxu0
    %v519 = vadd.f32 0.0, %v518
    %520 = vmatmul.bf16.gmra.mxu0 %v353
    %v521 = vpop.f32.mrf.mxu0
    %v522 = vadd.f32 0.0, %v521
    %v523 = vpop.f32.mrf.mxu0
    %v524 = vadd.f32 0.0, %v523
    %525 = vmatmul.bf16.gmra.mxu0 %v356
    %v526 = vpop.f32.mrf.mxu0
    %v527 = vadd.f32 0.0, %v526
    %v528 = vpop.f32.mrf.mxu0
    %v529 = vadd.f32 0.0, %v528
    %530 = vdwg.mxu0
    %v531 = vpack.c.bf16 %v372, %v372
    %v532 = vpack.c.bf16 %v374, %v374
    %v533 = vpack.c.bf16 %v377, %v377
    %v534 = vpack.c.bf16 %v379, %v379
    %v535 = vpack.c.bf16 %v382, %v382
    %v536 = vpack.c.bf16 %v384, %v384
    %v537 = vpack.c.bf16 %v387, %v387
    %v538 = vpack.c.bf16 %v389, %v389
    %v539 = vpack.c.bf16 %v392, %v392
    %v540 = vpack.c.bf16 %v394, %v394
    %v541 = vpack.c.bf16 %v397, %v397
    %v542 = vpack.c.bf16 %v399, %v399
    %v543 = vpack.c.bf16 %v402, %v402
    %v544 = vpack.c.bf16 %v404, %v404
    %v545 = vpack.c.bf16 %v407, %v407
    %v546 = vpack.c.bf16 %v409, %v409
    %v547 = vpack.c.bf16 %v412, %v412
    %v548 = vpack.c.bf16 %v414, %v414
    %v549 = vpack.c.bf16 %v417, %v417
    %v550 = vpack.c.bf16 %v419, %v419
    %v551 = vpack.c.bf16 %v422, %v422
    %v552 = vpack.c.bf16 %v424, %v424
    %v553 = vpack.c.bf16 %v427, %v427
    %v554 = vpack.c.bf16 %v429, %v429
    %v555 = vpack.c.bf16 %v432, %v432
    %v556 = vpack.c.bf16 %v434, %v434
    %v557 = vpack.c.bf16 %v437, %v437
    %v558 = vpack.c.bf16 %v439, %v439
    %v559 = vpack.c.bf16 %v442, %v442
    %v560 = vpack.c.bf16 %v444, %v444
    %v561 = vpack.c.bf16 %v447, %v447
    %v562 = vpack.c.bf16 %v449, %v449
    %v563 = vpack.c.bf16 %v452, %v452
    %v564 = vpack.c.bf16 %v454, %v454
    %v565 = vpack.c.bf16 %v457, %v457
    %v566 = vpack.c.bf16 %v459, %v459
    %v567 = vpack.c.bf16 %v462, %v462
    %v568 = vpack.c.bf16 %v464, %v464
    %v569 = vpack.c.bf16 %v467, %v467
    %v570 = vpack.c.bf16 %v469, %v469
    %v571 = vpack.c.bf16 %v472, %v472
    %v572 = vpack.c.bf16 %v474, %v474
    %v573 = vpack.c.bf16 %v477, %v477
    %v574 = vpack.c.bf16 %v479, %v479
    %v575 = vpack.c.bf16 %v482, %v482
    %v576 = vpack.c.bf16 %v484, %v484
    %v577 = vpack.c.bf16 %v487, %v487
    %v578 = vpack.c.bf16 %v489, %v489
    %v579 = vpack.c.bf16 %v492, %v492
    %v580 = vpack.c.bf16 %v494, %v494
    %v581 = vpack.c.bf16 %v497, %v497
    %v582 = vpack.c.bf16 %v499, %v499
    %v583 = vpack.c.bf16 %v502, %v502
    %v584 = vpack.c.bf16 %v504, %v504
    %v585 = vpack.c.bf16 %v507, %v507
    %v586 = vpack.c.bf16 %v509, %v509
    %v587 = vpack.c.bf16 %v512, %v512
    %v588 = vpack.c.bf16 %v514, %v514
    %v589 = vpack.c.bf16 %v517, %v517
    %v590 = vpack.c.bf16 %v519, %v519
    %v591 = vpack.c.bf16 %v522, %v522
    %v592 = vpack.c.bf16 %v524, %v524
    %v593 = vpack.c.bf16 %v527, %v527
    %v594 = vpack.c.bf16 %v529, %v529
    %595 = vst [vmem:[%s2] sm:$0xf] %v531
    %596 = vst [vmem:[%s2 + $0x4] sm:$0xf] %v532
    %597 = vst [vmem:[%s2 + $0x8] sm:$0xf] %v533
    %598 = vst [vmem:[%s2 + $0xc] sm:$0xf] %v534
    %599 = vst [vmem:[%s2 + $0x10] sm:$0xf] %v535
    %600 = vst [vmem:[%s2 + $0x14] sm:$0xf] %v536
    %601 = vst [vmem:[%s2 + $0x18] sm:$0xf] %v537
    %602 = vst [vmem:[%s2 + $0x1c] sm:$0xf] %v538
    %603 = vst [vmem:[%s2 + $0x20] sm:$0xf] %v539
    %604 = vst [vmem:[%s2 + $0x24] sm:$0xf] %v540
    %605 = vst [vmem:[%s2 + $0x28] sm:$0xf] %v541
    %606 = vst [vmem:[%s2 + $0x2c] sm:$0xf] %v542
    %607 = vst [vmem:[%s2 + $0x30] sm:$0xf] %v543
    %608 = vst [vmem:[%s2 + $0x34] sm:$0xf] %v544
    %609 = vst [vmem:[%s2 + $0x38] sm:$0xf] %v545
    %610 = vst [vmem:[%s2 + $0x3c] sm:$0xf] %v546
    %611 = vst [vmem:[%s2 + $0x40] sm:$0xf] %v547
    %612 = vst [vmem:[%s2 + $0x44] sm:$0xf] %v548
    %613 = vst [vmem:[%s2 + $0x48] sm:$0xf] %v549
    %614 = vst [vmem:[%s2 + $0x4c] sm:$0xf] %v550
    %615 = vst [vmem:[%s2 + $0x50] sm:$0xf] %v551
    %616 = vst [vmem:[%s2 + $0x54] sm:$0xf] %v552
    %617 = vst [vmem:[%s2 + $0x58] sm:$0xf] %v553
    %618 = vst [vmem:[%s2 + $0x5c] sm:$0xf] %v554
    %619 = vst [vmem:[%s2 + $0x60] sm:$0xf] %v555
    %620 = vst [vmem:[%s2 + $0x64] sm:$0xf] %v556
    %621 = vst [vmem:[%s2 + $0x68] sm:$0xf] %v557
    %622 = vst [vmem:[%s2 + $0x6c] sm:$0xf] %v558
    %623 = vst [vmem:[%s2 + $0x70] sm:$0xf] %v559
    %624 = vst [vmem:[%s2 + $0x74] sm:$0xf] %v560
    %625 = vst [vmem:[%s2 + $0x78] sm:$0xf] %v561
    %626 = vst [vmem:[%s2 + $0x7c] sm:$0xf] %v562
    %627 = vst [vmem:[%s2 + $0x80] sm:$0xf] %v563
    %628 = vst [vmem:[%s2 + $0x84] sm:$0xf] %v564
    %629 = vst [vmem:[%s2 + $0x88] sm:$0xf] %v565
    %630 = vst [vmem:[%s2 + $0x8c] sm:$0xf] %v566
    %631 = vst [vmem:[%s2 + $0x90] sm:$0xf] %v567
    %632 = vst [vmem:[%s2 + $0x94] sm:$0xf] %v568
    %633 = vst [vmem:[%s2 + $0x98] sm:$0xf] %v569
    %634 = vst [vmem:[%s2 + $0x9c] sm:$0xf] %v570
    %635 = vst [vmem:[%s2 + $0xa0] sm:$0xf] %v571
    %636 = vst [vmem:[%s2 + $0xa4] sm:$0xf] %v572
    %637 = vst [vmem:[%s2 + $0xa8] sm:$0xf] %v573
    %638 = vst [vmem:[%s2 + $0xac] sm:$0xf] %v574
    %639 = vst [vmem:[%s2 + $0xb0] sm:$0xf] %v575
    %640 = vst [vmem:[%s2 + $0xb4] sm:$0xf] %v576
    %641 = vst [vmem:[%s2 + $0xb8] sm:$0xf] %v577
    %642 = vst [vmem:[%s2 + $0xbc] sm:$0xf] %v578
    %643 = vst [vmem:[%s2 + $0xc0] sm:$0xf] %v579
    %644 = vst [vmem:[%s2 + $0xc4] sm:$0xf] %v580
    %645 = vst [vmem:[%s2 + $0xc8] sm:$0xf] %v581
    %646 = vst [vmem:[%s2 + $0xcc] sm:$0xf] %v582
    %647 = vst [vmem:[%s2 + $0xd0] sm:$0xf] %v583
    %648 = vst [vmem:[%s2 + $0xd4] sm:$0xf] %v584
    %649 = vst [vmem:[%s2 + $0xd8] sm:$0xf] %v585
    %650 = vst [vmem:[%s2 + $0xdc] sm:$0xf] %v586
    %651 = vst [vmem:[%s2 + $0xe0] sm:$0xf] %v587
    %652 = vst [vmem:[%s2 + $0xe4] sm:$0xf] %v588
    %653 = vst [vmem:[%s2 + $0xe8] sm:$0xf] %v589
    %654 = vst [vmem:[%s2 + $0xec] sm:$0xf] %v590
    %655 = vst [vmem:[%s2 + $0xf0] sm:$0xf] %v591
    %656 = vst [vmem:[%s2 + $0xf4] sm:$0xf] %v592
    %657 = vst [vmem:[%s2 + $0xf8] sm:$0xf] %v593
    %658 = vst [vmem:[%s2 + $0xfc] sm:$0xf] %v594
    %v659 = vadd.f32 %v372, %v374
    %v660 = vadd.f32 %v659, %v377
    %v661 = vadd.f32 %v660, %v379
    %v662 = vadd.f32 %v661, %v382
    %v663 = vadd.f32 %v662, %v384
    %v664 = vadd.f32 %v663, %v387
    %v665 = vadd.f32 %v664, %v389
    %v666 = vadd.f32 %v665, %v392
    %v667 = vadd.f32 %v666, %v394
    %v668 = vadd.f32 %v667, %v397
    %v669 = vadd.f32 %v668, %v399
    %v670 = vadd.f32 %v669, %v402
    %v671 = vadd.f32 %v670, %v404
    %v672 = vadd.f32 %v671, %v407
    %v673 = vadd.f32 %v672, %v409
    %v674 = vadd.f32 %v673, %v412
    %v675 = vadd.f32 %v674, %v414
    %v676 = vadd.f32 %v675, %v417
    %v677 = vadd.f32 %v676, %v419
    %v678 = vadd.f32 %v677, %v422
    %v679 = vadd.f32 %v678, %v424
    %v680 = vadd.f32 %v679, %v427
    %v681 = vadd.f32 %v680, %v429
    %v682 = vadd.f32 %v681, %v432
    %v683 = vadd.f32 %v682, %v434
    %v684 = vadd.f32 %v683, %v437
    %v685 = vadd.f32 %v684, %v439
    %v686 = vadd.f32 %v685, %v442
    %v687 = vadd.f32 %v686, %v444
    %v688 = vadd.f32 %v687, %v447
    %v689 = vadd.f32 %v688, %v449
    %v690 = vadd.f32 %v689, %v452
    %v691 = vadd.f32 %v690, %v454
    %v692 = vadd.f32 %v691, %v457
    %v693 = vadd.f32 %v692, %v459
    %v694 = vadd.f32 %v693, %v462
    %v695 = vadd.f32 %v694, %v464
    %v696 = vadd.f32 %v695, %v467
    %v697 = vadd.f32 %v696, %v469
    %v698 = vadd.f32 %v697, %v472
    %v699 = vadd.f32 %v698, %v474
    %v700 = vadd.f32 %v699, %v477
    %v701 = vadd.f32 %v700, %v479
    %v702 = vadd.f32 %v701, %v482
    %v703 = vadd.f32 %v702, %v484
    %v704 = vadd.f32 %v703, %v487
    %v705 = vadd.f32 %v704, %v489
    %v706 = vadd.f32 %v705, %v492
    %v707 = vadd.f32 %v706, %v494
    %v708 = vadd.f32 %v707, %v497
    %v709 = vadd.f32 %v708, %v499
    %v710 = vadd.f32 %v709, %v502
    %v711 = vadd.f32 %v710, %v504
    %v712 = vadd.f32 %v711, %v507
    %v713 = vadd.f32 %v712, %v509
    %v714 = vadd.f32 %v713, %v512
    %v715 = vadd.f32 %v714, %v514
    %v716 = vadd.f32 %v715, %v517
    %v717 = vadd.f32 %v716, %v519
    %v718 = vadd.f32 %v717, %v522
    %v719 = vadd.f32 %v718, %v524
    %v720 = vadd.f32 %v719, %v527
    %v721 = vadd.f32 %v720, %v529
    %v722 = vrot.slane %v721, 4
    %v723 = vadd.f32 %v721, %v722
    %v724 = vrot.slane %v723, 2
    %v725 = vadd.f32 %v723, %v724
    %v726 = vrot.slane %v725, 1
    %v727 = vadd.f32 %v725, %v726
    %v728 = vmul.f32 %v372, %v372
    %v729 = vmul.f32 %v374, %v374
    %v730 = vmul.f32 %v377, %v377
    %v731 = vmul.f32 %v379, %v379
    %v732 = vmul.f32 %v382, %v382
    %v733 = vmul.f32 %v384, %v384
    %v734 = vmul.f32 %v387, %v387
    %v735 = vmul.f32 %v389, %v389
    %v736 = vmul.f32 %v392, %v392
    %v737 = vmul.f32 %v394, %v394
    %v738 = vmul.f32 %v397, %v397
    %v739 = vmul.f32 %v399, %v399
    %v740 = vmul.f32 %v402, %v402
    %v741 = vmul.f32 %v404, %v404
    %v742 = vmul.f32 %v407, %v407
    %v743 = vmul.f32 %v409, %v409
    %v744 = vmul.f32 %v412, %v412
    %v745 = vmul.f32 %v414, %v414
    %v746 = vmul.f32 %v417, %v417
    %v747 = vmul.f32 %v419, %v419
    %v748 = vmul.f32 %v422, %v422
    %v749 = vmul.f32 %v424, %v424
    %v750 = vmul.f32 %v427, %v427
    %v751 = vmul.f32 %v429, %v429
    %v752 = vmul.f32 %v432, %v432
    %v753 = vmul.f32 %v434, %v434
    %v754 = vmul.f32 %v437, %v437
    %v755 = vmul.f32 %v439, %v439
    %v756 = vmul.f32 %v442, %v442
    %v757 = vmul.f32 %v444, %v444
    %v758 = vmul.f32 %v447, %v447
    %v759 = vmul.f32 %v449, %v449
    %v760 = vmul.f32 %v452, %v452
    %v761 = vmul.f32 %v454, %v454
    %v762 = vmul.f32 %v457, %v457
    %v763 = vmul.f32 %v459, %v459
    %v764 = vmul.f32 %v462, %v462
    %v765 = vmul.f32 %v464, %v464
    %v766 = vmul.f32 %v467, %v467
    %v767 = vmul.f32 %v469, %v469
    %v768 = vmul.f32 %v472, %v472
    %v769 = vmul.f32 %v474, %v474
    %v770 = vmul.f32 %v477, %v477
    %v771 = vmul.f32 %v479, %v479
    %v772 = vmul.f32 %v482, %v482
    %v773 = vmul.f32 %v484, %v484
    %v774 = vmul.f32 %v487, %v487
    %v775 = vmul.f32 %v489, %v489
    %v776 = vmul.f32 %v492, %v492
    %v777 = vmul.f32 %v494, %v494
    %v778 = vmul.f32 %v497, %v497
    %v779 = vmul.f32 %v499, %v499
    %v780 = vmul.f32 %v502, %v502
    %v781 = vmul.f32 %v504, %v504
    %v782 = vmul.f32 %v507, %v507
    %v783 = vmul.f32 %v509, %v509
    %v784 = vmul.f32 %v512, %v512
    %v785 = vmul.f32 %v514, %v514
    %v786 = vmul.f32 %v517, %v517
    %v787 = vmul.f32 %v519, %v519
    %v788 = vmul.f32 %v522, %v522
    %v789 = vmul.f32 %v524, %v524
    %v790 = vmul.f32 %v527, %v527
    %v791 = vmul.f32 %v529, %v529
    %v792 = vadd.f32 %v728, %v729
    %v793 = vadd.f32 %v792, %v730
    %v794 = vadd.f32 %v793, %v731
    %v795 = vadd.f32 %v794, %v732
    %v796 = vadd.f32 %v795, %v733
    %v797 = vadd.f32 %v796, %v734
    %v798 = vadd.f32 %v797, %v735
    %v799 = vadd.f32 %v798, %v736
    %v800 = vadd.f32 %v799, %v737
    %v801 = vadd.f32 %v800, %v738
    %v802 = vadd.f32 %v801, %v739
    %v803 = vadd.f32 %v802, %v740
    %v804 = vadd.f32 %v803, %v741
    %v805 = vadd.f32 %v804, %v742
    %v806 = vadd.f32 %v805, %v743
    %v807 = vadd.f32 %v806, %v744
    %v808 = vadd.f32 %v807, %v745
    %v809 = vadd.f32 %v808, %v746
    %v810 = vadd.f32 %v809, %v747
    %v811 = vadd.f32 %v810, %v748
    %v812 = vadd.f32 %v811, %v749
    %v813 = vadd.f32 %v812, %v750
    %v814 = vadd.f32 %v813, %v751
    %v815 = vadd.f32 %v814, %v752
    %v816 = vadd.f32 %v815, %v753
    %v817 = vadd.f32 %v816, %v754
    %v818 = vadd.f32 %v817, %v755
    %v819 = vadd.f32 %v818, %v756
    %v820 = vadd.f32 %v819, %v757
    %v821 = vadd.f32 %v820, %v758
    %v822 = vadd.f32 %v821, %v759
    %v823 = vadd.f32 %v822, %v760
    %v824 = vadd.f32 %v823, %v761
    %v825 = vadd.f32 %v824, %v762
    %v826 = vadd.f32 %v825, %v763
    %v827 = vadd.f32 %v826, %v764
    %v828 = vadd.f32 %v827, %v765
    %v829 = vadd.f32 %v828, %v766
    %v830 = vadd.f32 %v829, %v767
    %v831 = vadd.f32 %v830, %v768
    %v832 = vadd.f32 %v831, %v769
    %v833 = vadd.f32 %v832, %v770
    %v834 = vadd.f32 %v833, %v771
    %v835 = vadd.f32 %v834, %v772
    %v836 = vadd.f32 %v835, %v773
    %v837 = vadd.f32 %v836, %v774
    %v838 = vadd.f32 %v837, %v775
    %v839 = vadd.f32 %v838, %v776
    %v840 = vadd.f32 %v839, %v777
    %v841 = vadd.f32 %v840, %v778
    %v842 = vadd.f32 %v841, %v779
    %v843 = vadd.f32 %v842, %v780
    %v844 = vadd.f32 %v843, %v781
    %v845 = vadd.f32 %v844, %v782
    %v846 = vadd.f32 %v845, %v783
    %v847 = vadd.f32 %v846, %v784
    %v848 = vadd.f32 %v847, %v785
    %v849 = vadd.f32 %v848, %v786
    %v850 = vadd.f32 %v849, %v787
    %v851 = vadd.f32 %v850, %v788
    %v852 = vadd.f32 %v851, %v789
    %v853 = vadd.f32 %v852, %v790
    %v854 = vadd.f32 %v853, %v791
    %v855 = vrot.slane %v854, 4
    %v856 = vadd.f32 %v854, %v855
    %v857 = vrot.slane %v856, 2
    %v858 = vadd.f32 %v856, %v857
    %v859 = vrot.slane %v858, 1
    %v860 = vadd.f32 %v858, %v859
    %861 = vst [vmem:[#allocation2] sm:$0xff] %v727
    %862 = vst [vmem:[#allocation4] sm:$0xff] %v860
    // Predicated region
    $region10: #{_lambda_.70} parent=1 // pred_check
      _
    $region11: #{_lambda_.70} parent=1 // pred_check_branch
      %864 = sbr.rel (0) target = $region13
    $region12: #{_lambda_.70} parent=1 // pred_region
      _
    $region13: #{_lambda_.70} parent=1 // pred_fallthru
      _
    // Predicated region
    $region14: #{_lambda_.70} parent=1 // pred_check
      _
    $region15: #{_lambda_.70} parent=1 // pred_check_branch
      %866 = sbr.rel (0) target = $region17
    $region16: #{_lambda_.70} parent=1 // pred_region
      %868 = vsyncadd [#allocation3], 0
      %s870 = sshll.u32 [#allocation2], 4
      %s871 = int_to_ptr.vmem [resolvable:$true] %s870
      %s872 = sshll.u32 %s3, 4
      %s873 = int_to_ptr.hbm [resolvable:$true] %s872
      %875 = dma.vmem_to_hbm [thread:$0]  %s871, 128, %s873, [#allocation3]
    $region17: #{_lambda_.70} parent=1 // pred_fallthru
      _
    // Predicated region
    $region18: #{_lambda_.70} parent=1 // pred_check
      _
    $region19: #{_lambda_.70} parent=1 // pred_check_branch
      %877 = sbr.rel (0) target = $region21
    $region20: #{_lambda_.70} parent=1 // pred_region
      %879 = vsyncadd [#allocation5], 0
      %s881 = sshll.u32 [#allocation4], 4
      %s882 = int_to_ptr.vmem [resolvable:$true] %s881
      %s883 = sshll.u32 %s4, 4
      %s884 = int_to_ptr.hbm [resolvable:$true] %s883
      %886 = dma.vmem_to_hbm [thread:$0]  %s882, 128, %s884, [#allocation5]
    $region21: #{_lambda_.70} parent=1 // pred_fallthru
      _
    // Predicated region
    $region22: #{_lambda_.70} parent=1 // pred_check
      _
    $region23: #{_lambda_.70} parent=1 // pred_check_branch
      %888 = sbr.rel (0) target = $region25
    $region24: #{_lambda_.70} parent=1 // pred_region
      _
    $region25: #{_lambda_.70} parent=1 // pred_fallthru
      _
    // Predicated region
    $region26: #{_lambda_.70} parent=1 // pred_check
      _
    $region27: #{_lambda_.70} parent=1 // pred_check_branch
      %890 = sbr.rel (0) target = $region29
    $region28: #{_lambda_.70} parent=1 // pred_region
      %892 = dma.done [#allocation3], 128
    $region29: #{_lambda_.70} parent=1 // pred_fallthru
      _
    // Predicated region
    $region30: #{_lambda_.70} parent=1 // pred_check
      _
    $region31: #{_lambda_.70} parent=1 // pred_check_branch
      %894 = sbr.rel (0) target = $region33
    $region32: #{_lambda_.70} parent=1 // pred_region
      %896 = dma.done [#allocation5], 128
    $region33: #{_lambda_.70} parent=1 // pred_fallthru
      _
    %897 = vsyncpa [#allocation3], 1
    %898 = vsyncpa [#allocation5], 1

// kernel: _lambda_.68
$region0: #{_lambda_.68}
  #allocation0 [shape = 'u32[]', space=smem, size = 0x4, offset = 0x4, fixed_abs, tag = 'smem constant byte address 0x4 - core index']
  #allocation1 [shape = 'u32[72,128]{1,0:T(1,128)}', space=vmem, size = 0x9000, scoped, tag = 'internal scratch']
  %s0 = inlined_call_operand.vmem [shape: bf16[512,36], index: 0, kind: input, shape index: {}]
  %s1 = inlined_call_operand.vmem [shape: bf16[36,128], index: 1, kind: input, shape index: {}]
  %s2 = inlined_call_operand.vmem [shape: bf16[512,128], index: 2, kind: output, shape index: {0}]
  %s3 = inlined_call_operand.vmem [shape: f32[1,8,128], index: 3, kind: output, shape index: {1}]
  %s4 = inlined_call_operand.vmem [shape: f32[1,8,128], index: 4, kind: output, shape index: {2}]
  %5 = xla_tuple %s2, %s3, %s4
  %s6 = sld [smem:[#allocation0]]
  $region34: #{_lambda_.68} parent=0
    _
  %s8 = ssub.s32 1, %s6
  %s9 = scalar_select 0, %s8, %s6
  // Predicated region
  $region2: #{_lambda_.68} parent=0 // pred_check
    _
  $region3: #{_lambda_.68} parent=0 // pred_check_branch
    %11 = sbr.rel (0) target = $region5
  $region4: #{_lambda_.68} parent=0 // pred_region
    _
  $region5: #{_lambda_.68} parent=0 // pred_fallthru
    _
  // Predicated region
  $region6: #{_lambda_.68} parent=0 // pred_check
    _
  $region7: #{_lambda_.68} parent=0 // pred_check_branch
    %13 = sbr.rel (0) target = $region9
  $region8: #{_lambda_.68} parent=0 // pred_region
    _
  $region9: #{_lambda_.68} parent=0 // pred_fallthru
    _
  %v15 = vld [vmem:[%s0] sm:$0xf]
  %v16 = vld [vmem:[%s0 + $0x4] sm:$0xf]
  %v17 = vld [vmem:[%s0 + $0x8] sm:$0xf]
  %v18 = vld [vmem:[%s0 + $0xc] sm:$0xf]
  %v19 = vld [vmem:[%s0 + $0x10] sm:$0xf]
  %v20 = vld [vmem:[%s0 + $0x14] sm:$0xf]
  %v21 = vld [vmem:[%s0 + $0x18] sm:$0xf]
  %v22 = vld [vmem:[%s0 + $0x1c] sm:$0xf]
  %v23 = vld [vmem:[%s0 + $0x20] sm:$0xf]
  %v24 = vld [vmem:[%s0 + $0x24] sm:$0xf]
  %v25 = vld [vmem:[%s0 + $0x28] sm:$0xf]
  %v26 = vld [vmem:[%s0 + $0x2c] sm:$0xf]
  %v27 = vld [vmem:[%s0 + $0x30] sm:$0xf]
  %v28 = vld [vmem:[%s0 + $0x34] sm:$0xf]
  %v29 = vld [vmem:[%s0 + $0x38] sm:$0xf]
  %v30 = vld [vmem:[%s0 + $0x3c] sm:$0xf]
  %v31 = vld [vmem:[%s0 + $0x40] sm:$0xf]
  %v32 = vld [vmem:[%s0 + $0x44] sm:$0xf]
  %v33 = vld [vmem:[%s0 + $0x48] sm:$0xf]
  %v34 = vld [vmem:[%s0 + $0x4c] sm:$0xf]
  %v35 = vld [vmem:[%s0 + $0x50] sm:$0xf]
  %v36 = vld [vmem:[%s0 + $0x54] sm:$0xf]
  %v37 = vld [vmem:[%s0 + $0x58] sm:$0xf]
  %v38 = vld [vmem:[%s0 + $0x5c] sm:$0xf]
  %v39 = vld [vmem:[%s0 + $0x60] sm:$0xf]
  %v40 = vld [vmem:[%s0 + $0x64] sm:$0xf]
  %v41 = vld [vmem:[%s0 + $0x68] sm:$0xf]
  %v42 = vld [vmem:[%s0 + $0x6c] sm:$0xf]
  %v43 = vld [vmem:[%s0 + $0x70] sm:$0xf]
  %v44 = vld [vmem:[%s0 + $0x74] sm:$0xf]
  %v45 = vld [vmem:[%s0 + $0x78] sm:$0xf]
  %v46 = vld [vmem:[%s0 + $0x7c] sm:$0xf]
  %v47 = vld [vmem:[%s0 + $0x80] sm:$0xf]
  %v48 = vld [vmem:[%s0 + $0x84] sm:$0xf]
  %v49 = vld [vmem:[%s0 + $0x88] sm:$0xf]
  %v50 = vld [vmem:[%s0 + $0x8c] sm:$0xf]
  %v51 = vld [vmem:[%s0 + $0x90] sm:$0xf]
  %v52 = vld [vmem:[%s0 + $0x94] sm:$0xf]
  %v53 = vld [vmem:[%s0 + $0x98] sm:$0xf]
  %v54 = vld [vmem:[%s0 + $0x9c] sm:$0xf]
  %v55 = vld [vmem:[%s0 + $0xa0] sm:$0xf]
  %v56 = vld [vmem:[%s0 + $0xa4] sm:$0xf]
  %v57 = vld [vmem:[%s0 + $0xa8] sm:$0xf]
  %v58 = vld [vmem:[%s0 + $0xac] sm:$0xf]
  %v59 = vld [vmem:[%s0 + $0xb0] sm:$0xf]
  %v60 = vld [vmem:[%s0 + $0xb4] sm:$0xf]
  %v61 = vld [vmem:[%s0 + $0xb8] sm:$0xf]
  %v62 = vld [vmem:[%s0 + $0xbc] sm:$0xf]
  %v63 = vld [vmem:[%s0 + $0xc0] sm:$0xf]
  %v64 = vld [vmem:[%s0 + $0xc4] sm:$0xf]
  %v65 = vld [vmem:[%s0 + $0xc8] sm:$0xf]
  %v66 = vld [vmem:[%s0 + $0xcc] sm:$0xf]
  %v67 = vld [vmem:[%s0 + $0xd0] sm:$0xf]
  %v68 = vld [vmem:[%s0 + $0xd4] sm:$0xf]
  %v69 = vld [vmem:[%s0 + $0xd8] sm:$0xf]
  %v70 = vld [vmem:[%s0 + $0xdc] sm:$0xf]
  %v71 = vld [vmem:[%s0 + $0xe0] sm:$0xf]
  %v72 = vld [vmem:[%s0 + $0xe4] sm:$0xf]
  %v73 = vld [vmem:[%s0 + $0xe8] sm:$0xf]
  %v74 = vld [vmem:[%s0 + $0xec] sm:$0xf]
  %v75 = vld [vmem:[%s0 + $0xf0] sm:$0xf]
  %v76 = vld [vmem:[%s0 + $0xf4] sm:$0xf]
  %v77 = vld [vmem:[%s0 + $0xf8] sm:$0xf]
  %v78 = vld [vmem:[%s0 + $0xfc] sm:$0xf]
  %v79 = vld [vmem:[%s1] sm:$0xf]
  %v80 = vld [vmem:[%s1 + $0x4] sm:$0xf]
  %v81 = vld [vmem:[%s1 + $0x8] sm:$0xf]
  %v82 = vld [vmem:[%s1 + $0xc] sm:$0xf]
  %v83 = vld [vmem:[%s1 + $0x10] sm:$0x3]
  %v148 = vunpack.c.l.b16 %v15
  %v149 = vunpack.c.l.b16 %v16
  %v150 = vunpack.c.l.b16 %v17
  %v151 = vunpack.c.l.b16 %v18
  %v152 = vunpack.c.l.b16 %v19
  %v153 = vunpack.c.l.b16 %v20
  %v154 = vunpack.c.l.b16 %v21
  %v155 = vunpack.c.l.b16 %v22
  %v156 = vunpack.c.l.b16 %v23
  %v157 = vunpack.c.l.b16 %v24
  %v158 = vunpack.c.l.b16 %v25
  %v159 = vunpack.c.l.b16 %v26
  %v160 = vunpack.c.l.b16 %v27
  %v161 = vunpack.c.l.b16 %v28
  %v162 = vunpack.c.l.b16 %v29
  %v163 = vunpack.c.l.b16 %v30
  %v164 = vunpack.c.l.b16 %v31
  %v165 = vunpack.c.l.b16 %v32
  %v166 = vunpack.c.l.b16 %v33
  %v167 = vunpack.c.l.b16 %v34
  %v168 = vunpack.c.l.b16 %v35
  %v169 = vunpack.c.l.b16 %v36
  %v170 = vunpack.c.l.b16 %v37
  %v171 = vunpack.c.l.b16 %v38
  %v172 = vunpack.c.l.b16 %v39
  %v173 = vunpack.c.l.b16 %v40
  %v174 = vunpack.c.l.b16 %v41
  %v175 = vunpack.c.l.b16 %v42
  %v176 = vunpack.c.l.b16 %v43
  %v177 = vunpack.c.l.b16 %v44
  %v178 = vunpack.c.l.b16 %v45
  %v179 = vunpack.c.l.b16 %v46
  %v180 = vunpack.c.l.b16 %v47
  %v181 = vunpack.c.l.b16 %v48
  %v182 = vunpack.c.l.b16 %v49
  %v183 = vunpack.c.l.b16 %v50
  %v184 = vunpack.c.l.b16 %v51
  %v185 = vunpack.c.l.b16 %v52
  %v186 = vunpack.c.l.b16 %v53
  %v187 = vunpack.c.l.b16 %v54
  %v188 = vunpack.c.l.b16 %v55
  %v189 = vunpack.c.l.b16 %v56
  %v190 = vunpack.c.l.b16 %v57
  %v191 = vunpack.c.l.b16 %v58
  %v192 = vunpack.c.l.b16 %v59
  %v193 = vunpack.c.l.b16 %v60
  %v194 = vunpack.c.l.b16 %v61
  %v195 = vunpack.c.l.b16 %v62
  %v196 = vunpack.c.l.b16 %v63
  %v197 = vunpack.c.l.b16 %v64
  %v198 = vunpack.c.l.b16 %v65
  %v199 = vunpack.c.l.b16 %v66
  %v200 = vunpack.c.l.b16 %v67
  %v201 = vunpack.c.l.b16 %v68
  %v202 = vunpack.c.l.b16 %v69
  %v203 = vunpack.c.l.b16 %v70
  %v204 = vunpack.c.l.b16 %v71
  %v205 = vunpack.c.l.b16 %v72
  %v206 = vunpack.c.l.b16 %v73
  %v207 = vunpack.c.l.b16 %v74
  %v208 = vunpack.c.l.b16 %v75
  %v209 = vunpack.c.l.b16 %v76
  %v210 = vunpack.c.l.b16 %v77
  %v211 = vunpack.c.l.b16 %v78
  %v212 = vpack.c.b16 %v149, %v148
  %v213 = vpack.c.b16 %v151, %v150
  %v214 = vpack.c.b16 %v153, %v152
  %v215 = vpack.c.b16 %v155, %v154
  %v216 = vpack.c.b16 %v157, %v156
  %v217 = vpack.c.b16 %v159, %v158
  %v218 = vpack.c.b16 %v161, %v160
  %v219 = vpack.c.b16 %v163, %v162
  %v220 = vpack.c.b16 %v165, %v164
  %v221 = vpack.c.b16 %v167, %v166
  %v222 = vpack.c.b16 %v169, %v168
  %v223 = vpack.c.b16 %v171, %v170
  %v224 = vpack.c.b16 %v173, %v172
  %v225 = vpack.c.b16 %v175, %v174
  %v226 = vpack.c.b16 %v177, %v176
  %v227 = vpack.c.b16 %v179, %v178
  %v228 = vpack.c.b16 %v181, %v180
  %v229 = vpack.c.b16 %v183, %v182
  %v230 = vpack.c.b16 %v185, %v184
  %v231 = vpack.c.b16 %v187, %v186
  %v232 = vpack.c.b16 %v189, %v188
  %v233 = vpack.c.b16 %v191, %v190
  %v234 = vpack.c.b16 %v193, %v192
  %v235 = vpack.c.b16 %v195, %v194
  %v236 = vpack.c.b16 %v197, %v196
  %v237 = vpack.c.b16 %v199, %v198
  %v238 = vpack.c.b16 %v201, %v200
  %v239 = vpack.c.b16 %v203, %v202
  %v240 = vpack.c.b16 %v205, %v204
  %v241 = vpack.c.b16 %v207, %v206
  %v242 = vpack.c.b16 %v209, %v208
  %v243 = vpack.c.b16 %v211, %v210
  %v249 = vunpack.c.l.b16 %v79
  %v250 = vunpack.c.l.b16 %v80
  %v251 = vunpack.c.l.b16 %v81
  %v252 = vunpack.c.l.b16 %v82
  %v253 = vunpack.c.l.b16 %v83
  %v254 = vpack.c.b16 %v250, %v249
  %v255 = vpack.c.b16 %v252, %v251
  %v256 = vpack.c.b16 %v253, %v253
  %vm259 = vcmask 293888
  %v261 = vsel %vm259, %v212, 0
  %v264 = vsel %vm259, %v213, 0
  %v267 = vsel %vm259, %v214, 0
  %v270 = vsel %vm259, %v215, 0
  %v273 = vsel %vm259, %v216, 0
  %v276 = vsel %vm259, %v217, 0
  %v279 = vsel %vm259, %v218, 0
  %v282 = vsel %vm259, %v219, 0
  %v285 = vsel %vm259, %v220, 0
  %v288 = vsel %vm259, %v221, 0
  %v291 = vsel %vm259, %v222, 0
  %v294 = vsel %vm259, %v223, 0
  %v297 = vsel %vm259, %v224, 0
  %v300 = vsel %vm259, %v225, 0
  %v303 = vsel %vm259, %v226, 0
  %v306 = vsel %vm259, %v227, 0
  %v309 = vsel %vm259, %v228, 0
  %v312 = vsel %vm259, %v229, 0
  %v315 = vsel %vm259, %v230, 0
  %v318 = vsel %vm259, %v231, 0
  %v321 = vsel %vm259, %v232, 0
  %v324 = vsel %vm259, %v233, 0
  %v327 = vsel %vm259, %v234, 0
  %v330 = vsel %vm259, %v235, 0
  %v333 = vsel %vm259, %v236, 0
  %v336 = vsel %vm259, %v237, 0
  %v339 = vsel %vm259, %v238, 0
  %v342 = vsel %vm259, %v239, 0
  %v345 = vsel %vm259, %v240, 0
  %v348 = vsel %vm259, %v241, 0
  %v351 = vsel %vm259, %v242, 0
  %v354 = vsel %vm259, %v243, 0
  %vm356 = vcmask 1041408
  %v358 = vsel %vm356, %v256, 0
  %360 = vmatpush.bf16.msra.mxu0 0
  %361 = vmatpush.bf16.msra.mxu0 0
  %362 = vmatpush.bf16.msra.mxu0 0
  %363 = vmatpush.bf16.msra.mxu0 0
  %364 = vmatpush.bf16.msra.mxu0 0
  %365 = vmatpush.bf16.msra.mxu0 %v358
  %366 = vmatpush.bf16.msra.mxu0 %v255
  %367 = vmatpush.bf16.msra.mxu0 %v254
  %368 = vmatmul.bf16.gmra.mxu0 %v261
  %v369 = vpop.f32.mrf.mxu0
  %v370 = vadd.f32 0.0, %v369
  %v371 = vpop.f32.mrf.mxu0
  %v372 = vadd.f32 0.0, %v371
  %373 = vmatmul.bf16.gmra.mxu0 %v264
  %v374 = vpop.f32.mrf.mxu0
  %v375 = vadd.f32 0.0, %v374
  %v376 = vpop.f32.mrf.mxu0
  %v377 = vadd.f32 0.0, %v376
  %378 = vmatmul.bf16.gmra.mxu0 %v267
  %v379 = vpop.f32.mrf.mxu0
  %v380 = vadd.f32 0.0, %v379
  %v381 = vpop.f32.mrf.mxu0
  %v382 = vadd.f32 0.0, %v381
  %383 = vmatmul.bf16.gmra.mxu0 %v270
  %v384 = vpop.f32.mrf.mxu0
  %v385 = vadd.f32 0.0, %v384
  %v386 = vpop.f32.mrf.mxu0
  %v387 = vadd.f32 0.0, %v386
  %388 = vmatmul.bf16.gmra.mxu0 %v273
  %v389 = vpop.f32.mrf.mxu0
  %v390 = vadd.f32 0.0, %v389
  %v391 = vpop.f32.mrf.mxu0
  %v392 = vadd.f32 0.0, %v391
  %393 = vmatmul.bf16.gmra.mxu0 %v276
  %v394 = vpop.f32.mrf.mxu0
  %v395 = vadd.f32 0.0, %v394
  %v396 = vpop.f32.mrf.mxu0
  %v397 = vadd.f32 0.0, %v396
  %398 = vmatmul.bf16.gmra.mxu0 %v279
  %v399 = vpop.f32.mrf.mxu0
  %v400 = vadd.f32 0.0, %v399
  %v401 = vpop.f32.mrf.mxu0
  %v402 = vadd.f32 0.0, %v401
  %403 = vmatmul.bf16.gmra.mxu0 %v282
  %v404 = vpop.f32.mrf.mxu0
  %v405 = vadd.f32 0.0, %v404
  %v406 = vpop.f32.mrf.mxu0
  %v407 = vadd.f32 0.0, %v406
  %408 = vmatmul.bf16.gmra.mxu0 %v285
  %v409 = vpop.f32.mrf.mxu0
  %v410 = vadd.f32 0.0, %v409
  %v411 = vpop.f32.mrf.mxu0
  %v412 = vadd.f32 0.0, %v411
  %413 = vmatmul.bf16.gmra.mxu0 %v288
  %v414 = vpop.f32.mrf.mxu0
  %v415 = vadd.f32 0.0, %v414
  %v416 = vpop.f32.mrf.mxu0
  %v417 = vadd.f32 0.0, %v416
  %418 = vmatmul.bf16.gmra.mxu0 %v291
  %v419 = vpop.f32.mrf.mxu0
  %v420 = vadd.f32 0.0, %v419
  %v421 = vpop.f32.mrf.mxu0
  %v422 = vadd.f32 0.0, %v421
  %423 = vmatmul.bf16.gmra.mxu0 %v294
  %v424 = vpop.f32.mrf.mxu0
  %v425 = vadd.f32 0.0, %v424
  %v426 = vpop.f32.mrf.mxu0
  %v427 = vadd.f32 0.0, %v426
  %428 = vmatmul.bf16.gmra.mxu0 %v297
  %v429 = vpop.f32.mrf.mxu0
  %v430 = vadd.f32 0.0, %v429
  %v431 = vpop.f32.mrf.mxu0
  %v432 = vadd.f32 0.0, %v431
  %433 = vmatmul.bf16.gmra.mxu0 %v300
  %v434 = vpop.f32.mrf.mxu0
  %v435 = vadd.f32 0.0, %v434
  %v436 = vpop.f32.mrf.mxu0
  %v437 = vadd.f32 0.0, %v436
  %438 = vmatmul.bf16.gmra.mxu0 %v303
  %v439 = vpop.f32.mrf.mxu0
  %v440 = vadd.f32 0.0, %v439
  %v441 = vpop.f32.mrf.mxu0
  %v442 = vadd.f32 0.0, %v441
  %443 = vmatmul.bf16.gmra.mxu0 %v306
  %v444 = vpop.f32.mrf.mxu0
  %v445 = vadd.f32 0.0, %v444
  %v446 = vpop.f32.mrf.mxu0
  %v447 = vadd.f32 0.0, %v446
  %448 = vmatmul.bf16.gmra.mxu0 %v309
  %v449 = vpop.f32.mrf.mxu0
  %v450 = vadd.f32 0.0, %v449
  %v451 = vpop.f32.mrf.mxu0
  %v452 = vadd.f32 0.0, %v451
  %453 = vmatmul.bf16.gmra.mxu0 %v312
  %v454 = vpop.f32.mrf.mxu0
  %v455 = vadd.f32 0.0, %v454
  %v456 = vpop.f32.mrf.mxu0
  %v457 = vadd.f32 0.0, %v456
  %458 = vmatmul.bf16.gmra.mxu0 %v315
  %v459 = vpop.f32.mrf.mxu0
  %v460 = vadd.f32 0.0, %v459
  %v461 = vpop.f32.mrf.mxu0
  %v462 = vadd.f32 0.0, %v461
  %463 = vmatmul.bf16.gmra.mxu0 %v318
  %v464 = vpop.f32.mrf.mxu0
  %v465 = vadd.f32 0.0, %v464
  %v466 = vpop.f32.mrf.mxu0
  %v467 = vadd.f32 0.0, %v466
  %468 = vmatmul.bf16.gmra.mxu0 %v321
  %v469 = vpop.f32.mrf.mxu0
  %v470 = vadd.f32 0.0, %v469
  %v471 = vpop.f32.mrf.mxu0
  %v472 = vadd.f32 0.0, %v471
  %473 = vmatmul.bf16.gmra.mxu0 %v324
  %v474 = vpop.f32.mrf.mxu0
  %v475 = vadd.f32 0.0, %v474
  %v476 = vpop.f32.mrf.mxu0
  %v477 = vadd.f32 0.0, %v476
  %478 = vmatmul.bf16.gmra.mxu0 %v327
  %v479 = vpop.f32.mrf.mxu0
  %v480 = vadd.f32 0.0, %v479
  %v481 = vpop.f32.mrf.mxu0
  %v482 = vadd.f32 0.0, %v481
  %483 = vmatmul.bf16.gmra.mxu0 %v330
  %v484 = vpop.f32.mrf.mxu0
  %v485 = vadd.f32 0.0, %v484
  %v486 = vpop.f32.mrf.mxu0
  %v487 = vadd.f32 0.0, %v486
  %488 = vmatmul.bf16.gmra.mxu0 %v333
  %v489 = vpop.f32.mrf.mxu0
  %v490 = vadd.f32 0.0, %v489
  %v491 = vpop.f32.mrf.mxu0
  %v492 = vadd.f32 0.0, %v491
  %493 = vmatmul.bf16.gmra.mxu0 %v336
  %v494 = vpop.f32.mrf.mxu0
  %v495 = vadd.f32 0.0, %v494
  %v496 = vpop.f32.mrf.mxu0
  %v497 = vadd.f32 0.0, %v496
  %498 = vmatmul.bf16.gmra.mxu0 %v339
  %v499 = vpop.f32.mrf.mxu0
  %v500 = vadd.f32 0.0, %v499
  %v501 = vpop.f32.mrf.mxu0
  %v502 = vadd.f32 0.0, %v501
  %503 = vmatmul.bf16.gmra.mxu0 %v342
  %v504 = vpop.f32.mrf.mxu0
  %v505 = vadd.f32 0.0, %v504
  %v506 = vpop.f32.mrf.mxu0
  %v507 = vadd.f32 0.0, %v506
  %508 = vmatmul.bf16.gmra.mxu0 %v345
  %v509 = vpop.f32.mrf.mxu0
  %v510 = vadd.f32 0.0, %v509
  %v511 = vpop.f32.mrf.mxu0
  %v512 = vadd.f32 0.0, %v511
  %513 = vmatmul.bf16.gmra.mxu0 %v348
  %v514 = vpop.f32.mrf.mxu0
  %v515 = vadd.f32 0.0, %v514
  %v516 = vpop.f32.mrf.mxu0
  %v517 = vadd.f32 0.0, %v516
  %518 = vmatmul.bf16.gmra.mxu0 %v351
  %v519 = vpop.f32.mrf.mxu0
  %v520 = vadd.f32 0.0, %v519
  %v521 = vpop.f32.mrf.mxu0
  %v522 = vadd.f32 0.0, %v521
  %523 = vmatmul.bf16.gmra.mxu0 %v354
  %v524 = vpop.f32.mrf.mxu0
  %v525 = vadd.f32 0.0, %v524
  %v526 = vpop.f32.mrf.mxu0
  %v527 = vadd.f32 0.0, %v526
  %528 = vdwg.mxu0
  %v529 = vpack.c.bf16 %v370, %v370
  %v530 = vpack.c.bf16 %v372, %v372
  %v531 = vpack.c.bf16 %v375, %v375
  %v532 = vpack.c.bf16 %v377, %v377
  %v533 = vpack.c.bf16 %v380, %v380
  %v534 = vpack.c.bf16 %v382, %v382
  %v535 = vpack.c.bf16 %v385, %v385
  %v536 = vpack.c.bf16 %v387, %v387
  %v537 = vpack.c.bf16 %v390, %v390
  %v538 = vpack.c.bf16 %v392, %v392
  %v539 = vpack.c.bf16 %v395, %v395
  %v540 = vpack.c.bf16 %v397, %v397
  %v541 = vpack.c.bf16 %v400, %v400
  %v542 = vpack.c.bf16 %v402, %v402
  %v543 = vpack.c.bf16 %v405, %v405
  %v544 = vpack.c.bf16 %v407, %v407
  %v545 = vpack.c.bf16 %v410, %v410
  %v546 = vpack.c.bf16 %v412, %v412
  %v547 = vpack.c.bf16 %v415, %v415
  %v548 = vpack.c.bf16 %v417, %v417
  %v549 = vpack.c.bf16 %v420, %v420
  %v550 = vpack.c.bf16 %v422, %v422
  %v551 = vpack.c.bf16 %v425, %v425
  %v552 = vpack.c.bf16 %v427, %v427
  %v553 = vpack.c.bf16 %v430, %v430
  %v554 = vpack.c.bf16 %v432, %v432
  %v555 = vpack.c.bf16 %v435, %v435
  %v556 = vpack.c.bf16 %v437, %v437
  %v557 = vpack.c.bf16 %v440, %v440
  %v558 = vpack.c.bf16 %v442, %v442
  %v559 = vpack.c.bf16 %v445, %v445
  %v560 = vpack.c.bf16 %v447, %v447
  %v561 = vpack.c.bf16 %v450, %v450
  %v562 = vpack.c.bf16 %v452, %v452
  %v563 = vpack.c.bf16 %v455, %v455
  %v564 = vpack.c.bf16 %v457, %v457
  %v565 = vpack.c.bf16 %v460, %v460
  %v566 = vpack.c.bf16 %v462, %v462
  %v567 = vpack.c.bf16 %v465, %v465
  %v568 = vpack.c.bf16 %v467, %v467
  %v569 = vpack.c.bf16 %v470, %v470
  %v570 = vpack.c.bf16 %v472, %v472
  %v571 = vpack.c.bf16 %v475, %v475
  %v572 = vpack.c.bf16 %v477, %v477
  %v573 = vpack.c.bf16 %v480, %v480
  %v574 = vpack.c.bf16 %v482, %v482
  %v575 = vpack.c.bf16 %v485, %v485
  %v576 = vpack.c.bf16 %v487, %v487
  %v577 = vpack.c.bf16 %v490, %v490
  %v578 = vpack.c.bf16 %v492, %v492
  %v579 = vpack.c.bf16 %v495, %v495
  %v580 = vpack.c.bf16 %v497, %v497
  %v581 = vpack.c.bf16 %v500, %v500
  %v582 = vpack.c.bf16 %v502, %v502
  %v583 = vpack.c.bf16 %v505, %v505
  %v584 = vpack.c.bf16 %v507, %v507
  %v585 = vpack.c.bf16 %v510, %v510
  %v586 = vpack.c.bf16 %v512, %v512
  %v587 = vpack.c.bf16 %v515, %v515
  %v588 = vpack.c.bf16 %v517, %v517
  %v589 = vpack.c.bf16 %v520, %v520
  %v590 = vpack.c.bf16 %v522, %v522
  %v591 = vpack.c.bf16 %v525, %v525
  %v592 = vpack.c.bf16 %v527, %v527
  %593 = vst [vmem:[%s2] sm:$0xf] %v529
  %594 = vst [vmem:[%s2 + $0x4] sm:$0xf] %v530
  %595 = vst [vmem:[%s2 + $0x8] sm:$0xf] %v531
  %596 = vst [vmem:[%s2 + $0xc] sm:$0xf] %v532
  %597 = vst [vmem:[%s2 + $0x10] sm:$0xf] %v533
  %598 = vst [vmem:[%s2 + $0x14] sm:$0xf] %v534
  %599 = vst [vmem:[%s2 + $0x18] sm:$0xf] %v535
  %600 = vst [vmem:[%s2 + $0x1c] sm:$0xf] %v536
  %601 = vst [vmem:[%s2 + $0x20] sm:$0xf] %v537
  %602 = vst [vmem:[%s2 + $0x24] sm:$0xf] %v538
  %603 = vst [vmem:[%s2 + $0x28] sm:$0xf] %v539
  %604 = vst [vmem:[%s2 + $0x2c] sm:$0xf] %v540
  %605 = vst [vmem:[%s2 + $0x30] sm:$0xf] %v541
  %606 = vst [vmem:[%s2 + $0x34] sm:$0xf] %v542
  %607 = vst [vmem:[%s2 + $0x38] sm:$0xf] %v543
  %608 = vst [vmem:[%s2 + $0x3c] sm:$0xf] %v544
  %609 = vst [vmem:[%s2 + $0x40] sm:$0xf] %v545
  %610 = vst [vmem:[%s2 + $0x44] sm:$0xf] %v546
  %611 = vst [vmem:[%s2 + $0x48] sm:$0xf] %v547
  %612 = vst [vmem:[%s2 + $0x4c] sm:$0xf] %v548
  %613 = vst [vmem:[%s2 + $0x50] sm:$0xf] %v549
  %614 = vst [vmem:[%s2 + $0x54] sm:$0xf] %v550
  %615 = vst [vmem:[%s2 + $0x58] sm:$0xf] %v551
  %616 = vst [vmem:[%s2 + $0x5c] sm:$0xf] %v552
  %617 = vst [vmem:[%s2 + $0x60] sm:$0xf] %v553
  %618 = vst [vmem:[%s2 + $0x64] sm:$0xf] %v554
  %619 = vst [vmem:[%s2 + $0x68] sm:$0xf] %v555
  %620 = vst [vmem:[%s2 + $0x6c] sm:$0xf] %v556
  %621 = vst [vmem:[%s2 + $0x70] sm:$0xf] %v557
  %622 = vst [vmem:[%s2 + $0x74] sm:$0xf] %v558
  %623 = vst [vmem:[%s2 + $0x78] sm:$0xf] %v559
  %624 = vst [vmem:[%s2 + $0x7c] sm:$0xf] %v560
  %625 = vst [vmem:[%s2 + $0x80] sm:$0xf] %v561
  %626 = vst [vmem:[%s2 + $0x84] sm:$0xf] %v562
  %627 = vst [vmem:[%s2 + $0x88] sm:$0xf] %v563
  %628 = vst [vmem:[%s2 + $0x8c] sm:$0xf] %v564
  %629 = vst [vmem:[%s2 + $0x90] sm:$0xf] %v565
  %630 = vst [vmem:[%s2 + $0x94] sm:$0xf] %v566
  %631 = vst [vmem:[%s2 + $0x98] sm:$0xf] %v567
  %632 = vst [vmem:[%s2 + $0x9c] sm:$0xf] %v568
  %633 = vst [vmem:[%s2 + $0xa0] sm:$0xf] %v569
  %634 = vst [vmem:[%s2 + $0xa4] sm:$0xf] %v570
  %635 = vst [vmem:[%s2 + $0xa8] sm:$0xf] %v571
  %636 = vst [vmem:[%s2 + $0xac] sm:$0xf] %v572
  %637 = vst [vmem:[%s2 + $0xb0] sm:$0xf] %v573
  %638 = vst [vmem:[%s2 + $0xb4] sm:$0xf] %v574
  %639 = vst [vmem:[%s2 + $0xb8] sm:$0xf] %v575
  %640 = vst [vmem:[%s2 + $0xbc] sm:$0xf] %v576
  %641 = vst [vmem:[%s2 + $0xc0] sm:$0xf] %v577
  %642 = vst [vmem:[%s2 + $0xc4] sm:$0xf] %v578
  %643 = vst [vmem:[%s2 + $0xc8] sm:$0xf] %v579
  %644 = vst [vmem:[%s2 + $0xcc] sm:$0xf] %v580
  %645 = vst [vmem:[%s2 + $0xd0] sm:$0xf] %v581
  %646 = vst [vmem:[%s2 + $0xd4] sm:$0xf] %v582
  %647 = vst [vmem:[%s2 + $0xd8] sm:$0xf] %v583
  %648 = vst [vmem:[%s2 + $0xdc] sm:$0xf] %v584
  %649 = vst [vmem:[%s2 + $0xe0] sm:$0xf] %v585
  %650 = vst [vmem:[%s2 + $0xe4] sm:$0xf] %v586
  %651 = vst [vmem:[%s2 + $0xe8] sm:$0xf] %v587
  %652 = vst [vmem:[%s2 + $0xec] sm:$0xf] %v588
  %653 = vst [vmem:[%s2 + $0xf0] sm:$0xf] %v589
  %654 = vst [vmem:[%s2 + $0xf4] sm:$0xf] %v590
  %655 = vst [vmem:[%s2 + $0xf8] sm:$0xf] %v591
  %656 = vst [vmem:[%s2 + $0xfc] sm:$0xf] %v592
  %v657 = vadd.f32 %v370, %v372
  %v658 = vadd.f32 %v657, %v375
  %v659 = vadd.f32 %v658, %v377
  %v660 = vadd.f32 %v659, %v380
  %v661 = vadd.f32 %v660, %v382
  %v662 = vadd.f32 %v661, %v385
  %v663 = vadd.f32 %v662, %v387
  %v664 = vadd.f32 %v663, %v390
  %v665 = vadd.f32 %v664, %v392
  %v666 = vadd.f32 %v665, %v395
  %v667 = vadd.f32 %v666, %v397
  %v668 = vadd.f32 %v667, %v400
  %v669 = vadd.f32 %v668, %v402
  %v670 = vadd.f32 %v669, %v405
  %v671 = vadd.f32 %v670, %v407
  %v672 = vadd.f32 %v671, %v410
  %v673 = vadd.f32 %v672, %v412
  %v674 = vadd.f32 %v673, %v415
  %v675 = vadd.f32 %v674, %v417
  %v676 = vadd.f32 %v675, %v420
  %v677 = vadd.f32 %v676, %v422
  %v678 = vadd.f32 %v677, %v425
  %v679 = vadd.f32 %v678, %v427
  %v680 = vadd.f32 %v679, %v430
  %v681 = vadd.f32 %v680, %v432
  %v682 = vadd.f32 %v681, %v435
  %v683 = vadd.f32 %v682, %v437
  %v684 = vadd.f32 %v683, %v440
  %v685 = vadd.f32 %v684, %v442
  %v686 = vadd.f32 %v685, %v445
  %v687 = vadd.f32 %v686, %v447
  %v688 = vadd.f32 %v687, %v450
  %v689 = vadd.f32 %v688, %v452
  %v690 = vadd.f32 %v689, %v455
  %v691 = vadd.f32 %v690, %v457
  %v692 = vadd.f32 %v691, %v460
  %v693 = vadd.f32 %v692, %v462
  %v694 = vadd.f32 %v693, %v465
  %v695 = vadd.f32 %v694, %v467
  %v696 = vadd.f32 %v695, %v470
  %v697 = vadd.f32 %v696, %v472
  %v698 = vadd.f32 %v697, %v475
  %v699 = vadd.f32 %v698, %v477
  %v700 = vadd.f32 %v699, %v480
  %v701 = vadd.f32 %v700, %v482
  %v702 = vadd.f32 %v701, %v485
  %v703 = vadd.f32 %v702, %v487
  %v704 = vadd.f32 %v703, %v490
  %v705 = vadd.f32 %v704, %v492
  %v706 = vadd.f32 %v705, %v495
  %v707 = vadd.f32 %v706, %v497
  %v708 = vadd.f32 %v707, %v500
  %v709 = vadd.f32 %v708, %v502
  %v710 = vadd.f32 %v709, %v505
  %v711 = vadd.f32 %v710, %v507
  %v712 = vadd.f32 %v711, %v510
  %v713 = vadd.f32 %v712, %v512
  %v714 = vadd.f32 %v713, %v515
  %v715 = vadd.f32 %v714, %v517
  %v716 = vadd.f32 %v715, %v520
  %v717 = vadd.f32 %v716, %v522
  %v718 = vadd.f32 %v717, %v525
  %v719 = vadd.f32 %v718, %v527
  %v720 = vrot.slane %v719, 4
  %v721 = vadd.f32 %v719, %v720
  %v722 = vrot.slane %v721, 2
  %v723 = vadd.f32 %v721, %v722
  %v724 = vrot.slane %v723, 1
  %v725 = vadd.f32 %v723, %v724
  %v726 = vmul.f32 %v370, %v370
  %v727 = vmul.f32 %v372, %v372
  %v728 = vmul.f32 %v375, %v375
  %v729 = vmul.f32 %v377, %v377
  %v730 = vmul.f32 %v380, %v380
  %v731 = vmul.f32 %v382, %v382
  %v732 = vmul.f32 %v385, %v385
  %v733 = vmul.f32 %v387, %v387
  %v734 = vmul.f32 %v390, %v390
  %v735 = vmul.f32 %v392, %v392
  %v736 = vmul.f32 %v395, %v395
  %v737 = vmul.f32 %v397, %v397
  %v738 = vmul.f32 %v400, %v400
  %v739 = vmul.f32 %v402, %v402
  %v740 = vmul.f32 %v405, %v405
  %v741 = vmul.f32 %v407, %v407
  %v742 = vmul.f32 %v410, %v410
  %v743 = vmul.f32 %v412, %v412
  %v744 = vmul.f32 %v415, %v415
  %v745 = vmul.f32 %v417, %v417
  %v746 = vmul.f32 %v420, %v420
  %v747 = vmul.f32 %v422, %v422
  %v748 = vmul.f32 %v425, %v425
  %v749 = vmul.f32 %v427, %v427
  %v750 = vmul.f32 %v430, %v430
  %v751 = vmul.f32 %v432, %v432
  %v752 = vmul.f32 %v435, %v435
  %v753 = vmul.f32 %v437, %v437
  %v754 = vmul.f32 %v440, %v440
  %v755 = vmul.f32 %v442, %v442
  %v756 = vmul.f32 %v445, %v445
  %v757 = vmul.f32 %v447, %v447
  %v758 = vmul.f32 %v450, %v450
  %v759 = vmul.f32 %v452, %v452
  %v760 = vmul.f32 %v455, %v455
  %v761 = vmul.f32 %v457, %v457
  %v762 = vmul.f32 %v460, %v460
  %v763 = vmul.f32 %v462, %v462
  %v764 = vmul.f32 %v465, %v465
  %v765 = vmul.f32 %v467, %v467
  %v766 = vmul.f32 %v470, %v470
  %v767 = vmul.f32 %v472, %v472
  %v768 = vmul.f32 %v475, %v475
  %v769 = vmul.f32 %v477, %v477
  %v770 = vmul.f32 %v480, %v480
  %v771 = vmul.f32 %v482, %v482
  %v772 = vmul.f32 %v485, %v485
  %v773 = vmul.f32 %v487, %v487
  %v774 = vmul.f32 %v490, %v490
  %v775 = vmul.f32 %v492, %v492
  %v776 = vmul.f32 %v495, %v495
  %v777 = vmul.f32 %v497, %v497
  %v778 = vmul.f32 %v500, %v500
  %v779 = vmul.f32 %v502, %v502
  %v780 = vmul.f32 %v505, %v505
  %v781 = vmul.f32 %v507, %v507
  %v782 = vmul.f32 %v510, %v510
  %v783 = vmul.f32 %v512, %v512
  %v784 = vmul.f32 %v515, %v515
  %v785 = vmul.f32 %v517, %v517
  %v786 = vmul.f32 %v520, %v520
  %v787 = vmul.f32 %v522, %v522
  %v788 = vmul.f32 %v525, %v525
  %v789 = vmul.f32 %v527, %v527
  %v790 = vadd.f32 %v726, %v727
  %v791 = vadd.f32 %v790, %v728
  %v792 = vadd.f32 %v791, %v729
  %v793 = vadd.f32 %v792, %v730
  %v794 = vadd.f32 %v793, %v731
  %v795 = vadd.f32 %v794, %v732
  %v796 = vadd.f32 %v795, %v733
  %v797 = vadd.f32 %v796, %v734
  %v798 = vadd.f32 %v797, %v735
  %v799 = vadd.f32 %v798, %v736
  %v800 = vadd.f32 %v799, %v737
  %v801 = vadd.f32 %v800, %v738
  %v802 = vadd.f32 %v801, %v739
  %v803 = vadd.f32 %v802, %v740
  %v804 = vadd.f32 %v803, %v741
  %v805 = vadd.f32 %v804, %v742
  %v806 = vadd.f32 %v805, %v743
  %v807 = vadd.f32 %v806, %v744
  %v808 = vadd.f32 %v807, %v745
  %v809 = vadd.f32 %v808, %v746
  %v810 = vadd.f32 %v809, %v747
  %v811 = vadd.f32 %v810, %v748
  %v812 = vadd.f32 %v811, %v749
  %v813 = vadd.f32 %v812, %v750
  %v814 = vadd.f32 %v813, %v751
  %v815 = vadd.f32 %v814, %v752
  %v816 = vadd.f32 %v815, %v753
  %v817 = vadd.f32 %v816, %v754
  %v818 = vadd.f32 %v817, %v755
  %v819 = vadd.f32 %v818, %v756
  %v820 = vadd.f32 %v819, %v757
  %v821 = vadd.f32 %v820, %v758
  %v822 = vadd.f32 %v821, %v759
  %v823 = vadd.f32 %v822, %v760
  %v824 = vadd.f32 %v823, %v761
  %v825 = vadd.f32 %v824, %v762
  %v826 = vadd.f32 %v825, %v763
  %v827 = vadd.f32 %v826, %v764
  %v828 = vadd.f32 %v827, %v765
  %v829 = vadd.f32 %v828, %v766
  %v830 = vadd.f32 %v829, %v767
  %v831 = vadd.f32 %v830, %v768
  %v832 = vadd.f32 %v831, %v769
  %v833 = vadd.f32 %v832, %v770
  %v834 = vadd.f32 %v833, %v771
  %v835 = vadd.f32 %v834, %v772
  %v836 = vadd.f32 %v835, %v773
  %v837 = vadd.f32 %v836, %v774
  %v838 = vadd.f32 %v837, %v775
  %v839 = vadd.f32 %v838, %v776
  %v840 = vadd.f32 %v839, %v777
  %v841 = vadd.f32 %v840, %v778
  %v842 = vadd.f32 %v841, %v779
  %v843 = vadd.f32 %v842, %v780
  %v844 = vadd.f32 %v843, %v781
  %v845 = vadd.f32 %v844, %v782
  %v846 = vadd.f32 %v845, %v783
  %v847 = vadd.f32 %v846, %v784
  %v848 = vadd.f32 %v847, %v785
  %v849 = vadd.f32 %v848, %v786
  %v850 = vadd.f32 %v849, %v787
  %v851 = vadd.f32 %v850, %v788
  %v852 = vadd.f32 %v851, %v789
  %v853 = vrot.slane %v852, 4
  %v854 = vadd.f32 %v852, %v853
  %v855 = vrot.slane %v854, 2
  %v856 = vadd.f32 %v854, %v855
  %v857 = vrot.slane %v856, 1
  %v858 = vadd.f32 %v856, %v857
  %859 = vst [vmem:[%s3] sm:$0xff] %v725
  %860 = vst [vmem:[%s4] sm:$0xff] %v858
  // Predicated region
  $region10: #{_lambda_.68} parent=0 // pred_check
    _
  $region11: #{_lambda_.68} parent=0 // pred_check_branch
    %862 = sbr.rel (0) target = $region13
  $region12: #{_lambda_.68} parent=0 // pred_region
    _
  $region13: #{_lambda_.68} parent=0 // pred_fallthru
    _
  // Predicated region
  $region14: #{_lambda_.68} parent=0 // pred_check
    _
  $region15: #{_lambda_.68} parent=0 // pred_check_branch
    %864 = sbr.rel (0) target = $region17
  $region16: #{_lambda_.68} parent=0 // pred_region
    _
  $region17: #{_lambda_.68} parent=0 // pred_fallthru
    _
  // Predicated region
  $region18: #{_lambda_.68} parent=0 // pred_check
    _
  $region19: #{_lambda_.68} parent=0 // pred_check_branch
    %866 = sbr.rel (0) target = $region21
  $region20: #{_lambda_.68} parent=0 // pred_region
    _
  $region21: #{_lambda_.68} parent=0 // pred_fallthru
    _
  // Predicated region
  $region22: #{_lambda_.68} parent=0 // pred_check
    _
  $region23: #{_lambda_.68} parent=0 // pred_check_branch
    %868 = sbr.rel (0) target = $region25
  $region24: #{_lambda_.68} parent=0 // pred_region
    _
  $region25: #{_lambda_.68} parent=0 // pred_fallthru
    _
  // Predicated region
  $region26: #{_lambda_.68} parent=0 // pred_check
    _
  $region27: #{_lambda_.68} parent=0 // pred_check_branch
    %870 = sbr.rel (0) target = $region29
  $region28: #{_lambda_.68} parent=0 // pred_region
    _
  $region29: #{_lambda_.68} parent=0 // pred_fallthru
    _
  // Predicated region
  $region30: #{_lambda_.68} parent=0 // pred_check
    _
  $region31: #{_lambda_.68} parent=0 // pred_check_branch
    %872 = sbr.rel (0) target = $region33
  $region32: #{_lambda_.68} parent=0 // pred_region
    _
  $region33: #{_lambda_.68} parent=0 // pred_fallthru
    _

// kernel: _lambda_.71
$region0: #{_lambda_.71}
  #allocation0 [shape = 'u32[]', space=smem, size = 0x4, offset = 0x4, fixed_abs, tag = 'smem constant byte address 0x4 - core index']
  #allocation1 [shape = 'u32[72,128]{1,0:T(1,128)}', space=vmem, size = 0x9000, scoped, tag = 'internal scratch']
  %s0 = inlined_call_operand.vmem [shape: bf16[512,128], index: 0, kind: input, shape index: {}]
  %s1 = inlined_call_operand.vmem [shape: f32[1,128], index: 1, kind: input, shape index: {}]
  %s2 = inlined_call_operand.vmem [shape: f32[1,128], index: 2, kind: input, shape index: {}]
  %s3 = inlined_call_operand.vmem [shape: bf16[512,128], index: 3, kind: output, shape index: {}]
  %s4 = sld [smem:[#allocation0]]
  $region22: #{_lambda_.71} parent=0
    _
  %s6 = ssub.s32 1, %s4
  %s7 = scalar_select 0, %s6, %s4
  // Predicated region
  $region2: #{_lambda_.71} parent=0 // pred_check
    _
  $region3: #{_lambda_.71} parent=0 // pred_check_branch
    %9 = sbr.rel (0) target = $region5
  $region4: #{_lambda_.71} parent=0 // pred_region
    _
  $region5: #{_lambda_.71} parent=0 // pred_fallthru
    _
  // Predicated region
  $region6: #{_lambda_.71} parent=0 // pred_check
    _
  $region7: #{_lambda_.71} parent=0 // pred_check_branch
    %11 = sbr.rel (0) target = $region9
  $region8: #{_lambda_.71} parent=0 // pred_region
    _
  $region9: #{_lambda_.71} parent=0 // pred_fallthru
    _
  // Predicated region
  $region10: #{_lambda_.71} parent=0 // pred_check
    _
  $region11: #{_lambda_.71} parent=0 // pred_check_branch
    %13 = sbr.rel (0) target = $region13
  $region12: #{_lambda_.71} parent=0 // pred_region
    _
  $region13: #{_lambda_.71} parent=0 // pred_fallthru
    _
  %v14 = vld [vmem:[%s0] sm:$0xf]
  %v15 = vld [vmem:[%s0 + $0x4] sm:$0xf]
  %v16 = vld [vmem:[%s0 + $0x8] sm:$0xf]
  %v17 = vld [vmem:[%s0 + $0xc] sm:$0xf]
  %v18 = vld [vmem:[%s0 + $0x10] sm:$0xf]
  %v19 = vld [vmem:[%s0 + $0x14] sm:$0xf]
  %v20 = vld [vmem:[%s0 + $0x18] sm:$0xf]
  %v21 = vld [vmem:[%s0 + $0x1c] sm:$0xf]
  %v22 = vld [vmem:[%s0 + $0x20] sm:$0xf]
  %v23 = vld [vmem:[%s0 + $0x24] sm:$0xf]
  %v24 = vld [vmem:[%s0 + $0x28] sm:$0xf]
  %v25 = vld [vmem:[%s0 + $0x2c] sm:$0xf]
  %v26 = vld [vmem:[%s0 + $0x30] sm:$0xf]
  %v27 = vld [vmem:[%s0 + $0x34] sm:$0xf]
  %v28 = vld [vmem:[%s0 + $0x38] sm:$0xf]
  %v29 = vld [vmem:[%s0 + $0x3c] sm:$0xf]
  %v30 = vld [vmem:[%s0 + $0x40] sm:$0xf]
  %v31 = vld [vmem:[%s0 + $0x44] sm:$0xf]
  %v32 = vld [vmem:[%s0 + $0x48] sm:$0xf]
  %v33 = vld [vmem:[%s0 + $0x4c] sm:$0xf]
  %v34 = vld [vmem:[%s0 + $0x50] sm:$0xf]
  %v35 = vld [vmem:[%s0 + $0x54] sm:$0xf]
  %v36 = vld [vmem:[%s0 + $0x58] sm:$0xf]
  %v37 = vld [vmem:[%s0 + $0x5c] sm:$0xf]
  %v38 = vld [vmem:[%s0 + $0x60] sm:$0xf]
  %v39 = vld [vmem:[%s0 + $0x64] sm:$0xf]
  %v40 = vld [vmem:[%s0 + $0x68] sm:$0xf]
  %v41 = vld [vmem:[%s0 + $0x6c] sm:$0xf]
  %v42 = vld [vmem:[%s0 + $0x70] sm:$0xf]
  %v43 = vld [vmem:[%s0 + $0x74] sm:$0xf]
  %v44 = vld [vmem:[%s0 + $0x78] sm:$0xf]
  %v45 = vld [vmem:[%s0 + $0x7c] sm:$0xf]
  %v46 = vld [vmem:[%s0 + $0x80] sm:$0xf]
  %v47 = vld [vmem:[%s0 + $0x84] sm:$0xf]
  %v48 = vld [vmem:[%s0 + $0x88] sm:$0xf]
  %v49 = vld [vmem:[%s0 + $0x8c] sm:$0xf]
  %v50 = vld [vmem:[%s0 + $0x90] sm:$0xf]
  %v51 = vld [vmem:[%s0 + $0x94] sm:$0xf]
  %v52 = vld [vmem:[%s0 + $0x98] sm:$0xf]
  %v53 = vld [vmem:[%s0 + $0x9c] sm:$0xf]
  %v54 = vld [vmem:[%s0 + $0xa0] sm:$0xf]
  %v55 = vld [vmem:[%s0 + $0xa4] sm:$0xf]
  %v56 = vld [vmem:[%s0 + $0xa8] sm:$0xf]
  %v57 = vld [vmem:[%s0 + $0xac] sm:$0xf]
  %v58 = vld [vmem:[%s0 + $0xb0] sm:$0xf]
  %v59 = vld [vmem:[%s0 + $0xb4] sm:$0xf]
  %v60 = vld [vmem:[%s0 + $0xb8] sm:$0xf]
  %v61 = vld [vmem:[%s0 + $0xbc] sm:$0xf]
  %v62 = vld [vmem:[%s0 + $0xc0] sm:$0xf]
  %v63 = vld [vmem:[%s0 + $0xc4] sm:$0xf]
  %v64 = vld [vmem:[%s0 + $0xc8] sm:$0xf]
  %v65 = vld [vmem:[%s0 + $0xcc] sm:$0xf]
  %v66 = vld [vmem:[%s0 + $0xd0] sm:$0xf]
  %v67 = vld [vmem:[%s0 + $0xd4] sm:$0xf]
  %v68 = vld [vmem:[%s0 + $0xd8] sm:$0xf]
  %v69 = vld [vmem:[%s0 + $0xdc] sm:$0xf]
  %v70 = vld [vmem:[%s0 + $0xe0] sm:$0xf]
  %v71 = vld [vmem:[%s0 + $0xe4] sm:$0xf]
  %v72 = vld [vmem:[%s0 + $0xe8] sm:$0xf]
  %v73 = vld [vmem:[%s0 + $0xec] sm:$0xf]
  %v74 = vld [vmem:[%s0 + $0xf0] sm:$0xf]
  %v75 = vld [vmem:[%s0 + $0xf4] sm:$0xf]
  %v76 = vld [vmem:[%s0 + $0xf8] sm:$0xf]
  %v77 = vld [vmem:[%s0 + $0xfc] sm:$0xf]
  %v78 = vunpack.c.l.bf16 %v14
  %v79 = vunpack.c.l.bf16 %v15
  %v80 = vunpack.c.l.bf16 %v16
  %v81 = vunpack.c.l.bf16 %v17
  %v82 = vunpack.c.l.bf16 %v18
  %v83 = vunpack.c.l.bf16 %v19
  %v84 = vunpack.c.l.bf16 %v20
  %v85 = vunpack.c.l.bf16 %v21
  %v86 = vunpack.c.l.bf16 %v22
  %v87 = vunpack.c.l.bf16 %v23
  %v88 = vunpack.c.l.bf16 %v24
  %v89 = vunpack.c.l.bf16 %v25
  %v90 = vunpack.c.l.bf16 %v26
  %v91 = vunpack.c.l.bf16 %v27
  %v92 = vunpack.c.l.bf16 %v28
  %v93 = vunpack.c.l.bf16 %v29
  %v94 = vunpack.c.l.bf16 %v30
  %v95 = vunpack.c.l.bf16 %v31
  %v96 = vunpack.c.l.bf16 %v32
  %v97 = vunpack.c.l.bf16 %v33
  %v98 = vunpack.c.l.bf16 %v34
  %v99 = vunpack.c.l.bf16 %v35
  %v100 = vunpack.c.l.bf16 %v36
  %v101 = vunpack.c.l.bf16 %v37
  %v102 = vunpack.c.l.bf16 %v38
  %v103 = vunpack.c.l.bf16 %v39
  %v104 = vunpack.c.l.bf16 %v40
  %v105 = vunpack.c.l.bf16 %v41
  %v106 = vunpack.c.l.bf16 %v42
  %v107 = vunpack.c.l.bf16 %v43
  %v108 = vunpack.c.l.bf16 %v44
  %v109 = vunpack.c.l.bf16 %v45
  %v110 = vunpack.c.l.bf16 %v46
  %v111 = vunpack.c.l.bf16 %v47
  %v112 = vunpack.c.l.bf16 %v48
  %v113 = vunpack.c.l.bf16 %v49
  %v114 = vunpack.c.l.bf16 %v50
  %v115 = vunpack.c.l.bf16 %v51
  %v116 = vunpack.c.l.bf16 %v52
  %v117 = vunpack.c.l.bf16 %v53
  %v118 = vunpack.c.l.bf16 %v54
  %v119 = vunpack.c.l.bf16 %v55
  %v120 = vunpack.c.l.bf16 %v56
  %v121 = vunpack.c.l.bf16 %v57
  %v122 = vunpack.c.l.bf16 %v58
  %v123 = vunpack.c.l.bf16 %v59
  %v124 = vunpack.c.l.bf16 %v60
  %v125 = vunpack.c.l.bf16 %v61
  %v126 = vunpack.c.l.bf16 %v62
  %v127 = vunpack.c.l.bf16 %v63
  %v128 = vunpack.c.l.bf16 %v64
  %v129 = vunpack.c.l.bf16 %v65
  %v130 = vunpack.c.l.bf16 %v66
  %v131 = vunpack.c.l.bf16 %v67
  %v132 = vunpack.c.l.bf16 %v68
  %v133 = vunpack.c.l.bf16 %v69
  %v134 = vunpack.c.l.bf16 %v70
  %v135 = vunpack.c.l.bf16 %v71
  %v136 = vunpack.c.l.bf16 %v72
  %v137 = vunpack.c.l.bf16 %v73
  %v138 = vunpack.c.l.bf16 %v74
  %v139 = vunpack.c.l.bf16 %v75
  %v140 = vunpack.c.l.bf16 %v76
  %v141 = vunpack.c.l.bf16 %v77
  %v142 = vld [vmem:[%s1] sm:$0x1]
  %v144 = vperm.slane %v142, 0
  %v146 = vmul.f32 %v78, %v144
  %v147 = vmul.f32 %v79, %v144
  %v148 = vmul.f32 %v80, %v144
  %v149 = vmul.f32 %v81, %v144
  %v150 = vmul.f32 %v82, %v144
  %v151 = vmul.f32 %v83, %v144
  %v152 = vmul.f32 %v84, %v144
  %v153 = vmul.f32 %v85, %v144
  %v154 = vmul.f32 %v86, %v144
  %v155 = vmul.f32 %v87, %v144
  %v156 = vmul.f32 %v88, %v144
  %v157 = vmul.f32 %v89, %v144
  %v158 = vmul.f32 %v90, %v144
  %v159 = vmul.f32 %v91, %v144
  %v160 = vmul.f32 %v92, %v144
  %v161 = vmul.f32 %v93, %v144
  %v162 = vmul.f32 %v94, %v144
  %v163 = vmul.f32 %v95, %v144
  %v164 = vmul.f32 %v96, %v144
  %v165 = vmul.f32 %v97, %v144
  %v166 = vmul.f32 %v98, %v144
  %v167 = vmul.f32 %v99, %v144
  %v168 = vmul.f32 %v100, %v144
  %v169 = vmul.f32 %v101, %v144
  %v170 = vmul.f32 %v102, %v144
  %v171 = vmul.f32 %v103, %v144
  %v172 = vmul.f32 %v104, %v144
  %v173 = vmul.f32 %v105, %v144
  %v174 = vmul.f32 %v106, %v144
  %v175 = vmul.f32 %v107, %v144
  %v176 = vmul.f32 %v108, %v144
  %v177 = vmul.f32 %v109, %v144
  %v178 = vmul.f32 %v110, %v144
  %v179 = vmul.f32 %v111, %v144
  %v180 = vmul.f32 %v112, %v144
  %v181 = vmul.f32 %v113, %v144
  %v182 = vmul.f32 %v114, %v144
  %v183 = vmul.f32 %v115, %v144
  %v184 = vmul.f32 %v116, %v144
  %v185 = vmul.f32 %v117, %v144
  %v186 = vmul.f32 %v118, %v144
  %v187 = vmul.f32 %v119, %v144
  %v188 = vmul.f32 %v120, %v144
  %v189 = vmul.f32 %v121, %v144
  %v190 = vmul.f32 %v122, %v144
  %v191 = vmul.f32 %v123, %v144
  %v192 = vmul.f32 %v124, %v144
  %v193 = vmul.f32 %v125, %v144
  %v194 = vmul.f32 %v126, %v144
  %v195 = vmul.f32 %v127, %v144
  %v196 = vmul.f32 %v128, %v144
  %v197 = vmul.f32 %v129, %v144
  %v198 = vmul.f32 %v130, %v144
  %v199 = vmul.f32 %v131, %v144
  %v200 = vmul.f32 %v132, %v144
  %v201 = vmul.f32 %v133, %v144
  %v202 = vmul.f32 %v134, %v144
  %v203 = vmul.f32 %v135, %v144
  %v204 = vmul.f32 %v136, %v144
  %v205 = vmul.f32 %v137, %v144
  %v206 = vmul.f32 %v138, %v144
  %v207 = vmul.f32 %v139, %v144
  %v208 = vmul.f32 %v140, %v144
  %v209 = vmul.f32 %v141, %v144
  %v210 = vld [vmem:[%s2] sm:$0x1]
  %v212 = vperm.slane %v210, 0
  %v214 = vadd.f32 %v146, %v212
  %v215 = vadd.f32 %v147, %v212
  %v216 = vadd.f32 %v148, %v212
  %v217 = vadd.f32 %v149, %v212
  %v218 = vadd.f32 %v150, %v212
  %v219 = vadd.f32 %v151, %v212
  %v220 = vadd.f32 %v152, %v212
  %v221 = vadd.f32 %v153, %v212
  %v222 = vadd.f32 %v154, %v212
  %v223 = vadd.f32 %v155, %v212
  %v224 = vadd.f32 %v156, %v212
  %v225 = vadd.f32 %v157, %v212
  %v226 = vadd.f32 %v158, %v212
  %v227 = vadd.f32 %v159, %v212
  %v228 = vadd.f32 %v160, %v212
  %v229 = vadd.f32 %v161, %v212
  %v230 = vadd.f32 %v162, %v212
  %v231 = vadd.f32 %v163, %v212
  %v232 = vadd.f32 %v164, %v212
  %v233 = vadd.f32 %v165, %v212
  %v234 = vadd.f32 %v166, %v212
  %v235 = vadd.f32 %v167, %v212
  %v236 = vadd.f32 %v168, %v212
  %v237 = vadd.f32 %v169, %v212
  %v238 = vadd.f32 %v170, %v212
  %v239 = vadd.f32 %v171, %v212
  %v240 = vadd.f32 %v172, %v212
  %v241 = vadd.f32 %v173, %v212
  %v242 = vadd.f32 %v174, %v212
  %v243 = vadd.f32 %v175, %v212
  %v244 = vadd.f32 %v176, %v212
  %v245 = vadd.f32 %v177, %v212
  %v246 = vadd.f32 %v178, %v212
  %v247 = vadd.f32 %v179, %v212
  %v248 = vadd.f32 %v180, %v212
  %v249 = vadd.f32 %v181, %v212
  %v250 = vadd.f32 %v182, %v212
  %v251 = vadd.f32 %v183, %v212
  %v252 = vadd.f32 %v184, %v212
  %v253 = vadd.f32 %v185, %v212
  %v254 = vadd.f32 %v186, %v212
  %v255 = vadd.f32 %v187, %v212
  %v256 = vadd.f32 %v188, %v212
  %v257 = vadd.f32 %v189, %v212
  %v258 = vadd.f32 %v190, %v212
  %v259 = vadd.f32 %v191, %v212
  %v260 = vadd.f32 %v192, %v212
  %v261 = vadd.f32 %v193, %v212
  %v262 = vadd.f32 %v194, %v212
  %v263 = vadd.f32 %v195, %v212
  %v264 = vadd.f32 %v196, %v212
  %v265 = vadd.f32 %v197, %v212
  %v266 = vadd.f32 %v198, %v212
  %v267 = vadd.f32 %v199, %v212
  %v268 = vadd.f32 %v200, %v212
  %v269 = vadd.f32 %v201, %v212
  %v270 = vadd.f32 %v202, %v212
  %v271 = vadd.f32 %v203, %v212
  %v272 = vadd.f32 %v204, %v212
  %v273 = vadd.f32 %v205, %v212
  %v274 = vadd.f32 %v206, %v212
  %v275 = vadd.f32 %v207, %v212
  %v276 = vadd.f32 %v208, %v212
  %v277 = vadd.f32 %v209, %v212
  %v278 = vtanh.pop %v214
  %v279 = vtanh.pop %v215
  %v280 = vtanh.pop %v216
  %v281 = vtanh.pop %v217
  %v282 = vtanh.pop %v218
  %v283 = vtanh.pop %v219
  %v284 = vtanh.pop %v220
  %v285 = vtanh.pop %v221
  %v286 = vtanh.pop %v222
  %v287 = vtanh.pop %v223
  %v288 = vtanh.pop %v224
  %v289 = vtanh.pop %v225
  %v290 = vtanh.pop %v226
  %v291 = vtanh.pop %v227
  %v292 = vtanh.pop %v228
  %v293 = vtanh.pop %v229
  %v294 = vtanh.pop %v230
  %v295 = vtanh.pop %v231
  %v296 = vtanh.pop %v232
  %v297 = vtanh.pop %v233
  %v298 = vtanh.pop %v234
  %v299 = vtanh.pop %v235
  %v300 = vtanh.pop %v236
  %v301 = vtanh.pop %v237
  %v302 = vtanh.pop %v238
  %v303 = vtanh.pop %v239
  %v304 = vtanh.pop %v240
  %v305 = vtanh.pop %v241
  %v306 = vtanh.pop %v242
  %v307 = vtanh.pop %v243
  %v308 = vtanh.pop %v244
  %v309 = vtanh.pop %v245
  %v310 = vtanh.pop %v246
  %v311 = vtanh.pop %v247
  %v312 = vtanh.pop %v248
  %v313 = vtanh.pop %v249
  %v314 = vtanh.pop %v250
  %v315 = vtanh.pop %v251
  %v316 = vtanh.pop %v252
  %v317 = vtanh.pop %v253
  %v318 = vtanh.pop %v254
  %v319 = vtanh.pop %v255
  %v320 = vtanh.pop %v256
  %v321 = vtanh.pop %v257
  %v322 = vtanh.pop %v258
  %v323 = vtanh.pop %v259
  %v324 = vtanh.pop %v260
  %v325 = vtanh.pop %v261
  %v326 = vtanh.pop %v262
  %v327 = vtanh.pop %v263
  %v328 = vtanh.pop %v264
  %v329 = vtanh.pop %v265
  %v330 = vtanh.pop %v266
  %v331 = vtanh.pop %v267
  %v332 = vtanh.pop %v268
  %v333 = vtanh.pop %v269
  %v334 = vtanh.pop %v270
  %v335 = vtanh.pop %v271
  %v336 = vtanh.pop %v272
  %v337 = vtanh.pop %v273
  %v338 = vtanh.pop %v274
  %v339 = vtanh.pop %v275
  %v340 = vtanh.pop %v276
  %v341 = vtanh.pop %v277
  %v342 = vpack.c.bf16 %v278, %v278
  %v343 = vpack.c.bf16 %v279, %v279
  %v344 = vpack.c.bf16 %v280, %v280
  %v345 = vpack.c.bf16 %v281, %v281
  %v346 = vpack.c.bf16 %v282, %v282
  %v347 = vpack.c.bf16 %v283, %v283
  %v348 = vpack.c.bf16 %v284, %v284
  %v349 = vpack.c.bf16 %v285, %v285
  %v350 = vpack.c.bf16 %v286, %v286
  %v351 = vpack.c.bf16 %v287, %v287
  %v352 = vpack.c.bf16 %v288, %v288
  %v353 = vpack.c.bf16 %v289, %v289
  %v354 = vpack.c.bf16 %v290, %v290
  %v355 = vpack.c.bf16 %v291, %v291
  %v356 = vpack.c.bf16 %v292, %v292
  %v357 = vpack.c.bf16 %v293, %v293
  %v358 = vpack.c.bf16 %v294, %v294
  %v359 = vpack.c.bf16 %v295, %v295
  %v360 = vpack.c.bf16 %v296, %v296
  %v361 = vpack.c.bf16 %v297, %v297
  %v362 = vpack.c.bf16 %v298, %v298
  %v363 = vpack.c.bf16 %v299, %v299
  %v364 = vpack.c.bf16 %v300, %v300
  %v365 = vpack.c.bf16 %v301, %v301
  %v366 = vpack.c.bf16 %v302, %v302
  %v367 = vpack.c.bf16 %v303, %v303
  %v368 = vpack.c.bf16 %v304, %v304
  %v369 = vpack.c.bf16 %v305, %v305
  %v370 = vpack.c.bf16 %v306, %v306
  %v371 = vpack.c.bf16 %v307, %v307
  %v372 = vpack.c.bf16 %v308, %v308
  %v373 = vpack.c.bf16 %v309, %v309
  %v374 = vpack.c.bf16 %v310, %v310
  %v375 = vpack.c.bf16 %v311, %v311
  %v376 = vpack.c.bf16 %v312, %v312
  %v377 = vpack.c.bf16 %v313, %v313
  %v378 = vpack.c.bf16 %v314, %v314
  %v379 = vpack.c.bf16 %v315, %v315
  %v380 = vpack.c.bf16 %v316, %v316
  %v381 = vpack.c.bf16 %v317, %v317
  %v382 = vpack.c.bf16 %v318, %v318
  %v383 = vpack.c.bf16 %v319, %v319
  %v384 = vpack.c.bf16 %v320, %v320
  %v385 = vpack.c.bf16 %v321, %v321
  %v386 = vpack.c.bf16 %v322, %v322
  %v387 = vpack.c.bf16 %v323, %v323
  %v388 = vpack.c.bf16 %v324, %v324
  %v389 = vpack.c.bf16 %v325, %v325
  %v390 = vpack.c.bf16 %v326, %v326
  %v391 = vpack.c.bf16 %v327, %v327
  %v392 = vpack.c.bf16 %v328, %v328
  %v393 = vpack.c.bf16 %v329, %v329
  %v394 = vpack.c.bf16 %v330, %v330
  %v395 = vpack.c.bf16 %v331, %v331
  %v396 = vpack.c.bf16 %v332, %v332
  %v397 = vpack.c.bf16 %v333, %v333
  %v398 = vpack.c.bf16 %v334, %v334
  %v399 = vpack.c.bf16 %v335, %v335
  %v400 = vpack.c.bf16 %v336, %v336
  %v401 = vpack.c.bf16 %v337, %v337
  %v402 = vpack.c.bf16 %v338, %v338
  %v403 = vpack.c.bf16 %v339, %v339
  %v404 = vpack.c.bf16 %v340, %v340
  %v405 = vpack.c.bf16 %v341, %v341
  %406 = vst [vmem:[%s3] sm:$0xf] %v342
  %407 = vst [vmem:[%s3 + $0x4] sm:$0xf] %v343
  %408 = vst [vmem:[%s3 + $0x8] sm:$0xf] %v344
  %409 = vst [vmem:[%s3 + $0xc] sm:$0xf] %v345
  %410 = vst [vmem:[%s3 + $0x10] sm:$0xf] %v346
  %411 = vst [vmem:[%s3 + $0x14] sm:$0xf] %v347
  %412 = vst [vmem:[%s3 + $0x18] sm:$0xf] %v348
  %413 = vst [vmem:[%s3 + $0x1c] sm:$0xf] %v349
  %414 = vst [vmem:[%s3 + $0x20] sm:$0xf] %v350
  %415 = vst [vmem:[%s3 + $0x24] sm:$0xf] %v351
  %416 = vst [vmem:[%s3 + $0x28] sm:$0xf] %v352
  %417 = vst [vmem:[%s3 + $0x2c] sm:$0xf] %v353
  %418 = vst [vmem:[%s3 + $0x30] sm:$0xf] %v354
  %419 = vst [vmem:[%s3 + $0x34] sm:$0xf] %v355
  %420 = vst [vmem:[%s3 + $0x38] sm:$0xf] %v356
  %421 = vst [vmem:[%s3 + $0x3c] sm:$0xf] %v357
  %422 = vst [vmem:[%s3 + $0x40] sm:$0xf] %v358
  %423 = vst [vmem:[%s3 + $0x44] sm:$0xf] %v359
  %424 = vst [vmem:[%s3 + $0x48] sm:$0xf] %v360
  %425 = vst [vmem:[%s3 + $0x4c] sm:$0xf] %v361
  %426 = vst [vmem:[%s3 + $0x50] sm:$0xf] %v362
  %427 = vst [vmem:[%s3 + $0x54] sm:$0xf] %v363
  %428 = vst [vmem:[%s3 + $0x58] sm:$0xf] %v364
  %429 = vst [vmem:[%s3 + $0x5c] sm:$0xf] %v365
  %430 = vst [vmem:[%s3 + $0x60] sm:$0xf] %v366
  %431 = vst [vmem:[%s3 + $0x64] sm:$0xf] %v367
  %432 = vst [vmem:[%s3 + $0x68] sm:$0xf] %v368
  %433 = vst [vmem:[%s3 + $0x6c] sm:$0xf] %v369
  %434 = vst [vmem:[%s3 + $0x70] sm:$0xf] %v370
  %435 = vst [vmem:[%s3 + $0x74] sm:$0xf] %v371
  %436 = vst [vmem:[%s3 + $0x78] sm:$0xf] %v372
  %437 = vst [vmem:[%s3 + $0x7c] sm:$0xf] %v373
  %438 = vst [vmem:[%s3 + $0x80] sm:$0xf] %v374
  %439 = vst [vmem:[%s3 + $0x84] sm:$0xf] %v375
  %440 = vst [vmem:[%s3 + $0x88] sm:$0xf] %v376
  %441 = vst [vmem:[%s3 + $0x8c] sm:$0xf] %v377
  %442 = vst [vmem:[%s3 + $0x90] sm:$0xf] %v378
  %443 = vst [vmem:[%s3 + $0x94] sm:$0xf] %v379
  %444 = vst [vmem:[%s3 + $0x98] sm:$0xf] %v380
  %445 = vst [vmem:[%s3 + $0x9c] sm:$0xf] %v381
  %446 = vst [vmem:[%s3 + $0xa0] sm:$0xf] %v382
  %447 = vst [vmem:[%s3 + $0xa4] sm:$0xf] %v383
  %448 = vst [vmem:[%s3 + $0xa8] sm:$0xf] %v384
  %449 = vst [vmem:[%s3 + $0xac] sm:$0xf] %v385
  %450 = vst [vmem:[%s3 + $0xb0] sm:$0xf] %v386
  %451 = vst [vmem:[%s3 + $0xb4] sm:$0xf] %v387
  %452 = vst [vmem:[%s3 + $0xb8] sm:$0xf] %v388
  %453 = vst [vmem:[%s3 + $0xbc] sm:$0xf] %v389
  %454 = vst [vmem:[%s3 + $0xc0] sm:$0xf] %v390
  %455 = vst [vmem:[%s3 + $0xc4] sm:$0xf] %v391
  %456 = vst [vmem:[%s3 + $0xc8] sm:$0xf] %v392
  %457 = vst [vmem:[%s3 + $0xcc] sm:$0xf] %v393
  %458 = vst [vmem:[%s3 + $0xd0] sm:$0xf] %v394
  %459 = vst [vmem:[%s3 + $0xd4] sm:$0xf] %v395
  %460 = vst [vmem:[%s3 + $0xd8] sm:$0xf] %v396
  %461 = vst [vmem:[%s3 + $0xdc] sm:$0xf] %v397
  %462 = vst [vmem:[%s3 + $0xe0] sm:$0xf] %v398
  %463 = vst [vmem:[%s3 + $0xe4] sm:$0xf] %v399
  %464 = vst [vmem:[%s3 + $0xe8] sm:$0xf] %v400
  %465 = vst [vmem:[%s3 + $0xec] sm:$0xf] %v401
  %466 = vst [vmem:[%s3 + $0xf0] sm:$0xf] %v402
  %467 = vst [vmem:[%s3 + $0xf4] sm:$0xf] %v403
  %468 = vst [vmem:[%s3 + $0xf8] sm:$0xf] %v404
  %469 = vst [vmem:[%s3 + $0xfc] sm:$0xf] %v405
  // Predicated region
  $region14: #{_lambda_.71} parent=0 // pred_check
    _
  $region15: #{_lambda_.71} parent=0 // pred_check_branch
    %471 = sbr.rel (0) target = $region17
  $region16: #{_lambda_.71} parent=0 // pred_region
    _
  $region17: #{_lambda_.71} parent=0 // pred_fallthru
    _
  // Predicated region
  $region18: #{_lambda_.71} parent=0 // pred_check
    _
  $region19: #{_lambda_.71} parent=0 // pred_check_branch
    %473 = sbr.rel (0) target = $region21
  $region20: #{_lambda_.71} parent=0 // pred_region
    _
  $region21: #{_lambda_.71} parent=0 // pred_fallthru
    _

</llo_original>
